<compile_context>
chip_gen: v7x
topology: tpu7x:2x2x1
jax: 0.10.0
libtpu: 0.0.40
codegen_flags: <defaults>
</compile_context>

<pallas_src>
import jax
import jax.numpy as jnp
from jax.experimental import pallas as pl
from jax.experimental.pallas import tpu as pltpu


# Channel plan of the ResNet-lite backbone: layer1..layer4, then 10 classes.
_CHANNELS = [(4, 8), (8, 16), (16, 32), (32, 32)]
_NUM_CLASSES = 10
_C4 = _CHANNELS[-1][1]

# The halo / im2col scratch capacity is _C4 channels; the plan must fit.
assert _CHANNELS[0][0] <= _C4
assert all(ci <= _C4 and co <= _C4 for ci, co in _CHANNELS)
assert all(_CHANNELS[i][1] == _CHANNELS[i + 1][0] for i in range(len(_CHANNELS) - 1))


# ----------------------------------------------------------------------------
# Fused kernel: 4x (3x3 conv + ReLU) -> forward-hook output -> GAP + FC.
# ----------------------------------------------------------------------------
def _gradcam_fused_kernel(x_ref, w1_ref, b1_ref, w2_ref, b2_ref, w3_ref, b3_ref,
                          w4_ref, b4_ref, wfc_ref, bfc_ref,
                          logits_ref, sel_ref, pad_ref, col_ref):
    # x_ref   : (TB, H, W, cin0) f32 NHWC input block (TB images per grid step)
    # pad_ref : (TB, H+2, W+2, C4) f32 halo scratch shared by all layers
    # col_ref : (TB*H*W, 9*C4) f32 persistent im2col staging scratch
    TB, H, W, cin0 = x_ref.shape
    C4 = pad_ref.shape[3]
    HW = H * W
    M = TB * HW

    # "same" padding: zero only the halo border (2 rows + 2 columns, all C4
    # channels); interiors are fully overwritten below.  Done every step (not
    # gated on program_id) so each core's private scratch is initialized.
    pad_ref[:, 0:1, :, :] = jnp.zeros((TB, 1, W + 2, C4), jnp.float32)
    pad_ref[:, H + 1:H + 2, :, :] = jnp.zeros((TB, 1, W + 2, C4), jnp.float32)
    pad_ref[:, :, 0:1, :] = jnp.zeros((TB, H + 2, 1, C4), jnp.float32)
    pad_ref[:, :, W + 1:W + 2, :] = jnp.zeros((TB, H + 2, 1, C4), jnp.float32)

    # Layer-1 input into the halo interior.
    pad_ref[:, 1:H + 1, 1:W + 1, :cin0] = x_ref[...]

    conv_refs = ((w1_ref, b1_ref), (w2_ref, b2_ref),
                 (w3_ref, b3_ref), (w4_ref, b4_ref))
    y = None
    for li, ((cin, cout), (w_ref, b_ref)) in enumerate(zip(_CHANNELS, conv_refs)):
        # Stage im2col columns into the persistent scratch: 9 plain tap stores
        # (tap-major (dy, dx, cin) lane order, matching the weight reshape).
        for dy in range(3):
            for dx in range(3):
                t = dy * 3 + dx
                col_ref[:, t * cin:(t + 1) * cin] = (
                    pad_ref[:, dy:dy + H, dx:dx + W, :cin].reshape(M, cin))
        # One MXU matmul per layer at M = TB*H*W, f32 operands / f32 acc.
        y = jax.lax.dot_general(
            col_ref[:, :9 * cin], w_ref[...],
            dimension_numbers=(((1,), (0,)), ((), ())),
            preferred_element_type=jnp.float32)               # (M, cout) f32
        y = jnp.maximum(y + b_ref[...], 0.0)
        if li < len(_CHANNELS) - 1:      # layer4 output feeds the head only
            pad_ref[:, 1:H + 1, 1:W + 1, :cout] = y.reshape(TB, H, W, cout)

    # Forward hook: layer4 activations, lane-dense (last dim = H*W) so the
    # writeback is an unmasked full-lane store.
    for t in range(TB):
        y_t = y[t * HW:(t + 1) * HW, :]                       # (HW, C4) f32
        sel_ref[t:t + 1, :, :] = y_t.T.reshape(1, C4, HW).astype(sel_ref.dtype)

    # Head: GAP first, then the FC on the pooled (TB, C4) features.
    if TB == 1:
        pooled = jnp.mean(y, axis=0, keepdims=True)           # (1, C4)
    else:
        pooled = jnp.mean(y.reshape(TB, HW, C4), axis=1)      # (TB, C4)
    logits = jax.lax.dot_general(
        pooled, wfc_ref[...],
        dimension_numbers=(((1,), (0,)), ((), ())),
        preferred_element_type=jnp.float32) + bfc_ref[...]    # (TB, 10)
    logits_ref[...] = logits.reshape(logits_ref.shape).astype(logits_ref.dtype)


def _full_spec(shape):
    ndim = len(shape)
    return pl.BlockSpec(shape, lambda b, _n=ndim: (0,) * _n)


def _pick_tb(batch):
    """Images per grid step: largest divisor of batch that keeps >= 2 grid
    steps (so both v7x TensorCores get work) and bounds VMEM (~0.4 MB/image)."""
    cap = max(1, min(8, batch // 2))
    for tb in range(cap, 0, -1):
        if batch % tb == 0:
            return tb
    return 1


# ----------------------------------------------------------------------------
# GradCamModel equivalent: backbone forward with a "forward hook" on layer4.
# ----------------------------------------------------------------------------
def init_params(key):
    """Deterministic synthetic parameters (ResNet-lite backbone + classifier)."""
    keys = jax.random.split(key, 2 * len(_CHANNELS) + 2)
    layers = []
    for i, (cin, cout) in enumerate(_CHANNELS):
        w = 0.1 * jax.random.normal(keys[2 * i], (3, 3, cin, cout), jnp.float32)
        b = 0.01 * jax.random.normal(keys[2 * i + 1], (cout,), jnp.float32)
        layers.append((w, b))
    w_fc = 0.1 * jax.random.normal(keys[-2], (_CHANNELS[-1][1], _NUM_CLASSES),
                                   jnp.float32)
    b_fc = 0.01 * jax.random.normal(keys[-1], (_NUM_CLASSES,), jnp.float32)
    return {"layers": layers, "fc": (w_fc, b_fc)}


@jax.jit
def gradcam_forward(params, x_nchw):
    """Mirrors GradCamModel.forward: returns (out, selected_out).

    x_nchw       : (B, 4, H, W) float32, NCHW like the PyTorch module.
    out          : (B, 10) classifier logits.
    selected_out : (B, 32, H, W) layer4 activations (what the forward hook
                   would capture), NCHW like PyTorch.
    """
    B, cin0, H, W = x_nchw.shape
    C4 = _C4
    HW = H * W
    TB = _pick_tb(B)

    # Layout glue only (4 KB / image).
    x_nhwc = jnp.transpose(x_nchw, (0, 2, 3, 1))

    # Flatten conv weights to (9*Cin, Cout) with tap-major (dy, dx, cin) order
    # (matches the im2col lane order).  All operands stay f32.
    conv_args = []
    for (w, b) in params["layers"]:
        kin, kout = w.shape[2], w.shape[3]
        conv_args.append(w.reshape(9 * kin, kout).astype(jnp.float32))
        conv_args.append(b.reshape(1, kout).astype(jnp.float32))
    w_fc, b_fc = params["fc"]
    w_fc = w_fc.astype(jnp.float32)
    b_fc = b_fc.reshape(1, _NUM_CLASSES).astype(jnp.float32)

    in_specs = [pl.BlockSpec((TB, H, W, cin0), lambda b: (b, 0, 0, 0))]
    for a in conv_args:
        in_specs.append(_full_spec(a.shape))
    in_specs.append(_full_spec(w_fc.shape))
    in_specs.append(_full_spec(b_fc.shape))

    out_shape = (
        jax.ShapeDtypeStruct((B // TB, TB, _NUM_CLASSES), jnp.float32),  # logits
        jax.ShapeDtypeStruct((B, C4, HW), jnp.float32),                  # layer4 act
    )
    out_specs = [
        pl.BlockSpec((1, TB, _NUM_CLASSES), lambda b: (b, 0, 0)),
        pl.BlockSpec((TB, C4, HW), lambda b: (b, 0, 0)),
    ]

    logits, sel = pl.pallas_call(
        _gradcam_fused_kernel,
        out_shape=out_shape,
        grid_spec=pltpu.PrefetchScalarGridSpec(
            num_scalar_prefetch=0,
            grid=(B // TB,),
            in_specs=in_specs,
            out_specs=out_specs,
            scratch_shapes=[
                pltpu.VMEM((TB, H + 2, W + 2, C4), jnp.float32),   # halo scratch
                pltpu.VMEM((TB * HW, 9 * C4), jnp.float32),        # im2col scratch
            ],
        ),
        compiler_params=pltpu.CompilerParams(
            dimension_semantics=("parallel",)),
    )(x_nhwc, *conv_args, w_fc, b_fc)

    out = logits.reshape(B, _NUM_CLASSES)
    # Kernel already emitted (B, C4, H*W): NCHW is a pure reshape, no transpose.
    selected_out = sel.reshape(B, C4, H, W)
    return out, selected_out


# ----------------------------------------------------------------------------
# Pure-JAX reference (f32) for a correctness sanity check.
# ----------------------------------------------------------------------------
def _reference_forward(params, x_nchw):
    h = jnp.transpose(x_nchw, (0, 2, 3, 1))
    sel = None
    for i, (w, b) in enumerate(params["layers"]):
        h = jax.lax.conv_general_dilated(
            h, w, window_strides=(1, 1), padding="SAME",
            dimension_numbers=("NHWC", "HWIO", "NHWC"))
        h = jnp.maximum(h + b, 0.0)
        if i == len(params["layers"]) - 1:
            sel = h
    w_fc, b_fc = params["fc"]
    pooled = jnp.mean(h, axis=(1, 2))
    out = pooled @ w_fc + b_fc
    return out, jnp.transpose(sel, (0, 3, 1, 2))


if __name__ == "__main__":
    key = jax.random.PRNGKey(0)
    pkey, xkey = jax.random.split(key)
    params = init_params(pkey)

    # Small NCHW input consistent with the module's conv backbone.
    x = jax.random.normal(xkey, (2, 4, 16, 16), jnp.float32)

    out, selected_out = gradcam_forward(params, x)
    jax.block_until_ready((out, selected_out))

    assert out.shape == (2, 10)
    assert selected_out.shape == (2, 32, 16, 16)

    # Sanity check vs. a pure-JAX f32 reference.
    ref_out, ref_sel = _reference_forward(params, x)
    assert bool(jnp.all(jnp.isfinite(out))) and bool(jnp.all(jnp.isfinite(selected_out)))
    assert bool(jnp.allclose(out, ref_out, rtol=5e-2, atol=5e-2))
    assert bool(jnp.allclose(selected_out, ref_sel, rtol=1e-1, atol=1e-1))

    print("KERNEL_OK")
</pallas_src>

<mosaic_0001>
module attributes {stable_mosaic.version = 11 : i64} {
  func.func @_gradcam_fused_kernel(%arg0: i32, %arg1: memref<1x16x16x4xf32, #tpu.memory_space<vmem>>, %arg2: memref<36x8xf32, #tpu.memory_space<vmem>>, %arg3: memref<1x8xf32, #tpu.memory_space<vmem>>, %arg4: memref<72x16xf32, #tpu.memory_space<vmem>>, %arg5: memref<1x16xf32, #tpu.memory_space<vmem>>, %arg6: memref<144x32xf32, #tpu.memory_space<vmem>>, %arg7: memref<1x32xf32, #tpu.memory_space<vmem>>, %arg8: memref<288x32xf32, #tpu.memory_space<vmem>>, %arg9: memref<1x32xf32, #tpu.memory_space<vmem>>, %arg10: memref<32x10xf32, #tpu.memory_space<vmem>>, %arg11: memref<1x10xf32, #tpu.memory_space<vmem>>, %arg12: memref<1x1x10xf32, #tpu.memory_space<vmem>>, %arg13: memref<1x32x256xf32, #tpu.memory_space<vmem>>, %arg14: memref<1x18x18x32xf32, #tpu.memory_space<vmem>>, %arg15: memref<256x288xf32, #tpu.memory_space<vmem>>) attributes {dimension_semantics = [#tpu.dimension_semantics<parallel>], iteration_bounds = array<i64: 2>, scalar_prefetch = 0 : i64, scratch_operands = 2 : i64, tpu.core_type = #tpu.core_type<tc>, window_params = [{transform_indices = @transform_0, window_bounds = array<i64: 1, 16, 16, 4>}, {pipeline_mode = #tpu.pipeline_mode<synchronous>, transform_indices = @transform_1, window_bounds = array<i64: 36, 8>}, {pipeline_mode = #tpu.pipeline_mode<synchronous>, transform_indices = @transform_2, window_bounds = array<i64: 1, 8>}, {pipeline_mode = #tpu.pipeline_mode<synchronous>, transform_indices = @transform_3, window_bounds = array<i64: 72, 16>}, {pipeline_mode = #tpu.pipeline_mode<synchronous>, transform_indices = @transform_4, window_bounds = array<i64: 1, 16>}, {pipeline_mode = #tpu.pipeline_mode<synchronous>, transform_indices = @transform_5, window_bounds = array<i64: 144, 32>}, {pipeline_mode = #tpu.pipeline_mode<synchronous>, transform_indices = @transform_6, window_bounds = array<i64: 1, 32>}, {pipeline_mode = #tpu.pipeline_mode<synchronous>, transform_indices = @transform_7, window_bounds = array<i64: 288, 32>}, {pipeline_mode = #tpu.pipeline_mode<synchronous>, transform_indices = @transform_8, window_bounds = array<i64: 1, 32>}, {pipeline_mode = #tpu.pipeline_mode<synchronous>, transform_indices = @transform_9, window_bounds = array<i64: 32, 10>}, {pipeline_mode = #tpu.pipeline_mode<synchronous>, transform_indices = @transform_10, window_bounds = array<i64: 1, 10>}, {transform_indices = @transform_11, window_bounds = array<i64: 1, 1, 10>}, {transform_indices = @transform_12, window_bounds = array<i64: 1, 32, 256>}]} {
    %cst = arith.constant 0.000000e+00 : f32
    %0 = vector.broadcast %cst : f32 to vector<1x1x18x32xf32>
    %c0 = arith.constant 0 : index
    %c0_0 = arith.constant 0 : index
    %c0_1 = arith.constant 0 : index
    %c0_2 = arith.constant 0 : index
    %1 = vector.load %arg14[%c0, %c0_0, %c0_1, %c0_2] : memref<1x18x18x32xf32, #tpu.memory_space<vmem>>, vector<1x1x18x32xf32>
    tpu.vector_store %arg14[%c0, %c0_0, %c0_1, %c0_2], %0 {strides = array<i32>} : memref<1x18x18x32xf32, #tpu.memory_space<vmem>>, vector<1x1x18x32xf32>,
    %cst_3 = arith.constant 0.000000e+00 : f32
    %2 = vector.broadcast %cst_3 : f32 to vector<1x1x18x32xf32>
    %c0_4 = arith.constant 0 : index
    %c17 = arith.constant 17 : index
    %c0_5 = arith.constant 0 : index
    %c0_6 = arith.constant 0 : index
    %3 = vector.load %arg14[%c0_4, %c17, %c0_5, %c0_6] : memref<1x18x18x32xf32, #tpu.memory_space<vmem>>, vector<1x1x18x32xf32>
    tpu.vector_store %arg14[%c0_4, %c17, %c0_5, %c0_6], %2 {strides = array<i32>} : memref<1x18x18x32xf32, #tpu.memory_space<vmem>>, vector<1x1x18x32xf32>,
    %cst_7 = arith.constant 0.000000e+00 : f32
    %4 = vector.broadcast %cst_7 : f32 to vector<1x18x1x32xf32>
    %c0_8 = arith.constant 0 : index
    %c0_9 = arith.constant 0 : index
    %c0_10 = arith.constant 0 : index
    %c0_11 = arith.constant 0 : index
    %5 = vector.load %arg14[%c0_8, %c0_9, %c0_10, %c0_11] : memref<1x18x18x32xf32, #tpu.memory_space<vmem>>, vector<1x18x1x32xf32>
    tpu.vector_store %arg14[%c0_8, %c0_9, %c0_10, %c0_11], %4 {strides = array<i32>} : memref<1x18x18x32xf32, #tpu.memory_space<vmem>>, vector<1x18x1x32xf32>,
    %cst_12 = arith.constant 0.000000e+00 : f32
    %6 = vector.broadcast %cst_12 : f32 to vector<1x18x1x32xf32>
    %c0_13 = arith.constant 0 : index
    %c0_14 = arith.constant 0 : index
    %c17_15 = arith.constant 17 : index
    %c0_16 = arith.constant 0 : index
    %7 = vector.load %arg14[%c0_13, %c0_14, %c17_15, %c0_16] : memref<1x18x18x32xf32, #tpu.memory_space<vmem>>, vector<1x18x1x32xf32>
    tpu.vector_store %arg14[%c0_13, %c0_14, %c17_15, %c0_16], %6 {strides = array<i32>} : memref<1x18x18x32xf32, #tpu.memory_space<vmem>>, vector<1x18x1x32xf32>,
    %c0_17 = arith.constant 0 : index
    %c0_18 = arith.constant 0 : index
    %c0_19 = arith.constant 0 : index
    %c0_20 = arith.constant 0 : index
    %8 = vector.load %arg1[%c0_17, %c0_18, %c0_19, %c0_20] : memref<1x16x16x4xf32, #tpu.memory_space<vmem>>, vector<1x16x16x4xf32>
    %c0_21 = arith.constant 0 : index
    %c1 = arith.constant 1 : index
    %c1_22 = arith.constant 1 : index
    %c0_23 = arith.constant 0 : index
    %9 = vector.load %arg14[%c0_21, %c1, %c1_22, %c0_23] : memref<1x18x18x32xf32, #tpu.memory_space<vmem>>, vector<1x16x16x4xf32>
    tpu.vector_store %arg14[%c0_21, %c1, %c1_22, %c0_23], %8 {strides = array<i32>} : memref<1x18x18x32xf32, #tpu.memory_space<vmem>>, vector<1x16x16x4xf32>,
    %c0_24 = arith.constant 0 : index
    %c0_25 = arith.constant 0 : index
    %c0_26 = arith.constant 0 : index
    %c0_27 = arith.constant 0 : index
    %10 = vector.load %arg14[%c0_24, %c0_25, %c0_26, %c0_27] : memref<1x18x18x32xf32, #tpu.memory_space<vmem>>, vector<1x16x16x4xf32>
    %11 = vector.shape_cast %10 : vector<1x16x16x4xf32> to vector<256x4xf32>
    %c0_28 = arith.constant 0 : index
    %c0_29 = arith.constant 0 : index
    %12 = vector.load %arg15[%c0_28, %c0_29] : memref<256x288xf32, #tpu.memory_space<vmem>>, vector<256x4xf32>
    tpu.vector_store %arg15[%c0_28, %c0_29], %11 {strides = array<i32>} : memref<256x288xf32, #tpu.memory_space<vmem>>, vector<256x4xf32>,
    %c0_30 = arith.constant 0 : index
    %c0_31 = arith.constant 0 : index
    %c1_32 = arith.constant 1 : index
    %c0_33 = arith.constant 0 : index
    %13 = vector.load %arg14[%c0_30, %c0_31, %c1_32, %c0_33] : memref<1x18x18x32xf32, #tpu.memory_space<vmem>>, vector<1x16x16x4xf32>
    %14 = vector.shape_cast %13 : vector<1x16x16x4xf32> to vector<256x4xf32>
    %c0_34 = arith.constant 0 : index
    %c4 = arith.constant 4 : index
    %15 = vector.load %arg15[%c0_34, %c4] : memref<256x288xf32, #tpu.memory_space<vmem>>, vector<256x4xf32>
    tpu.vector_store %arg15[%c0_34, %c4], %14 {strides = array<i32>} : memref<256x288xf32, #tpu.memory_space<vmem>>, vector<256x4xf32>,
    %c0_35 = arith.constant 0 : index
    %c0_36 = arith.constant 0 : index
    %c2 = arith.constant 2 : index
    %c0_37 = arith.constant 0 : index
    %16 = vector.load %arg14[%c0_35, %c0_36, %c2, %c0_37] : memref<1x18x18x32xf32, #tpu.memory_space<vmem>>, vector<1x16x16x4xf32>
    %17 = vector.shape_cast %16 : vector<1x16x16x4xf32> to vector<256x4xf32>
    %c0_38 = arith.constant 0 : index
    %c8 = arith.constant 8 : index
    %18 = vector.load %arg15[%c0_38, %c8] : memref<256x288xf32, #tpu.memory_space<vmem>>, vector<256x4xf32>
    tpu.vector_store %arg15[%c0_38, %c8], %17 {strides = array<i32>} : memref<256x288xf32, #tpu.memory_space<vmem>>, vector<256x4xf32>,
    %c0_39 = arith.constant 0 : index
    %c1_40 = arith.constant 1 : index
    %c0_41 = arith.constant 0 : index
    %c0_42 = arith.constant 0 : index
    %19 = vector.load %arg14[%c0_39, %c1_40, %c0_41, %c0_42] : memref<1x18x18x32xf32, #tpu.memory_space<vmem>>, vector<1x16x16x4xf32>
    %20 = vector.shape_cast %19 : vector<1x16x16x4xf32> to vector<256x4xf32>
    %c0_43 = arith.constant 0 : index
    %c12 = arith.constant 12 : index
    %21 = vector.load %arg15[%c0_43, %c12] : memref<256x288xf32, #tpu.memory_space<vmem>>, vector<256x4xf32>
    tpu.vector_store %arg15[%c0_43, %c12], %20 {strides = array<i32>} : memref<256x288xf32, #tpu.memory_space<vmem>>, vector<256x4xf32>,
    %c0_44 = arith.constant 0 : index
    %c1_45 = arith.constant 1 : index
    %c1_46 = arith.constant 1 : index
    %c0_47 = arith.constant 0 : index
    %22 = vector.load %arg14[%c0_44, %c1_45, %c1_46, %c0_47] : memref<1x18x18x32xf32, #tpu.memory_space<vmem>>, vector<1x16x16x4xf32>
    %23 = vector.shape_cast %22 : vector<1x16x16x4xf32> to vector<256x4xf32>
    %c0_48 = arith.constant 0 : index
    %c16 = arith.constant 16 : index
    %24 = vector.load %arg15[%c0_48, %c16] : memref<256x288xf32, #tpu.memory_space<vmem>>, vector<256x4xf32>
    tpu.vector_store %arg15[%c0_48, %c16], %23 {strides = array<i32>} : memref<256x288xf32, #tpu.memory_space<vmem>>, vector<256x4xf32>,
    %c0_49 = arith.constant 0 : index
    %c1_50 = arith.constant 1 : index
    %c2_51 = arith.constant 2 : index
    %c0_52 = arith.constant 0 : index
    %25 = vector.load %arg14[%c0_49, %c1_50, %c2_51, %c0_52] : memref<1x18x18x32xf32, #tpu.memory_space<vmem>>, vector<1x16x16x4xf32>
    %26 = vector.shape_cast %25 : vector<1x16x16x4xf32> to vector<256x4xf32>
    %c0_53 = arith.constant 0 : index
    %c20 = arith.constant 20 : index
    %27 = vector.load %arg15[%c0_53, %c20] : memref<256x288xf32, #tpu.memory_space<vmem>>, vector<256x4xf32>
    tpu.vector_store %arg15[%c0_53, %c20], %26 {strides = array<i32>} : memref<256x288xf32, #tpu.memory_space<vmem>>, vector<256x4xf32>,
    %c0_54 = arith.constant 0 : index
    %c2_55 = arith.constant 2 : index
    %c0_56 = arith.constant 0 : index
    %c0_57 = arith.constant 0 : index
    %28 = vector.load %arg14[%c0_54, %c2_55, %c0_56, %c0_57] : memref<1x18x18x32xf32, #tpu.memory_space<vmem>>, vector<1x16x16x4xf32>
    %29 = vector.shape_cast %28 : vector<1x16x16x4xf32> to vector<256x4xf32>
    %c0_58 = arith.constant 0 : index
    %c24 = arith.constant 24 : index
    %30 = vector.load %arg15[%c0_58, %c24] : memref<256x288xf32, #tpu.memory_space<vmem>>, vector<256x4xf32>
    tpu.vector_store %arg15[%c0_58, %c24], %29 {strides = array<i32>} : memref<256x288xf32, #tpu.memory_space<vmem>>, vector<256x4xf32>,
    %c0_59 = arith.constant 0 : index
    %c2_60 = arith.constant 2 : index
    %c1_61 = arith.constant 1 : index
    %c0_62 = arith.constant 0 : index
    %31 = vector.load %arg14[%c0_59, %c2_60, %c1_61, %c0_62] : memref<1x18x18x32xf32, #tpu.memory_space<vmem>>, vector<1x16x16x4xf32>
    %32 = vector.shape_cast %31 : vector<1x16x16x4xf32> to vector<256x4xf32>
    %c0_63 = arith.constant 0 : index
    %c28 = arith.constant 28 : index
    %33 = vector.load %arg15[%c0_63, %c28] : memref<256x288xf32, #tpu.memory_space<vmem>>, vector<256x4xf32>
    tpu.vector_store %arg15[%c0_63, %c28], %32 {strides = array<i32>} : memref<256x288xf32, #tpu.memory_space<vmem>>, vector<256x4xf32>,
    %c0_64 = arith.constant 0 : index
    %c2_65 = arith.constant 2 : index
    %c2_66 = arith.constant 2 : index
    %c0_67 = arith.constant 0 : index
    %34 = vector.load %arg14[%c0_64, %c2_65, %c2_66, %c0_67] : memref<1x18x18x32xf32, #tpu.memory_space<vmem>>, vector<1x16x16x4xf32>
    %35 = vector.shape_cast %34 : vector<1x16x16x4xf32> to vector<256x4xf32>
    %c0_68 = arith.constant 0 : index
    %c32 = arith.constant 32 : index
    %36 = vector.load %arg15[%c0_68, %c32] : memref<256x288xf32, #tpu.memory_space<vmem>>, vector<256x4xf32>
    tpu.vector_store %arg15[%c0_68, %c32], %35 {strides = array<i32>} : memref<256x288xf32, #tpu.memory_space<vmem>>, vector<256x4xf32>,
    %c0_69 = arith.constant 0 : index
    %c0_70 = arith.constant 0 : index
    %37 = vector.load %arg15[%c0_69, %c0_70] : memref<256x288xf32, #tpu.memory_space<vmem>>, vector<256x36xf32>
    %c0_71 = arith.constant 0 : index
    %c0_72 = arith.constant 0 : index
    %38 = vector.load %arg2[%c0_71, %c0_72] : memref<36x8xf32, #tpu.memory_space<vmem>>, vector<36x8xf32>
    %cst_73 = arith.constant dense<0.000000e+00> : vector<256x8xf32>
    %39 = tpu.matmul %37, %38, %cst_73 {dimension_numbers = #tpu.dot_dimension_numbers<[1], [0], [0], [1], [0, 0, 1, 1], [], []>} : vector<256x36xf32>, vector<36x8xf32>, vector<256x8xf32> -> vector<256x8xf32>
    %c0_74 = arith.constant 0 : index
    %c0_75 = arith.constant 0 : index
    %40 = vector.load %arg3[%c0_74, %c0_75] : memref<1x8xf32, #tpu.memory_space<vmem>>, vector<1x8xf32>
    %41 = vector.broadcast %40 : vector<1x8xf32> to vector<256x8xf32>
    %42 = arith.addf %39, %41 : vector<256x8xf32>
    %cst_76 = arith.constant 0.000000e+00 : f32
    %43 = vector.broadcast %cst_76 : f32 to vector<256x8xf32>
    %44 = arith.maximumf %42, %43 : vector<256x8xf32>
    %45 = vector.shape_cast %44 : vector<256x8xf32> to vector<1x16x16x8xf32>
    %c0_77 = arith.constant 0 : index
    %c1_78 = arith.constant 1 : index
    %c1_79 = arith.constant 1 : index
    %c0_80 = arith.constant 0 : index
    %46 = vector.load %arg14[%c0_77, %c1_78, %c1_79, %c0_80] : memref<1x18x18x32xf32, #tpu.memory_space<vmem>>, vector<1x16x16x8xf32>
    tpu.vector_store %arg14[%c0_77, %c1_78, %c1_79, %c0_80], %45 {strides = array<i32>} : memref<1x18x18x32xf32, #tpu.memory_space<vmem>>, vector<1x16x16x8xf32>,
    %c0_81 = arith.constant 0 : index
    %c0_82 = arith.constant 0 : index
    %c0_83 = arith.constant 0 : index
    %c0_84 = arith.constant 0 : index
    %47 = vector.load %arg14[%c0_81, %c0_82, %c0_83, %c0_84] : memref<1x18x18x32xf32, #tpu.memory_space<vmem>>, vector<1x16x16x8xf32>
    %48 = vector.shape_cast %47 : vector<1x16x16x8xf32> to vector<256x8xf32>
    %c0_85 = arith.constant 0 : index
    %c0_86 = arith.constant 0 : index
    %49 = vector.load %arg15[%c0_85, %c0_86] : memref<256x288xf32, #tpu.memory_space<vmem>>, vector<256x8xf32>
    tpu.vector_store %arg15[%c0_85, %c0_86], %48 {strides = array<i32>} : memref<256x288xf32, #tpu.memory_space<vmem>>, vector<256x8xf32>,
    %c0_87 = arith.constant 0 : index
    %c0_88 = arith.constant 0 : index
    %c1_89 = arith.constant 1 : index
    %c0_90 = arith.constant 0 : index
    %50 = vector.load %arg14[%c0_87, %c0_88, %c1_89, %c0_90] : memref<1x18x18x32xf32, #tpu.memory_space<vmem>>, vector<1x16x16x8xf32>
    %51 = vector.shape_cast %50 : vector<1x16x16x8xf32> to vector<256x8xf32>
    %c0_91 = arith.constant 0 : index
    %c8_92 = arith.constant 8 : index
    %52 = vector.load %arg15[%c0_91, %c8_92] : memref<256x288xf32, #tpu.memory_space<vmem>>, vector<256x8xf32>
    tpu.vector_store %arg15[%c0_91, %c8_92], %51 {strides = array<i32>} : memref<256x288xf32, #tpu.memory_space<vmem>>, vector<256x8xf32>,
    %c0_93 = arith.constant 0 : index
    %c0_94 = arith.constant 0 : index
    %c2_95 = arith.constant 2 : index
    %c0_96 = arith.constant 0 : index
    %53 = vector.load %arg14[%c0_93, %c0_94, %c2_95, %c0_96] : memref<1x18x18x32xf32, #tpu.memory_space<vmem>>, vector<1x16x16x8xf32>
    %54 = vector.shape_cast %53 : vector<1x16x16x8xf32> to vector<256x8xf32>
    %c0_97 = arith.constant 0 : index
    %c16_98 = arith.constant 16 : index
    %55 = vector.load %arg15[%c0_97, %c16_98] : memref<256x288xf32, #tpu.memory_space<vmem>>, vector<256x8xf32>
    tpu.vector_store %arg15[%c0_97, %c16_98], %54 {strides = array<i32>} : memref<256x288xf32, #tpu.memory_space<vmem>>, vector<256x8xf32>,
    %c0_99 = arith.constant 0 : index
    %c1_100 = arith.constant 1 : index
    %c0_101 = arith.constant 0 : index
    %c0_102 = arith.constant 0 : index
    %56 = vector.load %arg14[%c0_99, %c1_100, %c0_101, %c0_102] : memref<1x18x18x32xf32, #tpu.memory_space<vmem>>, vector<1x16x16x8xf32>
    %57 = vector.shape_cast %56 : vector<1x16x16x8xf32> to vector<256x8xf32>
    %c0_103 = arith.constant 0 : index
    %c24_104 = arith.constant 24 : index
    %58 = vector.load %arg15[%c0_103, %c24_104] : memref<256x288xf32, #tpu.memory_space<vmem>>, vector<256x8xf32>
    tpu.vector_store %arg15[%c0_103, %c24_104], %57 {strides = array<i32>} : memref<256x288xf32, #tpu.memory_space<vmem>>, vector<256x8xf32>,
    %c0_105 = arith.constant 0 : index
    %c1_106 = arith.constant 1 : index
    %c1_107 = arith.constant 1 : index
    %c0_108 = arith.constant 0 : index
    %59 = vector.load %arg14[%c0_105, %c1_106, %c1_107, %c0_108] : memref<1x18x18x32xf32, #tpu.memory_space<vmem>>, vector<1x16x16x8xf32>
    %60 = vector.shape_cast %59 : vector<1x16x16x8xf32> to vector<256x8xf32>
    %c0_109 = arith.constant 0 : index
    %c32_110 = arith.constant 32 : index
    %61 = vector.load %arg15[%c0_109, %c32_110] : memref<256x288xf32, #tpu.memory_space<vmem>>, vector<256x8xf32>
    tpu.vector_store %arg15[%c0_109, %c32_110], %60 {strides = array<i32>} : memref<256x288xf32, #tpu.memory_space<vmem>>, vector<256x8xf32>,
    %c0_111 = arith.constant 0 : index
    %c1_112 = arith.constant 1 : index
    %c2_113 = arith.constant 2 : index
    %c0_114 = arith.constant 0 : index
    %62 = vector.load %arg14[%c0_111, %c1_112, %c2_113, %c0_114] : memref<1x18x18x32xf32, #tpu.memory_space<vmem>>, vector<1x16x16x8xf32>
    %63 = vector.shape_cast %62 : vector<1x16x16x8xf32> to vector<256x8xf32>
    %c0_115 = arith.constant 0 : index
    %c40 = arith.constant 40 : index
    %64 = vector.load %arg15[%c0_115, %c40] : memref<256x288xf32, #tpu.memory_space<vmem>>, vector<256x8xf32>
    tpu.vector_store %arg15[%c0_115, %c40], %63 {strides = array<i32>} : memref<256x288xf32, #tpu.memory_space<vmem>>, vector<256x8xf32>,
    %c0_116 = arith.constant 0 : index
    %c2_117 = arith.constant 2 : index
    %c0_118 = arith.constant 0 : index
    %c0_119 = arith.constant 0 : index
    %65 = vector.load %arg14[%c0_116, %c2_117, %c0_118, %c0_119] : memref<1x18x18x32xf32, #tpu.memory_space<vmem>>, vector<1x16x16x8xf32>
    %66 = vector.shape_cast %65 : vector<1x16x16x8xf32> to vector<256x8xf32>
    %c0_120 = arith.constant 0 : index
    %c48 = arith.constant 48 : index
    %67 = vector.load %arg15[%c0_120, %c48] : memref<256x288xf32, #tpu.memory_space<vmem>>, vector<256x8xf32>
    tpu.vector_store %arg15[%c0_120, %c48], %66 {strides = array<i32>} : memref<256x288xf32, #tpu.memory_space<vmem>>, vector<256x8xf32>,
    %c0_121 = arith.constant 0 : index
    %c2_122 = arith.constant 2 : index
    %c1_123 = arith.constant 1 : index
    %c0_124 = arith.constant 0 : index
    %68 = vector.load %arg14[%c0_121, %c2_122, %c1_123, %c0_124] : memref<1x18x18x32xf32, #tpu.memory_space<vmem>>, vector<1x16x16x8xf32>
    %69 = vector.shape_cast %68 : vector<1x16x16x8xf32> to vector<256x8xf32>
    %c0_125 = arith.constant 0 : index
    %c56 = arith.constant 56 : index
    %70 = vector.load %arg15[%c0_125, %c56] : memref<256x288xf32, #tpu.memory_space<vmem>>, vector<256x8xf32>
    tpu.vector_store %arg15[%c0_125, %c56], %69 {strides = array<i32>} : memref<256x288xf32, #tpu.memory_space<vmem>>, vector<256x8xf32>,
    %c0_126 = arith.constant 0 : index
    %c2_127 = arith.constant 2 : index
    %c2_128 = arith.constant 2 : index
    %c0_129 = arith.constant 0 : index
    %71 = vector.load %arg14[%c0_126, %c2_127, %c2_128, %c0_129] : memref<1x18x18x32xf32, #tpu.memory_space<vmem>>, vector<1x16x16x8xf32>
    %72 = vector.shape_cast %71 : vector<1x16x16x8xf32> to vector<256x8xf32>
    %c0_130 = arith.constant 0 : index
    %c64 = arith.constant 64 : index
    %73 = vector.load %arg15[%c0_130, %c64] : memref<256x288xf32, #tpu.memory_space<vmem>>, vector<256x8xf32>
    tpu.vector_store %arg15[%c0_130, %c64], %72 {strides = array<i32>} : memref<256x288xf32, #tpu.memory_space<vmem>>, vector<256x8xf32>,
    %c0_131 = arith.constant 0 : index
    %c0_132 = arith.constant 0 : index
    %74 = vector.load %arg15[%c0_131, %c0_132] : memref<256x288xf32, #tpu.memory_space<vmem>>, vector<256x72xf32>
    %c0_133 = arith.constant 0 : index
    %c0_134 = arith.constant 0 : index
    %75 = vector.load %arg4[%c0_133, %c0_134] : memref<72x16xf32, #tpu.memory_space<vmem>>, vector<72x16xf32>
    %cst_135 = arith.constant dense<0.000000e+00> : vector<256x16xf32>
    %76 = tpu.matmul %74, %75, %cst_135 {dimension_numbers = #tpu.dot_dimension_numbers<[1], [0], [0], [1], [0, 0, 1, 1], [], []>} : vector<256x72xf32>, vector<72x16xf32>, vector<256x16xf32> -> vector<256x16xf32>
    %c0_136 = arith.constant 0 : index
    %c0_137 = arith.constant 0 : index
    %77 = vector.load %arg5[%c0_136, %c0_137] : memref<1x16xf32, #tpu.memory_space<vmem>>, vector<1x16xf32>
    %78 = vector.broadcast %77 : vector<1x16xf32> to vector<256x16xf32>
    %79 = arith.addf %76, %78 : vector<256x16xf32>
    %cst_138 = arith.constant 0.000000e+00 : f32
    %80 = vector.broadcast %cst_138 : f32 to vector<256x16xf32>
    %81 = arith.maximumf %79, %80 : vector<256x16xf32>
    %82 = vector.shape_cast %81 : vector<256x16xf32> to vector<1x16x16x16xf32>
    %c0_139 = arith.constant 0 : index
    %c1_140 = arith.constant 1 : index
    %c1_141 = arith.constant 1 : index
    %c0_142 = arith.constant 0 : index
    %83 = vector.load %arg14[%c0_139, %c1_140, %c1_141, %c0_142] : memref<1x18x18x32xf32, #tpu.memory_space<vmem>>, vector<1x16x16x16xf32>
    tpu.vector_store %arg14[%c0_139, %c1_140, %c1_141, %c0_142], %82 {strides = array<i32>} : memref<1x18x18x32xf32, #tpu.memory_space<vmem>>, vector<1x16x16x16xf32>,
    %c0_143 = arith.constant 0 : index
    %c0_144 = arith.constant 0 : index
    %c0_145 = arith.constant 0 : index
    %c0_146 = arith.constant 0 : index
    %84 = vector.load %arg14[%c0_143, %c0_144, %c0_145, %c0_146] : memref<1x18x18x32xf32, #tpu.memory_space<vmem>>, vector<1x16x16x16xf32>
    %85 = vector.shape_cast %84 : vector<1x16x16x16xf32> to vector<256x16xf32>
    %c0_147 = arith.constant 0 : index
    %c0_148 = arith.constant 0 : index
    %86 = vector.load %arg15[%c0_147, %c0_148] : memref<256x288xf32, #tpu.memory_space<vmem>>, vector<256x16xf32>
    tpu.vector_store %arg15[%c0_147, %c0_148], %85 {strides = array<i32>} : memref<256x288xf32, #tpu.memory_space<vmem>>, vector<256x16xf32>,
    %c0_149 = arith.constant 0 : index
    %c0_150 = arith.constant 0 : index
    %c1_151 = arith.constant 1 : index
    %c0_152 = arith.constant 0 : index
    %87 = vector.load %arg14[%c0_149, %c0_150, %c1_151, %c0_152] : memref<1x18x18x32xf32, #tpu.memory_space<vmem>>, vector<1x16x16x16xf32>
    %88 = vector.shape_cast %87 : vector<1x16x16x16xf32> to vector<256x16xf32>
    %c0_153 = arith.constant 0 : index
    %c16_154 = arith.constant 16 : index
    %89 = vector.load %arg15[%c0_153, %c16_154] : memref<256x288xf32, #tpu.memory_space<vmem>>, vector<256x16xf32>
    tpu.vector_store %arg15[%c0_153, %c16_154], %88 {strides = array<i32>} : memref<256x288xf32, #tpu.memory_space<vmem>>, vector<256x16xf32>,
    %c0_155 = arith.constant 0 : index
    %c0_156 = arith.constant 0 : index
    %c2_157 = arith.constant 2 : index
    %c0_158 = arith.constant 0 : index
    %90 = vector.load %arg14[%c0_155, %c0_156, %c2_157, %c0_158] : memref<1x18x18x32xf32, #tpu.memory_space<vmem>>, vector<1x16x16x16xf32>
    %91 = vector.shape_cast %90 : vector<1x16x16x16xf32> to vector<256x16xf32>
    %c0_159 = arith.constant 0 : index
    %c32_160 = arith.constant 32 : index
    %92 = vector.load %arg15[%c0_159, %c32_160] : memref<256x288xf32, #tpu.memory_space<vmem>>, vector<256x16xf32>
    tpu.vector_store %arg15[%c0_159, %c32_160], %91 {strides = array<i32>} : memref<256x288xf32, #tpu.memory_space<vmem>>, vector<256x16xf32>,
    %c0_161 = arith.constant 0 : index
    %c1_162 = arith.constant 1 : index
    %c0_163 = arith.constant 0 : index
    %c0_164 = arith.constant 0 : index
    %93 = vector.load %arg14[%c0_161, %c1_162, %c0_163, %c0_164] : memref<1x18x18x32xf32, #tpu.memory_space<vmem>>, vector<1x16x16x16xf32>
    %94 = vector.shape_cast %93 : vector<1x16x16x16xf32> to vector<256x16xf32>
    %c0_165 = arith.constant 0 : index
    %c48_166 = arith.constant 48 : index
    %95 = vector.load %arg15[%c0_165, %c48_166] : memref<256x288xf32, #tpu.memory_space<vmem>>, vector<256x16xf32>
    tpu.vector_store %arg15[%c0_165, %c48_166], %94 {strides = array<i32>} : memref<256x288xf32, #tpu.memory_space<vmem>>, vector<256x16xf32>,
    %c0_167 = arith.constant 0 : index
    %c1_168 = arith.constant 1 : index
    %c1_169 = arith.constant 1 : index
    %c0_170 = arith.constant 0 : index
    %96 = vector.load %arg14[%c0_167, %c1_168, %c1_169, %c0_170] : memref<1x18x18x32xf32, #tpu.memory_space<vmem>>, vector<1x16x16x16xf32>
    %97 = vector.shape_cast %96 : vector<1x16x16x16xf32> to vector<256x16xf32>
    %c0_171 = arith.constant 0 : index
    %c64_172 = arith.constant 64 : index
    %98 = vector.load %arg15[%c0_171, %c64_172] : memref<256x288xf32, #tpu.memory_space<vmem>>, vector<256x16xf32>
    tpu.vector_store %arg15[%c0_171, %c64_172], %97 {strides = array<i32>} : memref<256x288xf32, #tpu.memory_space<vmem>>, vector<256x16xf32>,
    %c0_173 = arith.constant 0 : index
    %c1_174 = arith.constant 1 : index
    %c2_175 = arith.constant 2 : index
    %c0_176 = arith.constant 0 : index
    %99 = vector.load %arg14[%c0_173, %c1_174, %c2_175, %c0_176] : memref<1x18x18x32xf32, #tpu.memory_space<vmem>>, vector<1x16x16x16xf32>
    %100 = vector.shape_cast %99 : vector<1x16x16x16xf32> to vector<256x16xf32>
    %c0_177 = arith.constant 0 : index
    %c80 = arith.constant 80 : index
    %101 = vector.load %arg15[%c0_177, %c80] : memref<256x288xf32, #tpu.memory_space<vmem>>, vector<256x16xf32>
    tpu.vector_store %arg15[%c0_177, %c80], %100 {strides = array<i32>} : memref<256x288xf32, #tpu.memory_space<vmem>>, vector<256x16xf32>,
    %c0_178 = arith.constant 0 : index
    %c2_179 = arith.constant 2 : index
    %c0_180 = arith.constant 0 : index
    %c0_181 = arith.constant 0 : index
    %102 = vector.load %arg14[%c0_178, %c2_179, %c0_180, %c0_181] : memref<1x18x18x32xf32, #tpu.memory_space<vmem>>, vector<1x16x16x16xf32>
    %103 = vector.shape_cast %102 : vector<1x16x16x16xf32> to vector<256x16xf32>
    %c0_182 = arith.constant 0 : index
    %c96 = arith.constant 96 : index
    %104 = vector.load %arg15[%c0_182, %c96] : memref<256x288xf32, #tpu.memory_space<vmem>>, vector<256x16xf32>
    tpu.vector_store %arg15[%c0_182, %c96], %103 {strides = array<i32>} : memref<256x288xf32, #tpu.memory_space<vmem>>, vector<256x16xf32>,
    %c0_183 = arith.constant 0 : index
    %c2_184 = arith.constant 2 : index
    %c1_185 = arith.constant 1 : index
    %c0_186 = arith.constant 0 : index
    %105 = vector.load %arg14[%c0_183, %c2_184, %c1_185, %c0_186] : memref<1x18x18x32xf32, #tpu.memory_space<vmem>>, vector<1x16x16x16xf32>
    %106 = vector.shape_cast %105 : vector<1x16x16x16xf32> to vector<256x16xf32>
    %c0_187 = arith.constant 0 : index
    %c112 = arith.constant 112 : index
    %107 = vector.load %arg15[%c0_187, %c112] : memref<256x288xf32, #tpu.memory_space<vmem>>, vector<256x16xf32>
    tpu.vector_store %arg15[%c0_187, %c112], %106 {strides = array<i32>} : memref<256x288xf32, #tpu.memory_space<vmem>>, vector<256x16xf32>,
    %c0_188 = arith.constant 0 : index
    %c2_189 = arith.constant 2 : index
    %c2_190 = arith.constant 2 : index
    %c0_191 = arith.constant 0 : index
    %108 = vector.load %arg14[%c0_188, %c2_189, %c2_190, %c0_191] : memref<1x18x18x32xf32, #tpu.memory_space<vmem>>, vector<1x16x16x16xf32>
    %109 = vector.shape_cast %108 : vector<1x16x16x16xf32> to vector<256x16xf32>
    %c0_192 = arith.constant 0 : index
    %c128 = arith.constant 128 : index
    %110 = vector.load %arg15[%c0_192, %c128] : memref<256x288xf32, #tpu.memory_space<vmem>>, vector<256x16xf32>
    tpu.vector_store %arg15[%c0_192, %c128], %109 {strides = array<i32>} : memref<256x288xf32, #tpu.memory_space<vmem>>, vector<256x16xf32>,
    %c0_193 = arith.constant 0 : index
    %c0_194 = arith.constant 0 : index
    %111 = vector.load %arg15[%c0_193, %c0_194] : memref<256x288xf32, #tpu.memory_space<vmem>>, vector<256x144xf32>
    %c0_195 = arith.constant 0 : index
    %c0_196 = arith.constant 0 : index
    %112 = vector.load %arg6[%c0_195, %c0_196] : memref<144x32xf32, #tpu.memory_space<vmem>>, vector<144x32xf32>
    %cst_197 = arith.constant dense<0.000000e+00> : vector<256x32xf32>
    %113 = tpu.matmul %111, %112, %cst_197 {dimension_numbers = #tpu.dot_dimension_numbers<[1], [0], [0], [1], [0, 0, 1, 1], [], []>} : vector<256x144xf32>, vector<144x32xf32>, vector<256x32xf32> -> vector<256x32xf32>
    %c0_198 = arith.constant 0 : index
    %c0_199 = arith.constant 0 : index
    %114 = vector.load %arg7[%c0_198, %c0_199] : memref<1x32xf32, #tpu.memory_space<vmem>>, vector<1x32xf32>
    %115 = vector.broadcast %114 : vector<1x32xf32> to vector<256x32xf32>
    %116 = arith.addf %113, %115 : vector<256x32xf32>
    %cst_200 = arith.constant 0.000000e+00 : f32
    %117 = vector.broadcast %cst_200 : f32 to vector<256x32xf32>
    %118 = arith.maximumf %116, %117 : vector<256x32xf32>
    %119 = vector.shape_cast %118 : vector<256x32xf32> to vector<1x16x16x32xf32>
    %c0_201 = arith.constant 0 : index
    %c1_202 = arith.constant 1 : index
    %c1_203 = arith.constant 1 : index
    %c0_204 = arith.constant 0 : index
    %120 = vector.load %arg14[%c0_201, %c1_202, %c1_203, %c0_204] : memref<1x18x18x32xf32, #tpu.memory_space<vmem>>, vector<1x16x16x32xf32>
    tpu.vector_store %arg14[%c0_201, %c1_202, %c1_203, %c0_204], %119 {strides = array<i32>} : memref<1x18x18x32xf32, #tpu.memory_space<vmem>>, vector<1x16x16x32xf32>,
    %c0_205 = arith.constant 0 : index
    %c0_206 = arith.constant 0 : index
    %c0_207 = arith.constant 0 : index
    %c0_208 = arith.constant 0 : index
    %121 = vector.load %arg14[%c0_205, %c0_206, %c0_207, %c0_208] : memref<1x18x18x32xf32, #tpu.memory_space<vmem>>, vector<1x16x16x32xf32>
    %122 = vector.shape_cast %121 : vector<1x16x16x32xf32> to vector<256x32xf32>
    %c0_209 = arith.constant 0 : index
    %c0_210 = arith.constant 0 : index
    %123 = vector.load %arg15[%c0_209, %c0_210] : memref<256x288xf32, #tpu.memory_space<vmem>>, vector<256x32xf32>
    tpu.vector_store %arg15[%c0_209, %c0_210], %122 {strides = array<i32>} : memref<256x288xf32, #tpu.memory_space<vmem>>, vector<256x32xf32>,
    %c0_211 = arith.constant 0 : index
    %c0_212 = arith.constant 0 : index
    %c1_213 = arith.constant 1 : index
    %c0_214 = arith.constant 0 : index
    %124 = vector.load %arg14[%c0_211, %c0_212, %c1_213, %c0_214] : memref<1x18x18x32xf32, #tpu.memory_space<vmem>>, vector<1x16x16x32xf32>
    %125 = vector.shape_cast %124 : vector<1x16x16x32xf32> to vector<256x32xf32>
    %c0_215 = arith.constant 0 : index
    %c32_216 = arith.constant 32 : index
    %126 = vector.load %arg15[%c0_215, %c32_216] : memref<256x288xf32, #tpu.memory_space<vmem>>, vector<256x32xf32>
    tpu.vector_store %arg15[%c0_215, %c32_216], %125 {strides = array<i32>} : memref<256x288xf32, #tpu.memory_space<vmem>>, vector<256x32xf32>,
    %c0_217 = arith.constant 0 : index
    %c0_218 = arith.constant 0 : index
    %c2_219 = arith.constant 2 : index
    %c0_220 = arith.constant 0 : index
    %127 = vector.load %arg14[%c0_217, %c0_218, %c2_219, %c0_220] : memref<1x18x18x32xf32, #tpu.memory_space<vmem>>, vector<1x16x16x32xf32>
    %128 = vector.shape_cast %127 : vector<1x16x16x32xf32> to vector<256x32xf32>
    %c0_221 = arith.constant 0 : index
    %c64_222 = arith.constant 64 : index
    %129 = vector.load %arg15[%c0_221, %c64_222] : memref<256x288xf32, #tpu.memory_space<vmem>>, vector<256x32xf32>
    tpu.vector_store %arg15[%c0_221, %c64_222], %128 {strides = array<i32>} : memref<256x288xf32, #tpu.memory_space<vmem>>, vector<256x32xf32>,
    %c0_223 = arith.constant 0 : index
    %c1_224 = arith.constant 1 : index
    %c0_225 = arith.constant 0 : index
    %c0_226 = arith.constant 0 : index
    %130 = vector.load %arg14[%c0_223, %c1_224, %c0_225, %c0_226] : memref<1x18x18x32xf32, #tpu.memory_space<vmem>>, vector<1x16x16x32xf32>
    %131 = vector.shape_cast %130 : vector<1x16x16x32xf32> to vector<256x32xf32>
    %c0_227 = arith.constant 0 : index
    %c96_228 = arith.constant 96 : index
    %132 = vector.load %arg15[%c0_227, %c96_228] : memref<256x288xf32, #tpu.memory_space<vmem>>, vector<256x32xf32>
    tpu.vector_store %arg15[%c0_227, %c96_228], %131 {strides = array<i32>} : memref<256x288xf32, #tpu.memory_space<vmem>>, vector<256x32xf32>,
    %c0_229 = arith.constant 0 : index
    %c1_230 = arith.constant 1 : index
    %c1_231 = arith.constant 1 : index
    %c0_232 = arith.constant 0 : index
    %133 = vector.load %arg14[%c0_229, %c1_230, %c1_231, %c0_232] : memref<1x18x18x32xf32, #tpu.memory_space<vmem>>, vector<1x16x16x32xf32>
    %134 = vector.shape_cast %133 : vector<1x16x16x32xf32> to vector<256x32xf32>
    %c0_233 = arith.constant 0 : index
    %c128_234 = arith.constant 128 : index
    %135 = vector.load %arg15[%c0_233, %c128_234] : memref<256x288xf32, #tpu.memory_space<vmem>>, vector<256x32xf32>
    tpu.vector_store %arg15[%c0_233, %c128_234], %134 {strides = array<i32>} : memref<256x288xf32, #tpu.memory_space<vmem>>, vector<256x32xf32>,
    %c0_235 = arith.constant 0 : index
    %c1_236 = arith.constant 1 : index
    %c2_237 = arith.constant 2 : index
    %c0_238 = arith.constant 0 : index
    %136 = vector.load %arg14[%c0_235, %c1_236, %c2_237, %c0_238] : memref<1x18x18x32xf32, #tpu.memory_space<vmem>>, vector<1x16x16x32xf32>
    %137 = vector.shape_cast %136 : vector<1x16x16x32xf32> to vector<256x32xf32>
    %c0_239 = arith.constant 0 : index
    %c160 = arith.constant 160 : index
    %138 = vector.load %arg15[%c0_239, %c160] : memref<256x288xf32, #tpu.memory_space<vmem>>, vector<256x32xf32>
    tpu.vector_store %arg15[%c0_239, %c160], %137 {strides = array<i32>} : memref<256x288xf32, #tpu.memory_space<vmem>>, vector<256x32xf32>,
    %c0_240 = arith.constant 0 : index
    %c2_241 = arith.constant 2 : index
    %c0_242 = arith.constant 0 : index
    %c0_243 = arith.constant 0 : index
    %139 = vector.load %arg14[%c0_240, %c2_241, %c0_242, %c0_243] : memref<1x18x18x32xf32, #tpu.memory_space<vmem>>, vector<1x16x16x32xf32>
    %140 = vector.shape_cast %139 : vector<1x16x16x32xf32> to vector<256x32xf32>
    %c0_244 = arith.constant 0 : index
    %c192 = arith.constant 192 : index
    %141 = vector.load %arg15[%c0_244, %c192] : memref<256x288xf32, #tpu.memory_space<vmem>>, vector<256x32xf32>
    tpu.vector_store %arg15[%c0_244, %c192], %140 {strides = array<i32>} : memref<256x288xf32, #tpu.memory_space<vmem>>, vector<256x32xf32>,
    %c0_245 = arith.constant 0 : index
    %c2_246 = arith.constant 2 : index
    %c1_247 = arith.constant 1 : index
    %c0_248 = arith.constant 0 : index
    %142 = vector.load %arg14[%c0_245, %c2_246, %c1_247, %c0_248] : memref<1x18x18x32xf32, #tpu.memory_space<vmem>>, vector<1x16x16x32xf32>
    %143 = vector.shape_cast %142 : vector<1x16x16x32xf32> to vector<256x32xf32>
    %c0_249 = arith.constant 0 : index
    %c224 = arith.constant 224 : index
    %144 = vector.load %arg15[%c0_249, %c224] : memref<256x288xf32, #tpu.memory_space<vmem>>, vector<256x32xf32>
    tpu.vector_store %arg15[%c0_249, %c224], %143 {strides = array<i32>} : memref<256x288xf32, #tpu.memory_space<vmem>>, vector<256x32xf32>,
    %c0_250 = arith.constant 0 : index
    %c2_251 = arith.constant 2 : index
    %c2_252 = arith.constant 2 : index
    %c0_253 = arith.constant 0 : index
    %145 = vector.load %arg14[%c0_250, %c2_251, %c2_252, %c0_253] : memref<1x18x18x32xf32, #tpu.memory_space<vmem>>, vector<1x16x16x32xf32>
    %146 = vector.shape_cast %145 : vector<1x16x16x32xf32> to vector<256x32xf32>
    %c0_254 = arith.constant 0 : index
    %c256 = arith.constant 256 : index
    %147 = vector.load %arg15[%c0_254, %c256] : memref<256x288xf32, #tpu.memory_space<vmem>>, vector<256x32xf32>
    tpu.vector_store %arg15[%c0_254, %c256], %146 {strides = array<i32>} : memref<256x288xf32, #tpu.memory_space<vmem>>, vector<256x32xf32>,
    %c0_255 = arith.constant 0 : index
    %c0_256 = arith.constant 0 : index
    %148 = vector.load %arg15[%c0_255, %c0_256] : memref<256x288xf32, #tpu.memory_space<vmem>>, vector<256x288xf32>
    %c0_257 = arith.constant 0 : index
    %c0_258 = arith.constant 0 : index
    %149 = vector.load %arg8[%c0_257, %c0_258] : memref<288x32xf32, #tpu.memory_space<vmem>>, vector<288x32xf32>
    %cst_259 = arith.constant dense<0.000000e+00> : vector<256x32xf32>
    %150 = tpu.matmul %148, %149, %cst_259 {dimension_numbers = #tpu.dot_dimension_numbers<[1], [0], [0], [1], [0, 0, 1, 1], [], []>} : vector<256x288xf32>, vector<288x32xf32>, vector<256x32xf32> -> vector<256x32xf32>
    %c0_260 = arith.constant 0 : index
    %c0_261 = arith.constant 0 : index
    %151 = vector.load %arg9[%c0_260, %c0_261] : memref<1x32xf32, #tpu.memory_space<vmem>>, vector<1x32xf32>
    %152 = vector.broadcast %151 : vector<1x32xf32> to vector<256x32xf32>
    %153 = arith.addf %150, %152 : vector<256x32xf32>
    %cst_262 = arith.constant 0.000000e+00 : f32
    %154 = vector.broadcast %cst_262 : f32 to vector<256x32xf32>
    %155 = arith.maximumf %153, %154 : vector<256x32xf32>
    %156 = tpu.transpose %155, [1, 0] : vector<256x32xf32> -> vector<32x256xf32>
    %157 = vector.shape_cast %156 : vector<32x256xf32> to vector<1x32x256xf32>
    %c0_263 = arith.constant 0 : index
    %c0_264 = arith.constant 0 : index
    %c0_265 = arith.constant 0 : index
    %158 = vector.load %arg13[%c0_263, %c0_264, %c0_265] : memref<1x32x256xf32, #tpu.memory_space<vmem>>, vector<1x32x256xf32>
    tpu.vector_store %arg13[%c0_263, %c0_264, %c0_265], %157 {strides = array<i32>} : memref<1x32x256xf32, #tpu.memory_space<vmem>>, vector<1x32x256xf32>,
    %cst_266 = arith.constant dense<0.000000e+00> : vector<32xf32>
    %159 = vector.multi_reduction <add>, %155, %cst_266 [0] : vector<256x32xf32> to vector<32xf32>
    %160 = vector.shape_cast %159 : vector<32xf32> to vector<1x32xf32>
    %cst_267 = arith.constant 2.560000e+02 : f32
    %161 = vector.broadcast %cst_267 : f32 to vector<1x32xf32>
    %162 = arith.divf %160, %161 : vector<1x32xf32>
    %c0_268 = arith.constant 0 : index
    %c0_269 = arith.constant 0 : index
    %163 = vector.load %arg10[%c0_268, %c0_269] : memref<32x10xf32, #tpu.memory_space<vmem>>, vector<32x10xf32>
    %cst_270 = arith.constant dense<0.000000e+00> : vector<1x10xf32>
    %164 = tpu.matmul %162, %163, %cst_270 {dimension_numbers = #tpu.dot_dimension_numbers<[1], [0], [0], [1], [0, 0, 1, 1], [], []>} : vector<1x32xf32>, vector<32x10xf32>, vector<1x10xf32> -> vector<1x10xf32>
    %c0_271 = arith.constant 0 : index
    %c0_272 = arith.constant 0 : index
    %165 = vector.load %arg11[%c0_271, %c0_272] : memref<1x10xf32, #tpu.memory_space<vmem>>, vector<1x10xf32>
    %166 = arith.addf %164, %165 : vector<1x10xf32>
    %167 = vector.shape_cast %166 : vector<1x10xf32> to vector<1x1x10xf32>
    %c0_273 = arith.constant 0 : index
    %c0_274 = arith.constant 0 : index
    %c0_275 = arith.constant 0 : index
    %168 = vector.load %arg12[%c0_273, %c0_274, %c0_275] : memref<1x1x10xf32, #tpu.memory_space<vmem>>, vector<1x1x10xf32>
    tpu.vector_store %arg12[%c0_273, %c0_274, %c0_275], %167 {strides = array<i32>} : memref<1x1x10xf32, #tpu.memory_space<vmem>>, vector<1x1x10xf32>,
    return
  }
  func.func @transform_0(%arg0: i32) -> (i32, i32, i32, i32) {
    %c0_i32 = arith.constant 0 : i32
    %c0_i32_0 = arith.constant 0 : i32
    %c0_i32_1 = arith.constant 0 : i32
    %c0_i32_2 = arith.constant 0 : i32
    return %arg0, %c0_i32, %c0_i32_0, %c0_i32_1 : i32, i32, i32, i32
  }
  func.func @transform_1(%arg0: i32) -> (i32, i32) {
    %c0_i32 = arith.constant 0 : i32
    %c0_i32_0 = arith.constant 0 : i32
    %c0_i32_1 = arith.constant 0 : i32
    return %c0_i32, %c0_i32_0 : i32, i32
  }
  func.func @transform_2(%arg0: i32) -> (i32, i32) {
    %c0_i32 = arith.constant 0 : i32
    %c0_i32_0 = arith.constant 0 : i32
    %c0_i32_1 = arith.constant 0 : i32
    return %c0_i32, %c0_i32_0 : i32, i32
  }
  func.func @transform_3(%arg0: i32) -> (i32, i32) {
    %c0_i32 = arith.constant 0 : i32
    %c0_i32_0 = arith.constant 0 : i32
    %c0_i32_1 = arith.constant 0 : i32
    return %c0_i32, %c0_i32_0 : i32, i32
  }
  func.func @transform_4(%arg0: i32) -> (i32, i32) {
    %c0_i32 = arith.constant 0 : i32
    %c0_i32_0 = arith.constant 0 : i32
    %c0_i32_1 = arith.constant 0 : i32
    return %c0_i32, %c0_i32_0 : i32, i32
  }
  func.func @transform_5(%arg0: i32) -> (i32, i32) {
    %c0_i32 = arith.constant 0 : i32
    %c0_i32_0 = arith.constant 0 : i32
    %c0_i32_1 = arith.constant 0 : i32
    return %c0_i32, %c0_i32_0 : i32, i32
  }
  func.func @transform_6(%arg0: i32) -> (i32, i32) {
    %c0_i32 = arith.constant 0 : i32
    %c0_i32_0 = arith.constant 0 : i32
    %c0_i32_1 = arith.constant 0 : i32
    return %c0_i32, %c0_i32_0 : i32, i32
  }
  func.func @transform_7(%arg0: i32) -> (i32, i32) {
    %c0_i32 = arith.constant 0 : i32
    %c0_i32_0 = arith.constant 0 : i32
    %c0_i32_1 = arith.constant 0 : i32
    return %c0_i32, %c0_i32_0 : i32, i32
  }
  func.func @transform_8(%arg0: i32) -> (i32, i32) {
    %c0_i32 = arith.constant 0 : i32
    %c0_i32_0 = arith.constant 0 : i32
    %c0_i32_1 = arith.constant 0 : i32
    return %c0_i32, %c0_i32_0 : i32, i32
  }
  func.func @transform_9(%arg0: i32) -> (i32, i32) {
    %c0_i32 = arith.constant 0 : i32
    %c0_i32_0 = arith.constant 0 : i32
    %c0_i32_1 = arith.constant 0 : i32
    return %c0_i32, %c0_i32_0 : i32, i32
  }
  func.func @transform_10(%arg0: i32) -> (i32, i32) {
    %c0_i32 = arith.constant 0 : i32
    %c0_i32_0 = arith.constant 0 : i32
    %c0_i32_1 = arith.constant 0 : i32
    return %c0_i32, %c0_i32_0 : i32, i32
  }
  func.func @transform_11(%arg0: i32) -> (i32, i32, i32) {
    %c0_i32 = arith.constant 0 : i32
    %c0_i32_0 = arith.constant 0 : i32
    %c0_i32_1 = arith.constant 0 : i32
    return %arg0, %c0_i32, %c0_i32_0 : i32, i32, i32
  }
  func.func @transform_12(%arg0: i32) -> (i32, i32, i32) {
    %c0_i32 = arith.constant 0 : i32
    %c0_i32_0 = arith.constant 0 : i32
    %c0_i32_1 = arith.constant 0 : i32
    return %arg0, %c0_i32, %c0_i32_0 : i32, i32, i32
  }
}

</mosaic_0001>

<llo_original>
// kernel: gradcam_forward.1
$region0: #{gradcam_forward.1}
  #allocation0 [shape = 'u32[]', space=smem, size = 0x4, offset = 0x4, fixed_abs, tag = 'smem constant byte address 0x4 - core index']
  #allocation1 [shape = 'u32[144,128]{1,0:T(1,128)}', space=vmem, size = 0x12000, scoped, tag = 'internal scratch']
  #allocation2 [shape = 'f32[1,18,18,32]{3,2,1,0:T(8,128)}', space=vmem, size = 0x36000, scoped, tag = 'scratch operand']
  #allocation3 [shape = 'f32[256,288]{1,0:T(8,128)}', space=vmem, size = 0x60000, scoped, tag = 'scratch operand']
  %s0 = inlined_call_operand.vmem [shape: f32[2,16,16,4], index: 0, kind: input, shape index: {}]
  %s1 = inlined_call_operand.vmem [shape: f32[36,8], index: 1, kind: input, shape index: {}]
  %s2 = inlined_call_operand.vmem [shape: f32[1,8], index: 2, kind: input, shape index: {}]
  %s3 = inlined_call_operand.vmem [shape: f32[72,16], index: 3, kind: input, shape index: {}]
  %s4 = inlined_call_operand.vmem [shape: f32[1,16], index: 4, kind: input, shape index: {}]
  %s5 = inlined_call_operand.vmem [shape: f32[144,32], index: 5, kind: input, shape index: {}]
  %s6 = inlined_call_operand.vmem [shape: f32[1,32], index: 6, kind: input, shape index: {}]
  %s7 = inlined_call_operand.vmem [shape: f32[288,32], index: 7, kind: input, shape index: {}]
  %s8 = inlined_call_operand.vmem [shape: f32[1,32], index: 8, kind: input, shape index: {}]
  %s9 = inlined_call_operand.vmem [shape: f32[32,10], index: 9, kind: input, shape index: {}]
  %s10 = inlined_call_operand.vmem [shape: f32[1,10], index: 10, kind: input, shape index: {}]
  %s11 = inlined_call_operand.hbm [shape: f32[2,1,10], index: 11, kind: output, shape index: {0}]
  %s12 = inlined_call_operand.vmem [shape: f32[2,32,256], index: 12, kind: output, shape index: {1}]
  %13 = xla_tuple %s11, %s12
  %s14 = sld [smem:[#allocation0]]
  $region85: #{gradcam_forward.1} parent=0
    _
  %s16 = ssub.s32 1, %s14
  %s17 = scalar_select 0, %s16, %s14
  $region1: #{gradcam_forward.1} parent=0
    #allocation4 [shape = 'u8[1024]{0}', space=vmem, size = 0x400, scoped, tag = 'output window, operand 0']
    #allocation5 [shape = 's32[2]{0}', space=sflag, size = 0x8, scoped, tag = 'scoped memory for gradcam_forward.1']
    %18 = vsyncpa [#allocation5], 0
    %s19 = scalar_lea.sflag [#allocation5], 1
    %20 = vsyncpa %s19, 0
    loop: start=0, step=1, limit=4
    $region2: #{gradcam_forward.1} parent=1 // loop_pre_header
      _
    $region3: #{gradcam_forward.1} parent=1 // loop_header
      %s22 = sphi 0, %s26
      %p23 = scmp.ge.s32.totalorder %s22, 4
      %s32 = sphi 0, %s34
      %s35 = sphi 0, %s32
      %s36 = sphi 0, %s35
      %s52 = sphi 0, %s36
      %s56 = sphi 0, %s56
      %s58 = sphi 0, %s56
      %s59 = sphi 0, %s58
      %s73 = sphi 0, %s59
      %s77 = sphi 0, %s77
      %s79 = sphi 0, %s77
      %s80 = sphi 0, %s79
      %s94 = sphi 0, %s80
      %s98 = sphi 0, %s98
      %s100 = sphi 0, %s98
      %s101 = sphi 0, %s100
      %s115 = sphi 0, %s101
      %s119 = sphi 0, %s119
      %s121 = sphi 0, %s119
      %s122 = sphi 0, %s121
      %s136 = sphi 0, %s122
      %s140 = sphi 0, %s140
      %s142 = sphi 0, %s140
      %s143 = sphi 0, %s142
      %s157 = sphi 0, %s143
      %s161 = sphi 0, %s161
      %s163 = sphi 0, %s161
      %s164 = sphi 0, %s163
      %s178 = sphi 0, %s164
      %s182 = sphi 0, %s182
      %s184 = sphi 0, %s182
      %s185 = sphi 0, %s184
      %s199 = sphi 0, %s185
      %s203 = sphi 0, %s203
      %s205 = sphi 0, %s203
      %s206 = sphi 0, %s205
      %s220 = sphi 0, %s206
      %s224 = sphi 0, %s224
      %s226 = sphi 0, %s224
      %s227 = sphi 0, %s226
      %s241 = sphi 0, %s227
      %s245 = sphi 0, %s245
      %s247 = sphi 0, %s245
      %s248 = sphi 0, %s247
      %s262 = sphi 0, %s248
      %s268 = sphi 0, %s270
      %s271 = sphi 0, %s268
      %s272 = sphi 0, %s271
      %s288 = sphi 0, %s272
      %s294 = sphi 0, %s296
      %s297 = sphi 0, %s294
      %s298 = sphi 0, %s297
      %s314 = sphi 0, %s298
    $region4: #{gradcam_forward.1} parent=1 // loop_header_branch
      %25 = sbr.rel (%p23) target = $region8
    $region5: #{gradcam_forward.1} parent=1 // loop_body
      %s27 = ssub.s32 %s22, 1
      %s28 = ssub.s32 %s22, 2
      %s29 = sadd.s32 %s22, 1
      %s30 = ssub.s32 %s22, %s29
      %p31 = scmp.eq.s32.totalorder %s30, 0
      %s33 = sadd.s32 %s32, 1
      %s34 = scalar_select %p31, %s32, %s33
      %p37 = pneg %p31
      %p38 = scmp.eq.s32.totalorder %s22, 1
      %p39 = por %p37, %p38
      %p40 = scmp.ne.s32.totalorder %s32, %s35
      %p41 = scmp.eq.s32.totalorder %s22, 0
      %p42 = por %p40, %p41
      %p43 = scmp.ne.s32.totalorder %s32, %s35
      %p44 = scmp.eq.s32.totalorder %s27, 1
      %p45 = por %p43, %p44
      %p46 = scmp.ne.s32.totalorder %s35, %s36
      %p47 = scmp.eq.s32.totalorder %s27, 0
      %p48 = por %p46, %p47
      %p49 = scmp.ne.s32.totalorder %s35, %s36
      %p50 = scmp.eq.s32.totalorder %s28, 1
      %p51 = por %p49, %p50
      %p53 = scmp.ne.s32.totalorder %s36, %s52
      %p54 = scmp.eq.s32.totalorder %s28, 0
      %p55 = por %p53, %p54
      %s57 = sadd.s32 %s56, 1
      %p60 = scmp.eq.s32.totalorder %s22, 1
      %p61 = scmp.ne.s32.totalorder %s56, %s58
      %p62 = scmp.eq.s32.totalorder %s22, 0
      %p63 = por %p61, %p62
      %p64 = scmp.ne.s32.totalorder %s56, %s58
      %p65 = scmp.eq.s32.totalorder %s27, 1
      %p66 = por %p64, %p65
      %p67 = scmp.ne.s32.totalorder %s58, %s59
      %p68 = scmp.eq.s32.totalorder %s27, 0
      %p69 = por %p67, %p68
      %p70 = scmp.ne.s32.totalorder %s58, %s59
      %p71 = scmp.eq.s32.totalorder %s28, 1
      %p72 = por %p70, %p71
      %p74 = scmp.ne.s32.totalorder %s59, %s73
      %p75 = scmp.eq.s32.totalorder %s28, 0
      %p76 = por %p74, %p75
      %s78 = sadd.s32 %s77, 1
      %p81 = scmp.eq.s32.totalorder %s22, 1
      %p82 = scmp.ne.s32.totalorder %s77, %s79
      %p83 = scmp.eq.s32.totalorder %s22, 0
      %p84 = por %p82, %p83
      %p85 = scmp.ne.s32.totalorder %s77, %s79
      %p86 = scmp.eq.s32.totalorder %s27, 1
      %p87 = por %p85, %p86
      %p88 = scmp.ne.s32.totalorder %s79, %s80
      %p89 = scmp.eq.s32.totalorder %s27, 0
      %p90 = por %p88, %p89
      %p91 = scmp.ne.s32.totalorder %s79, %s80
      %p92 = scmp.eq.s32.totalorder %s28, 1
      %p93 = por %p91, %p92
      %p95 = scmp.ne.s32.totalorder %s80, %s94
      %p96 = scmp.eq.s32.totalorder %s28, 0
      %p97 = por %p95, %p96
      %s99 = sadd.s32 %s98, 1
      %p102 = scmp.eq.s32.totalorder %s22, 1
      %p103 = scmp.ne.s32.totalorder %s98, %s100
      %p104 = scmp.eq.s32.totalorder %s22, 0
      %p105 = por %p103, %p104
      %p106 = scmp.ne.s32.totalorder %s98, %s100
      %p107 = scmp.eq.s32.totalorder %s27, 1
      %p108 = por %p106, %p107
      %p109 = scmp.ne.s32.totalorder %s100, %s101
      %p110 = scmp.eq.s32.totalorder %s27, 0
      %p111 = por %p109, %p110
      %p112 = scmp.ne.s32.totalorder %s100, %s101
      %p113 = scmp.eq.s32.totalorder %s28, 1
      %p114 = por %p112, %p113
      %p116 = scmp.ne.s32.totalorder %s101, %s115
      %p117 = scmp.eq.s32.totalorder %s28, 0
      %p118 = por %p116, %p117
      %s120 = sadd.s32 %s119, 1
      %p123 = scmp.eq.s32.totalorder %s22, 1
      %p124 = scmp.ne.s32.totalorder %s119, %s121
      %p125 = scmp.eq.s32.totalorder %s22, 0
      %p126 = por %p124, %p125
      %p127 = scmp.ne.s32.totalorder %s119, %s121
      %p128 = scmp.eq.s32.totalorder %s27, 1
      %p129 = por %p127, %p128
      %p130 = scmp.ne.s32.totalorder %s121, %s122
      %p131 = scmp.eq.s32.totalorder %s27, 0
      %p132 = por %p130, %p131
      %p133 = scmp.ne.s32.totalorder %s121, %s122
      %p134 = scmp.eq.s32.totalorder %s28, 1
      %p135 = por %p133, %p134
      %p137 = scmp.ne.s32.totalorder %s122, %s136
      %p138 = scmp.eq.s32.totalorder %s28, 0
      %p139 = por %p137, %p138
      %s141 = sadd.s32 %s140, 1
      %p144 = scmp.eq.s32.totalorder %s22, 1
      %p145 = scmp.ne.s32.totalorder %s140, %s142
      %p146 = scmp.eq.s32.totalorder %s22, 0
      %p147 = por %p145, %p146
      %p148 = scmp.ne.s32.totalorder %s140, %s142
      %p149 = scmp.eq.s32.totalorder %s27, 1
      %p150 = por %p148, %p149
      %p151 = scmp.ne.s32.totalorder %s142, %s143
      %p152 = scmp.eq.s32.totalorder %s27, 0
      %p153 = por %p151, %p152
      %p154 = scmp.ne.s32.totalorder %s142, %s143
      %p155 = scmp.eq.s32.totalorder %s28, 1
      %p156 = por %p154, %p155
      %p158 = scmp.ne.s32.totalorder %s143, %s157
      %p159 = scmp.eq.s32.totalorder %s28, 0
      %p160 = por %p158, %p159
      %s162 = sadd.s32 %s161, 1
      %p165 = scmp.eq.s32.totalorder %s22, 1
      %p166 = scmp.ne.s32.totalorder %s161, %s163
      %p167 = scmp.eq.s32.totalorder %s22, 0
      %p168 = por %p166, %p167
      %p169 = scmp.ne.s32.totalorder %s161, %s163
      %p170 = scmp.eq.s32.totalorder %s27, 1
      %p171 = por %p169, %p170
      %p172 = scmp.ne.s32.totalorder %s163, %s164
      %p173 = scmp.eq.s32.totalorder %s27, 0
      %p174 = por %p172, %p173
      %p175 = scmp.ne.s32.totalorder %s163, %s164
      %p176 = scmp.eq.s32.totalorder %s28, 1
      %p177 = por %p175, %p176
      %p179 = scmp.ne.s32.totalorder %s164, %s178
      %p180 = scmp.eq.s32.totalorder %s28, 0
      %p181 = por %p179, %p180
      %s183 = sadd.s32 %s182, 1
      %p186 = scmp.eq.s32.totalorder %s22, 1
      %p187 = scmp.ne.s32.totalorder %s182, %s184
      %p188 = scmp.eq.s32.totalorder %s22, 0
      %p189 = por %p187, %p188
      %p190 = scmp.ne.s32.totalorder %s182, %s184
      %p191 = scmp.eq.s32.totalorder %s27, 1
      %p192 = por %p190, %p191
      %p193 = scmp.ne.s32.totalorder %s184, %s185
      %p194 = scmp.eq.s32.totalorder %s27, 0
      %p195 = por %p193, %p194
      %p196 = scmp.ne.s32.totalorder %s184, %s185
      %p197 = scmp.eq.s32.totalorder %s28, 1
      %p198 = por %p196, %p197
      %p200 = scmp.ne.s32.totalorder %s185, %s199
      %p201 = scmp.eq.s32.totalorder %s28, 0
      %p202 = por %p200, %p201
      %s204 = sadd.s32 %s203, 1
      %p207 = scmp.eq.s32.totalorder %s22, 1
      %p208 = scmp.ne.s32.totalorder %s203, %s205
      %p209 = scmp.eq.s32.totalorder %s22, 0
      %p210 = por %p208, %p209
      %p211 = scmp.ne.s32.totalorder %s203, %s205
      %p212 = scmp.eq.s32.totalorder %s27, 1
      %p213 = por %p211, %p212
      %p214 = scmp.ne.s32.totalorder %s205, %s206
      %p215 = scmp.eq.s32.totalorder %s27, 0
      %p216 = por %p214, %p215
      %p217 = scmp.ne.s32.totalorder %s205, %s206
      %p218 = scmp.eq.s32.totalorder %s28, 1
      %p219 = por %p217, %p218
      %p221 = scmp.ne.s32.totalorder %s206, %s220
      %p222 = scmp.eq.s32.totalorder %s28, 0
      %p223 = por %p221, %p222
      %s225 = sadd.s32 %s224, 1
      %p228 = scmp.eq.s32.totalorder %s22, 1
      %p229 = scmp.ne.s32.totalorder %s224, %s226
      %p230 = scmp.eq.s32.totalorder %s22, 0
      %p231 = por %p229, %p230
      %p232 = scmp.ne.s32.totalorder %s224, %s226
      %p233 = scmp.eq.s32.totalorder %s27, 1
      %p234 = por %p232, %p233
      %p235 = scmp.ne.s32.totalorder %s226, %s227
      %p236 = scmp.eq.s32.totalorder %s27, 0
      %p237 = por %p235, %p236
      %p238 = scmp.ne.s32.totalorder %s226, %s227
      %p239 = scmp.eq.s32.totalorder %s28, 1
      %p240 = por %p238, %p239
      %p242 = scmp.ne.s32.totalorder %s227, %s241
      %p243 = scmp.eq.s32.totalorder %s28, 0
      %p244 = por %p242, %p243
      %s246 = sadd.s32 %s245, 1
      %p249 = scmp.eq.s32.totalorder %s22, 1
      %p250 = scmp.ne.s32.totalorder %s245, %s247
      %p251 = scmp.eq.s32.totalorder %s22, 0
      %p252 = por %p250, %p251
      %p253 = scmp.ne.s32.totalorder %s245, %s247
      %p254 = scmp.eq.s32.totalorder %s27, 1
      %p255 = por %p253, %p254
      %p256 = scmp.ne.s32.totalorder %s247, %s248
      %p257 = scmp.eq.s32.totalorder %s27, 0
      %p258 = por %p256, %p257
      %p259 = scmp.ne.s32.totalorder %s247, %s248
      %p260 = scmp.eq.s32.totalorder %s28, 1
      %p261 = por %p259, %p260
      %p263 = scmp.ne.s32.totalorder %s248, %s262
      %p264 = scmp.eq.s32.totalorder %s28, 0
      %p265 = por %p263, %p264
      %s266 = ssub.s32 %s22, %s29
      %p267 = scmp.eq.s32.totalorder %s266, 0
      %s269 = sadd.s32 %s268, 1
      %s270 = scalar_select %p267, %s268, %s269
      %p273 = pneg %p267
      %p274 = scmp.eq.s32.totalorder %s22, 1
      %p275 = por %p273, %p274
      %p276 = scmp.ne.s32.totalorder %s268, %s271
      %p277 = scmp.eq.s32.totalorder %s22, 0
      %p278 = por %p276, %p277
      %p279 = scmp.ne.s32.totalorder %s268, %s271
      %p280 = scmp.eq.s32.totalorder %s27, 1
      %p281 = por %p279, %p280
      %p282 = scmp.ne.s32.totalorder %s271, %s272
      %p283 = scmp.eq.s32.totalorder %s27, 0
      %p284 = por %p282, %p283
      %p285 = scmp.ne.s32.totalorder %s271, %s272
      %p286 = scmp.eq.s32.totalorder %s28, 1
      %p287 = por %p285, %p286
      %p289 = scmp.ne.s32.totalorder %s272, %s288
      %p290 = scmp.eq.s32.totalorder %s28, 0
      %p291 = por %p289, %p290
      %s292 = ssub.s32 %s22, %s29
      %p293 = scmp.eq.s32.totalorder %s292, 0
      %s295 = sadd.s32 %s294, 1
      %s296 = scalar_select %p293, %s294, %s295
      %p299 = pneg %p293
      %p300 = scmp.eq.s32.totalorder %s22, 1
      %p301 = por %p299, %p300
      %p302 = scmp.ne.s32.totalorder %s294, %s297
      %p303 = scmp.eq.s32.totalorder %s22, 0
      %p304 = por %p302, %p303
      %p305 = scmp.ne.s32.totalorder %s294, %s297
      %p306 = scmp.eq.s32.totalorder %s27, 1
      %p307 = por %p305, %p306
      %p308 = scmp.ne.s32.totalorder %s297, %s298
      %p309 = scmp.eq.s32.totalorder %s27, 0
      %p310 = por %p308, %p309
      %p311 = scmp.ne.s32.totalorder %s297, %s298
      %p312 = scmp.eq.s32.totalorder %s28, 1
      %p313 = por %p311, %p312
      %p315 = scmp.ne.s32.totalorder %s298, %s314
      %p316 = scmp.eq.s32.totalorder %s28, 0
      %p317 = por %p315, %p316
      %p318 = scmp.le.s32.totalorder 1, %s22
      %p319 = scmp.lt.s32.totalorder %s22, 3
      %p320 = pnand %p318, %p319
      %p321 = pneg %p320
      // Predicated region
      $region9: #{gradcam_forward.1} parent=5 // pred_check
        _
      $region10: #{gradcam_forward.1} parent=5 // pred_check_branch
        %323 = sbr.rel (%p320) target = $region12
      $region11: #{gradcam_forward.1} parent=5 // pred_region
        %s324 = ssub.s32 %s22, 1
        // Predicated region
        $region13: #{gradcam_forward.1} parent=11 // pred_check
          %p325 = pneg %p69
        $region14: #{gradcam_forward.1} parent=11 // pred_check_branch
          %327 = sbr.rel (%p325) target = $region16
        $region15: #{gradcam_forward.1} parent=11 // pred_region
          _
        $region16: #{gradcam_forward.1} parent=11 // pred_fallthru
          _
        // Predicated region
        $region17: #{gradcam_forward.1} parent=11 // pred_check
          %p328 = pneg %p90
        $region18: #{gradcam_forward.1} parent=11 // pred_check_branch
          %330 = sbr.rel (%p328) target = $region20
        $region19: #{gradcam_forward.1} parent=11 // pred_region
          _
        $region20: #{gradcam_forward.1} parent=11 // pred_fallthru
          _
        // Predicated region
        $region21: #{gradcam_forward.1} parent=11 // pred_check
          %p331 = pneg %p111
        $region22: #{gradcam_forward.1} parent=11 // pred_check_branch
          %333 = sbr.rel (%p331) target = $region24
        $region23: #{gradcam_forward.1} parent=11 // pred_region
          _
        $region24: #{gradcam_forward.1} parent=11 // pred_fallthru
          _
        // Predicated region
        $region25: #{gradcam_forward.1} parent=11 // pred_check
          %p334 = pneg %p132
        $region26: #{gradcam_forward.1} parent=11 // pred_check_branch
          %336 = sbr.rel (%p334) target = $region28
        $region27: #{gradcam_forward.1} parent=11 // pred_region
          _
        $region28: #{gradcam_forward.1} parent=11 // pred_fallthru
          _
        // Predicated region
        $region29: #{gradcam_forward.1} parent=11 // pred_check
          %p337 = pneg %p153
        $region30: #{gradcam_forward.1} parent=11 // pred_check_branch
          %339 = sbr.rel (%p337) target = $region32
        $region31: #{gradcam_forward.1} parent=11 // pred_region
          _
        $region32: #{gradcam_forward.1} parent=11 // pred_fallthru
          _
        // Predicated region
        $region33: #{gradcam_forward.1} parent=11 // pred_check
          %p340 = pneg %p174
        $region34: #{gradcam_forward.1} parent=11 // pred_check_branch
          %342 = sbr.rel (%p340) target = $region36
        $region35: #{gradcam_forward.1} parent=11 // pred_region
          _
        $region36: #{gradcam_forward.1} parent=11 // pred_fallthru
          _
        // Predicated region
        $region37: #{gradcam_forward.1} parent=11 // pred_check
          %p343 = pneg %p195
        $region38: #{gradcam_forward.1} parent=11 // pred_check_branch
          %345 = sbr.rel (%p343) target = $region40
        $region39: #{gradcam_forward.1} parent=11 // pred_region
          _
        $region40: #{gradcam_forward.1} parent=11 // pred_fallthru
          _
        // Predicated region
        $region41: #{gradcam_forward.1} parent=11 // pred_check
          %p346 = pneg %p216
        $region42: #{gradcam_forward.1} parent=11 // pred_check_branch
          %348 = sbr.rel (%p346) target = $region44
        $region43: #{gradcam_forward.1} parent=11 // pred_region
          _
        $region44: #{gradcam_forward.1} parent=11 // pred_fallthru
          _
        // Predicated region
        $region45: #{gradcam_forward.1} parent=11 // pred_check
          %p349 = pneg %p237
        $region46: #{gradcam_forward.1} parent=11 // pred_check_branch
          %351 = sbr.rel (%p349) target = $region48
        $region47: #{gradcam_forward.1} parent=11 // pred_region
          _
        $region48: #{gradcam_forward.1} parent=11 // pred_fallthru
          _
        // Predicated region
        $region49: #{gradcam_forward.1} parent=11 // pred_check
          %p352 = pneg %p258
        $region50: #{gradcam_forward.1} parent=11 // pred_check_branch
          %354 = sbr.rel (%p352) target = $region52
        $region51: #{gradcam_forward.1} parent=11 // pred_region
          _
        $region52: #{gradcam_forward.1} parent=11 // pred_fallthru
          _
      $region12: #{gradcam_forward.1} parent=5 // pred_fallthru
        _
      %p355 = scmp.lt.s32.totalorder %s22, 2
      // Predicated region
      $region53: #{gradcam_forward.1} parent=5 // pred_check
        %p356 = pneg %p355
      $region54: #{gradcam_forward.1} parent=5 // pred_check_branch
        %358 = sbr.rel (%p356) target = $region56
      $region55: #{gradcam_forward.1} parent=5 // pred_region
        // Predicated region
        $region57: #{gradcam_forward.1} parent=55 // pred_check
          %p359 = pneg %p42
        $region58: #{gradcam_forward.1} parent=55 // pred_check_branch
          %361 = sbr.rel (%p359) target = $region60
        $region59: #{gradcam_forward.1} parent=55 // pred_region
          %p362 = scmp.lt.s32.totalorder %s22, 1
          %s363 = scalar_select %p362, %s22, 1
          %s364 = smul.addr %s363, 32
          %s365 = smul.addr %s364, 8
          %s366 = scalar_lea.vmem %s0, %s365
        $region60: #{gradcam_forward.1} parent=55 // pred_fallthru
          _
      $region56: #{gradcam_forward.1} parent=5 // pred_fallthru
        _
      %p367 = scmp.le.s32.totalorder 1, %s22
      %p368 = scmp.lt.s32.totalorder %s22, 3
      %p369 = pnand %p367, %p368
      %p370 = pneg %p369
      // Predicated region
      $region61: #{gradcam_forward.1} parent=5 // pred_check
        _
      $region62: #{gradcam_forward.1} parent=5 // pred_check_branch
        %372 = sbr.rel (%p369) target = $region64
      $region63: #{gradcam_forward.1} parent=5 // pred_region
        %s373 = ssub.s32 %s22, 1
        %p374 = scmp.lt.s32.totalorder %s27, 1
        %s375 = scalar_select %p374, %s27, 1
        %s376 = smul.addr %s375, 32
        %s377 = smul.addr %s376, 8
        %s378 = scalar_lea.vmem %s0, %s377
        %p379 = pneg %p48
        %p380 = pneg %p45
        %p381 = pneg %p69
        %p382 = pneg %p66
        %p383 = pneg %p90
        %p384 = pneg %p87
        %p385 = pneg %p111
        %p386 = pneg %p108
        %p387 = pneg %p132
        %p388 = pneg %p129
        %p389 = pneg %p153
        %p390 = pneg %p150
        %p391 = pneg %p174
        %p392 = pneg %p171
        %p393 = pneg %p195
        %p394 = pneg %p192
        %p395 = pneg %p216
        %p396 = pneg %p213
        %p397 = pneg %p237
        %p398 = pneg %p234
        %p399 = pneg %p258
        %p400 = pneg %p255
        %p401 = pneg %p284
        %p402 = pneg %p281
        %s403 = sand.u32 %s271, 1
        %s404 = scalar_lea.sflag [#allocation5], %s403
        %s405 = sand.u32 %s271, 1
        %s406 = scalar_lea.vmem [#allocation4], %s405
        %p407 = pneg %p310
        %p408 = pneg %p307
        %p409 = scmp.lt.s32.totalorder %s27, 1
        %s410 = scalar_select %p409, %s27, 1
        %s411 = smul.addr %s410, 8
        %s412 = smul.addr %s411, 8
        %s413 = scalar_lea.vmem %s12, %s412
        %p414 = scmp.lt.s32.totalorder %s27, 1
        %s415 = scalar_select %p414, %s27, 1
        %s416 = smul.addr %s415, 32
        %s417 = smul.addr %s416, 8
        %s418 = scalar_lea.vmem %s0, %s417
        %p419 = scmp.lt.s32.totalorder %s27, 1
        %s420 = scalar_select %p419, %s27, 1
        %s421 = smul.addr %s420, 8
        %s422 = smul.addr %s421, 8
        %s423 = scalar_lea.vmem %s12, %s422
        %vm424 = vcmask 261120
        %425 = vst.msk [vmem:[#allocation2] sm:$0xff] %vm424, 0.0
        %426 = vst.msk [vmem:[#allocation2 + $0x8] sm:$0xff] %vm424, 0.0
        %vm427 = vcmask 254976
        %428 = vst.msk [vmem:[#allocation2 + $0x10] sm:$0x3] %vm427, 0.0
        %s429 = scalar_lea.vmem [#allocation2], 408
        %430 = vst.msk [vmem:[%s429] sm:$0xff] %vm424, 0.0
        %431 = vst.msk [vmem:[%s429 + $0x8] sm:$0xff] %vm424, 0.0
        %432 = vst.msk [vmem:[%s429 + $0x10] sm:$0x3] %vm427, 0.0
        %vm433 = vcmask 253952
        %434 = vst.msk [vmem:[#allocation2] sm:$0x1] %vm433, 0.0
        %435 = vst.msk [vmem:[#allocation2 + $0x18] sm:$0x1] %vm433, 0.0
        %436 = vst.msk [vmem:[#allocation2 + $0x30] sm:$0x1] %vm433, 0.0
        %437 = vst.msk [vmem:[#allocation2 + $0x48] sm:$0x1] %vm433, 0.0
        %438 = vst.msk [vmem:[#allocation2 + $0x60] sm:$0x1] %vm433, 0.0
        %439 = vst.msk [vmem:[#allocation2 + $0x78] sm:$0x1] %vm433, 0.0
        %440 = vst.msk [vmem:[#allocation2 + $0x90] sm:$0x1] %vm433, 0.0
        %441 = vst.msk [vmem:[#allocation2 + $0xa8] sm:$0x1] %vm433, 0.0
        %442 = vst.msk [vmem:[#allocation2 + $0xc0] sm:$0x1] %vm433, 0.0
        %443 = vst.msk [vmem:[#allocation2 + $0xd8] sm:$0x1] %vm433, 0.0
        %444 = vst.msk [vmem:[#allocation2 + $0xf0] sm:$0x1] %vm433, 0.0
        %445 = vst.msk [vmem:[#allocation2 + $0x108] sm:$0x1] %vm433, 0.0
        %446 = vst.msk [vmem:[#allocation2 + $0x120] sm:$0x1] %vm433, 0.0
        %447 = vst.msk [vmem:[#allocation2 + $0x138] sm:$0x1] %vm433, 0.0
        %448 = vst.msk [vmem:[#allocation2 + $0x150] sm:$0x1] %vm433, 0.0
        %449 = vst.msk [vmem:[#allocation2 + $0x168] sm:$0x1] %vm433, 0.0
        %450 = vst.msk [vmem:[#allocation2 + $0x180] sm:$0x1] %vm433, 0.0
        %451 = vst.msk [vmem:[#allocation2 + $0x198] sm:$0x1] %vm433, 0.0
        %452 = vst.msk [vmem:[#allocation2 + $0x11] sm:$0x1] %vm433, 0.0
        %453 = vst.msk [vmem:[#allocation2 + $0x29] sm:$0x1] %vm433, 0.0
        %454 = vst.msk [vmem:[#allocation2 + $0x41] sm:$0x1] %vm433, 0.0
        %455 = vst.msk [vmem:[#allocation2 + $0x59] sm:$0x1] %vm433, 0.0
        %456 = vst.msk [vmem:[#allocation2 + $0x71] sm:$0x1] %vm433, 0.0
        %457 = vst.msk [vmem:[#allocation2 + $0x89] sm:$0x1] %vm433, 0.0
        %458 = vst.msk [vmem:[#allocation2 + $0xa1] sm:$0x1] %vm433, 0.0
        %459 = vst.msk [vmem:[#allocation2 + $0xb9] sm:$0x1] %vm433, 0.0
        %460 = vst.msk [vmem:[#allocation2 + $0xd1] sm:$0x1] %vm433, 0.0
        %461 = vst.msk [vmem:[#allocation2 + $0xe9] sm:$0x1] %vm433, 0.0
        %462 = vst.msk [vmem:[#allocation2 + $0x101] sm:$0x1] %vm433, 0.0
        %463 = vst.msk [vmem:[#allocation2 + $0x119] sm:$0x1] %vm433, 0.0
        %464 = vst.msk [vmem:[#allocation2 + $0x131] sm:$0x1] %vm433, 0.0
        %465 = vst.msk [vmem:[#allocation2 + $0x149] sm:$0x1] %vm433, 0.0
        %466 = vst.msk [vmem:[#allocation2 + $0x161] sm:$0x1] %vm433, 0.0
        %467 = vst.msk [vmem:[#allocation2 + $0x179] sm:$0x1] %vm433, 0.0
        %468 = vst.msk [vmem:[#allocation2 + $0x191] sm:$0x1] %vm433, 0.0
        %469 = vst.msk [vmem:[#allocation2 + $0x1a9] sm:$0x1] %vm433, 0.0
        %v470 = vld [vmem:[%s418] sm:$0xff]
        %v471 = vld [vmem:[%s418 + $0x8] sm:$0xff]
        %v472 = vld [vmem:[%s418 + $0x10] sm:$0xff]
        %v473 = vld [vmem:[%s418 + $0x18] sm:$0xff]
        %v474 = vld [vmem:[%s418 + $0x20] sm:$0xff]
        %v475 = vld [vmem:[%s418 + $0x28] sm:$0xff]
        %v476 = vld [vmem:[%s418 + $0x30] sm:$0xff]
        %v477 = vld [vmem:[%s418 + $0x38] sm:$0xff]
        %v478 = vld [vmem:[%s418 + $0x40] sm:$0xff]
        %v479 = vld [vmem:[%s418 + $0x48] sm:$0xff]
        %v480 = vld [vmem:[%s418 + $0x50] sm:$0xff]
        %v481 = vld [vmem:[%s418 + $0x58] sm:$0xff]
        %v482 = vld [vmem:[%s418 + $0x60] sm:$0xff]
        %v483 = vld [vmem:[%s418 + $0x68] sm:$0xff]
        %v484 = vld [vmem:[%s418 + $0x70] sm:$0xff]
        %v485 = vld [vmem:[%s418 + $0x78] sm:$0xff]
        %v486 = vld [vmem:[%s418 + $0x80] sm:$0xff]
        %v487 = vld [vmem:[%s418 + $0x88] sm:$0xff]
        %v488 = vld [vmem:[%s418 + $0x90] sm:$0xff]
        %v489 = vld [vmem:[%s418 + $0x98] sm:$0xff]
        %v490 = vld [vmem:[%s418 + $0xa0] sm:$0xff]
        %v491 = vld [vmem:[%s418 + $0xa8] sm:$0xff]
        %v492 = vld [vmem:[%s418 + $0xb0] sm:$0xff]
        %v493 = vld [vmem:[%s418 + $0xb8] sm:$0xff]
        %v494 = vld [vmem:[%s418 + $0xc0] sm:$0xff]
        %v495 = vld [vmem:[%s418 + $0xc8] sm:$0xff]
        %v496 = vld [vmem:[%s418 + $0xd0] sm:$0xff]
        %v497 = vld [vmem:[%s418 + $0xd8] sm:$0xff]
        %v498 = vld [vmem:[%s418 + $0xe0] sm:$0xff]
        %v499 = vld [vmem:[%s418 + $0xe8] sm:$0xff]
        %v500 = vld [vmem:[%s418 + $0xf0] sm:$0xff]
        %v501 = vld [vmem:[%s418 + $0xf8] sm:$0xff]
        %s502 = scalar_lea.vmem [#allocation2], 24
        %vm503 = vcmask 31744
        %504 = vst.msk [vmem:[%s502 + $0x1] sm:$0xff] %vm503, %v470
        %505 = vst.msk [vmem:[%s502 + $0x9] sm:$0xff] %vm503, %v471
        %506 = vst.msk [vmem:[%s502 + $0x19] sm:$0xff] %vm503, %v472
        %507 = vst.msk [vmem:[%s502 + $0x21] sm:$0xff] %vm503, %v473
        %508 = vst.msk [vmem:[%s502 + $0x31] sm:$0xff] %vm503, %v474
        %509 = vst.msk [vmem:[%s502 + $0x39] sm:$0xff] %vm503, %v475
        %510 = vst.msk [vmem:[%s502 + $0x49] sm:$0xff] %vm503, %v476
        %511 = vst.msk [vmem:[%s502 + $0x51] sm:$0xff] %vm503, %v477
        %512 = vst.msk [vmem:[%s502 + $0x61] sm:$0xff] %vm503, %v478
        %513 = vst.msk [vmem:[%s502 + $0x69] sm:$0xff] %vm503, %v479
        %514 = vst.msk [vmem:[%s502 + $0x79] sm:$0xff] %vm503, %v480
        %515 = vst.msk [vmem:[%s502 + $0x81] sm:$0xff] %vm503, %v481
        %516 = vst.msk [vmem:[%s502 + $0x91] sm:$0xff] %vm503, %v482
        %517 = vst.msk [vmem:[%s502 + $0x99] sm:$0xff] %vm503, %v483
        %518 = vst.msk [vmem:[%s502 + $0xa9] sm:$0xff] %vm503, %v484
        %519 = vst.msk [vmem:[%s502 + $0xb1] sm:$0xff] %vm503, %v485
        %520 = vst.msk [vmem:[%s502 + $0xc1] sm:$0xff] %vm503, %v486
        %521 = vst.msk [vmem:[%s502 + $0xc9] sm:$0xff] %vm503, %v487
        %522 = vst.msk [vmem:[%s502 + $0xd9] sm:$0xff] %vm503, %v488
        %523 = vst.msk [vmem:[%s502 + $0xe1] sm:$0xff] %vm503, %v489
        %524 = vst.msk [vmem:[%s502 + $0xf1] sm:$0xff] %vm503, %v490
        %525 = vst.msk [vmem:[%s502 + $0xf9] sm:$0xff] %vm503, %v491
        %526 = vst.msk [vmem:[%s502 + $0x109] sm:$0xff] %vm503, %v492
        %527 = vst.msk [vmem:[%s502 + $0x111] sm:$0xff] %vm503, %v493
        %528 = vst.msk [vmem:[%s502 + $0x121] sm:$0xff] %vm503, %v494
        %529 = vst.msk [vmem:[%s502 + $0x129] sm:$0xff] %vm503, %v495
        %530 = vst.msk [vmem:[%s502 + $0x139] sm:$0xff] %vm503, %v496
        %531 = vst.msk [vmem:[%s502 + $0x141] sm:$0xff] %vm503, %v497
        %532 = vst.msk [vmem:[%s502 + $0x151] sm:$0xff] %vm503, %v498
        %533 = vst.msk [vmem:[%s502 + $0x159] sm:$0xff] %vm503, %v499
        %534 = vst.msk [vmem:[%s502 + $0x169] sm:$0xff] %vm503, %v500
        %535 = vst.msk [vmem:[%s502 + $0x171] sm:$0xff] %vm503, %v501
        %v536 = vld [vmem:[#allocation2] sm:$0xff]
        %v537 = vld [vmem:[#allocation2 + $0x8] sm:$0xff]
        %v538 = vld [vmem:[#allocation2 + $0x18] sm:$0xff]
        %v539 = vld [vmem:[#allocation2 + $0x20] sm:$0xff]
        %v540 = vld [vmem:[#allocation2 + $0x30] sm:$0xff]
        %v541 = vld [vmem:[#allocation2 + $0x38] sm:$0xff]
        %v542 = vld [vmem:[#allocation2 + $0x48] sm:$0xff]
        %v543 = vld [vmem:[#allocation2 + $0x50] sm:$0xff]
        %v544 = vld [vmem:[#allocation2 + $0x60] sm:$0xff]
        %v545 = vld [vmem:[#allocation2 + $0x68] sm:$0xff]
        %v546 = vld [vmem:[#allocation2 + $0x78] sm:$0xff]
        %v547 = vld [vmem:[#allocation2 + $0x80] sm:$0xff]
        %v548 = vld [vmem:[#allocation2 + $0x90] sm:$0xff]
        %v549 = vld [vmem:[#allocation2 + $0x98] sm:$0xff]
        %v550 = vld [vmem:[#allocation2 + $0xa8] sm:$0xff]
        %v551 = vld [vmem:[#allocation2 + $0xb0] sm:$0xff]
        %v552 = vld [vmem:[#allocation2 + $0xc0] sm:$0xff]
        %v553 = vld [vmem:[#allocation2 + $0xc8] sm:$0xff]
        %v554 = vld [vmem:[#allocation2 + $0xd8] sm:$0xff]
        %v555 = vld [vmem:[#allocation2 + $0xe0] sm:$0xff]
        %v556 = vld [vmem:[#allocation2 + $0xf0] sm:$0xff]
        %v557 = vld [vmem:[#allocation2 + $0xf8] sm:$0xff]
        %v558 = vld [vmem:[#allocation2 + $0x108] sm:$0xff]
        %v559 = vld [vmem:[#allocation2 + $0x110] sm:$0xff]
        %v560 = vld [vmem:[#allocation2 + $0x120] sm:$0xff]
        %v561 = vld [vmem:[#allocation2 + $0x128] sm:$0xff]
        %v562 = vld [vmem:[#allocation2 + $0x138] sm:$0xff]
        %v563 = vld [vmem:[#allocation2 + $0x140] sm:$0xff]
        %v564 = vld [vmem:[#allocation2 + $0x150] sm:$0xff]
        %v565 = vld [vmem:[#allocation2 + $0x158] sm:$0xff]
        %v566 = vld [vmem:[#allocation2 + $0x168] sm:$0xff]
        %v567 = vld [vmem:[#allocation2 + $0x170] sm:$0xff]
        %568 = vst.msk [vmem:[#allocation3] sm:$0xff] %vm503, %v536
        %569 = vst.msk [vmem:[#allocation3 + $0x18] sm:$0xff] %vm503, %v537
        %570 = vst.msk [vmem:[#allocation3 + $0x30] sm:$0xff] %vm503, %v538
        %571 = vst.msk [vmem:[#allocation3 + $0x48] sm:$0xff] %vm503, %v539
        %572 = vst.msk [vmem:[#allocation3 + $0x60] sm:$0xff] %vm503, %v540
        %573 = vst.msk [vmem:[#allocation3 + $0x78] sm:$0xff] %vm503, %v541
        %574 = vst.msk [vmem:[#allocation3 + $0x90] sm:$0xff] %vm503, %v542
        %575 = vst.msk [vmem:[#allocation3 + $0xa8] sm:$0xff] %vm503, %v543
        %576 = vst.msk [vmem:[#allocation3 + $0xc0] sm:$0xff] %vm503, %v544
        %577 = vst.msk [vmem:[#allocation3 + $0xd8] sm:$0xff] %vm503, %v545
        %578 = vst.msk [vmem:[#allocation3 + $0xf0] sm:$0xff] %vm503, %v546
        %579 = vst.msk [vmem:[#allocation3 + $0x108] sm:$0xff] %vm503, %v547
        %580 = vst.msk [vmem:[#allocation3 + $0x120] sm:$0xff] %vm503, %v548
        %581 = vst.msk [vmem:[#allocation3 + $0x138] sm:$0xff] %vm503, %v549
        %582 = vst.msk [vmem:[#allocation3 + $0x150] sm:$0xff] %vm503, %v550
        %583 = vst.msk [vmem:[#allocation3 + $0x168] sm:$0xff] %vm503, %v551
        %584 = vst.msk [vmem:[#allocation3 + $0x180] sm:$0xff] %vm503, %v552
        %585 = vst.msk [vmem:[#allocation3 + $0x198] sm:$0xff] %vm503, %v553
        %586 = vst.msk [vmem:[#allocation3 + $0x1b0] sm:$0xff] %vm503, %v554
        %587 = vst.msk [vmem:[#allocation3 + $0x1c8] sm:$0xff] %vm503, %v555
        %588 = vst.msk [vmem:[#allocation3 + $0x1e0] sm:$0xff] %vm503, %v556
        %589 = vst.msk [vmem:[#allocation3 + $0x1f8] sm:$0xff] %vm503, %v557
        %590 = vst.msk [vmem:[#allocation3 + $0x210] sm:$0xff] %vm503, %v558
        %591 = vst.msk [vmem:[#allocation3 + $0x228] sm:$0xff] %vm503, %v559
        %592 = vst.msk [vmem:[#allocation3 + $0x240] sm:$0xff] %vm503, %v560
        %593 = vst.msk [vmem:[#allocation3 + $0x258] sm:$0xff] %vm503, %v561
        %594 = vst.msk [vmem:[#allocation3 + $0x270] sm:$0xff] %vm503, %v562
        %595 = vst.msk [vmem:[#allocation3 + $0x288] sm:$0xff] %vm503, %v563
        %596 = vst.msk [vmem:[#allocation3 + $0x2a0] sm:$0xff] %vm503, %v564
        %597 = vst.msk [vmem:[#allocation3 + $0x2b8] sm:$0xff] %vm503, %v565
        %598 = vst.msk [vmem:[#allocation3 + $0x2d0] sm:$0xff] %vm503, %v566
        %599 = vst.msk [vmem:[#allocation3 + $0x2e8] sm:$0xff] %vm503, %v567
        %v600 = vld [vmem:[#allocation2 + $0x1] sm:$0xff]
        %v601 = vld [vmem:[#allocation2 + $0x9] sm:$0xff]
        %v602 = vld [vmem:[#allocation2 + $0x19] sm:$0xff]
        %v603 = vld [vmem:[#allocation2 + $0x21] sm:$0xff]
        %v604 = vld [vmem:[#allocation2 + $0x31] sm:$0xff]
        %v605 = vld [vmem:[#allocation2 + $0x39] sm:$0xff]
        %v606 = vld [vmem:[#allocation2 + $0x49] sm:$0xff]
        %v607 = vld [vmem:[#allocation2 + $0x51] sm:$0xff]
        %v608 = vld [vmem:[#allocation2 + $0x61] sm:$0xff]
        %v609 = vld [vmem:[#allocation2 + $0x69] sm:$0xff]
        %v610 = vld [vmem:[#allocation2 + $0x79] sm:$0xff]
        %v611 = vld [vmem:[#allocation2 + $0x81] sm:$0xff]
        %v612 = vld [vmem:[#allocation2 + $0x91] sm:$0xff]
        %v613 = vld [vmem:[#allocation2 + $0x99] sm:$0xff]
        %v614 = vld [vmem:[#allocation2 + $0xa9] sm:$0xff]
        %v615 = vld [vmem:[#allocation2 + $0xb1] sm:$0xff]
        %v616 = vld [vmem:[#allocation2 + $0xc1] sm:$0xff]
        %v617 = vld [vmem:[#allocation2 + $0xc9] sm:$0xff]
        %v618 = vld [vmem:[#allocation2 + $0xd9] sm:$0xff]
        %v619 = vld [vmem:[#allocation2 + $0xe1] sm:$0xff]
        %v620 = vld [vmem:[#allocation2 + $0xf1] sm:$0xff]
        %v621 = vld [vmem:[#allocation2 + $0xf9] sm:$0xff]
        %v622 = vld [vmem:[#allocation2 + $0x109] sm:$0xff]
        %v623 = vld [vmem:[#allocation2 + $0x111] sm:$0xff]
        %v624 = vld [vmem:[#allocation2 + $0x121] sm:$0xff]
        %v625 = vld [vmem:[#allocation2 + $0x129] sm:$0xff]
        %v626 = vld [vmem:[#allocation2 + $0x139] sm:$0xff]
        %v627 = vld [vmem:[#allocation2 + $0x141] sm:$0xff]
        %v628 = vld [vmem:[#allocation2 + $0x151] sm:$0xff]
        %v629 = vld [vmem:[#allocation2 + $0x159] sm:$0xff]
        %v630 = vld [vmem:[#allocation2 + $0x169] sm:$0xff]
        %v631 = vld [vmem:[#allocation2 + $0x171] sm:$0xff]
        %664 = vrot.lane.b32.xlu0 %v600, 4
        %v665 = vpop.permute.xlu0 %664
        %666 = vrot.lane.b32.xlu0 %v601, 4
        %v667 = vpop.permute.xlu0 %666
        %668 = vrot.lane.b32.xlu0 %v602, 4
        %v669 = vpop.permute.xlu0 %668
        %670 = vrot.lane.b32.xlu0 %v603, 4
        %v671 = vpop.permute.xlu0 %670
        %672 = vrot.lane.b32.xlu0 %v604, 4
        %v673 = vpop.permute.xlu0 %672
        %674 = vrot.lane.b32.xlu0 %v605, 4
        %v675 = vpop.permute.xlu0 %674
        %676 = vrot.lane.b32.xlu0 %v606, 4
        %v677 = vpop.permute.xlu0 %676
        %678 = vrot.lane.b32.xlu0 %v607, 4
        %v679 = vpop.permute.xlu0 %678
        %680 = vrot.lane.b32.xlu0 %v608, 4
        %v681 = vpop.permute.xlu0 %680
        %682 = vrot.lane.b32.xlu0 %v609, 4
        %v683 = vpop.permute.xlu0 %682
        %684 = vrot.lane.b32.xlu0 %v610, 4
        %v685 = vpop.permute.xlu0 %684
        %686 = vrot.lane.b32.xlu0 %v611, 4
        %v687 = vpop.permute.xlu0 %686
        %688 = vrot.lane.b32.xlu0 %v612, 4
        %v689 = vpop.permute.xlu0 %688
        %690 = vrot.lane.b32.xlu0 %v613, 4
        %v691 = vpop.permute.xlu0 %690
        %692 = vrot.lane.b32.xlu0 %v614, 4
        %v693 = vpop.permute.xlu0 %692
        %694 = vrot.lane.b32.xlu0 %v615, 4
        %v695 = vpop.permute.xlu0 %694
        %696 = vrot.lane.b32.xlu0 %v616, 4
        %v697 = vpop.permute.xlu0 %696
        %698 = vrot.lane.b32.xlu0 %v617, 4
        %v699 = vpop.permute.xlu0 %698
        %700 = vrot.lane.b32.xlu0 %v618, 4
        %v701 = vpop.permute.xlu0 %700
        %702 = vrot.lane.b32.xlu0 %v619, 4
        %v703 = vpop.permute.xlu0 %702
        %704 = vrot.lane.b32.xlu0 %v620, 4
        %v705 = vpop.permute.xlu0 %704
        %706 = vrot.lane.b32.xlu0 %v621, 4
        %v707 = vpop.permute.xlu0 %706
        %708 = vrot.lane.b32.xlu0 %v622, 4
        %v709 = vpop.permute.xlu0 %708
        %710 = vrot.lane.b32.xlu0 %v623, 4
        %v711 = vpop.permute.xlu0 %710
        %712 = vrot.lane.b32.xlu0 %v624, 4
        %v713 = vpop.permute.xlu0 %712
        %714 = vrot.lane.b32.xlu0 %v625, 4
        %v715 = vpop.permute.xlu0 %714
        %716 = vrot.lane.b32.xlu0 %v626, 4
        %v717 = vpop.permute.xlu0 %716
        %718 = vrot.lane.b32.xlu0 %v627, 4
        %v719 = vpop.permute.xlu0 %718
        %720 = vrot.lane.b32.xlu0 %v628, 4
        %v721 = vpop.permute.xlu0 %720
        %722 = vrot.lane.b32.xlu0 %v629, 4
        %v723 = vpop.permute.xlu0 %722
        %724 = vrot.lane.b32.xlu0 %v630, 4
        %v725 = vpop.permute.xlu0 %724
        %726 = vrot.lane.b32.xlu0 %v631, 4
        %v727 = vpop.permute.xlu0 %726
        %vm760 = vcmask 64544
        %761 = vst.msk [vmem:[#allocation3] sm:$0xff] %vm760, %v665
        %762 = vst.msk [vmem:[#allocation3 + $0x18] sm:$0xff] %vm760, %v667
        %763 = vst.msk [vmem:[#allocation3 + $0x30] sm:$0xff] %vm760, %v669
        %764 = vst.msk [vmem:[#allocation3 + $0x48] sm:$0xff] %vm760, %v671
        %765 = vst.msk [vmem:[#allocation3 + $0x60] sm:$0xff] %vm760, %v673
        %766 = vst.msk [vmem:[#allocation3 + $0x78] sm:$0xff] %vm760, %v675
        %767 = vst.msk [vmem:[#allocation3 + $0x90] sm:$0xff] %vm760, %v677
        %768 = vst.msk [vmem:[#allocation3 + $0xa8] sm:$0xff] %vm760, %v679
        %769 = vst.msk [vmem:[#allocation3 + $0xc0] sm:$0xff] %vm760, %v681
        %770 = vst.msk [vmem:[#allocation3 + $0xd8] sm:$0xff] %vm760, %v683
        %771 = vst.msk [vmem:[#allocation3 + $0xf0] sm:$0xff] %vm760, %v685
        %772 = vst.msk [vmem:[#allocation3 + $0x108] sm:$0xff] %vm760, %v687
        %773 = vst.msk [vmem:[#allocation3 + $0x120] sm:$0xff] %vm760, %v689
        %774 = vst.msk [vmem:[#allocation3 + $0x138] sm:$0xff] %vm760, %v691
        %775 = vst.msk [vmem:[#allocation3 + $0x150] sm:$0xff] %vm760, %v693
        %776 = vst.msk [vmem:[#allocation3 + $0x168] sm:$0xff] %vm760, %v695
        %777 = vst.msk [vmem:[#allocation3 + $0x180] sm:$0xff] %vm760, %v697
        %778 = vst.msk [vmem:[#allocation3 + $0x198] sm:$0xff] %vm760, %v699
        %779 = vst.msk [vmem:[#allocation3 + $0x1b0] sm:$0xff] %vm760, %v701
        %780 = vst.msk [vmem:[#allocation3 + $0x1c8] sm:$0xff] %vm760, %v703
        %781 = vst.msk [vmem:[#allocation3 + $0x1e0] sm:$0xff] %vm760, %v705
        %782 = vst.msk [vmem:[#allocation3 + $0x1f8] sm:$0xff] %vm760, %v707
        %783 = vst.msk [vmem:[#allocation3 + $0x210] sm:$0xff] %vm760, %v709
        %784 = vst.msk [vmem:[#allocation3 + $0x228] sm:$0xff] %vm760, %v711
        %785 = vst.msk [vmem:[#allocation3 + $0x240] sm:$0xff] %vm760, %v713
        %786 = vst.msk [vmem:[#allocation3 + $0x258] sm:$0xff] %vm760, %v715
        %787 = vst.msk [vmem:[#allocation3 + $0x270] sm:$0xff] %vm760, %v717
        %788 = vst.msk [vmem:[#allocation3 + $0x288] sm:$0xff] %vm760, %v719
        %789 = vst.msk [vmem:[#allocation3 + $0x2a0] sm:$0xff] %vm760, %v721
        %790 = vst.msk [vmem:[#allocation3 + $0x2b8] sm:$0xff] %vm760, %v723
        %791 = vst.msk [vmem:[#allocation3 + $0x2d0] sm:$0xff] %vm760, %v725
        %792 = vst.msk [vmem:[#allocation3 + $0x2e8] sm:$0xff] %vm760, %v727
        %v793 = vld [vmem:[#allocation2 + $0x2] sm:$0xff]
        %v794 = vld [vmem:[#allocation2 + $0xa] sm:$0xff]
        %v795 = vld [vmem:[#allocation2 + $0x1a] sm:$0xff]
        %v796 = vld [vmem:[#allocation2 + $0x22] sm:$0xff]
        %v797 = vld [vmem:[#allocation2 + $0x32] sm:$0xff]
        %v798 = vld [vmem:[#allocation2 + $0x3a] sm:$0xff]
        %v799 = vld [vmem:[#allocation2 + $0x4a] sm:$0xff]
        %v800 = vld [vmem:[#allocation2 + $0x52] sm:$0xff]
        %v801 = vld [vmem:[#allocation2 + $0x62] sm:$0xff]
        %v802 = vld [vmem:[#allocation2 + $0x6a] sm:$0xff]
        %v803 = vld [vmem:[#allocation2 + $0x7a] sm:$0xff]
        %v804 = vld [vmem:[#allocation2 + $0x82] sm:$0xff]
        %v805 = vld [vmem:[#allocation2 + $0x92] sm:$0xff]
        %v806 = vld [vmem:[#allocation2 + $0x9a] sm:$0xff]
        %v807 = vld [vmem:[#allocation2 + $0xaa] sm:$0xff]
        %v808 = vld [vmem:[#allocation2 + $0xb2] sm:$0xff]
        %v809 = vld [vmem:[#allocation2 + $0xc2] sm:$0xff]
        %v810 = vld [vmem:[#allocation2 + $0xca] sm:$0xff]
        %v811 = vld [vmem:[#allocation2 + $0xda] sm:$0xff]
        %v812 = vld [vmem:[#allocation2 + $0xe2] sm:$0xff]
        %v813 = vld [vmem:[#allocation2 + $0xf2] sm:$0xff]
        %v814 = vld [vmem:[#allocation2 + $0xfa] sm:$0xff]
        %v815 = vld [vmem:[#allocation2 + $0x10a] sm:$0xff]
        %v816 = vld [vmem:[#allocation2 + $0x112] sm:$0xff]
        %v817 = vld [vmem:[#allocation2 + $0x122] sm:$0xff]
        %v818 = vld [vmem:[#allocation2 + $0x12a] sm:$0xff]
        %v819 = vld [vmem:[#allocation2 + $0x13a] sm:$0xff]
        %v820 = vld [vmem:[#allocation2 + $0x142] sm:$0xff]
        %v821 = vld [vmem:[#allocation2 + $0x152] sm:$0xff]
        %v822 = vld [vmem:[#allocation2 + $0x15a] sm:$0xff]
        %v823 = vld [vmem:[#allocation2 + $0x16a] sm:$0xff]
        %v824 = vld [vmem:[#allocation2 + $0x172] sm:$0xff]
        %857 = vrot.lane.b32.xlu0 %v793, 8
        %v858 = vpop.permute.xlu0 %857
        %859 = vrot.lane.b32.xlu0 %v794, 8
        %v860 = vpop.permute.xlu0 %859
        %861 = vrot.lane.b32.xlu0 %v795, 8
        %v862 = vpop.permute.xlu0 %861
        %863 = vrot.lane.b32.xlu0 %v796, 8
        %v864 = vpop.permute.xlu0 %863
        %865 = vrot.lane.b32.xlu0 %v797, 8
        %v866 = vpop.permute.xlu0 %865
        %867 = vrot.lane.b32.xlu0 %v798, 8
        %v868 = vpop.permute.xlu0 %867
        %869 = vrot.lane.b32.xlu0 %v799, 8
        %v870 = vpop.permute.xlu0 %869
        %871 = vrot.lane.b32.xlu0 %v800, 8
        %v872 = vpop.permute.xlu0 %871
        %873 = vrot.lane.b32.xlu0 %v801, 8
        %v874 = vpop.permute.xlu0 %873
        %875 = vrot.lane.b32.xlu0 %v802, 8
        %v876 = vpop.permute.xlu0 %875
        %877 = vrot.lane.b32.xlu0 %v803, 8
        %v878 = vpop.permute.xlu0 %877
        %879 = vrot.lane.b32.xlu0 %v804, 8
        %v880 = vpop.permute.xlu0 %879
        %881 = vrot.lane.b32.xlu0 %v805, 8
        %v882 = vpop.permute.xlu0 %881
        %883 = vrot.lane.b32.xlu0 %v806, 8
        %v884 = vpop.permute.xlu0 %883
        %885 = vrot.lane.b32.xlu0 %v807, 8
        %v886 = vpop.permute.xlu0 %885
        %887 = vrot.lane.b32.xlu0 %v808, 8
        %v888 = vpop.permute.xlu0 %887
        %889 = vrot.lane.b32.xlu0 %v809, 8
        %v890 = vpop.permute.xlu0 %889
        %891 = vrot.lane.b32.xlu0 %v810, 8
        %v892 = vpop.permute.xlu0 %891
        %893 = vrot.lane.b32.xlu0 %v811, 8
        %v894 = vpop.permute.xlu0 %893
        %895 = vrot.lane.b32.xlu0 %v812, 8
        %v896 = vpop.permute.xlu0 %895
        %897 = vrot.lane.b32.xlu0 %v813, 8
        %v898 = vpop.permute.xlu0 %897
        %899 = vrot.lane.b32.xlu0 %v814, 8
        %v900 = vpop.permute.xlu0 %899
        %901 = vrot.lane.b32.xlu0 %v815, 8
        %v902 = vpop.permute.xlu0 %901
        %903 = vrot.lane.b32.xlu0 %v816, 8
        %v904 = vpop.permute.xlu0 %903
        %905 = vrot.lane.b32.xlu0 %v817, 8
        %v906 = vpop.permute.xlu0 %905
        %907 = vrot.lane.b32.xlu0 %v818, 8
        %v908 = vpop.permute.xlu0 %907
        %909 = vrot.lane.b32.xlu0 %v819, 8
        %v910 = vpop.permute.xlu0 %909
        %911 = vrot.lane.b32.xlu0 %v820, 8
        %v912 = vpop.permute.xlu0 %911
        %913 = vrot.lane.b32.xlu0 %v821, 8
        %v914 = vpop.permute.xlu0 %913
        %915 = vrot.lane.b32.xlu0 %v822, 8
        %v916 = vpop.permute.xlu0 %915
        %917 = vrot.lane.b32.xlu0 %v823, 8
        %v918 = vpop.permute.xlu0 %917
        %919 = vrot.lane.b32.xlu0 %v824, 8
        %v920 = vpop.permute.xlu0 %919
        %vm953 = vcmask 97344
        %954 = vst.msk [vmem:[#allocation3] sm:$0xff] %vm953, %v858
        %955 = vst.msk [vmem:[#allocation3 + $0x18] sm:$0xff] %vm953, %v860
        %956 = vst.msk [vmem:[#allocation3 + $0x30] sm:$0xff] %vm953, %v862
        %957 = vst.msk [vmem:[#allocation3 + $0x48] sm:$0xff] %vm953, %v864
        %958 = vst.msk [vmem:[#allocation3 + $0x60] sm:$0xff] %vm953, %v866
        %959 = vst.msk [vmem:[#allocation3 + $0x78] sm:$0xff] %vm953, %v868
        %960 = vst.msk [vmem:[#allocation3 + $0x90] sm:$0xff] %vm953, %v870
        %961 = vst.msk [vmem:[#allocation3 + $0xa8] sm:$0xff] %vm953, %v872
        %962 = vst.msk [vmem:[#allocation3 + $0xc0] sm:$0xff] %vm953, %v874
        %963 = vst.msk [vmem:[#allocation3 + $0xd8] sm:$0xff] %vm953, %v876
        %964 = vst.msk [vmem:[#allocation3 + $0xf0] sm:$0xff] %vm953, %v878
        %965 = vst.msk [vmem:[#allocation3 + $0x108] sm:$0xff] %vm953, %v880
        %966 = vst.msk [vmem:[#allocation3 + $0x120] sm:$0xff] %vm953, %v882
        %967 = vst.msk [vmem:[#allocation3 + $0x138] sm:$0xff] %vm953, %v884
        %968 = vst.msk [vmem:[#allocation3 + $0x150] sm:$0xff] %vm953, %v886
        %969 = vst.msk [vmem:[#allocation3 + $0x168] sm:$0xff] %vm953, %v888
        %970 = vst.msk [vmem:[#allocation3 + $0x180] sm:$0xff] %vm953, %v890
        %971 = vst.msk [vmem:[#allocation3 + $0x198] sm:$0xff] %vm953, %v892
        %972 = vst.msk [vmem:[#allocation3 + $0x1b0] sm:$0xff] %vm953, %v894
        %973 = vst.msk [vmem:[#allocation3 + $0x1c8] sm:$0xff] %vm953, %v896
        %974 = vst.msk [vmem:[#allocation3 + $0x1e0] sm:$0xff] %vm953, %v898
        %975 = vst.msk [vmem:[#allocation3 + $0x1f8] sm:$0xff] %vm953, %v900
        %976 = vst.msk [vmem:[#allocation3 + $0x210] sm:$0xff] %vm953, %v902
        %977 = vst.msk [vmem:[#allocation3 + $0x228] sm:$0xff] %vm953, %v904
        %978 = vst.msk [vmem:[#allocation3 + $0x240] sm:$0xff] %vm953, %v906
        %979 = vst.msk [vmem:[#allocation3 + $0x258] sm:$0xff] %vm953, %v908
        %980 = vst.msk [vmem:[#allocation3 + $0x270] sm:$0xff] %vm953, %v910
        %981 = vst.msk [vmem:[#allocation3 + $0x288] sm:$0xff] %vm953, %v912
        %982 = vst.msk [vmem:[#allocation3 + $0x2a0] sm:$0xff] %vm953, %v914
        %983 = vst.msk [vmem:[#allocation3 + $0x2b8] sm:$0xff] %vm953, %v916
        %984 = vst.msk [vmem:[#allocation3 + $0x2d0] sm:$0xff] %vm953, %v918
        %985 = vst.msk [vmem:[#allocation3 + $0x2e8] sm:$0xff] %vm953, %v920
        %v986 = vld [vmem:[%s502] sm:$0xff]
        %v987 = vld [vmem:[%s502 + $0x8] sm:$0xff]
        %v988 = vld [vmem:[%s502 + $0x18] sm:$0xff]
        %v989 = vld [vmem:[%s502 + $0x20] sm:$0xff]
        %v990 = vld [vmem:[%s502 + $0x30] sm:$0xff]
        %v991 = vld [vmem:[%s502 + $0x38] sm:$0xff]
        %v992 = vld [vmem:[%s502 + $0x48] sm:$0xff]
        %v993 = vld [vmem:[%s502 + $0x50] sm:$0xff]
        %v994 = vld [vmem:[%s502 + $0x60] sm:$0xff]
        %v995 = vld [vmem:[%s502 + $0x68] sm:$0xff]
        %v996 = vld [vmem:[%s502 + $0x78] sm:$0xff]
        %v997 = vld [vmem:[%s502 + $0x80] sm:$0xff]
        %v998 = vld [vmem:[%s502 + $0x90] sm:$0xff]
        %v999 = vld [vmem:[%s502 + $0x98] sm:$0xff]
        %v1000 = vld [vmem:[%s502 + $0xa8] sm:$0xff]
        %v1001 = vld [vmem:[%s502 + $0xb0] sm:$0xff]
        %v1002 = vld [vmem:[%s502 + $0xc0] sm:$0xff]
        %v1003 = vld [vmem:[%s502 + $0xc8] sm:$0xff]
        %v1004 = vld [vmem:[%s502 + $0xd8] sm:$0xff]
        %v1005 = vld [vmem:[%s502 + $0xe0] sm:$0xff]
        %v1006 = vld [vmem:[%s502 + $0xf0] sm:$0xff]
        %v1007 = vld [vmem:[%s502 + $0xf8] sm:$0xff]
        %v1008 = vld [vmem:[%s502 + $0x108] sm:$0xff]
        %v1009 = vld [vmem:[%s502 + $0x110] sm:$0xff]
        %v1010 = vld [vmem:[%s502 + $0x120] sm:$0xff]
        %v1011 = vld [vmem:[%s502 + $0x128] sm:$0xff]
        %v1012 = vld [vmem:[%s502 + $0x138] sm:$0xff]
        %v1013 = vld [vmem:[%s502 + $0x140] sm:$0xff]
        %v1014 = vld [vmem:[%s502 + $0x150] sm:$0xff]
        %v1015 = vld [vmem:[%s502 + $0x158] sm:$0xff]
        %v1016 = vld [vmem:[%s502 + $0x168] sm:$0xff]
        %v1017 = vld [vmem:[%s502 + $0x170] sm:$0xff]
        %1050 = vrot.lane.b32.xlu0 %v986, 12
        %v1051 = vpop.permute.xlu0 %1050
        %1052 = vrot.lane.b32.xlu0 %v987, 12
        %v1053 = vpop.permute.xlu0 %1052
        %1054 = vrot.lane.b32.xlu0 %v988, 12
        %v1055 = vpop.permute.xlu0 %1054
        %1056 = vrot.lane.b32.xlu0 %v989, 12
        %v1057 = vpop.permute.xlu0 %1056
        %1058 = vrot.lane.b32.xlu0 %v990, 12
        %v1059 = vpop.permute.xlu0 %1058
        %1060 = vrot.lane.b32.xlu0 %v991, 12
        %v1061 = vpop.permute.xlu0 %1060
        %1062 = vrot.lane.b32.xlu0 %v992, 12
        %v1063 = vpop.permute.xlu0 %1062
        %1064 = vrot.lane.b32.xlu0 %v993, 12
        %v1065 = vpop.permute.xlu0 %1064
        %1066 = vrot.lane.b32.xlu0 %v994, 12
        %v1067 = vpop.permute.xlu0 %1066
        %1068 = vrot.lane.b32.xlu0 %v995, 12
        %v1069 = vpop.permute.xlu0 %1068
        %1070 = vrot.lane.b32.xlu0 %v996, 12
        %v1071 = vpop.permute.xlu0 %1070
        %1072 = vrot.lane.b32.xlu0 %v997, 12
        %v1073 = vpop.permute.xlu0 %1072
        %1074 = vrot.lane.b32.xlu0 %v998, 12
        %v1075 = vpop.permute.xlu0 %1074
        %1076 = vrot.lane.b32.xlu0 %v999, 12
        %v1077 = vpop.permute.xlu0 %1076
        %1078 = vrot.lane.b32.xlu0 %v1000, 12
        %v1079 = vpop.permute.xlu0 %1078
        %1080 = vrot.lane.b32.xlu0 %v1001, 12
        %v1081 = vpop.permute.xlu0 %1080
        %1082 = vrot.lane.b32.xlu0 %v1002, 12
        %v1083 = vpop.permute.xlu0 %1082
        %1084 = vrot.lane.b32.xlu0 %v1003, 12
        %v1085 = vpop.permute.xlu0 %1084
        %1086 = vrot.lane.b32.xlu0 %v1004, 12
        %v1087 = vpop.permute.xlu0 %1086
        %1088 = vrot.lane.b32.xlu0 %v1005, 12
        %v1089 = vpop.permute.xlu0 %1088
        %1090 = vrot.lane.b32.xlu0 %v1006, 12
        %v1091 = vpop.permute.xlu0 %1090
        %1092 = vrot.lane.b32.xlu0 %v1007, 12
        %v1093 = vpop.permute.xlu0 %1092
        %1094 = vrot.lane.b32.xlu0 %v1008, 12
        %v1095 = vpop.permute.xlu0 %1094
        %1096 = vrot.lane.b32.xlu0 %v1009, 12
        %v1097 = vpop.permute.xlu0 %1096
        %1098 = vrot.lane.b32.xlu0 %v1010, 12
        %v1099 = vpop.permute.xlu0 %1098
        %1100 = vrot.lane.b32.xlu0 %v1011, 12
        %v1101 = vpop.permute.xlu0 %1100
        %1102 = vrot.lane.b32.xlu0 %v1012, 12
        %v1103 = vpop.permute.xlu0 %1102
        %1104 = vrot.lane.b32.xlu0 %v1013, 12
        %v1105 = vpop.permute.xlu0 %1104
        %1106 = vrot.lane.b32.xlu0 %v1014, 12
        %v1107 = vpop.permute.xlu0 %1106
        %1108 = vrot.lane.b32.xlu0 %v1015, 12
        %v1109 = vpop.permute.xlu0 %1108
        %1110 = vrot.lane.b32.xlu0 %v1016, 12
        %v1111 = vpop.permute.xlu0 %1110
        %1112 = vrot.lane.b32.xlu0 %v1017, 12
        %v1113 = vpop.permute.xlu0 %1112
        %vm1146 = vcmask 130144
        %1147 = vst.msk [vmem:[#allocation3] sm:$0xff] %vm1146, %v1051
        %1148 = vst.msk [vmem:[#allocation3 + $0x18] sm:$0xff] %vm1146, %v1053
        %1149 = vst.msk [vmem:[#allocation3 + $0x30] sm:$0xff] %vm1146, %v1055
        %1150 = vst.msk [vmem:[#allocation3 + $0x48] sm:$0xff] %vm1146, %v1057
        %1151 = vst.msk [vmem:[#allocation3 + $0x60] sm:$0xff] %vm1146, %v1059
        %1152 = vst.msk [vmem:[#allocation3 + $0x78] sm:$0xff] %vm1146, %v1061
        %1153 = vst.msk [vmem:[#allocation3 + $0x90] sm:$0xff] %vm1146, %v1063
        %1154 = vst.msk [vmem:[#allocation3 + $0xa8] sm:$0xff] %vm1146, %v1065
        %1155 = vst.msk [vmem:[#allocation3 + $0xc0] sm:$0xff] %vm1146, %v1067
        %1156 = vst.msk [vmem:[#allocation3 + $0xd8] sm:$0xff] %vm1146, %v1069
        %1157 = vst.msk [vmem:[#allocation3 + $0xf0] sm:$0xff] %vm1146, %v1071
        %1158 = vst.msk [vmem:[#allocation3 + $0x108] sm:$0xff] %vm1146, %v1073
        %1159 = vst.msk [vmem:[#allocation3 + $0x120] sm:$0xff] %vm1146, %v1075
        %1160 = vst.msk [vmem:[#allocation3 + $0x138] sm:$0xff] %vm1146, %v1077
        %1161 = vst.msk [vmem:[#allocation3 + $0x150] sm:$0xff] %vm1146, %v1079
        %1162 = vst.msk [vmem:[#allocation3 + $0x168] sm:$0xff] %vm1146, %v1081
        %1163 = vst.msk [vmem:[#allocation3 + $0x180] sm:$0xff] %vm1146, %v1083
        %1164 = vst.msk [vmem:[#allocation3 + $0x198] sm:$0xff] %vm1146, %v1085
        %1165 = vst.msk [vmem:[#allocation3 + $0x1b0] sm:$0xff] %vm1146, %v1087
        %1166 = vst.msk [vmem:[#allocation3 + $0x1c8] sm:$0xff] %vm1146, %v1089
        %1167 = vst.msk [vmem:[#allocation3 + $0x1e0] sm:$0xff] %vm1146, %v1091
        %1168 = vst.msk [vmem:[#allocation3 + $0x1f8] sm:$0xff] %vm1146, %v1093
        %1169 = vst.msk [vmem:[#allocation3 + $0x210] sm:$0xff] %vm1146, %v1095
        %1170 = vst.msk [vmem:[#allocation3 + $0x228] sm:$0xff] %vm1146, %v1097
        %1171 = vst.msk [vmem:[#allocation3 + $0x240] sm:$0xff] %vm1146, %v1099
        %1172 = vst.msk [vmem:[#allocation3 + $0x258] sm:$0xff] %vm1146, %v1101
        %1173 = vst.msk [vmem:[#allocation3 + $0x270] sm:$0xff] %vm1146, %v1103
        %1174 = vst.msk [vmem:[#allocation3 + $0x288] sm:$0xff] %vm1146, %v1105
        %1175 = vst.msk [vmem:[#allocation3 + $0x2a0] sm:$0xff] %vm1146, %v1107
        %1176 = vst.msk [vmem:[#allocation3 + $0x2b8] sm:$0xff] %vm1146, %v1109
        %1177 = vst.msk [vmem:[#allocation3 + $0x2d0] sm:$0xff] %vm1146, %v1111
        %1178 = vst.msk [vmem:[#allocation3 + $0x2e8] sm:$0xff] %vm1146, %v1113
        %v1179 = vld [vmem:[%s502 + $0x1] sm:$0xff]
        %v1180 = vld [vmem:[%s502 + $0x9] sm:$0xff]
        %v1181 = vld [vmem:[%s502 + $0x19] sm:$0xff]
        %v1182 = vld [vmem:[%s502 + $0x21] sm:$0xff]
        %v1183 = vld [vmem:[%s502 + $0x31] sm:$0xff]
        %v1184 = vld [vmem:[%s502 + $0x39] sm:$0xff]
        %v1185 = vld [vmem:[%s502 + $0x49] sm:$0xff]
        %v1186 = vld [vmem:[%s502 + $0x51] sm:$0xff]
        %v1187 = vld [vmem:[%s502 + $0x61] sm:$0xff]
        %v1188 = vld [vmem:[%s502 + $0x69] sm:$0xff]
        %v1189 = vld [vmem:[%s502 + $0x79] sm:$0xff]
        %v1190 = vld [vmem:[%s502 + $0x81] sm:$0xff]
        %v1191 = vld [vmem:[%s502 + $0x91] sm:$0xff]
        %v1192 = vld [vmem:[%s502 + $0x99] sm:$0xff]
        %v1193 = vld [vmem:[%s502 + $0xa9] sm:$0xff]
        %v1194 = vld [vmem:[%s502 + $0xb1] sm:$0xff]
        %v1195 = vld [vmem:[%s502 + $0xc1] sm:$0xff]
        %v1196 = vld [vmem:[%s502 + $0xc9] sm:$0xff]
        %v1197 = vld [vmem:[%s502 + $0xd9] sm:$0xff]
        %v1198 = vld [vmem:[%s502 + $0xe1] sm:$0xff]
        %v1199 = vld [vmem:[%s502 + $0xf1] sm:$0xff]
        %v1200 = vld [vmem:[%s502 + $0xf9] sm:$0xff]
        %v1201 = vld [vmem:[%s502 + $0x109] sm:$0xff]
        %v1202 = vld [vmem:[%s502 + $0x111] sm:$0xff]
        %v1203 = vld [vmem:[%s502 + $0x121] sm:$0xff]
        %v1204 = vld [vmem:[%s502 + $0x129] sm:$0xff]
        %v1205 = vld [vmem:[%s502 + $0x139] sm:$0xff]
        %v1206 = vld [vmem:[%s502 + $0x141] sm:$0xff]
        %v1207 = vld [vmem:[%s502 + $0x151] sm:$0xff]
        %v1208 = vld [vmem:[%s502 + $0x159] sm:$0xff]
        %v1209 = vld [vmem:[%s502 + $0x169] sm:$0xff]
        %v1210 = vld [vmem:[%s502 + $0x171] sm:$0xff]
        %1243 = vrot.lane.b32.xlu0 %v1179, 16
        %v1244 = vpop.permute.xlu0 %1243
        %1245 = vrot.lane.b32.xlu0 %v1180, 16
        %v1246 = vpop.permute.xlu0 %1245
        %1247 = vrot.lane.b32.xlu0 %v1181, 16
        %v1248 = vpop.permute.xlu0 %1247
        %1249 = vrot.lane.b32.xlu0 %v1182, 16
        %v1250 = vpop.permute.xlu0 %1249
        %1251 = vrot.lane.b32.xlu0 %v1183, 16
        %v1252 = vpop.permute.xlu0 %1251
        %1253 = vrot.lane.b32.xlu0 %v1184, 16
        %v1254 = vpop.permute.xlu0 %1253
        %1255 = vrot.lane.b32.xlu0 %v1185, 16
        %v1256 = vpop.permute.xlu0 %1255
        %1257 = vrot.lane.b32.xlu0 %v1186, 16
        %v1258 = vpop.permute.xlu0 %1257
        %1259 = vrot.lane.b32.xlu0 %v1187, 16
        %v1260 = vpop.permute.xlu0 %1259
        %1261 = vrot.lane.b32.xlu0 %v1188, 16
        %v1262 = vpop.permute.xlu0 %1261
        %1263 = vrot.lane.b32.xlu0 %v1189, 16
        %v1264 = vpop.permute.xlu0 %1263
        %1265 = vrot.lane.b32.xlu0 %v1190, 16
        %v1266 = vpop.permute.xlu0 %1265
        %1267 = vrot.lane.b32.xlu0 %v1191, 16
        %v1268 = vpop.permute.xlu0 %1267
        %1269 = vrot.lane.b32.xlu0 %v1192, 16
        %v1270 = vpop.permute.xlu0 %1269
        %1271 = vrot.lane.b32.xlu0 %v1193, 16
        %v1272 = vpop.permute.xlu0 %1271
        %1273 = vrot.lane.b32.xlu0 %v1194, 16
        %v1274 = vpop.permute.xlu0 %1273
        %1275 = vrot.lane.b32.xlu0 %v1195, 16
        %v1276 = vpop.permute.xlu0 %1275
        %1277 = vrot.lane.b32.xlu0 %v1196, 16
        %v1278 = vpop.permute.xlu0 %1277
        %1279 = vrot.lane.b32.xlu0 %v1197, 16
        %v1280 = vpop.permute.xlu0 %1279
        %1281 = vrot.lane.b32.xlu0 %v1198, 16
        %v1282 = vpop.permute.xlu0 %1281
        %1283 = vrot.lane.b32.xlu0 %v1199, 16
        %v1284 = vpop.permute.xlu0 %1283
        %1285 = vrot.lane.b32.xlu0 %v1200, 16
        %v1286 = vpop.permute.xlu0 %1285
        %1287 = vrot.lane.b32.xlu0 %v1201, 16
        %v1288 = vpop.permute.xlu0 %1287
        %1289 = vrot.lane.b32.xlu0 %v1202, 16
        %v1290 = vpop.permute.xlu0 %1289
        %1291 = vrot.lane.b32.xlu0 %v1203, 16
        %v1292 = vpop.permute.xlu0 %1291
        %1293 = vrot.lane.b32.xlu0 %v1204, 16
        %v1294 = vpop.permute.xlu0 %1293
        %1295 = vrot.lane.b32.xlu0 %v1205, 16
        %v1296 = vpop.permute.xlu0 %1295
        %1297 = vrot.lane.b32.xlu0 %v1206, 16
        %v1298 = vpop.permute.xlu0 %1297
        %1299 = vrot.lane.b32.xlu0 %v1207, 16
        %v1300 = vpop.permute.xlu0 %1299
        %1301 = vrot.lane.b32.xlu0 %v1208, 16
        %v1302 = vpop.permute.xlu0 %1301
        %1303 = vrot.lane.b32.xlu0 %v1209, 16
        %v1304 = vpop.permute.xlu0 %1303
        %1305 = vrot.lane.b32.xlu0 %v1210, 16
        %v1306 = vpop.permute.xlu0 %1305
        %vm1339 = vcmask 162944
        %1340 = vst.msk [vmem:[#allocation3] sm:$0xff] %vm1339, %v1244
        %1341 = vst.msk [vmem:[#allocation3 + $0x18] sm:$0xff] %vm1339, %v1246
        %1342 = vst.msk [vmem:[#allocation3 + $0x30] sm:$0xff] %vm1339, %v1248
        %1343 = vst.msk [vmem:[#allocation3 + $0x48] sm:$0xff] %vm1339, %v1250
        %1344 = vst.msk [vmem:[#allocation3 + $0x60] sm:$0xff] %vm1339, %v1252
        %1345 = vst.msk [vmem:[#allocation3 + $0x78] sm:$0xff] %vm1339, %v1254
        %1346 = vst.msk [vmem:[#allocation3 + $0x90] sm:$0xff] %vm1339, %v1256
        %1347 = vst.msk [vmem:[#allocation3 + $0xa8] sm:$0xff] %vm1339, %v1258
        %1348 = vst.msk [vmem:[#allocation3 + $0xc0] sm:$0xff] %vm1339, %v1260
        %1349 = vst.msk [vmem:[#allocation3 + $0xd8] sm:$0xff] %vm1339, %v1262
        %1350 = vst.msk [vmem:[#allocation3 + $0xf0] sm:$0xff] %vm1339, %v1264
        %1351 = vst.msk [vmem:[#allocation3 + $0x108] sm:$0xff] %vm1339, %v1266
        %1352 = vst.msk [vmem:[#allocation3 + $0x120] sm:$0xff] %vm1339, %v1268
        %1353 = vst.msk [vmem:[#allocation3 + $0x138] sm:$0xff] %vm1339, %v1270
        %1354 = vst.msk [vmem:[#allocation3 + $0x150] sm:$0xff] %vm1339, %v1272
        %1355 = vst.msk [vmem:[#allocation3 + $0x168] sm:$0xff] %vm1339, %v1274
        %1356 = vst.msk [vmem:[#allocation3 + $0x180] sm:$0xff] %vm1339, %v1276
        %1357 = vst.msk [vmem:[#allocation3 + $0x198] sm:$0xff] %vm1339, %v1278
        %1358 = vst.msk [vmem:[#allocation3 + $0x1b0] sm:$0xff] %vm1339, %v1280
        %1359 = vst.msk [vmem:[#allocation3 + $0x1c8] sm:$0xff] %vm1339, %v1282
        %1360 = vst.msk [vmem:[#allocation3 + $0x1e0] sm:$0xff] %vm1339, %v1284
        %1361 = vst.msk [vmem:[#allocation3 + $0x1f8] sm:$0xff] %vm1339, %v1286
        %1362 = vst.msk [vmem:[#allocation3 + $0x210] sm:$0xff] %vm1339, %v1288
        %1363 = vst.msk [vmem:[#allocation3 + $0x228] sm:$0xff] %vm1339, %v1290
        %1364 = vst.msk [vmem:[#allocation3 + $0x240] sm:$0xff] %vm1339, %v1292
        %1365 = vst.msk [vmem:[#allocation3 + $0x258] sm:$0xff] %vm1339, %v1294
        %1366 = vst.msk [vmem:[#allocation3 + $0x270] sm:$0xff] %vm1339, %v1296
        %1367 = vst.msk [vmem:[#allocation3 + $0x288] sm:$0xff] %vm1339, %v1298
        %1368 = vst.msk [vmem:[#allocation3 + $0x2a0] sm:$0xff] %vm1339, %v1300
        %1369 = vst.msk [vmem:[#allocation3 + $0x2b8] sm:$0xff] %vm1339, %v1302
        %1370 = vst.msk [vmem:[#allocation3 + $0x2d0] sm:$0xff] %vm1339, %v1304
        %1371 = vst.msk [vmem:[#allocation3 + $0x2e8] sm:$0xff] %vm1339, %v1306
        %v1372 = vld [vmem:[%s502 + $0x2] sm:$0xff]
        %v1373 = vld [vmem:[%s502 + $0xa] sm:$0xff]
        %v1374 = vld [vmem:[%s502 + $0x1a] sm:$0xff]
        %v1375 = vld [vmem:[%s502 + $0x22] sm:$0xff]
        %v1376 = vld [vmem:[%s502 + $0x32] sm:$0xff]
        %v1377 = vld [vmem:[%s502 + $0x3a] sm:$0xff]
        %v1378 = vld [vmem:[%s502 + $0x4a] sm:$0xff]
        %v1379 = vld [vmem:[%s502 + $0x52] sm:$0xff]
        %v1380 = vld [vmem:[%s502 + $0x62] sm:$0xff]
        %v1381 = vld [vmem:[%s502 + $0x6a] sm:$0xff]
        %v1382 = vld [vmem:[%s502 + $0x7a] sm:$0xff]
        %v1383 = vld [vmem:[%s502 + $0x82] sm:$0xff]
        %v1384 = vld [vmem:[%s502 + $0x92] sm:$0xff]
        %v1385 = vld [vmem:[%s502 + $0x9a] sm:$0xff]
        %v1386 = vld [vmem:[%s502 + $0xaa] sm:$0xff]
        %v1387 = vld [vmem:[%s502 + $0xb2] sm:$0xff]
        %v1388 = vld [vmem:[%s502 + $0xc2] sm:$0xff]
        %v1389 = vld [vmem:[%s502 + $0xca] sm:$0xff]
        %v1390 = vld [vmem:[%s502 + $0xda] sm:$0xff]
        %v1391 = vld [vmem:[%s502 + $0xe2] sm:$0xff]
        %v1392 = vld [vmem:[%s502 + $0xf2] sm:$0xff]
        %v1393 = vld [vmem:[%s502 + $0xfa] sm:$0xff]
        %v1394 = vld [vmem:[%s502 + $0x10a] sm:$0xff]
        %v1395 = vld [vmem:[%s502 + $0x112] sm:$0xff]
        %v1396 = vld [vmem:[%s502 + $0x122] sm:$0xff]
        %v1397 = vld [vmem:[%s502 + $0x12a] sm:$0xff]
        %v1398 = vld [vmem:[%s502 + $0x13a] sm:$0xff]
        %v1399 = vld [vmem:[%s502 + $0x142] sm:$0xff]
        %v1400 = vld [vmem:[%s502 + $0x152] sm:$0xff]
        %v1401 = vld [vmem:[%s502 + $0x15a] sm:$0xff]
        %v1402 = vld [vmem:[%s502 + $0x16a] sm:$0xff]
        %v1403 = vld [vmem:[%s502 + $0x172] sm:$0xff]
        %1436 = vrot.lane.b32.xlu0 %v1372, 20
        %v1437 = vpop.permute.xlu0 %1436
        %1438 = vrot.lane.b32.xlu0 %v1373, 20
        %v1439 = vpop.permute.xlu0 %1438
        %1440 = vrot.lane.b32.xlu0 %v1374, 20
        %v1441 = vpop.permute.xlu0 %1440
        %1442 = vrot.lane.b32.xlu0 %v1375, 20
        %v1443 = vpop.permute.xlu0 %1442
        %1444 = vrot.lane.b32.xlu0 %v1376, 20
        %v1445 = vpop.permute.xlu0 %1444
        %1446 = vrot.lane.b32.xlu0 %v1377, 20
        %v1447 = vpop.permute.xlu0 %1446
        %1448 = vrot.lane.b32.xlu0 %v1378, 20
        %v1449 = vpop.permute.xlu0 %1448
        %1450 = vrot.lane.b32.xlu0 %v1379, 20
        %v1451 = vpop.permute.xlu0 %1450
        %1452 = vrot.lane.b32.xlu0 %v1380, 20
        %v1453 = vpop.permute.xlu0 %1452
        %1454 = vrot.lane.b32.xlu0 %v1381, 20
        %v1455 = vpop.permute.xlu0 %1454
        %1456 = vrot.lane.b32.xlu0 %v1382, 20
        %v1457 = vpop.permute.xlu0 %1456
        %1458 = vrot.lane.b32.xlu0 %v1383, 20
        %v1459 = vpop.permute.xlu0 %1458
        %1460 = vrot.lane.b32.xlu0 %v1384, 20
        %v1461 = vpop.permute.xlu0 %1460
        %1462 = vrot.lane.b32.xlu0 %v1385, 20
        %v1463 = vpop.permute.xlu0 %1462
        %1464 = vrot.lane.b32.xlu0 %v1386, 20
        %v1465 = vpop.permute.xlu0 %1464
        %1466 = vrot.lane.b32.xlu0 %v1387, 20
        %v1467 = vpop.permute.xlu0 %1466
        %1468 = vrot.lane.b32.xlu0 %v1388, 20
        %v1469 = vpop.permute.xlu0 %1468
        %1470 = vrot.lane.b32.xlu0 %v1389, 20
        %v1471 = vpop.permute.xlu0 %1470
        %1472 = vrot.lane.b32.xlu0 %v1390, 20
        %v1473 = vpop.permute.xlu0 %1472
        %1474 = vrot.lane.b32.xlu0 %v1391, 20
        %v1475 = vpop.permute.xlu0 %1474
        %1476 = vrot.lane.b32.xlu0 %v1392, 20
        %v1477 = vpop.permute.xlu0 %1476
        %1478 = vrot.lane.b32.xlu0 %v1393, 20
        %v1479 = vpop.permute.xlu0 %1478
        %1480 = vrot.lane.b32.xlu0 %v1394, 20
        %v1481 = vpop.permute.xlu0 %1480
        %1482 = vrot.lane.b32.xlu0 %v1395, 20
        %v1483 = vpop.permute.xlu0 %1482
        %1484 = vrot.lane.b32.xlu0 %v1396, 20
        %v1485 = vpop.permute.xlu0 %1484
        %1486 = vrot.lane.b32.xlu0 %v1397, 20
        %v1487 = vpop.permute.xlu0 %1486
        %1488 = vrot.lane.b32.xlu0 %v1398, 20
        %v1489 = vpop.permute.xlu0 %1488
        %1490 = vrot.lane.b32.xlu0 %v1399, 20
        %v1491 = vpop.permute.xlu0 %1490
        %1492 = vrot.lane.b32.xlu0 %v1400, 20
        %v1493 = vpop.permute.xlu0 %1492
        %1494 = vrot.lane.b32.xlu0 %v1401, 20
        %v1495 = vpop.permute.xlu0 %1494
        %1496 = vrot.lane.b32.xlu0 %v1402, 20
        %v1497 = vpop.permute.xlu0 %1496
        %1498 = vrot.lane.b32.xlu0 %v1403, 20
        %v1499 = vpop.permute.xlu0 %1498
        %vm1532 = vcmask 195744
        %1533 = vst.msk [vmem:[#allocation3] sm:$0xff] %vm1532, %v1437
        %1534 = vst.msk [vmem:[#allocation3 + $0x18] sm:$0xff] %vm1532, %v1439
        %1535 = vst.msk [vmem:[#allocation3 + $0x30] sm:$0xff] %vm1532, %v1441
        %1536 = vst.msk [vmem:[#allocation3 + $0x48] sm:$0xff] %vm1532, %v1443
        %1537 = vst.msk [vmem:[#allocation3 + $0x60] sm:$0xff] %vm1532, %v1445
        %1538 = vst.msk [vmem:[#allocation3 + $0x78] sm:$0xff] %vm1532, %v1447
        %1539 = vst.msk [vmem:[#allocation3 + $0x90] sm:$0xff] %vm1532, %v1449
        %1540 = vst.msk [vmem:[#allocation3 + $0xa8] sm:$0xff] %vm1532, %v1451
        %1541 = vst.msk [vmem:[#allocation3 + $0xc0] sm:$0xff] %vm1532, %v1453
        %1542 = vst.msk [vmem:[#allocation3 + $0xd8] sm:$0xff] %vm1532, %v1455
        %1543 = vst.msk [vmem:[#allocation3 + $0xf0] sm:$0xff] %vm1532, %v1457
        %1544 = vst.msk [vmem:[#allocation3 + $0x108] sm:$0xff] %vm1532, %v1459
        %1545 = vst.msk [vmem:[#allocation3 + $0x120] sm:$0xff] %vm1532, %v1461
        %1546 = vst.msk [vmem:[#allocation3 + $0x138] sm:$0xff] %vm1532, %v1463
        %1547 = vst.msk [vmem:[#allocation3 + $0x150] sm:$0xff] %vm1532, %v1465
        %1548 = vst.msk [vmem:[#allocation3 + $0x168] sm:$0xff] %vm1532, %v1467
        %1549 = vst.msk [vmem:[#allocation3 + $0x180] sm:$0xff] %vm1532, %v1469
        %1550 = vst.msk [vmem:[#allocation3 + $0x198] sm:$0xff] %vm1532, %v1471
        %1551 = vst.msk [vmem:[#allocation3 + $0x1b0] sm:$0xff] %vm1532, %v1473
        %1552 = vst.msk [vmem:[#allocation3 + $0x1c8] sm:$0xff] %vm1532, %v1475
        %1553 = vst.msk [vmem:[#allocation3 + $0x1e0] sm:$0xff] %vm1532, %v1477
        %1554 = vst.msk [vmem:[#allocation3 + $0x1f8] sm:$0xff] %vm1532, %v1479
        %1555 = vst.msk [vmem:[#allocation3 + $0x210] sm:$0xff] %vm1532, %v1481
        %1556 = vst.msk [vmem:[#allocation3 + $0x228] sm:$0xff] %vm1532, %v1483
        %1557 = vst.msk [vmem:[#allocation3 + $0x240] sm:$0xff] %vm1532, %v1485
        %1558 = vst.msk [vmem:[#allocation3 + $0x258] sm:$0xff] %vm1532, %v1487
        %1559 = vst.msk [vmem:[#allocation3 + $0x270] sm:$0xff] %vm1532, %v1489
        %1560 = vst.msk [vmem:[#allocation3 + $0x288] sm:$0xff] %vm1532, %v1491
        %1561 = vst.msk [vmem:[#allocation3 + $0x2a0] sm:$0xff] %vm1532, %v1493
        %1562 = vst.msk [vmem:[#allocation3 + $0x2b8] sm:$0xff] %vm1532, %v1495
        %1563 = vst.msk [vmem:[#allocation3 + $0x2d0] sm:$0xff] %vm1532, %v1497
        %1564 = vst.msk [vmem:[#allocation3 + $0x2e8] sm:$0xff] %vm1532, %v1499
        %s1565 = scalar_lea.vmem [#allocation2], 48
        %v1566 = vld [vmem:[%s1565] sm:$0xff]
        %v1567 = vld [vmem:[%s1565 + $0x8] sm:$0xff]
        %v1568 = vld [vmem:[%s1565 + $0x18] sm:$0xff]
        %v1569 = vld [vmem:[%s1565 + $0x20] sm:$0xff]
        %v1570 = vld [vmem:[%s1565 + $0x30] sm:$0xff]
        %v1571 = vld [vmem:[%s1565 + $0x38] sm:$0xff]
        %v1572 = vld [vmem:[%s1565 + $0x48] sm:$0xff]
        %v1573 = vld [vmem:[%s1565 + $0x50] sm:$0xff]
        %v1574 = vld [vmem:[%s1565 + $0x60] sm:$0xff]
        %v1575 = vld [vmem:[%s1565 + $0x68] sm:$0xff]
        %v1576 = vld [vmem:[%s1565 + $0x78] sm:$0xff]
        %v1577 = vld [vmem:[%s1565 + $0x80] sm:$0xff]
        %v1578 = vld [vmem:[%s1565 + $0x90] sm:$0xff]
        %v1579 = vld [vmem:[%s1565 + $0x98] sm:$0xff]
        %v1580 = vld [vmem:[%s1565 + $0xa8] sm:$0xff]
        %v1581 = vld [vmem:[%s1565 + $0xb0] sm:$0xff]
        %v1582 = vld [vmem:[%s1565 + $0xc0] sm:$0xff]
        %v1583 = vld [vmem:[%s1565 + $0xc8] sm:$0xff]
        %v1584 = vld [vmem:[%s1565 + $0xd8] sm:$0xff]
        %v1585 = vld [vmem:[%s1565 + $0xe0] sm:$0xff]
        %v1586 = vld [vmem:[%s1565 + $0xf0] sm:$0xff]
        %v1587 = vld [vmem:[%s1565 + $0xf8] sm:$0xff]
        %v1588 = vld [vmem:[%s1565 + $0x108] sm:$0xff]
        %v1589 = vld [vmem:[%s1565 + $0x110] sm:$0xff]
        %v1590 = vld [vmem:[%s1565 + $0x120] sm:$0xff]
        %v1591 = vld [vmem:[%s1565 + $0x128] sm:$0xff]
        %v1592 = vld [vmem:[%s1565 + $0x138] sm:$0xff]
        %v1593 = vld [vmem:[%s1565 + $0x140] sm:$0xff]
        %v1594 = vld [vmem:[%s1565 + $0x150] sm:$0xff]
        %v1595 = vld [vmem:[%s1565 + $0x158] sm:$0xff]
        %v1596 = vld [vmem:[%s1565 + $0x168] sm:$0xff]
        %v1597 = vld [vmem:[%s1565 + $0x170] sm:$0xff]
        %1630 = vrot.lane.b32.xlu0 %v1566, 24
        %v1631 = vpop.permute.xlu0 %1630
        %1632 = vrot.lane.b32.xlu0 %v1567, 24
        %v1633 = vpop.permute.xlu0 %1632
        %1634 = vrot.lane.b32.xlu0 %v1568, 24
        %v1635 = vpop.permute.xlu0 %1634
        %1636 = vrot.lane.b32.xlu0 %v1569, 24
        %v1637 = vpop.permute.xlu0 %1636
        %1638 = vrot.lane.b32.xlu0 %v1570, 24
        %v1639 = vpop.permute.xlu0 %1638
        %1640 = vrot.lane.b32.xlu0 %v1571, 24
        %v1641 = vpop.permute.xlu0 %1640
        %1642 = vrot.lane.b32.xlu0 %v1572, 24
        %v1643 = vpop.permute.xlu0 %1642
        %1644 = vrot.lane.b32.xlu0 %v1573, 24
        %v1645 = vpop.permute.xlu0 %1644
        %1646 = vrot.lane.b32.xlu0 %v1574, 24
        %v1647 = vpop.permute.xlu0 %1646
        %1648 = vrot.lane.b32.xlu0 %v1575, 24
        %v1649 = vpop.permute.xlu0 %1648
        %1650 = vrot.lane.b32.xlu0 %v1576, 24
        %v1651 = vpop.permute.xlu0 %1650
        %1652 = vrot.lane.b32.xlu0 %v1577, 24
        %v1653 = vpop.permute.xlu0 %1652
        %1654 = vrot.lane.b32.xlu0 %v1578, 24
        %v1655 = vpop.permute.xlu0 %1654
        %1656 = vrot.lane.b32.xlu0 %v1579, 24
        %v1657 = vpop.permute.xlu0 %1656
        %1658 = vrot.lane.b32.xlu0 %v1580, 24
        %v1659 = vpop.permute.xlu0 %1658
        %1660 = vrot.lane.b32.xlu0 %v1581, 24
        %v1661 = vpop.permute.xlu0 %1660
        %1662 = vrot.lane.b32.xlu0 %v1582, 24
        %v1663 = vpop.permute.xlu0 %1662
        %1664 = vrot.lane.b32.xlu0 %v1583, 24
        %v1665 = vpop.permute.xlu0 %1664
        %1666 = vrot.lane.b32.xlu0 %v1584, 24
        %v1667 = vpop.permute.xlu0 %1666
        %1668 = vrot.lane.b32.xlu0 %v1585, 24
        %v1669 = vpop.permute.xlu0 %1668
        %1670 = vrot.lane.b32.xlu0 %v1586, 24
        %v1671 = vpop.permute.xlu0 %1670
        %1672 = vrot.lane.b32.xlu0 %v1587, 24
        %v1673 = vpop.permute.xlu0 %1672
        %1674 = vrot.lane.b32.xlu0 %v1588, 24
        %v1675 = vpop.permute.xlu0 %1674
        %1676 = vrot.lane.b32.xlu0 %v1589, 24
        %v1677 = vpop.permute.xlu0 %1676
        %1678 = vrot.lane.b32.xlu0 %v1590, 24
        %v1679 = vpop.permute.xlu0 %1678
        %1680 = vrot.lane.b32.xlu0 %v1591, 24
        %v1681 = vpop.permute.xlu0 %1680
        %1682 = vrot.lane.b32.xlu0 %v1592, 24
        %v1683 = vpop.permute.xlu0 %1682
        %1684 = vrot.lane.b32.xlu0 %v1593, 24
        %v1685 = vpop.permute.xlu0 %1684
        %1686 = vrot.lane.b32.xlu0 %v1594, 24
        %v1687 = vpop.permute.xlu0 %1686
        %1688 = vrot.lane.b32.xlu0 %v1595, 24
        %v1689 = vpop.permute.xlu0 %1688
        %1690 = vrot.lane.b32.xlu0 %v1596, 24
        %v1691 = vpop.permute.xlu0 %1690
        %1692 = vrot.lane.b32.xlu0 %v1597, 24
        %v1693 = vpop.permute.xlu0 %1692
        %vm1726 = vcmask 228544
        %1727 = vst.msk [vmem:[#allocation3] sm:$0xff] %vm1726, %v1631
        %1728 = vst.msk [vmem:[#allocation3 + $0x18] sm:$0xff] %vm1726, %v1633
        %1729 = vst.msk [vmem:[#allocation3 + $0x30] sm:$0xff] %vm1726, %v1635
        %1730 = vst.msk [vmem:[#allocation3 + $0x48] sm:$0xff] %vm1726, %v1637
        %1731 = vst.msk [vmem:[#allocation3 + $0x60] sm:$0xff] %vm1726, %v1639
        %1732 = vst.msk [vmem:[#allocation3 + $0x78] sm:$0xff] %vm1726, %v1641
        %1733 = vst.msk [vmem:[#allocation3 + $0x90] sm:$0xff] %vm1726, %v1643
        %1734 = vst.msk [vmem:[#allocation3 + $0xa8] sm:$0xff] %vm1726, %v1645
        %1735 = vst.msk [vmem:[#allocation3 + $0xc0] sm:$0xff] %vm1726, %v1647
        %1736 = vst.msk [vmem:[#allocation3 + $0xd8] sm:$0xff] %vm1726, %v1649
        %1737 = vst.msk [vmem:[#allocation3 + $0xf0] sm:$0xff] %vm1726, %v1651
        %1738 = vst.msk [vmem:[#allocation3 + $0x108] sm:$0xff] %vm1726, %v1653
        %1739 = vst.msk [vmem:[#allocation3 + $0x120] sm:$0xff] %vm1726, %v1655
        %1740 = vst.msk [vmem:[#allocation3 + $0x138] sm:$0xff] %vm1726, %v1657
        %1741 = vst.msk [vmem:[#allocation3 + $0x150] sm:$0xff] %vm1726, %v1659
        %1742 = vst.msk [vmem:[#allocation3 + $0x168] sm:$0xff] %vm1726, %v1661
        %1743 = vst.msk [vmem:[#allocation3 + $0x180] sm:$0xff] %vm1726, %v1663
        %1744 = vst.msk [vmem:[#allocation3 + $0x198] sm:$0xff] %vm1726, %v1665
        %1745 = vst.msk [vmem:[#allocation3 + $0x1b0] sm:$0xff] %vm1726, %v1667
        %1746 = vst.msk [vmem:[#allocation3 + $0x1c8] sm:$0xff] %vm1726, %v1669
        %1747 = vst.msk [vmem:[#allocation3 + $0x1e0] sm:$0xff] %vm1726, %v1671
        %1748 = vst.msk [vmem:[#allocation3 + $0x1f8] sm:$0xff] %vm1726, %v1673
        %1749 = vst.msk [vmem:[#allocation3 + $0x210] sm:$0xff] %vm1726, %v1675
        %1750 = vst.msk [vmem:[#allocation3 + $0x228] sm:$0xff] %vm1726, %v1677
        %1751 = vst.msk [vmem:[#allocation3 + $0x240] sm:$0xff] %vm1726, %v1679
        %1752 = vst.msk [vmem:[#allocation3 + $0x258] sm:$0xff] %vm1726, %v1681
        %1753 = vst.msk [vmem:[#allocation3 + $0x270] sm:$0xff] %vm1726, %v1683
        %1754 = vst.msk [vmem:[#allocation3 + $0x288] sm:$0xff] %vm1726, %v1685
        %1755 = vst.msk [vmem:[#allocation3 + $0x2a0] sm:$0xff] %vm1726, %v1687
        %1756 = vst.msk [vmem:[#allocation3 + $0x2b8] sm:$0xff] %vm1726, %v1689
        %1757 = vst.msk [vmem:[#allocation3 + $0x2d0] sm:$0xff] %vm1726, %v1691
        %1758 = vst.msk [vmem:[#allocation3 + $0x2e8] sm:$0xff] %vm1726, %v1693
        %v1759 = vld [vmem:[%s1565 + $0x1] sm:$0xff]
        %v1760 = vld [vmem:[%s1565 + $0x9] sm:$0xff]
        %v1761 = vld [vmem:[%s1565 + $0x19] sm:$0xff]
        %v1762 = vld [vmem:[%s1565 + $0x21] sm:$0xff]
        %v1763 = vld [vmem:[%s1565 + $0x31] sm:$0xff]
        %v1764 = vld [vmem:[%s1565 + $0x39] sm:$0xff]
        %v1765 = vld [vmem:[%s1565 + $0x49] sm:$0xff]
        %v1766 = vld [vmem:[%s1565 + $0x51] sm:$0xff]
        %v1767 = vld [vmem:[%s1565 + $0x61] sm:$0xff]
        %v1768 = vld [vmem:[%s1565 + $0x69] sm:$0xff]
        %v1769 = vld [vmem:[%s1565 + $0x79] sm:$0xff]
        %v1770 = vld [vmem:[%s1565 + $0x81] sm:$0xff]
        %v1771 = vld [vmem:[%s1565 + $0x91] sm:$0xff]
        %v1772 = vld [vmem:[%s1565 + $0x99] sm:$0xff]
        %v1773 = vld [vmem:[%s1565 + $0xa9] sm:$0xff]
        %v1774 = vld [vmem:[%s1565 + $0xb1] sm:$0xff]
        %v1775 = vld [vmem:[%s1565 + $0xc1] sm:$0xff]
        %v1776 = vld [vmem:[%s1565 + $0xc9] sm:$0xff]
        %v1777 = vld [vmem:[%s1565 + $0xd9] sm:$0xff]
        %v1778 = vld [vmem:[%s1565 + $0xe1] sm:$0xff]
        %v1779 = vld [vmem:[%s1565 + $0xf1] sm:$0xff]
        %v1780 = vld [vmem:[%s1565 + $0xf9] sm:$0xff]
        %v1781 = vld [vmem:[%s1565 + $0x109] sm:$0xff]
        %v1782 = vld [vmem:[%s1565 + $0x111] sm:$0xff]
        %v1783 = vld [vmem:[%s1565 + $0x121] sm:$0xff]
        %v1784 = vld [vmem:[%s1565 + $0x129] sm:$0xff]
        %v1785 = vld [vmem:[%s1565 + $0x139] sm:$0xff]
        %v1786 = vld [vmem:[%s1565 + $0x141] sm:$0xff]
        %v1787 = vld [vmem:[%s1565 + $0x151] sm:$0xff]
        %v1788 = vld [vmem:[%s1565 + $0x159] sm:$0xff]
        %v1789 = vld [vmem:[%s1565 + $0x169] sm:$0xff]
        %v1790 = vld [vmem:[%s1565 + $0x171] sm:$0xff]
        %1823 = vrot.lane.b32.xlu0 %v1759, 28
        %v1824 = vpop.permute.xlu0 %1823
        %1825 = vrot.lane.b32.xlu0 %v1760, 28
        %v1826 = vpop.permute.xlu0 %1825
        %1827 = vrot.lane.b32.xlu0 %v1761, 28
        %v1828 = vpop.permute.xlu0 %1827
        %1829 = vrot.lane.b32.xlu0 %v1762, 28
        %v1830 = vpop.permute.xlu0 %1829
        %1831 = vrot.lane.b32.xlu0 %v1763, 28
        %v1832 = vpop.permute.xlu0 %1831
        %1833 = vrot.lane.b32.xlu0 %v1764, 28
        %v1834 = vpop.permute.xlu0 %1833
        %1835 = vrot.lane.b32.xlu0 %v1765, 28
        %v1836 = vpop.permute.xlu0 %1835
        %1837 = vrot.lane.b32.xlu0 %v1766, 28
        %v1838 = vpop.permute.xlu0 %1837
        %1839 = vrot.lane.b32.xlu0 %v1767, 28
        %v1840 = vpop.permute.xlu0 %1839
        %1841 = vrot.lane.b32.xlu0 %v1768, 28
        %v1842 = vpop.permute.xlu0 %1841
        %1843 = vrot.lane.b32.xlu0 %v1769, 28
        %v1844 = vpop.permute.xlu0 %1843
        %1845 = vrot.lane.b32.xlu0 %v1770, 28
        %v1846 = vpop.permute.xlu0 %1845
        %1847 = vrot.lane.b32.xlu0 %v1771, 28
        %v1848 = vpop.permute.xlu0 %1847
        %1849 = vrot.lane.b32.xlu0 %v1772, 28
        %v1850 = vpop.permute.xlu0 %1849
        %1851 = vrot.lane.b32.xlu0 %v1773, 28
        %v1852 = vpop.permute.xlu0 %1851
        %1853 = vrot.lane.b32.xlu0 %v1774, 28
        %v1854 = vpop.permute.xlu0 %1853
        %1855 = vrot.lane.b32.xlu0 %v1775, 28
        %v1856 = vpop.permute.xlu0 %1855
        %1857 = vrot.lane.b32.xlu0 %v1776, 28
        %v1858 = vpop.permute.xlu0 %1857
        %1859 = vrot.lane.b32.xlu0 %v1777, 28
        %v1860 = vpop.permute.xlu0 %1859
        %1861 = vrot.lane.b32.xlu0 %v1778, 28
        %v1862 = vpop.permute.xlu0 %1861
        %1863 = vrot.lane.b32.xlu0 %v1779, 28
        %v1864 = vpop.permute.xlu0 %1863
        %1865 = vrot.lane.b32.xlu0 %v1780, 28
        %v1866 = vpop.permute.xlu0 %1865
        %1867 = vrot.lane.b32.xlu0 %v1781, 28
        %v1868 = vpop.permute.xlu0 %1867
        %1869 = vrot.lane.b32.xlu0 %v1782, 28
        %v1870 = vpop.permute.xlu0 %1869
        %1871 = vrot.lane.b32.xlu0 %v1783, 28
        %v1872 = vpop.permute.xlu0 %1871
        %1873 = vrot.lane.b32.xlu0 %v1784, 28
        %v1874 = vpop.permute.xlu0 %1873
        %1875 = vrot.lane.b32.xlu0 %v1785, 28
        %v1876 = vpop.permute.xlu0 %1875
        %1877 = vrot.lane.b32.xlu0 %v1786, 28
        %v1878 = vpop.permute.xlu0 %1877
        %1879 = vrot.lane.b32.xlu0 %v1787, 28
        %v1880 = vpop.permute.xlu0 %1879
        %1881 = vrot.lane.b32.xlu0 %v1788, 28
        %v1882 = vpop.permute.xlu0 %1881
        %1883 = vrot.lane.b32.xlu0 %v1789, 28
        %v1884 = vpop.permute.xlu0 %1883
        %1885 = vrot.lane.b32.xlu0 %v1790, 28
        %v1886 = vpop.permute.xlu0 %1885
        %vm1919 = vcmask 261344
        %1920 = vst.msk [vmem:[#allocation3] sm:$0xff] %vm1919, %v1824
        %1921 = vst.msk [vmem:[#allocation3 + $0x18] sm:$0xff] %vm1919, %v1826
        %1922 = vst.msk [vmem:[#allocation3 + $0x30] sm:$0xff] %vm1919, %v1828
        %1923 = vst.msk [vmem:[#allocation3 + $0x48] sm:$0xff] %vm1919, %v1830
        %1924 = vst.msk [vmem:[#allocation3 + $0x60] sm:$0xff] %vm1919, %v1832
        %1925 = vst.msk [vmem:[#allocation3 + $0x78] sm:$0xff] %vm1919, %v1834
        %1926 = vst.msk [vmem:[#allocation3 + $0x90] sm:$0xff] %vm1919, %v1836
        %1927 = vst.msk [vmem:[#allocation3 + $0xa8] sm:$0xff] %vm1919, %v1838
        %1928 = vst.msk [vmem:[#allocation3 + $0xc0] sm:$0xff] %vm1919, %v1840
        %1929 = vst.msk [vmem:[#allocation3 + $0xd8] sm:$0xff] %vm1919, %v1842
        %1930 = vst.msk [vmem:[#allocation3 + $0xf0] sm:$0xff] %vm1919, %v1844
        %1931 = vst.msk [vmem:[#allocation3 + $0x108] sm:$0xff] %vm1919, %v1846
        %1932 = vst.msk [vmem:[#allocation3 + $0x120] sm:$0xff] %vm1919, %v1848
        %1933 = vst.msk [vmem:[#allocation3 + $0x138] sm:$0xff] %vm1919, %v1850
        %1934 = vst.msk [vmem:[#allocation3 + $0x150] sm:$0xff] %vm1919, %v1852
        %1935 = vst.msk [vmem:[#allocation3 + $0x168] sm:$0xff] %vm1919, %v1854
        %1936 = vst.msk [vmem:[#allocation3 + $0x180] sm:$0xff] %vm1919, %v1856
        %1937 = vst.msk [vmem:[#allocation3 + $0x198] sm:$0xff] %vm1919, %v1858
        %1938 = vst.msk [vmem:[#allocation3 + $0x1b0] sm:$0xff] %vm1919, %v1860
        %1939 = vst.msk [vmem:[#allocation3 + $0x1c8] sm:$0xff] %vm1919, %v1862
        %1940 = vst.msk [vmem:[#allocation3 + $0x1e0] sm:$0xff] %vm1919, %v1864
        %1941 = vst.msk [vmem:[#allocation3 + $0x1f8] sm:$0xff] %vm1919, %v1866
        %1942 = vst.msk [vmem:[#allocation3 + $0x210] sm:$0xff] %vm1919, %v1868
        %1943 = vst.msk [vmem:[#allocation3 + $0x228] sm:$0xff] %vm1919, %v1870
        %1944 = vst.msk [vmem:[#allocation3 + $0x240] sm:$0xff] %vm1919, %v1872
        %1945 = vst.msk [vmem:[#allocation3 + $0x258] sm:$0xff] %vm1919, %v1874
        %1946 = vst.msk [vmem:[#allocation3 + $0x270] sm:$0xff] %vm1919, %v1876
        %1947 = vst.msk [vmem:[#allocation3 + $0x288] sm:$0xff] %vm1919, %v1878
        %1948 = vst.msk [vmem:[#allocation3 + $0x2a0] sm:$0xff] %vm1919, %v1880
        %1949 = vst.msk [vmem:[#allocation3 + $0x2b8] sm:$0xff] %vm1919, %v1882
        %1950 = vst.msk [vmem:[#allocation3 + $0x2d0] sm:$0xff] %vm1919, %v1884
        %1951 = vst.msk [vmem:[#allocation3 + $0x2e8] sm:$0xff] %vm1919, %v1886
        %v1952 = vld [vmem:[%s1565 + $0x2] sm:$0xff]
        %v1953 = vld [vmem:[%s1565 + $0xa] sm:$0xff]
        %v1954 = vld [vmem:[%s1565 + $0x1a] sm:$0xff]
        %v1955 = vld [vmem:[%s1565 + $0x22] sm:$0xff]
        %v1956 = vld [vmem:[%s1565 + $0x32] sm:$0xff]
        %v1957 = vld [vmem:[%s1565 + $0x3a] sm:$0xff]
        %v1958 = vld [vmem:[%s1565 + $0x4a] sm:$0xff]
        %v1959 = vld [vmem:[%s1565 + $0x52] sm:$0xff]
        %v1960 = vld [vmem:[%s1565 + $0x62] sm:$0xff]
        %v1961 = vld [vmem:[%s1565 + $0x6a] sm:$0xff]
        %v1962 = vld [vmem:[%s1565 + $0x7a] sm:$0xff]
        %v1963 = vld [vmem:[%s1565 + $0x82] sm:$0xff]
        %v1964 = vld [vmem:[%s1565 + $0x92] sm:$0xff]
        %v1965 = vld [vmem:[%s1565 + $0x9a] sm:$0xff]
        %v1966 = vld [vmem:[%s1565 + $0xaa] sm:$0xff]
        %v1967 = vld [vmem:[%s1565 + $0xb2] sm:$0xff]
        %v1968 = vld [vmem:[%s1565 + $0xc2] sm:$0xff]
        %v1969 = vld [vmem:[%s1565 + $0xca] sm:$0xff]
        %v1970 = vld [vmem:[%s1565 + $0xda] sm:$0xff]
        %v1971 = vld [vmem:[%s1565 + $0xe2] sm:$0xff]
        %v1972 = vld [vmem:[%s1565 + $0xf2] sm:$0xff]
        %v1973 = vld [vmem:[%s1565 + $0xfa] sm:$0xff]
        %v1974 = vld [vmem:[%s1565 + $0x10a] sm:$0xff]
        %v1975 = vld [vmem:[%s1565 + $0x112] sm:$0xff]
        %v1976 = vld [vmem:[%s1565 + $0x122] sm:$0xff]
        %v1977 = vld [vmem:[%s1565 + $0x12a] sm:$0xff]
        %v1978 = vld [vmem:[%s1565 + $0x13a] sm:$0xff]
        %v1979 = vld [vmem:[%s1565 + $0x142] sm:$0xff]
        %v1980 = vld [vmem:[%s1565 + $0x152] sm:$0xff]
        %v1981 = vld [vmem:[%s1565 + $0x15a] sm:$0xff]
        %v1982 = vld [vmem:[%s1565 + $0x16a] sm:$0xff]
        %v1983 = vld [vmem:[%s1565 + $0x172] sm:$0xff]
        %2016 = vrot.lane.b32.xlu0 %v1952, 32
        %v2017 = vpop.permute.xlu0 %2016
        %2018 = vrot.lane.b32.xlu0 %v1953, 32
        %v2019 = vpop.permute.xlu0 %2018
        %2020 = vrot.lane.b32.xlu0 %v1954, 32
        %v2021 = vpop.permute.xlu0 %2020
        %2022 = vrot.lane.b32.xlu0 %v1955, 32
        %v2023 = vpop.permute.xlu0 %2022
        %2024 = vrot.lane.b32.xlu0 %v1956, 32
        %v2025 = vpop.permute.xlu0 %2024
        %2026 = vrot.lane.b32.xlu0 %v1957, 32
        %v2027 = vpop.permute.xlu0 %2026
        %2028 = vrot.lane.b32.xlu0 %v1958, 32
        %v2029 = vpop.permute.xlu0 %2028
        %2030 = vrot.lane.b32.xlu0 %v1959, 32
        %v2031 = vpop.permute.xlu0 %2030
        %2032 = vrot.lane.b32.xlu0 %v1960, 32
        %v2033 = vpop.permute.xlu0 %2032
        %2034 = vrot.lane.b32.xlu0 %v1961, 32
        %v2035 = vpop.permute.xlu0 %2034
        %2036 = vrot.lane.b32.xlu0 %v1962, 32
        %v2037 = vpop.permute.xlu0 %2036
        %2038 = vrot.lane.b32.xlu0 %v1963, 32
        %v2039 = vpop.permute.xlu0 %2038
        %2040 = vrot.lane.b32.xlu0 %v1964, 32
        %v2041 = vpop.permute.xlu0 %2040
        %2042 = vrot.lane.b32.xlu0 %v1965, 32
        %v2043 = vpop.permute.xlu0 %2042
        %2044 = vrot.lane.b32.xlu0 %v1966, 32
        %v2045 = vpop.permute.xlu0 %2044
        %2046 = vrot.lane.b32.xlu0 %v1967, 32
        %v2047 = vpop.permute.xlu0 %2046
        %2048 = vrot.lane.b32.xlu0 %v1968, 32
        %v2049 = vpop.permute.xlu0 %2048
        %2050 = vrot.lane.b32.xlu0 %v1969, 32
        %v2051 = vpop.permute.xlu0 %2050
        %2052 = vrot.lane.b32.xlu0 %v1970, 32
        %v2053 = vpop.permute.xlu0 %2052
        %2054 = vrot.lane.b32.xlu0 %v1971, 32
        %v2055 = vpop.permute.xlu0 %2054
        %2056 = vrot.lane.b32.xlu0 %v1972, 32
        %v2057 = vpop.permute.xlu0 %2056
        %2058 = vrot.lane.b32.xlu0 %v1973, 32
        %v2059 = vpop.permute.xlu0 %2058
        %2060 = vrot.lane.b32.xlu0 %v1974, 32
        %v2061 = vpop.permute.xlu0 %2060
        %2062 = vrot.lane.b32.xlu0 %v1975, 32
        %v2063 = vpop.permute.xlu0 %2062
        %2064 = vrot.lane.b32.xlu0 %v1976, 32
        %v2065 = vpop.permute.xlu0 %2064
        %2066 = vrot.lane.b32.xlu0 %v1977, 32
        %v2067 = vpop.permute.xlu0 %2066
        %2068 = vrot.lane.b32.xlu0 %v1978, 32
        %v2069 = vpop.permute.xlu0 %2068
        %2070 = vrot.lane.b32.xlu0 %v1979, 32
        %v2071 = vpop.permute.xlu0 %2070
        %2072 = vrot.lane.b32.xlu0 %v1980, 32
        %v2073 = vpop.permute.xlu0 %2072
        %2074 = vrot.lane.b32.xlu0 %v1981, 32
        %v2075 = vpop.permute.xlu0 %2074
        %2076 = vrot.lane.b32.xlu0 %v1982, 32
        %v2077 = vpop.permute.xlu0 %2076
        %2078 = vrot.lane.b32.xlu0 %v1983, 32
        %v2079 = vpop.permute.xlu0 %2078
        %vm2112 = vcmask 294144
        %2113 = vst.msk [vmem:[#allocation3] sm:$0xff] %vm2112, %v2017
        %2114 = vst.msk [vmem:[#allocation3 + $0x18] sm:$0xff] %vm2112, %v2019
        %2115 = vst.msk [vmem:[#allocation3 + $0x30] sm:$0xff] %vm2112, %v2021
        %2116 = vst.msk [vmem:[#allocation3 + $0x48] sm:$0xff] %vm2112, %v2023
        %2117 = vst.msk [vmem:[#allocation3 + $0x60] sm:$0xff] %vm2112, %v2025
        %2118 = vst.msk [vmem:[#allocation3 + $0x78] sm:$0xff] %vm2112, %v2027
        %2119 = vst.msk [vmem:[#allocation3 + $0x90] sm:$0xff] %vm2112, %v2029
        %2120 = vst.msk [vmem:[#allocation3 + $0xa8] sm:$0xff] %vm2112, %v2031
        %2121 = vst.msk [vmem:[#allocation3 + $0xc0] sm:$0xff] %vm2112, %v2033
        %2122 = vst.msk [vmem:[#allocation3 + $0xd8] sm:$0xff] %vm2112, %v2035
        %2123 = vst.msk [vmem:[#allocation3 + $0xf0] sm:$0xff] %vm2112, %v2037
        %2124 = vst.msk [vmem:[#allocation3 + $0x108] sm:$0xff] %vm2112, %v2039
        %2125 = vst.msk [vmem:[#allocation3 + $0x120] sm:$0xff] %vm2112, %v2041
        %2126 = vst.msk [vmem:[#allocation3 + $0x138] sm:$0xff] %vm2112, %v2043
        %2127 = vst.msk [vmem:[#allocation3 + $0x150] sm:$0xff] %vm2112, %v2045
        %2128 = vst.msk [vmem:[#allocation3 + $0x168] sm:$0xff] %vm2112, %v2047
        %2129 = vst.msk [vmem:[#allocation3 + $0x180] sm:$0xff] %vm2112, %v2049
        %2130 = vst.msk [vmem:[#allocation3 + $0x198] sm:$0xff] %vm2112, %v2051
        %2131 = vst.msk [vmem:[#allocation3 + $0x1b0] sm:$0xff] %vm2112, %v2053
        %2132 = vst.msk [vmem:[#allocation3 + $0x1c8] sm:$0xff] %vm2112, %v2055
        %2133 = vst.msk [vmem:[#allocation3 + $0x1e0] sm:$0xff] %vm2112, %v2057
        %2134 = vst.msk [vmem:[#allocation3 + $0x1f8] sm:$0xff] %vm2112, %v2059
        %2135 = vst.msk [vmem:[#allocation3 + $0x210] sm:$0xff] %vm2112, %v2061
        %2136 = vst.msk [vmem:[#allocation3 + $0x228] sm:$0xff] %vm2112, %v2063
        %2137 = vst.msk [vmem:[#allocation3 + $0x240] sm:$0xff] %vm2112, %v2065
        %2138 = vst.msk [vmem:[#allocation3 + $0x258] sm:$0xff] %vm2112, %v2067
        %2139 = vst.msk [vmem:[#allocation3 + $0x270] sm:$0xff] %vm2112, %v2069
        %2140 = vst.msk [vmem:[#allocation3 + $0x288] sm:$0xff] %vm2112, %v2071
        %2141 = vst.msk [vmem:[#allocation3 + $0x2a0] sm:$0xff] %vm2112, %v2073
        %2142 = vst.msk [vmem:[#allocation3 + $0x2b8] sm:$0xff] %vm2112, %v2075
        %2143 = vst.msk [vmem:[#allocation3 + $0x2d0] sm:$0xff] %vm2112, %v2077
        %2144 = vst.msk [vmem:[#allocation3 + $0x2e8] sm:$0xff] %vm2112, %v2079
        %v2145 = vld [vmem:[#allocation3] sm:$0xff]
        %v2146 = vld [vmem:[#allocation3 + $0x18] sm:$0xff]
        %v2147 = vld [vmem:[#allocation3 + $0x30] sm:$0xff]
        %v2148 = vld [vmem:[#allocation3 + $0x48] sm:$0xff]
        %v2149 = vld [vmem:[#allocation3 + $0x60] sm:$0xff]
        %v2150 = vld [vmem:[#allocation3 + $0x78] sm:$0xff]
        %v2151 = vld [vmem:[#allocation3 + $0x90] sm:$0xff]
        %v2152 = vld [vmem:[#allocation3 + $0xa8] sm:$0xff]
        %v2153 = vld [vmem:[#allocation3 + $0xc0] sm:$0xff]
        %v2154 = vld [vmem:[#allocation3 + $0xd8] sm:$0xff]
        %v2155 = vld [vmem:[#allocation3 + $0xf0] sm:$0xff]
        %v2156 = vld [vmem:[#allocation3 + $0x108] sm:$0xff]
        %v2157 = vld [vmem:[#allocation3 + $0x120] sm:$0xff]
        %v2158 = vld [vmem:[#allocation3 + $0x138] sm:$0xff]
        %v2159 = vld [vmem:[#allocation3 + $0x150] sm:$0xff]
        %v2160 = vld [vmem:[#allocation3 + $0x168] sm:$0xff]
        %v2161 = vld [vmem:[#allocation3 + $0x180] sm:$0xff]
        %v2162 = vld [vmem:[#allocation3 + $0x198] sm:$0xff]
        %v2163 = vld [vmem:[#allocation3 + $0x1b0] sm:$0xff]
        %v2164 = vld [vmem:[#allocation3 + $0x1c8] sm:$0xff]
        %v2165 = vld [vmem:[#allocation3 + $0x1e0] sm:$0xff]
        %v2166 = vld [vmem:[#allocation3 + $0x1f8] sm:$0xff]
        %v2167 = vld [vmem:[#allocation3 + $0x210] sm:$0xff]
        %v2168 = vld [vmem:[#allocation3 + $0x228] sm:$0xff]
        %v2169 = vld [vmem:[#allocation3 + $0x240] sm:$0xff]
        %v2170 = vld [vmem:[#allocation3 + $0x258] sm:$0xff]
        %v2171 = vld [vmem:[#allocation3 + $0x270] sm:$0xff]
        %v2172 = vld [vmem:[#allocation3 + $0x288] sm:$0xff]
        %v2173 = vld [vmem:[#allocation3 + $0x2a0] sm:$0xff]
        %v2174 = vld [vmem:[#allocation3 + $0x2b8] sm:$0xff]
        %v2175 = vld [vmem:[#allocation3 + $0x2d0] sm:$0xff]
        %v2176 = vld [vmem:[#allocation3 + $0x2e8] sm:$0xff]
        %v2177 = vld [vmem:[%s1] sm:$0xff]
        %v2178 = vld [vmem:[%s1 + $0x8] sm:$0xff]
        %v2179 = vld [vmem:[%s1 + $0x10] sm:$0xff]
        %v2180 = vld [vmem:[%s1 + $0x18] sm:$0xff]
        %v2181 = vld [vmem:[%s1 + $0x20] sm:$0xf]
        %v2182 = vld [vmem:[%s2] sm:$0x1]
        %v2184 = vlaneseq
        %v2185 = vshrl.u32 %v2184, 7
        %v2186 = vsub.s32 0, %v2185
        %v2187 = vrot.slane %v2182, %v2186
        %vm2189 = vcmask 293888
        %v2191 = vsel %vm2189, %v2145, 0
        %v2194 = vsel %vm2189, %v2146, 0
        %v2197 = vsel %vm2189, %v2147, 0
        %v2200 = vsel %vm2189, %v2148, 0
        %v2203 = vsel %vm2189, %v2149, 0
        %v2206 = vsel %vm2189, %v2150, 0
        %v2209 = vsel %vm2189, %v2151, 0
        %v2212 = vsel %vm2189, %v2152, 0
        %v2215 = vsel %vm2189, %v2153, 0
        %v2218 = vsel %vm2189, %v2154, 0
        %v2221 = vsel %vm2189, %v2155, 0
        %v2224 = vsel %vm2189, %v2156, 0
        %v2227 = vsel %vm2189, %v2157, 0
        %v2230 = vsel %vm2189, %v2158, 0
        %v2233 = vsel %vm2189, %v2159, 0
        %v2236 = vsel %vm2189, %v2160, 0
        %v2239 = vsel %vm2189, %v2161, 0
        %v2242 = vsel %vm2189, %v2162, 0
        %v2245 = vsel %vm2189, %v2163, 0
        %v2248 = vsel %vm2189, %v2164, 0
        %v2251 = vsel %vm2189, %v2165, 0
        %v2254 = vsel %vm2189, %v2166, 0
        %v2257 = vsel %vm2189, %v2167, 0
        %v2260 = vsel %vm2189, %v2168, 0
        %v2263 = vsel %vm2189, %v2169, 0
        %v2266 = vsel %vm2189, %v2170, 0
        %v2269 = vsel %vm2189, %v2171, 0
        %v2272 = vsel %vm2189, %v2172, 0
        %v2275 = vsel %vm2189, %v2173, 0
        %v2278 = vsel %vm2189, %v2174, 0
        %v2281 = vsel %vm2189, %v2175, 0
        %v2284 = vsel %vm2189, %v2176, 0
        %vm2286 = vcmask 1043456
        %v2288 = vsel %vm2286, %v2181, 0
        %2290 = vmatprep.subr.mxu0 0.0
        %2291 = vmatpush1.msra.mxu0 %v2177
        %2292 = vmatprep.subr.mxu0 0.0
        %2293 = vmatpush1.msra.mxu0 %v2178
        %2294 = vmatprep.subr.mxu0 0.0
        %2295 = vmatpush1.msra.mxu0 %v2179
        %2296 = vmatprep.subr.mxu0 0.0
        %2297 = vmatpush1.msra.mxu0 %v2180
        %2298 = vmatprep.subr.mxu0 0.0
        %2299 = vmatpush1.msra.mxu0 %v2288
        %2300 = vmatprep.subr.mxu0 0.0
        %2301 = vmatpush1.msra.mxu0 0.0
        %2302 = vmatprep.subr.mxu0 0.0
        %2303 = vmatpush1.msra.mxu0 0.0
        %2304 = vmatprep.subr.mxu0 0.0
        %2305 = vmatpush1.msra.mxu0 0.0
        %2306 = vmatprep.subr.mxu0 0.0
        %2307 = vmatpush1.msra.mxu0 0.0
        %2308 = vmatprep.subr.mxu0 0.0
        %2309 = vmatpush1.msra.mxu0 0.0
        %2310 = vmatprep.subr.mxu0 0.0
        %2311 = vmatpush1.msra.mxu0 0.0
        %2312 = vmatprep.subr.mxu0 0.0
        %2313 = vmatpush1.msra.mxu0 0.0
        %2314 = vmatprep.subr.mxu0 0.0
        %2315 = vmatpush1.msra.mxu0 0.0
        %2316 = vmatprep.subr.mxu0 0.0
        %2317 = vmatpush1.msra.mxu0 0.0
        %2318 = vmatprep.subr.mxu0 0.0
        %2319 = vmatpush1.msra.mxu0 0.0
        %2320 = vmatprep.subr.mxu0 0.0
        %2321 = vmatpush1.msra.mxu0 0.0
        %2322 = vmatprep.subr.mxu0 0.0
        %2323 = vmatpush1.msra.mxu0 0.0
        %2324 = vmatprep.subr.mxu0 0.0
        %2325 = vmatpush1.msra.mxu0 0.0
        %2326 = vmatprep.subr.mxu0 0.0
        %2327 = vmatpush1.msra.mxu0 0.0
        %2328 = vmatprep.subr.mxu0 0.0
        %2329 = vmatpush1.msra.mxu0 0.0
        %2330 = vmatprep.subr.mxu0 0.0
        %2331 = vmatpush1.msra.mxu0 0.0
        %2332 = vmatprep.subr.mxu0 0.0
        %2333 = vmatpush1.msra.mxu0 0.0
        %2334 = vmatprep.subr.mxu0 0.0
        %2335 = vmatpush1.msra.mxu0 0.0
        %2336 = vmatprep.subr.mxu0 0.0
        %2337 = vmatpush1.msra.mxu0 0.0
        %2338 = vmatprep.subr.mxu0 0.0
        %2339 = vmatpush1.msra.mxu0 0.0
        %2340 = vmatprep.subr.mxu0 0.0
        %2341 = vmatpush1.msra.mxu0 0.0
        %2342 = vmatprep.subr.mxu0 0.0
        %2343 = vmatpush1.msra.mxu0 0.0
        %2344 = vmatprep.subr.mxu0 0.0
        %2345 = vmatpush1.msra.mxu0 0.0
        %2346 = vmatprep.subr.mxu0 0.0
        %2347 = vmatpush1.msra.mxu0 0.0
        %2348 = vmatprep.subr.mxu0 0.0
        %2349 = vmatpush1.msra.mxu0 0.0
        %2350 = vmatprep.subr.mxu0 0.0
        %2351 = vmatpush1.msra.mxu0 0.0
        %2352 = vmatprep.subr.mxu0 0.0
        %2353 = vmatpush1.msra.mxu0 0.0
        %2354 = vmatprep.mubr.f32.mxu0 0.0
        %2355 = vmatmul.mubr.f32.gmra.mrb[0].mxu0 %v2191
        %v2356 = vpop.f32.mrb[0].mxu0
        %v2357 = vadd.f32 %v2187, %v2356
        %v2358 = vpop.f32.mrb[0].mxu0
        %2359 = vmatprep.mubr.f32.mxu0 0.0
        %2360 = vmatmul.mubr.f32.gmra.mrb[0].mxu0 %v2194
        %v2361 = vpop.f32.mrb[0].mxu0
        %v2362 = vadd.f32 %v2187, %v2361
        %v2363 = vpop.f32.mrb[0].mxu0
        %2364 = vmatprep.mubr.f32.mxu0 0.0
        %2365 = vmatmul.mubr.f32.gmra.mrb[0].mxu0 %v2197
        %v2366 = vpop.f32.mrb[0].mxu0
        %v2367 = vadd.f32 %v2187, %v2366
        %v2368 = vpop.f32.mrb[0].mxu0
        %2369 = vmatprep.mubr.f32.mxu0 0.0
        %2370 = vmatmul.mubr.f32.gmra.mrb[0].mxu0 %v2200
        %v2371 = vpop.f32.mrb[0].mxu0
        %v2372 = vadd.f32 %v2187, %v2371
        %v2373 = vpop.f32.mrb[0].mxu0
        %2374 = vmatprep.mubr.f32.mxu0 0.0
        %2375 = vmatmul.mubr.f32.gmra.mrb[0].mxu0 %v2203
        %v2376 = vpop.f32.mrb[0].mxu0
        %v2377 = vadd.f32 %v2187, %v2376
        %v2378 = vpop.f32.mrb[0].mxu0
        %2379 = vmatprep.mubr.f32.mxu0 0.0
        %2380 = vmatmul.mubr.f32.gmra.mrb[0].mxu0 %v2206
        %v2381 = vpop.f32.mrb[0].mxu0
        %v2382 = vadd.f32 %v2187, %v2381
        %v2383 = vpop.f32.mrb[0].mxu0
        %2384 = vmatprep.mubr.f32.mxu0 0.0
        %2385 = vmatmul.mubr.f32.gmra.mrb[0].mxu0 %v2209
        %v2386 = vpop.f32.mrb[0].mxu0
        %v2387 = vadd.f32 %v2187, %v2386
        %v2388 = vpop.f32.mrb[0].mxu0
        %2389 = vmatprep.mubr.f32.mxu0 0.0
        %2390 = vmatmul.mubr.f32.gmra.mrb[0].mxu0 %v2212
        %v2391 = vpop.f32.mrb[0].mxu0
        %v2392 = vadd.f32 %v2187, %v2391
        %v2393 = vpop.f32.mrb[0].mxu0
        %2394 = vmatprep.mubr.f32.mxu0 0.0
        %2395 = vmatmul.mubr.f32.gmra.mrb[0].mxu0 %v2215
        %v2396 = vpop.f32.mrb[0].mxu0
        %v2397 = vadd.f32 %v2187, %v2396
        %v2398 = vpop.f32.mrb[0].mxu0
        %2399 = vmatprep.mubr.f32.mxu0 0.0
        %2400 = vmatmul.mubr.f32.gmra.mrb[0].mxu0 %v2218
        %v2401 = vpop.f32.mrb[0].mxu0
        %v2402 = vadd.f32 %v2187, %v2401
        %v2403 = vpop.f32.mrb[0].mxu0
        %2404 = vmatprep.mubr.f32.mxu0 0.0
        %2405 = vmatmul.mubr.f32.gmra.mrb[0].mxu0 %v2221
        %v2406 = vpop.f32.mrb[0].mxu0
        %v2407 = vadd.f32 %v2187, %v2406
        %v2408 = vpop.f32.mrb[0].mxu0
        %2409 = vmatprep.mubr.f32.mxu0 0.0
        %2410 = vmatmul.mubr.f32.gmra.mrb[0].mxu0 %v2224
        %v2411 = vpop.f32.mrb[0].mxu0
        %v2412 = vadd.f32 %v2187, %v2411
        %v2413 = vpop.f32.mrb[0].mxu0
        %2414 = vmatprep.mubr.f32.mxu0 0.0
        %2415 = vmatmul.mubr.f32.gmra.mrb[0].mxu0 %v2227
        %v2416 = vpop.f32.mrb[0].mxu0
        %v2417 = vadd.f32 %v2187, %v2416
        %v2418 = vpop.f32.mrb[0].mxu0
        %2419 = vmatprep.mubr.f32.mxu0 0.0
        %2420 = vmatmul.mubr.f32.gmra.mrb[0].mxu0 %v2230
        %v2421 = vpop.f32.mrb[0].mxu0
        %v2422 = vadd.f32 %v2187, %v2421
        %v2423 = vpop.f32.mrb[0].mxu0
        %2424 = vmatprep.mubr.f32.mxu0 0.0
        %2425 = vmatmul.mubr.f32.gmra.mrb[0].mxu0 %v2233
        %v2426 = vpop.f32.mrb[0].mxu0
        %v2427 = vadd.f32 %v2187, %v2426
        %v2428 = vpop.f32.mrb[0].mxu0
        %2429 = vmatprep.mubr.f32.mxu0 0.0
        %2430 = vmatmul.mubr.f32.gmra.mrb[0].mxu0 %v2236
        %v2431 = vpop.f32.mrb[0].mxu0
        %v2432 = vadd.f32 %v2187, %v2431
        %v2433 = vpop.f32.mrb[0].mxu0
        %2434 = vmatprep.mubr.f32.mxu0 0.0
        %2435 = vmatmul.mubr.f32.gmra.mrb[0].mxu0 %v2239
        %v2436 = vpop.f32.mrb[0].mxu0
        %v2437 = vadd.f32 %v2187, %v2436
        %v2438 = vpop.f32.mrb[0].mxu0
        %2439 = vmatprep.mubr.f32.mxu0 0.0
        %2440 = vmatmul.mubr.f32.gmra.mrb[0].mxu0 %v2242
        %v2441 = vpop.f32.mrb[0].mxu0
        %v2442 = vadd.f32 %v2187, %v2441
        %v2443 = vpop.f32.mrb[0].mxu0
        %2444 = vmatprep.mubr.f32.mxu0 0.0
        %2445 = vmatmul.mubr.f32.gmra.mrb[0].mxu0 %v2245
        %v2446 = vpop.f32.mrb[0].mxu0
        %v2447 = vadd.f32 %v2187, %v2446
        %v2448 = vpop.f32.mrb[0].mxu0
        %2449 = vmatprep.mubr.f32.mxu0 0.0
        %2450 = vmatmul.mubr.f32.gmra.mrb[0].mxu0 %v2248
        %v2451 = vpop.f32.mrb[0].mxu0
        %v2452 = vadd.f32 %v2187, %v2451
        %v2453 = vpop.f32.mrb[0].mxu0
        %2454 = vmatprep.mubr.f32.mxu0 0.0
        %2455 = vmatmul.mubr.f32.gmra.mrb[0].mxu0 %v2251
        %v2456 = vpop.f32.mrb[0].mxu0
        %v2457 = vadd.f32 %v2187, %v2456
        %v2458 = vpop.f32.mrb[0].mxu0
        %2459 = vmatprep.mubr.f32.mxu0 0.0
        %2460 = vmatmul.mubr.f32.gmra.mrb[0].mxu0 %v2254
        %v2461 = vpop.f32.mrb[0].mxu0
        %v2462 = vadd.f32 %v2187, %v2461
        %v2463 = vpop.f32.mrb[0].mxu0
        %2464 = vmatprep.mubr.f32.mxu0 0.0
        %2465 = vmatmul.mubr.f32.gmra.mrb[0].mxu0 %v2257
        %v2466 = vpop.f32.mrb[0].mxu0
        %v2467 = vadd.f32 %v2187, %v2466
        %v2468 = vpop.f32.mrb[0].mxu0
        %2469 = vmatprep.mubr.f32.mxu0 0.0
        %2470 = vmatmul.mubr.f32.gmra.mrb[0].mxu0 %v2260
        %v2471 = vpop.f32.mrb[0].mxu0
        %v2472 = vadd.f32 %v2187, %v2471
        %v2473 = vpop.f32.mrb[0].mxu0
        %2474 = vmatprep.mubr.f32.mxu0 0.0
        %2475 = vmatmul.mubr.f32.gmra.mrb[0].mxu0 %v2263
        %v2476 = vpop.f32.mrb[0].mxu0
        %v2477 = vadd.f32 %v2187, %v2476
        %v2478 = vpop.f32.mrb[0].mxu0
        %2479 = vmatprep.mubr.f32.mxu0 0.0
        %2480 = vmatmul.mubr.f32.gmra.mrb[0].mxu0 %v2266
        %v2481 = vpop.f32.mrb[0].mxu0
        %v2482 = vadd.f32 %v2187, %v2481
        %v2483 = vpop.f32.mrb[0].mxu0
        %2484 = vmatprep.mubr.f32.mxu0 0.0
        %2485 = vmatmul.mubr.f32.gmra.mrb[0].mxu0 %v2269
        %v2486 = vpop.f32.mrb[0].mxu0
        %v2487 = vadd.f32 %v2187, %v2486
        %v2488 = vpop.f32.mrb[0].mxu0
        %2489 = vmatprep.mubr.f32.mxu0 0.0
        %2490 = vmatmul.mubr.f32.gmra.mrb[0].mxu0 %v2272
        %v2491 = vpop.f32.mrb[0].mxu0
        %v2492 = vadd.f32 %v2187, %v2491
        %v2493 = vpop.f32.mrb[0].mxu0
        %2494 = vmatprep.mubr.f32.mxu0 0.0
        %2495 = vmatmul.mubr.f32.gmra.mrb[0].mxu0 %v2275
        %v2496 = vpop.f32.mrb[0].mxu0
        %v2497 = vadd.f32 %v2187, %v2496
        %v2498 = vpop.f32.mrb[0].mxu0
        %2499 = vmatprep.mubr.f32.mxu0 0.0
        %2500 = vmatmul.mubr.f32.gmra.mrb[0].mxu0 %v2278
        %v2501 = vpop.f32.mrb[0].mxu0
        %v2502 = vadd.f32 %v2187, %v2501
        %v2503 = vpop.f32.mrb[0].mxu0
        %2504 = vmatprep.mubr.f32.mxu0 0.0
        %2505 = vmatmul.mubr.f32.gmra.mrb[0].mxu0 %v2281
        %v2506 = vpop.f32.mrb[0].mxu0
        %v2507 = vadd.f32 %v2187, %v2506
        %v2508 = vpop.f32.mrb[0].mxu0
        %2509 = vmatprep.mubr.f32.mxu0 0.0
        %2510 = vmatmul.mubr.f32.gmra.mrb[0].mxu0 %v2284
        %v2511 = vpop.f32.mrb[0].mxu0
        %v2512 = vadd.f32 %v2187, %v2511
        %v2513 = vpop.f32.mrb[0].mxu0
        %2514 = vdwg.mxu0
        %v2515 = vmax.f32 %v2357, 0.0
        %v2516 = vmax.f32 %v2362, 0.0
        %v2517 = vmax.f32 %v2367, 0.0
        %v2518 = vmax.f32 %v2372, 0.0
        %v2519 = vmax.f32 %v2377, 0.0
        %v2520 = vmax.f32 %v2382, 0.0
        %v2521 = vmax.f32 %v2387, 0.0
        %v2522 = vmax.f32 %v2392, 0.0
        %v2523 = vmax.f32 %v2397, 0.0
        %v2524 = vmax.f32 %v2402, 0.0
        %v2525 = vmax.f32 %v2407, 0.0
        %v2526 = vmax.f32 %v2412, 0.0
        %v2527 = vmax.f32 %v2417, 0.0
        %v2528 = vmax.f32 %v2422, 0.0
        %v2529 = vmax.f32 %v2427, 0.0
        %v2530 = vmax.f32 %v2432, 0.0
        %v2531 = vmax.f32 %v2437, 0.0
        %v2532 = vmax.f32 %v2442, 0.0
        %v2533 = vmax.f32 %v2447, 0.0
        %v2534 = vmax.f32 %v2452, 0.0
        %v2535 = vmax.f32 %v2457, 0.0
        %v2536 = vmax.f32 %v2462, 0.0
        %v2537 = vmax.f32 %v2467, 0.0
        %v2538 = vmax.f32 %v2472, 0.0
        %v2539 = vmax.f32 %v2477, 0.0
        %v2540 = vmax.f32 %v2482, 0.0
        %v2541 = vmax.f32 %v2487, 0.0
        %v2542 = vmax.f32 %v2492, 0.0
        %v2543 = vmax.f32 %v2497, 0.0
        %v2544 = vmax.f32 %v2502, 0.0
        %v2545 = vmax.f32 %v2507, 0.0
        %v2546 = vmax.f32 %v2512, 0.0
        %vm2547 = vcmask 64512
        %2548 = vst.msk [vmem:[%s502 + $0x1] sm:$0xff] %vm2547, %v2515
        %2549 = vst.msk [vmem:[%s502 + $0x9] sm:$0xff] %vm2547, %v2516
        %2550 = vst.msk [vmem:[%s502 + $0x19] sm:$0xff] %vm2547, %v2517
        %2551 = vst.msk [vmem:[%s502 + $0x21] sm:$0xff] %vm2547, %v2518
        %2552 = vst.msk [vmem:[%s502 + $0x31] sm:$0xff] %vm2547, %v2519
        %2553 = vst.msk [vmem:[%s502 + $0x39] sm:$0xff] %vm2547, %v2520
        %2554 = vst.msk [vmem:[%s502 + $0x49] sm:$0xff] %vm2547, %v2521
        %2555 = vst.msk [vmem:[%s502 + $0x51] sm:$0xff] %vm2547, %v2522
        %2556 = vst.msk [vmem:[%s502 + $0x61] sm:$0xff] %vm2547, %v2523
        %2557 = vst.msk [vmem:[%s502 + $0x69] sm:$0xff] %vm2547, %v2524
        %2558 = vst.msk [vmem:[%s502 + $0x79] sm:$0xff] %vm2547, %v2525
        %2559 = vst.msk [vmem:[%s502 + $0x81] sm:$0xff] %vm2547, %v2526
        %2560 = vst.msk [vmem:[%s502 + $0x91] sm:$0xff] %vm2547, %v2527
        %2561 = vst.msk [vmem:[%s502 + $0x99] sm:$0xff] %vm2547, %v2528
        %2562 = vst.msk [vmem:[%s502 + $0xa9] sm:$0xff] %vm2547, %v2529
        %2563 = vst.msk [vmem:[%s502 + $0xb1] sm:$0xff] %vm2547, %v2530
        %2564 = vst.msk [vmem:[%s502 + $0xc1] sm:$0xff] %vm2547, %v2531
        %2565 = vst.msk [vmem:[%s502 + $0xc9] sm:$0xff] %vm2547, %v2532
        %2566 = vst.msk [vmem:[%s502 + $0xd9] sm:$0xff] %vm2547, %v2533
        %2567 = vst.msk [vmem:[%s502 + $0xe1] sm:$0xff] %vm2547, %v2534
        %2568 = vst.msk [vmem:[%s502 + $0xf1] sm:$0xff] %vm2547, %v2535
        %2569 = vst.msk [vmem:[%s502 + $0xf9] sm:$0xff] %vm2547, %v2536
        %2570 = vst.msk [vmem:[%s502 + $0x109] sm:$0xff] %vm2547, %v2537
        %2571 = vst.msk [vmem:[%s502 + $0x111] sm:$0xff] %vm2547, %v2538
        %2572 = vst.msk [vmem:[%s502 + $0x121] sm:$0xff] %vm2547, %v2539
        %2573 = vst.msk [vmem:[%s502 + $0x129] sm:$0xff] %vm2547, %v2540
        %2574 = vst.msk [vmem:[%s502 + $0x139] sm:$0xff] %vm2547, %v2541
        %2575 = vst.msk [vmem:[%s502 + $0x141] sm:$0xff] %vm2547, %v2542
        %2576 = vst.msk [vmem:[%s502 + $0x151] sm:$0xff] %vm2547, %v2543
        %2577 = vst.msk [vmem:[%s502 + $0x159] sm:$0xff] %vm2547, %v2544
        %2578 = vst.msk [vmem:[%s502 + $0x169] sm:$0xff] %vm2547, %v2545
        %2579 = vst.msk [vmem:[%s502 + $0x171] sm:$0xff] %vm2547, %v2546
        %v2580 = vld [vmem:[#allocation2] sm:$0xff]
        %v2581 = vld [vmem:[#allocation2 + $0x8] sm:$0xff]
        %v2582 = vld [vmem:[#allocation2 + $0x18] sm:$0xff]
        %v2583 = vld [vmem:[#allocation2 + $0x20] sm:$0xff]
        %v2584 = vld [vmem:[#allocation2 + $0x30] sm:$0xff]
        %v2585 = vld [vmem:[#allocation2 + $0x38] sm:$0xff]
        %v2586 = vld [vmem:[#allocation2 + $0x48] sm:$0xff]
        %v2587 = vld [vmem:[#allocation2 + $0x50] sm:$0xff]
        %v2588 = vld [vmem:[#allocation2 + $0x60] sm:$0xff]
        %v2589 = vld [vmem:[#allocation2 + $0x68] sm:$0xff]
        %v2590 = vld [vmem:[#allocation2 + $0x78] sm:$0xff]
        %v2591 = vld [vmem:[#allocation2 + $0x80] sm:$0xff]
        %v2592 = vld [vmem:[#allocation2 + $0x90] sm:$0xff]
        %v2593 = vld [vmem:[#allocation2 + $0x98] sm:$0xff]
        %v2594 = vld [vmem:[#allocation2 + $0xa8] sm:$0xff]
        %v2595 = vld [vmem:[#allocation2 + $0xb0] sm:$0xff]
        %v2596 = vld [vmem:[#allocation2 + $0xc0] sm:$0xff]
        %v2597 = vld [vmem:[#allocation2 + $0xc8] sm:$0xff]
        %v2598 = vld [vmem:[#allocation2 + $0xd8] sm:$0xff]
        %v2599 = vld [vmem:[#allocation2 + $0xe0] sm:$0xff]
        %v2600 = vld [vmem:[#allocation2 + $0xf0] sm:$0xff]
        %v2601 = vld [vmem:[#allocation2 + $0xf8] sm:$0xff]
        %v2602 = vld [vmem:[#allocation2 + $0x108] sm:$0xff]
        %v2603 = vld [vmem:[#allocation2 + $0x110] sm:$0xff]
        %v2604 = vld [vmem:[#allocation2 + $0x120] sm:$0xff]
        %v2605 = vld [vmem:[#allocation2 + $0x128] sm:$0xff]
        %v2606 = vld [vmem:[#allocation2 + $0x138] sm:$0xff]
        %v2607 = vld [vmem:[#allocation2 + $0x140] sm:$0xff]
        %v2608 = vld [vmem:[#allocation2 + $0x150] sm:$0xff]
        %v2609 = vld [vmem:[#allocation2 + $0x158] sm:$0xff]
        %v2610 = vld [vmem:[#allocation2 + $0x168] sm:$0xff]
        %v2611 = vld [vmem:[#allocation2 + $0x170] sm:$0xff]
        %2612 = vst.msk [vmem:[#allocation3] sm:$0xff] %vm2547, %v2580
        %2613 = vst.msk [vmem:[#allocation3 + $0x18] sm:$0xff] %vm2547, %v2581
        %2614 = vst.msk [vmem:[#allocation3 + $0x30] sm:$0xff] %vm2547, %v2582
        %2615 = vst.msk [vmem:[#allocation3 + $0x48] sm:$0xff] %vm2547, %v2583
        %2616 = vst.msk [vmem:[#allocation3 + $0x60] sm:$0xff] %vm2547, %v2584
        %2617 = vst.msk [vmem:[#allocation3 + $0x78] sm:$0xff] %vm2547, %v2585
        %2618 = vst.msk [vmem:[#allocation3 + $0x90] sm:$0xff] %vm2547, %v2586
        %2619 = vst.msk [vmem:[#allocation3 + $0xa8] sm:$0xff] %vm2547, %v2587
        %2620 = vst.msk [vmem:[#allocation3 + $0xc0] sm:$0xff] %vm2547, %v2588
        %2621 = vst.msk [vmem:[#allocation3 + $0xd8] sm:$0xff] %vm2547, %v2589
        %2622 = vst.msk [vmem:[#allocation3 + $0xf0] sm:$0xff] %vm2547, %v2590
        %2623 = vst.msk [vmem:[#allocation3 + $0x108] sm:$0xff] %vm2547, %v2591
        %2624 = vst.msk [vmem:[#allocation3 + $0x120] sm:$0xff] %vm2547, %v2592
        %2625 = vst.msk [vmem:[#allocation3 + $0x138] sm:$0xff] %vm2547, %v2593
        %2626 = vst.msk [vmem:[#allocation3 + $0x150] sm:$0xff] %vm2547, %v2594
        %2627 = vst.msk [vmem:[#allocation3 + $0x168] sm:$0xff] %vm2547, %v2595
        %2628 = vst.msk [vmem:[#allocation3 + $0x180] sm:$0xff] %vm2547, %v2596
        %2629 = vst.msk [vmem:[#allocation3 + $0x198] sm:$0xff] %vm2547, %v2597
        %2630 = vst.msk [vmem:[#allocation3 + $0x1b0] sm:$0xff] %vm2547, %v2598
        %2631 = vst.msk [vmem:[#allocation3 + $0x1c8] sm:$0xff] %vm2547, %v2599
        %2632 = vst.msk [vmem:[#allocation3 + $0x1e0] sm:$0xff] %vm2547, %v2600
        %2633 = vst.msk [vmem:[#allocation3 + $0x1f8] sm:$0xff] %vm2547, %v2601
        %2634 = vst.msk [vmem:[#allocation3 + $0x210] sm:$0xff] %vm2547, %v2602
        %2635 = vst.msk [vmem:[#allocation3 + $0x228] sm:$0xff] %vm2547, %v2603
        %2636 = vst.msk [vmem:[#allocation3 + $0x240] sm:$0xff] %vm2547, %v2604
        %2637 = vst.msk [vmem:[#allocation3 + $0x258] sm:$0xff] %vm2547, %v2605
        %2638 = vst.msk [vmem:[#allocation3 + $0x270] sm:$0xff] %vm2547, %v2606
        %2639 = vst.msk [vmem:[#allocation3 + $0x288] sm:$0xff] %vm2547, %v2607
        %2640 = vst.msk [vmem:[#allocation3 + $0x2a0] sm:$0xff] %vm2547, %v2608
        %2641 = vst.msk [vmem:[#allocation3 + $0x2b8] sm:$0xff] %vm2547, %v2609
        %2642 = vst.msk [vmem:[#allocation3 + $0x2d0] sm:$0xff] %vm2547, %v2610
        %2643 = vst.msk [vmem:[#allocation3 + $0x2e8] sm:$0xff] %vm2547, %v2611
        %v2644 = vld [vmem:[#allocation2 + $0x1] sm:$0xff]
        %v2645 = vld [vmem:[#allocation2 + $0x9] sm:$0xff]
        %v2646 = vld [vmem:[#allocation2 + $0x19] sm:$0xff]
        %v2647 = vld [vmem:[#allocation2 + $0x21] sm:$0xff]
        %v2648 = vld [vmem:[#allocation2 + $0x31] sm:$0xff]
        %v2649 = vld [vmem:[#allocation2 + $0x39] sm:$0xff]
        %v2650 = vld [vmem:[#allocation2 + $0x49] sm:$0xff]
        %v2651 = vld [vmem:[#allocation2 + $0x51] sm:$0xff]
        %v2652 = vld [vmem:[#allocation2 + $0x61] sm:$0xff]
        %v2653 = vld [vmem:[#allocation2 + $0x69] sm:$0xff]
        %v2654 = vld [vmem:[#allocation2 + $0x79] sm:$0xff]
        %v2655 = vld [vmem:[#allocation2 + $0x81] sm:$0xff]
        %v2656 = vld [vmem:[#allocation2 + $0x91] sm:$0xff]
        %v2657 = vld [vmem:[#allocation2 + $0x99] sm:$0xff]
        %v2658 = vld [vmem:[#allocation2 + $0xa9] sm:$0xff]
        %v2659 = vld [vmem:[#allocation2 + $0xb1] sm:$0xff]
        %v2660 = vld [vmem:[#allocation2 + $0xc1] sm:$0xff]
        %v2661 = vld [vmem:[#allocation2 + $0xc9] sm:$0xff]
        %v2662 = vld [vmem:[#allocation2 + $0xd9] sm:$0xff]
        %v2663 = vld [vmem:[#allocation2 + $0xe1] sm:$0xff]
        %v2664 = vld [vmem:[#allocation2 + $0xf1] sm:$0xff]
        %v2665 = vld [vmem:[#allocation2 + $0xf9] sm:$0xff]
        %v2666 = vld [vmem:[#allocation2 + $0x109] sm:$0xff]
        %v2667 = vld [vmem:[#allocation2 + $0x111] sm:$0xff]
        %v2668 = vld [vmem:[#allocation2 + $0x121] sm:$0xff]
        %v2669 = vld [vmem:[#allocation2 + $0x129] sm:$0xff]
        %v2670 = vld [vmem:[#allocation2 + $0x139] sm:$0xff]
        %v2671 = vld [vmem:[#allocation2 + $0x141] sm:$0xff]
        %v2672 = vld [vmem:[#allocation2 + $0x151] sm:$0xff]
        %v2673 = vld [vmem:[#allocation2 + $0x159] sm:$0xff]
        %v2674 = vld [vmem:[#allocation2 + $0x169] sm:$0xff]
        %v2675 = vld [vmem:[#allocation2 + $0x171] sm:$0xff]
        %2708 = vrot.lane.b32.xlu0 %v2644, 8
        %v2709 = vpop.permute.xlu0 %2708
        %2710 = vrot.lane.b32.xlu0 %v2645, 8
        %v2711 = vpop.permute.xlu0 %2710
        %2712 = vrot.lane.b32.xlu0 %v2646, 8
        %v2713 = vpop.permute.xlu0 %2712
        %2714 = vrot.lane.b32.xlu0 %v2647, 8
        %v2715 = vpop.permute.xlu0 %2714
        %2716 = vrot.lane.b32.xlu0 %v2648, 8
        %v2717 = vpop.permute.xlu0 %2716
        %2718 = vrot.lane.b32.xlu0 %v2649, 8
        %v2719 = vpop.permute.xlu0 %2718
        %2720 = vrot.lane.b32.xlu0 %v2650, 8
        %v2721 = vpop.permute.xlu0 %2720
        %2722 = vrot.lane.b32.xlu0 %v2651, 8
        %v2723 = vpop.permute.xlu0 %2722
        %2724 = vrot.lane.b32.xlu0 %v2652, 8
        %v2725 = vpop.permute.xlu0 %2724
        %2726 = vrot.lane.b32.xlu0 %v2653, 8
        %v2727 = vpop.permute.xlu0 %2726
        %2728 = vrot.lane.b32.xlu0 %v2654, 8
        %v2729 = vpop.permute.xlu0 %2728
        %2730 = vrot.lane.b32.xlu0 %v2655, 8
        %v2731 = vpop.permute.xlu0 %2730
        %2732 = vrot.lane.b32.xlu0 %v2656, 8
        %v2733 = vpop.permute.xlu0 %2732
        %2734 = vrot.lane.b32.xlu0 %v2657, 8
        %v2735 = vpop.permute.xlu0 %2734
        %2736 = vrot.lane.b32.xlu0 %v2658, 8
        %v2737 = vpop.permute.xlu0 %2736
        %2738 = vrot.lane.b32.xlu0 %v2659, 8
        %v2739 = vpop.permute.xlu0 %2738
        %2740 = vrot.lane.b32.xlu0 %v2660, 8
        %v2741 = vpop.permute.xlu0 %2740
        %2742 = vrot.lane.b32.xlu0 %v2661, 8
        %v2743 = vpop.permute.xlu0 %2742
        %2744 = vrot.lane.b32.xlu0 %v2662, 8
        %v2745 = vpop.permute.xlu0 %2744
        %2746 = vrot.lane.b32.xlu0 %v2663, 8
        %v2747 = vpop.permute.xlu0 %2746
        %2748 = vrot.lane.b32.xlu0 %v2664, 8
        %v2749 = vpop.permute.xlu0 %2748
        %2750 = vrot.lane.b32.xlu0 %v2665, 8
        %v2751 = vpop.permute.xlu0 %2750
        %2752 = vrot.lane.b32.xlu0 %v2666, 8
        %v2753 = vpop.permute.xlu0 %2752
        %2754 = vrot.lane.b32.xlu0 %v2667, 8
        %v2755 = vpop.permute.xlu0 %2754
        %2756 = vrot.lane.b32.xlu0 %v2668, 8
        %v2757 = vpop.permute.xlu0 %2756
        %2758 = vrot.lane.b32.xlu0 %v2669, 8
        %v2759 = vpop.permute.xlu0 %2758
        %2760 = vrot.lane.b32.xlu0 %v2670, 8
        %v2761 = vpop.permute.xlu0 %2760
        %2762 = vrot.lane.b32.xlu0 %v2671, 8
        %v2763 = vpop.permute.xlu0 %2762
        %2764 = vrot.lane.b32.xlu0 %v2672, 8
        %v2765 = vpop.permute.xlu0 %2764
        %2766 = vrot.lane.b32.xlu0 %v2673, 8
        %v2767 = vpop.permute.xlu0 %2766
        %2768 = vrot.lane.b32.xlu0 %v2674, 8
        %v2769 = vpop.permute.xlu0 %2768
        %2770 = vrot.lane.b32.xlu0 %v2675, 8
        %v2771 = vpop.permute.xlu0 %2770
        %vm2804 = vcmask 130112
        %2805 = vst.msk [vmem:[#allocation3] sm:$0xff] %vm2804, %v2709
        %2806 = vst.msk [vmem:[#allocation3 + $0x18] sm:$0xff] %vm2804, %v2711
        %2807 = vst.msk [vmem:[#allocation3 + $0x30] sm:$0xff] %vm2804, %v2713
        %2808 = vst.msk [vmem:[#allocation3 + $0x48] sm:$0xff] %vm2804, %v2715
        %2809 = vst.msk [vmem:[#allocation3 + $0x60] sm:$0xff] %vm2804, %v2717
        %2810 = vst.msk [vmem:[#allocation3 + $0x78] sm:$0xff] %vm2804, %v2719
        %2811 = vst.msk [vmem:[#allocation3 + $0x90] sm:$0xff] %vm2804, %v2721
        %2812 = vst.msk [vmem:[#allocation3 + $0xa8] sm:$0xff] %vm2804, %v2723
        %2813 = vst.msk [vmem:[#allocation3 + $0xc0] sm:$0xff] %vm2804, %v2725
        %2814 = vst.msk [vmem:[#allocation3 + $0xd8] sm:$0xff] %vm2804, %v2727
        %2815 = vst.msk [vmem:[#allocation3 + $0xf0] sm:$0xff] %vm2804, %v2729
        %2816 = vst.msk [vmem:[#allocation3 + $0x108] sm:$0xff] %vm2804, %v2731
        %2817 = vst.msk [vmem:[#allocation3 + $0x120] sm:$0xff] %vm2804, %v2733
        %2818 = vst.msk [vmem:[#allocation3 + $0x138] sm:$0xff] %vm2804, %v2735
        %2819 = vst.msk [vmem:[#allocation3 + $0x150] sm:$0xff] %vm2804, %v2737
        %2820 = vst.msk [vmem:[#allocation3 + $0x168] sm:$0xff] %vm2804, %v2739
        %2821 = vst.msk [vmem:[#allocation3 + $0x180] sm:$0xff] %vm2804, %v2741
        %2822 = vst.msk [vmem:[#allocation3 + $0x198] sm:$0xff] %vm2804, %v2743
        %2823 = vst.msk [vmem:[#allocation3 + $0x1b0] sm:$0xff] %vm2804, %v2745
        %2824 = vst.msk [vmem:[#allocation3 + $0x1c8] sm:$0xff] %vm2804, %v2747
        %2825 = vst.msk [vmem:[#allocation3 + $0x1e0] sm:$0xff] %vm2804, %v2749
        %2826 = vst.msk [vmem:[#allocation3 + $0x1f8] sm:$0xff] %vm2804, %v2751
        %2827 = vst.msk [vmem:[#allocation3 + $0x210] sm:$0xff] %vm2804, %v2753
        %2828 = vst.msk [vmem:[#allocation3 + $0x228] sm:$0xff] %vm2804, %v2755
        %2829 = vst.msk [vmem:[#allocation3 + $0x240] sm:$0xff] %vm2804, %v2757
        %2830 = vst.msk [vmem:[#allocation3 + $0x258] sm:$0xff] %vm2804, %v2759
        %2831 = vst.msk [vmem:[#allocation3 + $0x270] sm:$0xff] %vm2804, %v2761
        %2832 = vst.msk [vmem:[#allocation3 + $0x288] sm:$0xff] %vm2804, %v2763
        %2833 = vst.msk [vmem:[#allocation3 + $0x2a0] sm:$0xff] %vm2804, %v2765
        %2834 = vst.msk [vmem:[#allocation3 + $0x2b8] sm:$0xff] %vm2804, %v2767
        %2835 = vst.msk [vmem:[#allocation3 + $0x2d0] sm:$0xff] %vm2804, %v2769
        %2836 = vst.msk [vmem:[#allocation3 + $0x2e8] sm:$0xff] %vm2804, %v2771
        %v2837 = vld [vmem:[#allocation2 + $0x2] sm:$0xff]
        %v2838 = vld [vmem:[#allocation2 + $0xa] sm:$0xff]
        %v2839 = vld [vmem:[#allocation2 + $0x1a] sm:$0xff]
        %v2840 = vld [vmem:[#allocation2 + $0x22] sm:$0xff]
        %v2841 = vld [vmem:[#allocation2 + $0x32] sm:$0xff]
        %v2842 = vld [vmem:[#allocation2 + $0x3a] sm:$0xff]
        %v2843 = vld [vmem:[#allocation2 + $0x4a] sm:$0xff]
        %v2844 = vld [vmem:[#allocation2 + $0x52] sm:$0xff]
        %v2845 = vld [vmem:[#allocation2 + $0x62] sm:$0xff]
        %v2846 = vld [vmem:[#allocation2 + $0x6a] sm:$0xff]
        %v2847 = vld [vmem:[#allocation2 + $0x7a] sm:$0xff]
        %v2848 = vld [vmem:[#allocation2 + $0x82] sm:$0xff]
        %v2849 = vld [vmem:[#allocation2 + $0x92] sm:$0xff]
        %v2850 = vld [vmem:[#allocation2 + $0x9a] sm:$0xff]
        %v2851 = vld [vmem:[#allocation2 + $0xaa] sm:$0xff]
        %v2852 = vld [vmem:[#allocation2 + $0xb2] sm:$0xff]
        %v2853 = vld [vmem:[#allocation2 + $0xc2] sm:$0xff]
        %v2854 = vld [vmem:[#allocation2 + $0xca] sm:$0xff]
        %v2855 = vld [vmem:[#allocation2 + $0xda] sm:$0xff]
        %v2856 = vld [vmem:[#allocation2 + $0xe2] sm:$0xff]
        %v2857 = vld [vmem:[#allocation2 + $0xf2] sm:$0xff]
        %v2858 = vld [vmem:[#allocation2 + $0xfa] sm:$0xff]
        %v2859 = vld [vmem:[#allocation2 + $0x10a] sm:$0xff]
        %v2860 = vld [vmem:[#allocation2 + $0x112] sm:$0xff]
        %v2861 = vld [vmem:[#allocation2 + $0x122] sm:$0xff]
        %v2862 = vld [vmem:[#allocation2 + $0x12a] sm:$0xff]
        %v2863 = vld [vmem:[#allocation2 + $0x13a] sm:$0xff]
        %v2864 = vld [vmem:[#allocation2 + $0x142] sm:$0xff]
        %v2865 = vld [vmem:[#allocation2 + $0x152] sm:$0xff]
        %v2866 = vld [vmem:[#allocation2 + $0x15a] sm:$0xff]
        %v2867 = vld [vmem:[#allocation2 + $0x16a] sm:$0xff]
        %v2868 = vld [vmem:[#allocation2 + $0x172] sm:$0xff]
        %2901 = vrot.lane.b32.xlu0 %v2837, 16
        %v2902 = vpop.permute.xlu0 %2901
        %2903 = vrot.lane.b32.xlu0 %v2838, 16
        %v2904 = vpop.permute.xlu0 %2903
        %2905 = vrot.lane.b32.xlu0 %v2839, 16
        %v2906 = vpop.permute.xlu0 %2905
        %2907 = vrot.lane.b32.xlu0 %v2840, 16
        %v2908 = vpop.permute.xlu0 %2907
        %2909 = vrot.lane.b32.xlu0 %v2841, 16
        %v2910 = vpop.permute.xlu0 %2909
        %2911 = vrot.lane.b32.xlu0 %v2842, 16
        %v2912 = vpop.permute.xlu0 %2911
        %2913 = vrot.lane.b32.xlu0 %v2843, 16
        %v2914 = vpop.permute.xlu0 %2913
        %2915 = vrot.lane.b32.xlu0 %v2844, 16
        %v2916 = vpop.permute.xlu0 %2915
        %2917 = vrot.lane.b32.xlu0 %v2845, 16
        %v2918 = vpop.permute.xlu0 %2917
        %2919 = vrot.lane.b32.xlu0 %v2846, 16
        %v2920 = vpop.permute.xlu0 %2919
        %2921 = vrot.lane.b32.xlu0 %v2847, 16
        %v2922 = vpop.permute.xlu0 %2921
        %2923 = vrot.lane.b32.xlu0 %v2848, 16
        %v2924 = vpop.permute.xlu0 %2923
        %2925 = vrot.lane.b32.xlu0 %v2849, 16
        %v2926 = vpop.permute.xlu0 %2925
        %2927 = vrot.lane.b32.xlu0 %v2850, 16
        %v2928 = vpop.permute.xlu0 %2927
        %2929 = vrot.lane.b32.xlu0 %v2851, 16
        %v2930 = vpop.permute.xlu0 %2929
        %2931 = vrot.lane.b32.xlu0 %v2852, 16
        %v2932 = vpop.permute.xlu0 %2931
        %2933 = vrot.lane.b32.xlu0 %v2853, 16
        %v2934 = vpop.permute.xlu0 %2933
        %2935 = vrot.lane.b32.xlu0 %v2854, 16
        %v2936 = vpop.permute.xlu0 %2935
        %2937 = vrot.lane.b32.xlu0 %v2855, 16
        %v2938 = vpop.permute.xlu0 %2937
        %2939 = vrot.lane.b32.xlu0 %v2856, 16
        %v2940 = vpop.permute.xlu0 %2939
        %2941 = vrot.lane.b32.xlu0 %v2857, 16
        %v2942 = vpop.permute.xlu0 %2941
        %2943 = vrot.lane.b32.xlu0 %v2858, 16
        %v2944 = vpop.permute.xlu0 %2943
        %2945 = vrot.lane.b32.xlu0 %v2859, 16
        %v2946 = vpop.permute.xlu0 %2945
        %2947 = vrot.lane.b32.xlu0 %v2860, 16
        %v2948 = vpop.permute.xlu0 %2947
        %2949 = vrot.lane.b32.xlu0 %v2861, 16
        %v2950 = vpop.permute.xlu0 %2949
        %2951 = vrot.lane.b32.xlu0 %v2862, 16
        %v2952 = vpop.permute.xlu0 %2951
        %2953 = vrot.lane.b32.xlu0 %v2863, 16
        %v2954 = vpop.permute.xlu0 %2953
        %2955 = vrot.lane.b32.xlu0 %v2864, 16
        %v2956 = vpop.permute.xlu0 %2955
        %2957 = vrot.lane.b32.xlu0 %v2865, 16
        %v2958 = vpop.permute.xlu0 %2957
        %2959 = vrot.lane.b32.xlu0 %v2866, 16
        %v2960 = vpop.permute.xlu0 %2959
        %2961 = vrot.lane.b32.xlu0 %v2867, 16
        %v2962 = vpop.permute.xlu0 %2961
        %2963 = vrot.lane.b32.xlu0 %v2868, 16
        %v2964 = vpop.permute.xlu0 %2963
        %vm2997 = vcmask 195712
        %2998 = vst.msk [vmem:[#allocation3] sm:$0xff] %vm2997, %v2902
        %2999 = vst.msk [vmem:[#allocation3 + $0x18] sm:$0xff] %vm2997, %v2904
        %3000 = vst.msk [vmem:[#allocation3 + $0x30] sm:$0xff] %vm2997, %v2906
        %3001 = vst.msk [vmem:[#allocation3 + $0x48] sm:$0xff] %vm2997, %v2908
        %3002 = vst.msk [vmem:[#allocation3 + $0x60] sm:$0xff] %vm2997, %v2910
        %3003 = vst.msk [vmem:[#allocation3 + $0x78] sm:$0xff] %vm2997, %v2912
        %3004 = vst.msk [vmem:[#allocation3 + $0x90] sm:$0xff] %vm2997, %v2914
        %3005 = vst.msk [vmem:[#allocation3 + $0xa8] sm:$0xff] %vm2997, %v2916
        %3006 = vst.msk [vmem:[#allocation3 + $0xc0] sm:$0xff] %vm2997, %v2918
        %3007 = vst.msk [vmem:[#allocation3 + $0xd8] sm:$0xff] %vm2997, %v2920
        %3008 = vst.msk [vmem:[#allocation3 + $0xf0] sm:$0xff] %vm2997, %v2922
        %3009 = vst.msk [vmem:[#allocation3 + $0x108] sm:$0xff] %vm2997, %v2924
        %3010 = vst.msk [vmem:[#allocation3 + $0x120] sm:$0xff] %vm2997, %v2926
        %3011 = vst.msk [vmem:[#allocation3 + $0x138] sm:$0xff] %vm2997, %v2928
        %3012 = vst.msk [vmem:[#allocation3 + $0x150] sm:$0xff] %vm2997, %v2930
        %3013 = vst.msk [vmem:[#allocation3 + $0x168] sm:$0xff] %vm2997, %v2932
        %3014 = vst.msk [vmem:[#allocation3 + $0x180] sm:$0xff] %vm2997, %v2934
        %3015 = vst.msk [vmem:[#allocation3 + $0x198] sm:$0xff] %vm2997, %v2936
        %3016 = vst.msk [vmem:[#allocation3 + $0x1b0] sm:$0xff] %vm2997, %v2938
        %3017 = vst.msk [vmem:[#allocation3 + $0x1c8] sm:$0xff] %vm2997, %v2940
        %3018 = vst.msk [vmem:[#allocation3 + $0x1e0] sm:$0xff] %vm2997, %v2942
        %3019 = vst.msk [vmem:[#allocation3 + $0x1f8] sm:$0xff] %vm2997, %v2944
        %3020 = vst.msk [vmem:[#allocation3 + $0x210] sm:$0xff] %vm2997, %v2946
        %3021 = vst.msk [vmem:[#allocation3 + $0x228] sm:$0xff] %vm2997, %v2948
        %3022 = vst.msk [vmem:[#allocation3 + $0x240] sm:$0xff] %vm2997, %v2950
        %3023 = vst.msk [vmem:[#allocation3 + $0x258] sm:$0xff] %vm2997, %v2952
        %3024 = vst.msk [vmem:[#allocation3 + $0x270] sm:$0xff] %vm2997, %v2954
        %3025 = vst.msk [vmem:[#allocation3 + $0x288] sm:$0xff] %vm2997, %v2956
        %3026 = vst.msk [vmem:[#allocation3 + $0x2a0] sm:$0xff] %vm2997, %v2958
        %3027 = vst.msk [vmem:[#allocation3 + $0x2b8] sm:$0xff] %vm2997, %v2960
        %3028 = vst.msk [vmem:[#allocation3 + $0x2d0] sm:$0xff] %vm2997, %v2962
        %3029 = vst.msk [vmem:[#allocation3 + $0x2e8] sm:$0xff] %vm2997, %v2964
        %v3030 = vld [vmem:[%s502] sm:$0xff]
        %v3031 = vld [vmem:[%s502 + $0x8] sm:$0xff]
        %v3032 = vld [vmem:[%s502 + $0x18] sm:$0xff]
        %v3033 = vld [vmem:[%s502 + $0x20] sm:$0xff]
        %v3034 = vld [vmem:[%s502 + $0x30] sm:$0xff]
        %v3035 = vld [vmem:[%s502 + $0x38] sm:$0xff]
        %v3036 = vld [vmem:[%s502 + $0x48] sm:$0xff]
        %v3037 = vld [vmem:[%s502 + $0x50] sm:$0xff]
        %v3038 = vld [vmem:[%s502 + $0x60] sm:$0xff]
        %v3039 = vld [vmem:[%s502 + $0x68] sm:$0xff]
        %v3040 = vld [vmem:[%s502 + $0x78] sm:$0xff]
        %v3041 = vld [vmem:[%s502 + $0x80] sm:$0xff]
        %v3042 = vld [vmem:[%s502 + $0x90] sm:$0xff]
        %v3043 = vld [vmem:[%s502 + $0x98] sm:$0xff]
        %v3044 = vld [vmem:[%s502 + $0xa8] sm:$0xff]
        %v3045 = vld [vmem:[%s502 + $0xb0] sm:$0xff]
        %v3046 = vld [vmem:[%s502 + $0xc0] sm:$0xff]
        %v3047 = vld [vmem:[%s502 + $0xc8] sm:$0xff]
        %v3048 = vld [vmem:[%s502 + $0xd8] sm:$0xff]
        %v3049 = vld [vmem:[%s502 + $0xe0] sm:$0xff]
        %v3050 = vld [vmem:[%s502 + $0xf0] sm:$0xff]
        %v3051 = vld [vmem:[%s502 + $0xf8] sm:$0xff]
        %v3052 = vld [vmem:[%s502 + $0x108] sm:$0xff]
        %v3053 = vld [vmem:[%s502 + $0x110] sm:$0xff]
        %v3054 = vld [vmem:[%s502 + $0x120] sm:$0xff]
        %v3055 = vld [vmem:[%s502 + $0x128] sm:$0xff]
        %v3056 = vld [vmem:[%s502 + $0x138] sm:$0xff]
        %v3057 = vld [vmem:[%s502 + $0x140] sm:$0xff]
        %v3058 = vld [vmem:[%s502 + $0x150] sm:$0xff]
        %v3059 = vld [vmem:[%s502 + $0x158] sm:$0xff]
        %v3060 = vld [vmem:[%s502 + $0x168] sm:$0xff]
        %v3061 = vld [vmem:[%s502 + $0x170] sm:$0xff]
        %3094 = vrot.lane.b32.xlu0 %v3030, 24
        %v3095 = vpop.permute.xlu0 %3094
        %3096 = vrot.lane.b32.xlu0 %v3031, 24
        %v3097 = vpop.permute.xlu0 %3096
        %3098 = vrot.lane.b32.xlu0 %v3032, 24
        %v3099 = vpop.permute.xlu0 %3098
        %3100 = vrot.lane.b32.xlu0 %v3033, 24
        %v3101 = vpop.permute.xlu0 %3100
        %3102 = vrot.lane.b32.xlu0 %v3034, 24
        %v3103 = vpop.permute.xlu0 %3102
        %3104 = vrot.lane.b32.xlu0 %v3035, 24
        %v3105 = vpop.permute.xlu0 %3104
        %3106 = vrot.lane.b32.xlu0 %v3036, 24
        %v3107 = vpop.permute.xlu0 %3106
        %3108 = vrot.lane.b32.xlu0 %v3037, 24
        %v3109 = vpop.permute.xlu0 %3108
        %3110 = vrot.lane.b32.xlu0 %v3038, 24
        %v3111 = vpop.permute.xlu0 %3110
        %3112 = vrot.lane.b32.xlu0 %v3039, 24
        %v3113 = vpop.permute.xlu0 %3112
        %3114 = vrot.lane.b32.xlu0 %v3040, 24
        %v3115 = vpop.permute.xlu0 %3114
        %3116 = vrot.lane.b32.xlu0 %v3041, 24
        %v3117 = vpop.permute.xlu0 %3116
        %3118 = vrot.lane.b32.xlu0 %v3042, 24
        %v3119 = vpop.permute.xlu0 %3118
        %3120 = vrot.lane.b32.xlu0 %v3043, 24
        %v3121 = vpop.permute.xlu0 %3120
        %3122 = vrot.lane.b32.xlu0 %v3044, 24
        %v3123 = vpop.permute.xlu0 %3122
        %3124 = vrot.lane.b32.xlu0 %v3045, 24
        %v3125 = vpop.permute.xlu0 %3124
        %3126 = vrot.lane.b32.xlu0 %v3046, 24
        %v3127 = vpop.permute.xlu0 %3126
        %3128 = vrot.lane.b32.xlu0 %v3047, 24
        %v3129 = vpop.permute.xlu0 %3128
        %3130 = vrot.lane.b32.xlu0 %v3048, 24
        %v3131 = vpop.permute.xlu0 %3130
        %3132 = vrot.lane.b32.xlu0 %v3049, 24
        %v3133 = vpop.permute.xlu0 %3132
        %3134 = vrot.lane.b32.xlu0 %v3050, 24
        %v3135 = vpop.permute.xlu0 %3134
        %3136 = vrot.lane.b32.xlu0 %v3051, 24
        %v3137 = vpop.permute.xlu0 %3136
        %3138 = vrot.lane.b32.xlu0 %v3052, 24
        %v3139 = vpop.permute.xlu0 %3138
        %3140 = vrot.lane.b32.xlu0 %v3053, 24
        %v3141 = vpop.permute.xlu0 %3140
        %3142 = vrot.lane.b32.xlu0 %v3054, 24
        %v3143 = vpop.permute.xlu0 %3142
        %3144 = vrot.lane.b32.xlu0 %v3055, 24
        %v3145 = vpop.permute.xlu0 %3144
        %3146 = vrot.lane.b32.xlu0 %v3056, 24
        %v3147 = vpop.permute.xlu0 %3146
        %3148 = vrot.lane.b32.xlu0 %v3057, 24
        %v3149 = vpop.permute.xlu0 %3148
        %3150 = vrot.lane.b32.xlu0 %v3058, 24
        %v3151 = vpop.permute.xlu0 %3150
        %3152 = vrot.lane.b32.xlu0 %v3059, 24
        %v3153 = vpop.permute.xlu0 %3152
        %3154 = vrot.lane.b32.xlu0 %v3060, 24
        %v3155 = vpop.permute.xlu0 %3154
        %3156 = vrot.lane.b32.xlu0 %v3061, 24
        %v3157 = vpop.permute.xlu0 %3156
        %vm3190 = vcmask 261312
        %3191 = vst.msk [vmem:[#allocation3] sm:$0xff] %vm3190, %v3095
        %3192 = vst.msk [vmem:[#allocation3 + $0x18] sm:$0xff] %vm3190, %v3097
        %3193 = vst.msk [vmem:[#allocation3 + $0x30] sm:$0xff] %vm3190, %v3099
        %3194 = vst.msk [vmem:[#allocation3 + $0x48] sm:$0xff] %vm3190, %v3101
        %3195 = vst.msk [vmem:[#allocation3 + $0x60] sm:$0xff] %vm3190, %v3103
        %3196 = vst.msk [vmem:[#allocation3 + $0x78] sm:$0xff] %vm3190, %v3105
        %3197 = vst.msk [vmem:[#allocation3 + $0x90] sm:$0xff] %vm3190, %v3107
        %3198 = vst.msk [vmem:[#allocation3 + $0xa8] sm:$0xff] %vm3190, %v3109
        %3199 = vst.msk [vmem:[#allocation3 + $0xc0] sm:$0xff] %vm3190, %v3111
        %3200 = vst.msk [vmem:[#allocation3 + $0xd8] sm:$0xff] %vm3190, %v3113
        %3201 = vst.msk [vmem:[#allocation3 + $0xf0] sm:$0xff] %vm3190, %v3115
        %3202 = vst.msk [vmem:[#allocation3 + $0x108] sm:$0xff] %vm3190, %v3117
        %3203 = vst.msk [vmem:[#allocation3 + $0x120] sm:$0xff] %vm3190, %v3119
        %3204 = vst.msk [vmem:[#allocation3 + $0x138] sm:$0xff] %vm3190, %v3121
        %3205 = vst.msk [vmem:[#allocation3 + $0x150] sm:$0xff] %vm3190, %v3123
        %3206 = vst.msk [vmem:[#allocation3 + $0x168] sm:$0xff] %vm3190, %v3125
        %3207 = vst.msk [vmem:[#allocation3 + $0x180] sm:$0xff] %vm3190, %v3127
        %3208 = vst.msk [vmem:[#allocation3 + $0x198] sm:$0xff] %vm3190, %v3129
        %3209 = vst.msk [vmem:[#allocation3 + $0x1b0] sm:$0xff] %vm3190, %v3131
        %3210 = vst.msk [vmem:[#allocation3 + $0x1c8] sm:$0xff] %vm3190, %v3133
        %3211 = vst.msk [vmem:[#allocation3 + $0x1e0] sm:$0xff] %vm3190, %v3135
        %3212 = vst.msk [vmem:[#allocation3 + $0x1f8] sm:$0xff] %vm3190, %v3137
        %3213 = vst.msk [vmem:[#allocation3 + $0x210] sm:$0xff] %vm3190, %v3139
        %3214 = vst.msk [vmem:[#allocation3 + $0x228] sm:$0xff] %vm3190, %v3141
        %3215 = vst.msk [vmem:[#allocation3 + $0x240] sm:$0xff] %vm3190, %v3143
        %3216 = vst.msk [vmem:[#allocation3 + $0x258] sm:$0xff] %vm3190, %v3145
        %3217 = vst.msk [vmem:[#allocation3 + $0x270] sm:$0xff] %vm3190, %v3147
        %3218 = vst.msk [vmem:[#allocation3 + $0x288] sm:$0xff] %vm3190, %v3149
        %3219 = vst.msk [vmem:[#allocation3 + $0x2a0] sm:$0xff] %vm3190, %v3151
        %3220 = vst.msk [vmem:[#allocation3 + $0x2b8] sm:$0xff] %vm3190, %v3153
        %3221 = vst.msk [vmem:[#allocation3 + $0x2d0] sm:$0xff] %vm3190, %v3155
        %3222 = vst.msk [vmem:[#allocation3 + $0x2e8] sm:$0xff] %vm3190, %v3157
        %v3223 = vld [vmem:[%s502 + $0x1] sm:$0xff]
        %v3224 = vld [vmem:[%s502 + $0x9] sm:$0xff]
        %v3225 = vld [vmem:[%s502 + $0x19] sm:$0xff]
        %v3226 = vld [vmem:[%s502 + $0x21] sm:$0xff]
        %v3227 = vld [vmem:[%s502 + $0x31] sm:$0xff]
        %v3228 = vld [vmem:[%s502 + $0x39] sm:$0xff]
        %v3229 = vld [vmem:[%s502 + $0x49] sm:$0xff]
        %v3230 = vld [vmem:[%s502 + $0x51] sm:$0xff]
        %v3231 = vld [vmem:[%s502 + $0x61] sm:$0xff]
        %v3232 = vld [vmem:[%s502 + $0x69] sm:$0xff]
        %v3233 = vld [vmem:[%s502 + $0x79] sm:$0xff]
        %v3234 = vld [vmem:[%s502 + $0x81] sm:$0xff]
        %v3235 = vld [vmem:[%s502 + $0x91] sm:$0xff]
        %v3236 = vld [vmem:[%s502 + $0x99] sm:$0xff]
        %v3237 = vld [vmem:[%s502 + $0xa9] sm:$0xff]
        %v3238 = vld [vmem:[%s502 + $0xb1] sm:$0xff]
        %v3239 = vld [vmem:[%s502 + $0xc1] sm:$0xff]
        %v3240 = vld [vmem:[%s502 + $0xc9] sm:$0xff]
        %v3241 = vld [vmem:[%s502 + $0xd9] sm:$0xff]
        %v3242 = vld [vmem:[%s502 + $0xe1] sm:$0xff]
        %v3243 = vld [vmem:[%s502 + $0xf1] sm:$0xff]
        %v3244 = vld [vmem:[%s502 + $0xf9] sm:$0xff]
        %v3245 = vld [vmem:[%s502 + $0x109] sm:$0xff]
        %v3246 = vld [vmem:[%s502 + $0x111] sm:$0xff]
        %v3247 = vld [vmem:[%s502 + $0x121] sm:$0xff]
        %v3248 = vld [vmem:[%s502 + $0x129] sm:$0xff]
        %v3249 = vld [vmem:[%s502 + $0x139] sm:$0xff]
        %v3250 = vld [vmem:[%s502 + $0x141] sm:$0xff]
        %v3251 = vld [vmem:[%s502 + $0x151] sm:$0xff]
        %v3252 = vld [vmem:[%s502 + $0x159] sm:$0xff]
        %v3253 = vld [vmem:[%s502 + $0x169] sm:$0xff]
        %v3254 = vld [vmem:[%s502 + $0x171] sm:$0xff]
        %3287 = vrot.lane.b32.xlu0 %v3223, 32
        %v3288 = vpop.permute.xlu0 %3287
        %3289 = vrot.lane.b32.xlu0 %v3224, 32
        %v3290 = vpop.permute.xlu0 %3289
        %3291 = vrot.lane.b32.xlu0 %v3225, 32
        %v3292 = vpop.permute.xlu0 %3291
        %3293 = vrot.lane.b32.xlu0 %v3226, 32
        %v3294 = vpop.permute.xlu0 %3293
        %3295 = vrot.lane.b32.xlu0 %v3227, 32
        %v3296 = vpop.permute.xlu0 %3295
        %3297 = vrot.lane.b32.xlu0 %v3228, 32
        %v3298 = vpop.permute.xlu0 %3297
        %3299 = vrot.lane.b32.xlu0 %v3229, 32
        %v3300 = vpop.permute.xlu0 %3299
        %3301 = vrot.lane.b32.xlu0 %v3230, 32
        %v3302 = vpop.permute.xlu0 %3301
        %3303 = vrot.lane.b32.xlu0 %v3231, 32
        %v3304 = vpop.permute.xlu0 %3303
        %3305 = vrot.lane.b32.xlu0 %v3232, 32
        %v3306 = vpop.permute.xlu0 %3305
        %3307 = vrot.lane.b32.xlu0 %v3233, 32
        %v3308 = vpop.permute.xlu0 %3307
        %3309 = vrot.lane.b32.xlu0 %v3234, 32
        %v3310 = vpop.permute.xlu0 %3309
        %3311 = vrot.lane.b32.xlu0 %v3235, 32
        %v3312 = vpop.permute.xlu0 %3311
        %3313 = vrot.lane.b32.xlu0 %v3236, 32
        %v3314 = vpop.permute.xlu0 %3313
        %3315 = vrot.lane.b32.xlu0 %v3237, 32
        %v3316 = vpop.permute.xlu0 %3315
        %3317 = vrot.lane.b32.xlu0 %v3238, 32
        %v3318 = vpop.permute.xlu0 %3317
        %3319 = vrot.lane.b32.xlu0 %v3239, 32
        %v3320 = vpop.permute.xlu0 %3319
        %3321 = vrot.lane.b32.xlu0 %v3240, 32
        %v3322 = vpop.permute.xlu0 %3321
        %3323 = vrot.lane.b32.xlu0 %v3241, 32
        %v3324 = vpop.permute.xlu0 %3323
        %3325 = vrot.lane.b32.xlu0 %v3242, 32
        %v3326 = vpop.permute.xlu0 %3325
        %3327 = vrot.lane.b32.xlu0 %v3243, 32
        %v3328 = vpop.permute.xlu0 %3327
        %3329 = vrot.lane.b32.xlu0 %v3244, 32
        %v3330 = vpop.permute.xlu0 %3329
        %3331 = vrot.lane.b32.xlu0 %v3245, 32
        %v3332 = vpop.permute.xlu0 %3331
        %3333 = vrot.lane.b32.xlu0 %v3246, 32
        %v3334 = vpop.permute.xlu0 %3333
        %3335 = vrot.lane.b32.xlu0 %v3247, 32
        %v3336 = vpop.permute.xlu0 %3335
        %3337 = vrot.lane.b32.xlu0 %v3248, 32
        %v3338 = vpop.permute.xlu0 %3337
        %3339 = vrot.lane.b32.xlu0 %v3249, 32
        %v3340 = vpop.permute.xlu0 %3339
        %3341 = vrot.lane.b32.xlu0 %v3250, 32
        %v3342 = vpop.permute.xlu0 %3341
        %3343 = vrot.lane.b32.xlu0 %v3251, 32
        %v3344 = vpop.permute.xlu0 %3343
        %3345 = vrot.lane.b32.xlu0 %v3252, 32
        %v3346 = vpop.permute.xlu0 %3345
        %3347 = vrot.lane.b32.xlu0 %v3253, 32
        %v3348 = vpop.permute.xlu0 %3347
        %3349 = vrot.lane.b32.xlu0 %v3254, 32
        %v3350 = vpop.permute.xlu0 %3349
        %vm3383 = vcmask 326912
        %3384 = vst.msk [vmem:[#allocation3] sm:$0xff] %vm3383, %v3288
        %3385 = vst.msk [vmem:[#allocation3 + $0x18] sm:$0xff] %vm3383, %v3290
        %3386 = vst.msk [vmem:[#allocation3 + $0x30] sm:$0xff] %vm3383, %v3292
        %3387 = vst.msk [vmem:[#allocation3 + $0x48] sm:$0xff] %vm3383, %v3294
        %3388 = vst.msk [vmem:[#allocation3 + $0x60] sm:$0xff] %vm3383, %v3296
        %3389 = vst.msk [vmem:[#allocation3 + $0x78] sm:$0xff] %vm3383, %v3298
        %3390 = vst.msk [vmem:[#allocation3 + $0x90] sm:$0xff] %vm3383, %v3300
        %3391 = vst.msk [vmem:[#allocation3 + $0xa8] sm:$0xff] %vm3383, %v3302
        %3392 = vst.msk [vmem:[#allocation3 + $0xc0] sm:$0xff] %vm3383, %v3304
        %3393 = vst.msk [vmem:[#allocation3 + $0xd8] sm:$0xff] %vm3383, %v3306
        %3394 = vst.msk [vmem:[#allocation3 + $0xf0] sm:$0xff] %vm3383, %v3308
        %3395 = vst.msk [vmem:[#allocation3 + $0x108] sm:$0xff] %vm3383, %v3310
        %3396 = vst.msk [vmem:[#allocation3 + $0x120] sm:$0xff] %vm3383, %v3312
        %3397 = vst.msk [vmem:[#allocation3 + $0x138] sm:$0xff] %vm3383, %v3314
        %3398 = vst.msk [vmem:[#allocation3 + $0x150] sm:$0xff] %vm3383, %v3316
        %3399 = vst.msk [vmem:[#allocation3 + $0x168] sm:$0xff] %vm3383, %v3318
        %3400 = vst.msk [vmem:[#allocation3 + $0x180] sm:$0xff] %vm3383, %v3320
        %3401 = vst.msk [vmem:[#allocation3 + $0x198] sm:$0xff] %vm3383, %v3322
        %3402 = vst.msk [vmem:[#allocation3 + $0x1b0] sm:$0xff] %vm3383, %v3324
        %3403 = vst.msk [vmem:[#allocation3 + $0x1c8] sm:$0xff] %vm3383, %v3326
        %3404 = vst.msk [vmem:[#allocation3 + $0x1e0] sm:$0xff] %vm3383, %v3328
        %3405 = vst.msk [vmem:[#allocation3 + $0x1f8] sm:$0xff] %vm3383, %v3330
        %3406 = vst.msk [vmem:[#allocation3 + $0x210] sm:$0xff] %vm3383, %v3332
        %3407 = vst.msk [vmem:[#allocation3 + $0x228] sm:$0xff] %vm3383, %v3334
        %3408 = vst.msk [vmem:[#allocation3 + $0x240] sm:$0xff] %vm3383, %v3336
        %3409 = vst.msk [vmem:[#allocation3 + $0x258] sm:$0xff] %vm3383, %v3338
        %3410 = vst.msk [vmem:[#allocation3 + $0x270] sm:$0xff] %vm3383, %v3340
        %3411 = vst.msk [vmem:[#allocation3 + $0x288] sm:$0xff] %vm3383, %v3342
        %3412 = vst.msk [vmem:[#allocation3 + $0x2a0] sm:$0xff] %vm3383, %v3344
        %3413 = vst.msk [vmem:[#allocation3 + $0x2b8] sm:$0xff] %vm3383, %v3346
        %3414 = vst.msk [vmem:[#allocation3 + $0x2d0] sm:$0xff] %vm3383, %v3348
        %3415 = vst.msk [vmem:[#allocation3 + $0x2e8] sm:$0xff] %vm3383, %v3350
        %v3416 = vld [vmem:[%s502 + $0x2] sm:$0xff]
        %v3417 = vld [vmem:[%s502 + $0xa] sm:$0xff]
        %v3418 = vld [vmem:[%s502 + $0x1a] sm:$0xff]
        %v3419 = vld [vmem:[%s502 + $0x22] sm:$0xff]
        %v3420 = vld [vmem:[%s502 + $0x32] sm:$0xff]
        %v3421 = vld [vmem:[%s502 + $0x3a] sm:$0xff]
        %v3422 = vld [vmem:[%s502 + $0x4a] sm:$0xff]
        %v3423 = vld [vmem:[%s502 + $0x52] sm:$0xff]
        %v3424 = vld [vmem:[%s502 + $0x62] sm:$0xff]
        %v3425 = vld [vmem:[%s502 + $0x6a] sm:$0xff]
        %v3426 = vld [vmem:[%s502 + $0x7a] sm:$0xff]
        %v3427 = vld [vmem:[%s502 + $0x82] sm:$0xff]
        %v3428 = vld [vmem:[%s502 + $0x92] sm:$0xff]
        %v3429 = vld [vmem:[%s502 + $0x9a] sm:$0xff]
        %v3430 = vld [vmem:[%s502 + $0xaa] sm:$0xff]
        %v3431 = vld [vmem:[%s502 + $0xb2] sm:$0xff]
        %v3432 = vld [vmem:[%s502 + $0xc2] sm:$0xff]
        %v3433 = vld [vmem:[%s502 + $0xca] sm:$0xff]
        %v3434 = vld [vmem:[%s502 + $0xda] sm:$0xff]
        %v3435 = vld [vmem:[%s502 + $0xe2] sm:$0xff]
        %v3436 = vld [vmem:[%s502 + $0xf2] sm:$0xff]
        %v3437 = vld [vmem:[%s502 + $0xfa] sm:$0xff]
        %v3438 = vld [vmem:[%s502 + $0x10a] sm:$0xff]
        %v3439 = vld [vmem:[%s502 + $0x112] sm:$0xff]
        %v3440 = vld [vmem:[%s502 + $0x122] sm:$0xff]
        %v3441 = vld [vmem:[%s502 + $0x12a] sm:$0xff]
        %v3442 = vld [vmem:[%s502 + $0x13a] sm:$0xff]
        %v3443 = vld [vmem:[%s502 + $0x142] sm:$0xff]
        %v3444 = vld [vmem:[%s502 + $0x152] sm:$0xff]
        %v3445 = vld [vmem:[%s502 + $0x15a] sm:$0xff]
        %v3446 = vld [vmem:[%s502 + $0x16a] sm:$0xff]
        %v3447 = vld [vmem:[%s502 + $0x172] sm:$0xff]
        %3480 = vrot.lane.b32.xlu0 %v3416, 40
        %v3481 = vpop.permute.xlu0 %3480
        %3482 = vrot.lane.b32.xlu0 %v3417, 40
        %v3483 = vpop.permute.xlu0 %3482
        %3484 = vrot.lane.b32.xlu0 %v3418, 40
        %v3485 = vpop.permute.xlu0 %3484
        %3486 = vrot.lane.b32.xlu0 %v3419, 40
        %v3487 = vpop.permute.xlu0 %3486
        %3488 = vrot.lane.b32.xlu0 %v3420, 40
        %v3489 = vpop.permute.xlu0 %3488
        %3490 = vrot.lane.b32.xlu0 %v3421, 40
        %v3491 = vpop.permute.xlu0 %3490
        %3492 = vrot.lane.b32.xlu0 %v3422, 40
        %v3493 = vpop.permute.xlu0 %3492
        %3494 = vrot.lane.b32.xlu0 %v3423, 40
        %v3495 = vpop.permute.xlu0 %3494
        %3496 = vrot.lane.b32.xlu0 %v3424, 40
        %v3497 = vpop.permute.xlu0 %3496
        %3498 = vrot.lane.b32.xlu0 %v3425, 40
        %v3499 = vpop.permute.xlu0 %3498
        %3500 = vrot.lane.b32.xlu0 %v3426, 40
        %v3501 = vpop.permute.xlu0 %3500
        %3502 = vrot.lane.b32.xlu0 %v3427, 40
        %v3503 = vpop.permute.xlu0 %3502
        %3504 = vrot.lane.b32.xlu0 %v3428, 40
        %v3505 = vpop.permute.xlu0 %3504
        %3506 = vrot.lane.b32.xlu0 %v3429, 40
        %v3507 = vpop.permute.xlu0 %3506
        %3508 = vrot.lane.b32.xlu0 %v3430, 40
        %v3509 = vpop.permute.xlu0 %3508
        %3510 = vrot.lane.b32.xlu0 %v3431, 40
        %v3511 = vpop.permute.xlu0 %3510
        %3512 = vrot.lane.b32.xlu0 %v3432, 40
        %v3513 = vpop.permute.xlu0 %3512
        %3514 = vrot.lane.b32.xlu0 %v3433, 40
        %v3515 = vpop.permute.xlu0 %3514
        %3516 = vrot.lane.b32.xlu0 %v3434, 40
        %v3517 = vpop.permute.xlu0 %3516
        %3518 = vrot.lane.b32.xlu0 %v3435, 40
        %v3519 = vpop.permute.xlu0 %3518
        %3520 = vrot.lane.b32.xlu0 %v3436, 40
        %v3521 = vpop.permute.xlu0 %3520
        %3522 = vrot.lane.b32.xlu0 %v3437, 40
        %v3523 = vpop.permute.xlu0 %3522
        %3524 = vrot.lane.b32.xlu0 %v3438, 40
        %v3525 = vpop.permute.xlu0 %3524
        %3526 = vrot.lane.b32.xlu0 %v3439, 40
        %v3527 = vpop.permute.xlu0 %3526
        %3528 = vrot.lane.b32.xlu0 %v3440, 40
        %v3529 = vpop.permute.xlu0 %3528
        %3530 = vrot.lane.b32.xlu0 %v3441, 40
        %v3531 = vpop.permute.xlu0 %3530
        %3532 = vrot.lane.b32.xlu0 %v3442, 40
        %v3533 = vpop.permute.xlu0 %3532
        %3534 = vrot.lane.b32.xlu0 %v3443, 40
        %v3535 = vpop.permute.xlu0 %3534
        %3536 = vrot.lane.b32.xlu0 %v3444, 40
        %v3537 = vpop.permute.xlu0 %3536
        %3538 = vrot.lane.b32.xlu0 %v3445, 40
        %v3539 = vpop.permute.xlu0 %3538
        %3540 = vrot.lane.b32.xlu0 %v3446, 40
        %v3541 = vpop.permute.xlu0 %3540
        %3542 = vrot.lane.b32.xlu0 %v3447, 40
        %v3543 = vpop.permute.xlu0 %3542
        %vm3576 = vcmask 392512
        %3577 = vst.msk [vmem:[#allocation3] sm:$0xff] %vm3576, %v3481
        %3578 = vst.msk [vmem:[#allocation3 + $0x18] sm:$0xff] %vm3576, %v3483
        %3579 = vst.msk [vmem:[#allocation3 + $0x30] sm:$0xff] %vm3576, %v3485
        %3580 = vst.msk [vmem:[#allocation3 + $0x48] sm:$0xff] %vm3576, %v3487
        %3581 = vst.msk [vmem:[#allocation3 + $0x60] sm:$0xff] %vm3576, %v3489
        %3582 = vst.msk [vmem:[#allocation3 + $0x78] sm:$0xff] %vm3576, %v3491
        %3583 = vst.msk [vmem:[#allocation3 + $0x90] sm:$0xff] %vm3576, %v3493
        %3584 = vst.msk [vmem:[#allocation3 + $0xa8] sm:$0xff] %vm3576, %v3495
        %3585 = vst.msk [vmem:[#allocation3 + $0xc0] sm:$0xff] %vm3576, %v3497
        %3586 = vst.msk [vmem:[#allocation3 + $0xd8] sm:$0xff] %vm3576, %v3499
        %3587 = vst.msk [vmem:[#allocation3 + $0xf0] sm:$0xff] %vm3576, %v3501
        %3588 = vst.msk [vmem:[#allocation3 + $0x108] sm:$0xff] %vm3576, %v3503
        %3589 = vst.msk [vmem:[#allocation3 + $0x120] sm:$0xff] %vm3576, %v3505
        %3590 = vst.msk [vmem:[#allocation3 + $0x138] sm:$0xff] %vm3576, %v3507
        %3591 = vst.msk [vmem:[#allocation3 + $0x150] sm:$0xff] %vm3576, %v3509
        %3592 = vst.msk [vmem:[#allocation3 + $0x168] sm:$0xff] %vm3576, %v3511
        %3593 = vst.msk [vmem:[#allocation3 + $0x180] sm:$0xff] %vm3576, %v3513
        %3594 = vst.msk [vmem:[#allocation3 + $0x198] sm:$0xff] %vm3576, %v3515
        %3595 = vst.msk [vmem:[#allocation3 + $0x1b0] sm:$0xff] %vm3576, %v3517
        %3596 = vst.msk [vmem:[#allocation3 + $0x1c8] sm:$0xff] %vm3576, %v3519
        %3597 = vst.msk [vmem:[#allocation3 + $0x1e0] sm:$0xff] %vm3576, %v3521
        %3598 = vst.msk [vmem:[#allocation3 + $0x1f8] sm:$0xff] %vm3576, %v3523
        %3599 = vst.msk [vmem:[#allocation3 + $0x210] sm:$0xff] %vm3576, %v3525
        %3600 = vst.msk [vmem:[#allocation3 + $0x228] sm:$0xff] %vm3576, %v3527
        %3601 = vst.msk [vmem:[#allocation3 + $0x240] sm:$0xff] %vm3576, %v3529
        %3602 = vst.msk [vmem:[#allocation3 + $0x258] sm:$0xff] %vm3576, %v3531
        %3603 = vst.msk [vmem:[#allocation3 + $0x270] sm:$0xff] %vm3576, %v3533
        %3604 = vst.msk [vmem:[#allocation3 + $0x288] sm:$0xff] %vm3576, %v3535
        %3605 = vst.msk [vmem:[#allocation3 + $0x2a0] sm:$0xff] %vm3576, %v3537
        %3606 = vst.msk [vmem:[#allocation3 + $0x2b8] sm:$0xff] %vm3576, %v3539
        %3607 = vst.msk [vmem:[#allocation3 + $0x2d0] sm:$0xff] %vm3576, %v3541
        %3608 = vst.msk [vmem:[#allocation3 + $0x2e8] sm:$0xff] %vm3576, %v3543
        %v3609 = vld [vmem:[%s1565] sm:$0xff]
        %v3610 = vld [vmem:[%s1565 + $0x8] sm:$0xff]
        %v3611 = vld [vmem:[%s1565 + $0x18] sm:$0xff]
        %v3612 = vld [vmem:[%s1565 + $0x20] sm:$0xff]
        %v3613 = vld [vmem:[%s1565 + $0x30] sm:$0xff]
        %v3614 = vld [vmem:[%s1565 + $0x38] sm:$0xff]
        %v3615 = vld [vmem:[%s1565 + $0x48] sm:$0xff]
        %v3616 = vld [vmem:[%s1565 + $0x50] sm:$0xff]
        %v3617 = vld [vmem:[%s1565 + $0x60] sm:$0xff]
        %v3618 = vld [vmem:[%s1565 + $0x68] sm:$0xff]
        %v3619 = vld [vmem:[%s1565 + $0x78] sm:$0xff]
        %v3620 = vld [vmem:[%s1565 + $0x80] sm:$0xff]
        %v3621 = vld [vmem:[%s1565 + $0x90] sm:$0xff]
        %v3622 = vld [vmem:[%s1565 + $0x98] sm:$0xff]
        %v3623 = vld [vmem:[%s1565 + $0xa8] sm:$0xff]
        %v3624 = vld [vmem:[%s1565 + $0xb0] sm:$0xff]
        %v3625 = vld [vmem:[%s1565 + $0xc0] sm:$0xff]
        %v3626 = vld [vmem:[%s1565 + $0xc8] sm:$0xff]
        %v3627 = vld [vmem:[%s1565 + $0xd8] sm:$0xff]
        %v3628 = vld [vmem:[%s1565 + $0xe0] sm:$0xff]
        %v3629 = vld [vmem:[%s1565 + $0xf0] sm:$0xff]
        %v3630 = vld [vmem:[%s1565 + $0xf8] sm:$0xff]
        %v3631 = vld [vmem:[%s1565 + $0x108] sm:$0xff]
        %v3632 = vld [vmem:[%s1565 + $0x110] sm:$0xff]
        %v3633 = vld [vmem:[%s1565 + $0x120] sm:$0xff]
        %v3634 = vld [vmem:[%s1565 + $0x128] sm:$0xff]
        %v3635 = vld [vmem:[%s1565 + $0x138] sm:$0xff]
        %v3636 = vld [vmem:[%s1565 + $0x140] sm:$0xff]
        %v3637 = vld [vmem:[%s1565 + $0x150] sm:$0xff]
        %v3638 = vld [vmem:[%s1565 + $0x158] sm:$0xff]
        %v3639 = vld [vmem:[%s1565 + $0x168] sm:$0xff]
        %v3640 = vld [vmem:[%s1565 + $0x170] sm:$0xff]
        %3673 = vrot.lane.b32.xlu0 %v3609, 48
        %v3674 = vpop.permute.xlu0 %3673
        %3675 = vrot.lane.b32.xlu0 %v3610, 48
        %v3676 = vpop.permute.xlu0 %3675
        %3677 = vrot.lane.b32.xlu0 %v3611, 48
        %v3678 = vpop.permute.xlu0 %3677
        %3679 = vrot.lane.b32.xlu0 %v3612, 48
        %v3680 = vpop.permute.xlu0 %3679
        %3681 = vrot.lane.b32.xlu0 %v3613, 48
        %v3682 = vpop.permute.xlu0 %3681
        %3683 = vrot.lane.b32.xlu0 %v3614, 48
        %v3684 = vpop.permute.xlu0 %3683
        %3685 = vrot.lane.b32.xlu0 %v3615, 48
        %v3686 = vpop.permute.xlu0 %3685
        %3687 = vrot.lane.b32.xlu0 %v3616, 48
        %v3688 = vpop.permute.xlu0 %3687
        %3689 = vrot.lane.b32.xlu0 %v3617, 48
        %v3690 = vpop.permute.xlu0 %3689
        %3691 = vrot.lane.b32.xlu0 %v3618, 48
        %v3692 = vpop.permute.xlu0 %3691
        %3693 = vrot.lane.b32.xlu0 %v3619, 48
        %v3694 = vpop.permute.xlu0 %3693
        %3695 = vrot.lane.b32.xlu0 %v3620, 48
        %v3696 = vpop.permute.xlu0 %3695
        %3697 = vrot.lane.b32.xlu0 %v3621, 48
        %v3698 = vpop.permute.xlu0 %3697
        %3699 = vrot.lane.b32.xlu0 %v3622, 48
        %v3700 = vpop.permute.xlu0 %3699
        %3701 = vrot.lane.b32.xlu0 %v3623, 48
        %v3702 = vpop.permute.xlu0 %3701
        %3703 = vrot.lane.b32.xlu0 %v3624, 48
        %v3704 = vpop.permute.xlu0 %3703
        %3705 = vrot.lane.b32.xlu0 %v3625, 48
        %v3706 = vpop.permute.xlu0 %3705
        %3707 = vrot.lane.b32.xlu0 %v3626, 48
        %v3708 = vpop.permute.xlu0 %3707
        %3709 = vrot.lane.b32.xlu0 %v3627, 48
        %v3710 = vpop.permute.xlu0 %3709
        %3711 = vrot.lane.b32.xlu0 %v3628, 48
        %v3712 = vpop.permute.xlu0 %3711
        %3713 = vrot.lane.b32.xlu0 %v3629, 48
        %v3714 = vpop.permute.xlu0 %3713
        %3715 = vrot.lane.b32.xlu0 %v3630, 48
        %v3716 = vpop.permute.xlu0 %3715
        %3717 = vrot.lane.b32.xlu0 %v3631, 48
        %v3718 = vpop.permute.xlu0 %3717
        %3719 = vrot.lane.b32.xlu0 %v3632, 48
        %v3720 = vpop.permute.xlu0 %3719
        %3721 = vrot.lane.b32.xlu0 %v3633, 48
        %v3722 = vpop.permute.xlu0 %3721
        %3723 = vrot.lane.b32.xlu0 %v3634, 48
        %v3724 = vpop.permute.xlu0 %3723
        %3725 = vrot.lane.b32.xlu0 %v3635, 48
        %v3726 = vpop.permute.xlu0 %3725
        %3727 = vrot.lane.b32.xlu0 %v3636, 48
        %v3728 = vpop.permute.xlu0 %3727
        %3729 = vrot.lane.b32.xlu0 %v3637, 48
        %v3730 = vpop.permute.xlu0 %3729
        %3731 = vrot.lane.b32.xlu0 %v3638, 48
        %v3732 = vpop.permute.xlu0 %3731
        %3733 = vrot.lane.b32.xlu0 %v3639, 48
        %v3734 = vpop.permute.xlu0 %3733
        %3735 = vrot.lane.b32.xlu0 %v3640, 48
        %v3736 = vpop.permute.xlu0 %3735
        %vm3769 = vcmask 458112
        %3770 = vst.msk [vmem:[#allocation3] sm:$0xff] %vm3769, %v3674
        %3771 = vst.msk [vmem:[#allocation3 + $0x18] sm:$0xff] %vm3769, %v3676
        %3772 = vst.msk [vmem:[#allocation3 + $0x30] sm:$0xff] %vm3769, %v3678
        %3773 = vst.msk [vmem:[#allocation3 + $0x48] sm:$0xff] %vm3769, %v3680
        %3774 = vst.msk [vmem:[#allocation3 + $0x60] sm:$0xff] %vm3769, %v3682
        %3775 = vst.msk [vmem:[#allocation3 + $0x78] sm:$0xff] %vm3769, %v3684
        %3776 = vst.msk [vmem:[#allocation3 + $0x90] sm:$0xff] %vm3769, %v3686
        %3777 = vst.msk [vmem:[#allocation3 + $0xa8] sm:$0xff] %vm3769, %v3688
        %3778 = vst.msk [vmem:[#allocation3 + $0xc0] sm:$0xff] %vm3769, %v3690
        %3779 = vst.msk [vmem:[#allocation3 + $0xd8] sm:$0xff] %vm3769, %v3692
        %3780 = vst.msk [vmem:[#allocation3 + $0xf0] sm:$0xff] %vm3769, %v3694
        %3781 = vst.msk [vmem:[#allocation3 + $0x108] sm:$0xff] %vm3769, %v3696
        %3782 = vst.msk [vmem:[#allocation3 + $0x120] sm:$0xff] %vm3769, %v3698
        %3783 = vst.msk [vmem:[#allocation3 + $0x138] sm:$0xff] %vm3769, %v3700
        %3784 = vst.msk [vmem:[#allocation3 + $0x150] sm:$0xff] %vm3769, %v3702
        %3785 = vst.msk [vmem:[#allocation3 + $0x168] sm:$0xff] %vm3769, %v3704
        %3786 = vst.msk [vmem:[#allocation3 + $0x180] sm:$0xff] %vm3769, %v3706
        %3787 = vst.msk [vmem:[#allocation3 + $0x198] sm:$0xff] %vm3769, %v3708
        %3788 = vst.msk [vmem:[#allocation3 + $0x1b0] sm:$0xff] %vm3769, %v3710
        %3789 = vst.msk [vmem:[#allocation3 + $0x1c8] sm:$0xff] %vm3769, %v3712
        %3790 = vst.msk [vmem:[#allocation3 + $0x1e0] sm:$0xff] %vm3769, %v3714
        %3791 = vst.msk [vmem:[#allocation3 + $0x1f8] sm:$0xff] %vm3769, %v3716
        %3792 = vst.msk [vmem:[#allocation3 + $0x210] sm:$0xff] %vm3769, %v3718
        %3793 = vst.msk [vmem:[#allocation3 + $0x228] sm:$0xff] %vm3769, %v3720
        %3794 = vst.msk [vmem:[#allocation3 + $0x240] sm:$0xff] %vm3769, %v3722
        %3795 = vst.msk [vmem:[#allocation3 + $0x258] sm:$0xff] %vm3769, %v3724
        %3796 = vst.msk [vmem:[#allocation3 + $0x270] sm:$0xff] %vm3769, %v3726
        %3797 = vst.msk [vmem:[#allocation3 + $0x288] sm:$0xff] %vm3769, %v3728
        %3798 = vst.msk [vmem:[#allocation3 + $0x2a0] sm:$0xff] %vm3769, %v3730
        %3799 = vst.msk [vmem:[#allocation3 + $0x2b8] sm:$0xff] %vm3769, %v3732
        %3800 = vst.msk [vmem:[#allocation3 + $0x2d0] sm:$0xff] %vm3769, %v3734
        %3801 = vst.msk [vmem:[#allocation3 + $0x2e8] sm:$0xff] %vm3769, %v3736
        %v3802 = vld [vmem:[%s1565 + $0x1] sm:$0xff]
        %v3803 = vld [vmem:[%s1565 + $0x9] sm:$0xff]
        %v3804 = vld [vmem:[%s1565 + $0x19] sm:$0xff]
        %v3805 = vld [vmem:[%s1565 + $0x21] sm:$0xff]
        %v3806 = vld [vmem:[%s1565 + $0x31] sm:$0xff]
        %v3807 = vld [vmem:[%s1565 + $0x39] sm:$0xff]
        %v3808 = vld [vmem:[%s1565 + $0x49] sm:$0xff]
        %v3809 = vld [vmem:[%s1565 + $0x51] sm:$0xff]
        %v3810 = vld [vmem:[%s1565 + $0x61] sm:$0xff]
        %v3811 = vld [vmem:[%s1565 + $0x69] sm:$0xff]
        %v3812 = vld [vmem:[%s1565 + $0x79] sm:$0xff]
        %v3813 = vld [vmem:[%s1565 + $0x81] sm:$0xff]
        %v3814 = vld [vmem:[%s1565 + $0x91] sm:$0xff]
        %v3815 = vld [vmem:[%s1565 + $0x99] sm:$0xff]
        %v3816 = vld [vmem:[%s1565 + $0xa9] sm:$0xff]
        %v3817 = vld [vmem:[%s1565 + $0xb1] sm:$0xff]
        %v3818 = vld [vmem:[%s1565 + $0xc1] sm:$0xff]
        %v3819 = vld [vmem:[%s1565 + $0xc9] sm:$0xff]
        %v3820 = vld [vmem:[%s1565 + $0xd9] sm:$0xff]
        %v3821 = vld [vmem:[%s1565 + $0xe1] sm:$0xff]
        %v3822 = vld [vmem:[%s1565 + $0xf1] sm:$0xff]
        %v3823 = vld [vmem:[%s1565 + $0xf9] sm:$0xff]
        %v3824 = vld [vmem:[%s1565 + $0x109] sm:$0xff]
        %v3825 = vld [vmem:[%s1565 + $0x111] sm:$0xff]
        %v3826 = vld [vmem:[%s1565 + $0x121] sm:$0xff]
        %v3827 = vld [vmem:[%s1565 + $0x129] sm:$0xff]
        %v3828 = vld [vmem:[%s1565 + $0x139] sm:$0xff]
        %v3829 = vld [vmem:[%s1565 + $0x141] sm:$0xff]
        %v3830 = vld [vmem:[%s1565 + $0x151] sm:$0xff]
        %v3831 = vld [vmem:[%s1565 + $0x159] sm:$0xff]
        %v3832 = vld [vmem:[%s1565 + $0x169] sm:$0xff]
        %v3833 = vld [vmem:[%s1565 + $0x171] sm:$0xff]
        %3866 = vrot.lane.b32.xlu0 %v3802, 56
        %v3867 = vpop.permute.xlu0 %3866
        %3868 = vrot.lane.b32.xlu0 %v3803, 56
        %v3869 = vpop.permute.xlu0 %3868
        %3870 = vrot.lane.b32.xlu0 %v3804, 56
        %v3871 = vpop.permute.xlu0 %3870
        %3872 = vrot.lane.b32.xlu0 %v3805, 56
        %v3873 = vpop.permute.xlu0 %3872
        %3874 = vrot.lane.b32.xlu0 %v3806, 56
        %v3875 = vpop.permute.xlu0 %3874
        %3876 = vrot.lane.b32.xlu0 %v3807, 56
        %v3877 = vpop.permute.xlu0 %3876
        %3878 = vrot.lane.b32.xlu0 %v3808, 56
        %v3879 = vpop.permute.xlu0 %3878
        %3880 = vrot.lane.b32.xlu0 %v3809, 56
        %v3881 = vpop.permute.xlu0 %3880
        %3882 = vrot.lane.b32.xlu0 %v3810, 56
        %v3883 = vpop.permute.xlu0 %3882
        %3884 = vrot.lane.b32.xlu0 %v3811, 56
        %v3885 = vpop.permute.xlu0 %3884
        %3886 = vrot.lane.b32.xlu0 %v3812, 56
        %v3887 = vpop.permute.xlu0 %3886
        %3888 = vrot.lane.b32.xlu0 %v3813, 56
        %v3889 = vpop.permute.xlu0 %3888
        %3890 = vrot.lane.b32.xlu0 %v3814, 56
        %v3891 = vpop.permute.xlu0 %3890
        %3892 = vrot.lane.b32.xlu0 %v3815, 56
        %v3893 = vpop.permute.xlu0 %3892
        %3894 = vrot.lane.b32.xlu0 %v3816, 56
        %v3895 = vpop.permute.xlu0 %3894
        %3896 = vrot.lane.b32.xlu0 %v3817, 56
        %v3897 = vpop.permute.xlu0 %3896
        %3898 = vrot.lane.b32.xlu0 %v3818, 56
        %v3899 = vpop.permute.xlu0 %3898
        %3900 = vrot.lane.b32.xlu0 %v3819, 56
        %v3901 = vpop.permute.xlu0 %3900
        %3902 = vrot.lane.b32.xlu0 %v3820, 56
        %v3903 = vpop.permute.xlu0 %3902
        %3904 = vrot.lane.b32.xlu0 %v3821, 56
        %v3905 = vpop.permute.xlu0 %3904
        %3906 = vrot.lane.b32.xlu0 %v3822, 56
        %v3907 = vpop.permute.xlu0 %3906
        %3908 = vrot.lane.b32.xlu0 %v3823, 56
        %v3909 = vpop.permute.xlu0 %3908
        %3910 = vrot.lane.b32.xlu0 %v3824, 56
        %v3911 = vpop.permute.xlu0 %3910
        %3912 = vrot.lane.b32.xlu0 %v3825, 56
        %v3913 = vpop.permute.xlu0 %3912
        %3914 = vrot.lane.b32.xlu0 %v3826, 56
        %v3915 = vpop.permute.xlu0 %3914
        %3916 = vrot.lane.b32.xlu0 %v3827, 56
        %v3917 = vpop.permute.xlu0 %3916
        %3918 = vrot.lane.b32.xlu0 %v3828, 56
        %v3919 = vpop.permute.xlu0 %3918
        %3920 = vrot.lane.b32.xlu0 %v3829, 56
        %v3921 = vpop.permute.xlu0 %3920
        %3922 = vrot.lane.b32.xlu0 %v3830, 56
        %v3923 = vpop.permute.xlu0 %3922
        %3924 = vrot.lane.b32.xlu0 %v3831, 56
        %v3925 = vpop.permute.xlu0 %3924
        %3926 = vrot.lane.b32.xlu0 %v3832, 56
        %v3927 = vpop.permute.xlu0 %3926
        %3928 = vrot.lane.b32.xlu0 %v3833, 56
        %v3929 = vpop.permute.xlu0 %3928
        %vm3962 = vcmask 523712
        %3963 = vst.msk [vmem:[#allocation3] sm:$0xff] %vm3962, %v3867
        %3964 = vst.msk [vmem:[#allocation3 + $0x18] sm:$0xff] %vm3962, %v3869
        %3965 = vst.msk [vmem:[#allocation3 + $0x30] sm:$0xff] %vm3962, %v3871
        %3966 = vst.msk [vmem:[#allocation3 + $0x48] sm:$0xff] %vm3962, %v3873
        %3967 = vst.msk [vmem:[#allocation3 + $0x60] sm:$0xff] %vm3962, %v3875
        %3968 = vst.msk [vmem:[#allocation3 + $0x78] sm:$0xff] %vm3962, %v3877
        %3969 = vst.msk [vmem:[#allocation3 + $0x90] sm:$0xff] %vm3962, %v3879
        %3970 = vst.msk [vmem:[#allocation3 + $0xa8] sm:$0xff] %vm3962, %v3881
        %3971 = vst.msk [vmem:[#allocation3 + $0xc0] sm:$0xff] %vm3962, %v3883
        %3972 = vst.msk [vmem:[#allocation3 + $0xd8] sm:$0xff] %vm3962, %v3885
        %3973 = vst.msk [vmem:[#allocation3 + $0xf0] sm:$0xff] %vm3962, %v3887
        %3974 = vst.msk [vmem:[#allocation3 + $0x108] sm:$0xff] %vm3962, %v3889
        %3975 = vst.msk [vmem:[#allocation3 + $0x120] sm:$0xff] %vm3962, %v3891
        %3976 = vst.msk [vmem:[#allocation3 + $0x138] sm:$0xff] %vm3962, %v3893
        %3977 = vst.msk [vmem:[#allocation3 + $0x150] sm:$0xff] %vm3962, %v3895
        %3978 = vst.msk [vmem:[#allocation3 + $0x168] sm:$0xff] %vm3962, %v3897
        %3979 = vst.msk [vmem:[#allocation3 + $0x180] sm:$0xff] %vm3962, %v3899
        %3980 = vst.msk [vmem:[#allocation3 + $0x198] sm:$0xff] %vm3962, %v3901
        %3981 = vst.msk [vmem:[#allocation3 + $0x1b0] sm:$0xff] %vm3962, %v3903
        %3982 = vst.msk [vmem:[#allocation3 + $0x1c8] sm:$0xff] %vm3962, %v3905
        %3983 = vst.msk [vmem:[#allocation3 + $0x1e0] sm:$0xff] %vm3962, %v3907
        %3984 = vst.msk [vmem:[#allocation3 + $0x1f8] sm:$0xff] %vm3962, %v3909
        %3985 = vst.msk [vmem:[#allocation3 + $0x210] sm:$0xff] %vm3962, %v3911
        %3986 = vst.msk [vmem:[#allocation3 + $0x228] sm:$0xff] %vm3962, %v3913
        %3987 = vst.msk [vmem:[#allocation3 + $0x240] sm:$0xff] %vm3962, %v3915
        %3988 = vst.msk [vmem:[#allocation3 + $0x258] sm:$0xff] %vm3962, %v3917
        %3989 = vst.msk [vmem:[#allocation3 + $0x270] sm:$0xff] %vm3962, %v3919
        %3990 = vst.msk [vmem:[#allocation3 + $0x288] sm:$0xff] %vm3962, %v3921
        %3991 = vst.msk [vmem:[#allocation3 + $0x2a0] sm:$0xff] %vm3962, %v3923
        %3992 = vst.msk [vmem:[#allocation3 + $0x2b8] sm:$0xff] %vm3962, %v3925
        %3993 = vst.msk [vmem:[#allocation3 + $0x2d0] sm:$0xff] %vm3962, %v3927
        %3994 = vst.msk [vmem:[#allocation3 + $0x2e8] sm:$0xff] %vm3962, %v3929
        %v3995 = vld [vmem:[%s1565 + $0x2] sm:$0xff]
        %v3996 = vld [vmem:[%s1565 + $0xa] sm:$0xff]
        %v3997 = vld [vmem:[%s1565 + $0x1a] sm:$0xff]
        %v3998 = vld [vmem:[%s1565 + $0x22] sm:$0xff]
        %v3999 = vld [vmem:[%s1565 + $0x32] sm:$0xff]
        %v4000 = vld [vmem:[%s1565 + $0x3a] sm:$0xff]
        %v4001 = vld [vmem:[%s1565 + $0x4a] sm:$0xff]
        %v4002 = vld [vmem:[%s1565 + $0x52] sm:$0xff]
        %v4003 = vld [vmem:[%s1565 + $0x62] sm:$0xff]
        %v4004 = vld [vmem:[%s1565 + $0x6a] sm:$0xff]
        %v4005 = vld [vmem:[%s1565 + $0x7a] sm:$0xff]
        %v4006 = vld [vmem:[%s1565 + $0x82] sm:$0xff]
        %v4007 = vld [vmem:[%s1565 + $0x92] sm:$0xff]
        %v4008 = vld [vmem:[%s1565 + $0x9a] sm:$0xff]
        %v4009 = vld [vmem:[%s1565 + $0xaa] sm:$0xff]
        %v4010 = vld [vmem:[%s1565 + $0xb2] sm:$0xff]
        %v4011 = vld [vmem:[%s1565 + $0xc2] sm:$0xff]
        %v4012 = vld [vmem:[%s1565 + $0xca] sm:$0xff]
        %v4013 = vld [vmem:[%s1565 + $0xda] sm:$0xff]
        %v4014 = vld [vmem:[%s1565 + $0xe2] sm:$0xff]
        %v4015 = vld [vmem:[%s1565 + $0xf2] sm:$0xff]
        %v4016 = vld [vmem:[%s1565 + $0xfa] sm:$0xff]
        %v4017 = vld [vmem:[%s1565 + $0x10a] sm:$0xff]
        %v4018 = vld [vmem:[%s1565 + $0x112] sm:$0xff]
        %v4019 = vld [vmem:[%s1565 + $0x122] sm:$0xff]
        %v4020 = vld [vmem:[%s1565 + $0x12a] sm:$0xff]
        %v4021 = vld [vmem:[%s1565 + $0x13a] sm:$0xff]
        %v4022 = vld [vmem:[%s1565 + $0x142] sm:$0xff]
        %v4023 = vld [vmem:[%s1565 + $0x152] sm:$0xff]
        %v4024 = vld [vmem:[%s1565 + $0x15a] sm:$0xff]
        %v4025 = vld [vmem:[%s1565 + $0x16a] sm:$0xff]
        %v4026 = vld [vmem:[%s1565 + $0x172] sm:$0xff]
        %4059 = vrot.lane.b32.xlu0 %v3995, 64
        %v4060 = vpop.permute.xlu0 %4059
        %4061 = vrot.lane.b32.xlu0 %v3996, 64
        %v4062 = vpop.permute.xlu0 %4061
        %4063 = vrot.lane.b32.xlu0 %v3997, 64
        %v4064 = vpop.permute.xlu0 %4063
        %4065 = vrot.lane.b32.xlu0 %v3998, 64
        %v4066 = vpop.permute.xlu0 %4065
        %4067 = vrot.lane.b32.xlu0 %v3999, 64
        %v4068 = vpop.permute.xlu0 %4067
        %4069 = vrot.lane.b32.xlu0 %v4000, 64
        %v4070 = vpop.permute.xlu0 %4069
        %4071 = vrot.lane.b32.xlu0 %v4001, 64
        %v4072 = vpop.permute.xlu0 %4071
        %4073 = vrot.lane.b32.xlu0 %v4002, 64
        %v4074 = vpop.permute.xlu0 %4073
        %4075 = vrot.lane.b32.xlu0 %v4003, 64
        %v4076 = vpop.permute.xlu0 %4075
        %4077 = vrot.lane.b32.xlu0 %v4004, 64
        %v4078 = vpop.permute.xlu0 %4077
        %4079 = vrot.lane.b32.xlu0 %v4005, 64
        %v4080 = vpop.permute.xlu0 %4079
        %4081 = vrot.lane.b32.xlu0 %v4006, 64
        %v4082 = vpop.permute.xlu0 %4081
        %4083 = vrot.lane.b32.xlu0 %v4007, 64
        %v4084 = vpop.permute.xlu0 %4083
        %4085 = vrot.lane.b32.xlu0 %v4008, 64
        %v4086 = vpop.permute.xlu0 %4085
        %4087 = vrot.lane.b32.xlu0 %v4009, 64
        %v4088 = vpop.permute.xlu0 %4087
        %4089 = vrot.lane.b32.xlu0 %v4010, 64
        %v4090 = vpop.permute.xlu0 %4089
        %4091 = vrot.lane.b32.xlu0 %v4011, 64
        %v4092 = vpop.permute.xlu0 %4091
        %4093 = vrot.lane.b32.xlu0 %v4012, 64
        %v4094 = vpop.permute.xlu0 %4093
        %4095 = vrot.lane.b32.xlu0 %v4013, 64
        %v4096 = vpop.permute.xlu0 %4095
        %4097 = vrot.lane.b32.xlu0 %v4014, 64
        %v4098 = vpop.permute.xlu0 %4097
        %4099 = vrot.lane.b32.xlu0 %v4015, 64
        %v4100 = vpop.permute.xlu0 %4099
        %4101 = vrot.lane.b32.xlu0 %v4016, 64
        %v4102 = vpop.permute.xlu0 %4101
        %4103 = vrot.lane.b32.xlu0 %v4017, 64
        %v4104 = vpop.permute.xlu0 %4103
        %4105 = vrot.lane.b32.xlu0 %v4018, 64
        %v4106 = vpop.permute.xlu0 %4105
        %4107 = vrot.lane.b32.xlu0 %v4019, 64
        %v4108 = vpop.permute.xlu0 %4107
        %4109 = vrot.lane.b32.xlu0 %v4020, 64
        %v4110 = vpop.permute.xlu0 %4109
        %4111 = vrot.lane.b32.xlu0 %v4021, 64
        %v4112 = vpop.permute.xlu0 %4111
        %4113 = vrot.lane.b32.xlu0 %v4022, 64
        %v4114 = vpop.permute.xlu0 %4113
        %4115 = vrot.lane.b32.xlu0 %v4023, 64
        %v4116 = vpop.permute.xlu0 %4115
        %4117 = vrot.lane.b32.xlu0 %v4024, 64
        %v4118 = vpop.permute.xlu0 %4117
        %4119 = vrot.lane.b32.xlu0 %v4025, 64
        %v4120 = vpop.permute.xlu0 %4119
        %4121 = vrot.lane.b32.xlu0 %v4026, 64
        %v4122 = vpop.permute.xlu0 %4121
        %vm4155 = vcmask 589312
        %4156 = vst.msk [vmem:[#allocation3] sm:$0xff] %vm4155, %v4060
        %4157 = vst.msk [vmem:[#allocation3 + $0x18] sm:$0xff] %vm4155, %v4062
        %4158 = vst.msk [vmem:[#allocation3 + $0x30] sm:$0xff] %vm4155, %v4064
        %4159 = vst.msk [vmem:[#allocation3 + $0x48] sm:$0xff] %vm4155, %v4066
        %4160 = vst.msk [vmem:[#allocation3 + $0x60] sm:$0xff] %vm4155, %v4068
        %4161 = vst.msk [vmem:[#allocation3 + $0x78] sm:$0xff] %vm4155, %v4070
        %4162 = vst.msk [vmem:[#allocation3 + $0x90] sm:$0xff] %vm4155, %v4072
        %4163 = vst.msk [vmem:[#allocation3 + $0xa8] sm:$0xff] %vm4155, %v4074
        %4164 = vst.msk [vmem:[#allocation3 + $0xc0] sm:$0xff] %vm4155, %v4076
        %4165 = vst.msk [vmem:[#allocation3 + $0xd8] sm:$0xff] %vm4155, %v4078
        %4166 = vst.msk [vmem:[#allocation3 + $0xf0] sm:$0xff] %vm4155, %v4080
        %4167 = vst.msk [vmem:[#allocation3 + $0x108] sm:$0xff] %vm4155, %v4082
        %4168 = vst.msk [vmem:[#allocation3 + $0x120] sm:$0xff] %vm4155, %v4084
        %4169 = vst.msk [vmem:[#allocation3 + $0x138] sm:$0xff] %vm4155, %v4086
        %4170 = vst.msk [vmem:[#allocation3 + $0x150] sm:$0xff] %vm4155, %v4088
        %4171 = vst.msk [vmem:[#allocation3 + $0x168] sm:$0xff] %vm4155, %v4090
        %4172 = vst.msk [vmem:[#allocation3 + $0x180] sm:$0xff] %vm4155, %v4092
        %4173 = vst.msk [vmem:[#allocation3 + $0x198] sm:$0xff] %vm4155, %v4094
        %4174 = vst.msk [vmem:[#allocation3 + $0x1b0] sm:$0xff] %vm4155, %v4096
        %4175 = vst.msk [vmem:[#allocation3 + $0x1c8] sm:$0xff] %vm4155, %v4098
        %4176 = vst.msk [vmem:[#allocation3 + $0x1e0] sm:$0xff] %vm4155, %v4100
        %4177 = vst.msk [vmem:[#allocation3 + $0x1f8] sm:$0xff] %vm4155, %v4102
        %4178 = vst.msk [vmem:[#allocation3 + $0x210] sm:$0xff] %vm4155, %v4104
        %4179 = vst.msk [vmem:[#allocation3 + $0x228] sm:$0xff] %vm4155, %v4106
        %4180 = vst.msk [vmem:[#allocation3 + $0x240] sm:$0xff] %vm4155, %v4108
        %4181 = vst.msk [vmem:[#allocation3 + $0x258] sm:$0xff] %vm4155, %v4110
        %4182 = vst.msk [vmem:[#allocation3 + $0x270] sm:$0xff] %vm4155, %v4112
        %4183 = vst.msk [vmem:[#allocation3 + $0x288] sm:$0xff] %vm4155, %v4114
        %4184 = vst.msk [vmem:[#allocation3 + $0x2a0] sm:$0xff] %vm4155, %v4116
        %4185 = vst.msk [vmem:[#allocation3 + $0x2b8] sm:$0xff] %vm4155, %v4118
        %4186 = vst.msk [vmem:[#allocation3 + $0x2d0] sm:$0xff] %vm4155, %v4120
        %4187 = vst.msk [vmem:[#allocation3 + $0x2e8] sm:$0xff] %vm4155, %v4122
        %v4188 = vld [vmem:[#allocation3] sm:$0xff]
        %v4189 = vld [vmem:[#allocation3 + $0x18] sm:$0xff]
        %v4190 = vld [vmem:[#allocation3 + $0x30] sm:$0xff]
        %v4191 = vld [vmem:[#allocation3 + $0x48] sm:$0xff]
        %v4192 = vld [vmem:[#allocation3 + $0x60] sm:$0xff]
        %v4193 = vld [vmem:[#allocation3 + $0x78] sm:$0xff]
        %v4194 = vld [vmem:[#allocation3 + $0x90] sm:$0xff]
        %v4195 = vld [vmem:[#allocation3 + $0xa8] sm:$0xff]
        %v4196 = vld [vmem:[#allocation3 + $0xc0] sm:$0xff]
        %v4197 = vld [vmem:[#allocation3 + $0xd8] sm:$0xff]
        %v4198 = vld [vmem:[#allocation3 + $0xf0] sm:$0xff]
        %v4199 = vld [vmem:[#allocation3 + $0x108] sm:$0xff]
        %v4200 = vld [vmem:[#allocation3 + $0x120] sm:$0xff]
        %v4201 = vld [vmem:[#allocation3 + $0x138] sm:$0xff]
        %v4202 = vld [vmem:[#allocation3 + $0x150] sm:$0xff]
        %v4203 = vld [vmem:[#allocation3 + $0x168] sm:$0xff]
        %v4204 = vld [vmem:[#allocation3 + $0x180] sm:$0xff]
        %v4205 = vld [vmem:[#allocation3 + $0x198] sm:$0xff]
        %v4206 = vld [vmem:[#allocation3 + $0x1b0] sm:$0xff]
        %v4207 = vld [vmem:[#allocation3 + $0x1c8] sm:$0xff]
        %v4208 = vld [vmem:[#allocation3 + $0x1e0] sm:$0xff]
        %v4209 = vld [vmem:[#allocation3 + $0x1f8] sm:$0xff]
        %v4210 = vld [vmem:[#allocation3 + $0x210] sm:$0xff]
        %v4211 = vld [vmem:[#allocation3 + $0x228] sm:$0xff]
        %v4212 = vld [vmem:[#allocation3 + $0x240] sm:$0xff]
        %v4213 = vld [vmem:[#allocation3 + $0x258] sm:$0xff]
        %v4214 = vld [vmem:[#allocation3 + $0x270] sm:$0xff]
        %v4215 = vld [vmem:[#allocation3 + $0x288] sm:$0xff]
        %v4216 = vld [vmem:[#allocation3 + $0x2a0] sm:$0xff]
        %v4217 = vld [vmem:[#allocation3 + $0x2b8] sm:$0xff]
        %v4218 = vld [vmem:[#allocation3 + $0x2d0] sm:$0xff]
        %v4219 = vld [vmem:[#allocation3 + $0x2e8] sm:$0xff]
        %v4220 = vld [vmem:[%s3] sm:$0xff]
        %v4221 = vld [vmem:[%s3 + $0x8] sm:$0xff]
        %v4222 = vld [vmem:[%s3 + $0x10] sm:$0xff]
        %v4223 = vld [vmem:[%s3 + $0x18] sm:$0xff]
        %v4224 = vld [vmem:[%s3 + $0x20] sm:$0xff]
        %v4225 = vld [vmem:[%s3 + $0x28] sm:$0xff]
        %v4226 = vld [vmem:[%s3 + $0x30] sm:$0xff]
        %v4227 = vld [vmem:[%s3 + $0x38] sm:$0xff]
        %v4228 = vld [vmem:[%s3 + $0x40] sm:$0xff]
        %v4229 = vld [vmem:[%s4] sm:$0x1]
        %v4231 = vlaneseq
        %v4232 = vshrl.u32 %v4231, 7
        %v4233 = vsub.s32 0, %v4232
        %v4234 = vrot.slane %v4229, %v4233
        %vm4236 = vcmask 588800
        %v4238 = vsel %vm4236, %v4188, 0
        %v4241 = vsel %vm4236, %v4189, 0
        %v4244 = vsel %vm4236, %v4190, 0
        %v4247 = vsel %vm4236, %v4191, 0
        %v4250 = vsel %vm4236, %v4192, 0
        %v4253 = vsel %vm4236, %v4193, 0
        %v4256 = vsel %vm4236, %v4194, 0
        %v4259 = vsel %vm4236, %v4195, 0
        %v4262 = vsel %vm4236, %v4196, 0
        %v4265 = vsel %vm4236, %v4197, 0
        %v4268 = vsel %vm4236, %v4198, 0
        %v4271 = vsel %vm4236, %v4199, 0
        %v4274 = vsel %vm4236, %v4200, 0
        %v4277 = vsel %vm4236, %v4201, 0
        %v4280 = vsel %vm4236, %v4202, 0
        %v4283 = vsel %vm4236, %v4203, 0
        %v4286 = vsel %vm4236, %v4204, 0
        %v4289 = vsel %vm4236, %v4205, 0
        %v4292 = vsel %vm4236, %v4206, 0
        %v4295 = vsel %vm4236, %v4207, 0
        %v4298 = vsel %vm4236, %v4208, 0
        %v4301 = vsel %vm4236, %v4209, 0
        %v4304 = vsel %vm4236, %v4210, 0
        %v4307 = vsel %vm4236, %v4211, 0
        %v4310 = vsel %vm4236, %v4212, 0
        %v4313 = vsel %vm4236, %v4213, 0
        %v4316 = vsel %vm4236, %v4214, 0
        %v4319 = vsel %vm4236, %v4215, 0
        %v4322 = vsel %vm4236, %v4216, 0
        %v4325 = vsel %vm4236, %v4217, 0
        %v4328 = vsel %vm4236, %v4218, 0
        %v4331 = vsel %vm4236, %v4219, 0
        %4333 = vmatprep.subr.mxu0 0.0
        %4334 = vmatpush1.msra.mxu0 %v4220
        %4335 = vmatprep.subr.mxu0 0.0
        %4336 = vmatpush1.msra.mxu0 %v4221
        %4337 = vmatprep.subr.mxu0 0.0
        %4338 = vmatpush1.msra.mxu0 %v4222
        %4339 = vmatprep.subr.mxu0 0.0
        %4340 = vmatpush1.msra.mxu0 %v4223
        %4341 = vmatprep.subr.mxu0 0.0
        %4342 = vmatpush1.msra.mxu0 %v4224
        %4343 = vmatprep.subr.mxu0 0.0
        %4344 = vmatpush1.msra.mxu0 %v4225
        %4345 = vmatprep.subr.mxu0 0.0
        %4346 = vmatpush1.msra.mxu0 %v4226
        %4347 = vmatprep.subr.mxu0 0.0
        %4348 = vmatpush1.msra.mxu0 %v4227
        %4349 = vmatprep.subr.mxu0 0.0
        %4350 = vmatpush1.msra.mxu0 %v4228
        %4351 = vmatprep.subr.mxu0 0.0
        %4352 = vmatpush1.msra.mxu0 0.0
        %4353 = vmatprep.subr.mxu0 0.0
        %4354 = vmatpush1.msra.mxu0 0.0
        %4355 = vmatprep.subr.mxu0 0.0
        %4356 = vmatpush1.msra.mxu0 0.0
        %4357 = vmatprep.subr.mxu0 0.0
        %4358 = vmatpush1.msra.mxu0 0.0
        %4359 = vmatprep.subr.mxu0 0.0
        %4360 = vmatpush1.msra.mxu0 0.0
        %4361 = vmatprep.subr.mxu0 0.0
        %4362 = vmatpush1.msra.mxu0 0.0
        %4363 = vmatprep.subr.mxu0 0.0
        %4364 = vmatpush1.msra.mxu0 0.0
        %4365 = vmatprep.subr.mxu0 0.0
        %4366 = vmatpush1.msra.mxu0 0.0
        %4367 = vmatprep.subr.mxu0 0.0
        %4368 = vmatpush1.msra.mxu0 0.0
        %4369 = vmatprep.subr.mxu0 0.0
        %4370 = vmatpush1.msra.mxu0 0.0
        %4371 = vmatprep.subr.mxu0 0.0
        %4372 = vmatpush1.msra.mxu0 0.0
        %4373 = vmatprep.subr.mxu0 0.0
        %4374 = vmatpush1.msra.mxu0 0.0
        %4375 = vmatprep.subr.mxu0 0.0
        %4376 = vmatpush1.msra.mxu0 0.0
        %4377 = vmatprep.subr.mxu0 0.0
        %4378 = vmatpush1.msra.mxu0 0.0
        %4379 = vmatprep.subr.mxu0 0.0
        %4380 = vmatpush1.msra.mxu0 0.0
        %4381 = vmatprep.subr.mxu0 0.0
        %4382 = vmatpush1.msra.mxu0 0.0
        %4383 = vmatprep.subr.mxu0 0.0
        %4384 = vmatpush1.msra.mxu0 0.0
        %4385 = vmatprep.subr.mxu0 0.0
        %4386 = vmatpush1.msra.mxu0 0.0
        %4387 = vmatprep.subr.mxu0 0.0
        %4388 = vmatpush1.msra.mxu0 0.0
        %4389 = vmatprep.subr.mxu0 0.0
        %4390 = vmatpush1.msra.mxu0 0.0
        %4391 = vmatprep.subr.mxu0 0.0
        %4392 = vmatpush1.msra.mxu0 0.0
        %4393 = vmatprep.subr.mxu0 0.0
        %4394 = vmatpush1.msra.mxu0 0.0
        %4395 = vmatprep.subr.mxu0 0.0
        %4396 = vmatpush1.msra.mxu0 0.0
        %4397 = vmatprep.mubr.f32.mxu0 0.0
        %4398 = vmatmul.mubr.f32.gmra.mrb[0].mxu0 %v4238
        %v4399 = vpop.f32.mrb[0].mxu0
        %v4400 = vadd.f32 %v4234, %v4399
        %v4401 = vpop.f32.mrb[0].mxu0
        %4402 = vmatprep.mubr.f32.mxu0 0.0
        %4403 = vmatmul.mubr.f32.gmra.mrb[0].mxu0 %v4241
        %v4404 = vpop.f32.mrb[0].mxu0
        %v4405 = vadd.f32 %v4234, %v4404
        %v4406 = vpop.f32.mrb[0].mxu0
        %4407 = vmatprep.mubr.f32.mxu0 0.0
        %4408 = vmatmul.mubr.f32.gmra.mrb[0].mxu0 %v4244
        %v4409 = vpop.f32.mrb[0].mxu0
        %v4410 = vadd.f32 %v4234, %v4409
        %v4411 = vpop.f32.mrb[0].mxu0
        %4412 = vmatprep.mubr.f32.mxu0 0.0
        %4413 = vmatmul.mubr.f32.gmra.mrb[0].mxu0 %v4247
        %v4414 = vpop.f32.mrb[0].mxu0
        %v4415 = vadd.f32 %v4234, %v4414
        %v4416 = vpop.f32.mrb[0].mxu0
        %4417 = vmatprep.mubr.f32.mxu0 0.0
        %4418 = vmatmul.mubr.f32.gmra.mrb[0].mxu0 %v4250
        %v4419 = vpop.f32.mrb[0].mxu0
        %v4420 = vadd.f32 %v4234, %v4419
        %v4421 = vpop.f32.mrb[0].mxu0
        %4422 = vmatprep.mubr.f32.mxu0 0.0
        %4423 = vmatmul.mubr.f32.gmra.mrb[0].mxu0 %v4253
        %v4424 = vpop.f32.mrb[0].mxu0
        %v4425 = vadd.f32 %v4234, %v4424
        %v4426 = vpop.f32.mrb[0].mxu0
        %4427 = vmatprep.mubr.f32.mxu0 0.0
        %4428 = vmatmul.mubr.f32.gmra.mrb[0].mxu0 %v4256
        %v4429 = vpop.f32.mrb[0].mxu0
        %v4430 = vadd.f32 %v4234, %v4429
        %v4431 = vpop.f32.mrb[0].mxu0
        %4432 = vmatprep.mubr.f32.mxu0 0.0
        %4433 = vmatmul.mubr.f32.gmra.mrb[0].mxu0 %v4259
        %v4434 = vpop.f32.mrb[0].mxu0
        %v4435 = vadd.f32 %v4234, %v4434
        %v4436 = vpop.f32.mrb[0].mxu0
        %4437 = vmatprep.mubr.f32.mxu0 0.0
        %4438 = vmatmul.mubr.f32.gmra.mrb[0].mxu0 %v4262
        %v4439 = vpop.f32.mrb[0].mxu0
        %v4440 = vadd.f32 %v4234, %v4439
        %v4441 = vpop.f32.mrb[0].mxu0
        %4442 = vmatprep.mubr.f32.mxu0 0.0
        %4443 = vmatmul.mubr.f32.gmra.mrb[0].mxu0 %v4265
        %v4444 = vpop.f32.mrb[0].mxu0
        %v4445 = vadd.f32 %v4234, %v4444
        %v4446 = vpop.f32.mrb[0].mxu0
        %4447 = vmatprep.mubr.f32.mxu0 0.0
        %4448 = vmatmul.mubr.f32.gmra.mrb[0].mxu0 %v4268
        %v4449 = vpop.f32.mrb[0].mxu0
        %v4450 = vadd.f32 %v4234, %v4449
        %v4451 = vpop.f32.mrb[0].mxu0
        %4452 = vmatprep.mubr.f32.mxu0 0.0
        %4453 = vmatmul.mubr.f32.gmra.mrb[0].mxu0 %v4271
        %v4454 = vpop.f32.mrb[0].mxu0
        %v4455 = vadd.f32 %v4234, %v4454
        %v4456 = vpop.f32.mrb[0].mxu0
        %4457 = vmatprep.mubr.f32.mxu0 0.0
        %4458 = vmatmul.mubr.f32.gmra.mrb[0].mxu0 %v4274
        %v4459 = vpop.f32.mrb[0].mxu0
        %v4460 = vadd.f32 %v4234, %v4459
        %v4461 = vpop.f32.mrb[0].mxu0
        %4462 = vmatprep.mubr.f32.mxu0 0.0
        %4463 = vmatmul.mubr.f32.gmra.mrb[0].mxu0 %v4277
        %v4464 = vpop.f32.mrb[0].mxu0
        %v4465 = vadd.f32 %v4234, %v4464
        %v4466 = vpop.f32.mrb[0].mxu0
        %4467 = vmatprep.mubr.f32.mxu0 0.0
        %4468 = vmatmul.mubr.f32.gmra.mrb[0].mxu0 %v4280
        %v4469 = vpop.f32.mrb[0].mxu0
        %v4470 = vadd.f32 %v4234, %v4469
        %v4471 = vpop.f32.mrb[0].mxu0
        %4472 = vmatprep.mubr.f32.mxu0 0.0
        %4473 = vmatmul.mubr.f32.gmra.mrb[0].mxu0 %v4283
        %v4474 = vpop.f32.mrb[0].mxu0
        %v4475 = vadd.f32 %v4234, %v4474
        %v4476 = vpop.f32.mrb[0].mxu0
        %4477 = vmatprep.mubr.f32.mxu0 0.0
        %4478 = vmatmul.mubr.f32.gmra.mrb[0].mxu0 %v4286
        %v4479 = vpop.f32.mrb[0].mxu0
        %v4480 = vadd.f32 %v4234, %v4479
        %v4481 = vpop.f32.mrb[0].mxu0
        %4482 = vmatprep.mubr.f32.mxu0 0.0
        %4483 = vmatmul.mubr.f32.gmra.mrb[0].mxu0 %v4289
        %v4484 = vpop.f32.mrb[0].mxu0
        %v4485 = vadd.f32 %v4234, %v4484
        %v4486 = vpop.f32.mrb[0].mxu0
        %4487 = vmatprep.mubr.f32.mxu0 0.0
        %4488 = vmatmul.mubr.f32.gmra.mrb[0].mxu0 %v4292
        %v4489 = vpop.f32.mrb[0].mxu0
        %v4490 = vadd.f32 %v4234, %v4489
        %v4491 = vpop.f32.mrb[0].mxu0
        %4492 = vmatprep.mubr.f32.mxu0 0.0
        %4493 = vmatmul.mubr.f32.gmra.mrb[0].mxu0 %v4295
        %v4494 = vpop.f32.mrb[0].mxu0
        %v4495 = vadd.f32 %v4234, %v4494
        %v4496 = vpop.f32.mrb[0].mxu0
        %4497 = vmatprep.mubr.f32.mxu0 0.0
        %4498 = vmatmul.mubr.f32.gmra.mrb[0].mxu0 %v4298
        %v4499 = vpop.f32.mrb[0].mxu0
        %v4500 = vadd.f32 %v4234, %v4499
        %v4501 = vpop.f32.mrb[0].mxu0
        %4502 = vmatprep.mubr.f32.mxu0 0.0
        %4503 = vmatmul.mubr.f32.gmra.mrb[0].mxu0 %v4301
        %v4504 = vpop.f32.mrb[0].mxu0
        %v4505 = vadd.f32 %v4234, %v4504
        %v4506 = vpop.f32.mrb[0].mxu0
        %4507 = vmatprep.mubr.f32.mxu0 0.0
        %4508 = vmatmul.mubr.f32.gmra.mrb[0].mxu0 %v4304
        %v4509 = vpop.f32.mrb[0].mxu0
        %v4510 = vadd.f32 %v4234, %v4509
        %v4511 = vpop.f32.mrb[0].mxu0
        %4512 = vmatprep.mubr.f32.mxu0 0.0
        %4513 = vmatmul.mubr.f32.gmra.mrb[0].mxu0 %v4307
        %v4514 = vpop.f32.mrb[0].mxu0
        %v4515 = vadd.f32 %v4234, %v4514
        %v4516 = vpop.f32.mrb[0].mxu0
        %4517 = vmatprep.mubr.f32.mxu0 0.0
        %4518 = vmatmul.mubr.f32.gmra.mrb[0].mxu0 %v4310
        %v4519 = vpop.f32.mrb[0].mxu0
        %v4520 = vadd.f32 %v4234, %v4519
        %v4521 = vpop.f32.mrb[0].mxu0
        %4522 = vmatprep.mubr.f32.mxu0 0.0
        %4523 = vmatmul.mubr.f32.gmra.mrb[0].mxu0 %v4313
        %v4524 = vpop.f32.mrb[0].mxu0
        %v4525 = vadd.f32 %v4234, %v4524
        %v4526 = vpop.f32.mrb[0].mxu0
        %4527 = vmatprep.mubr.f32.mxu0 0.0
        %4528 = vmatmul.mubr.f32.gmra.mrb[0].mxu0 %v4316
        %v4529 = vpop.f32.mrb[0].mxu0
        %v4530 = vadd.f32 %v4234, %v4529
        %v4531 = vpop.f32.mrb[0].mxu0
        %4532 = vmatprep.mubr.f32.mxu0 0.0
        %4533 = vmatmul.mubr.f32.gmra.mrb[0].mxu0 %v4319
        %v4534 = vpop.f32.mrb[0].mxu0
        %v4535 = vadd.f32 %v4234, %v4534
        %v4536 = vpop.f32.mrb[0].mxu0
        %4537 = vmatprep.mubr.f32.mxu0 0.0
        %4538 = vmatmul.mubr.f32.gmra.mrb[0].mxu0 %v4322
        %v4539 = vpop.f32.mrb[0].mxu0
        %v4540 = vadd.f32 %v4234, %v4539
        %v4541 = vpop.f32.mrb[0].mxu0
        %4542 = vmatprep.mubr.f32.mxu0 0.0
        %4543 = vmatmul.mubr.f32.gmra.mrb[0].mxu0 %v4325
        %v4544 = vpop.f32.mrb[0].mxu0
        %v4545 = vadd.f32 %v4234, %v4544
        %v4546 = vpop.f32.mrb[0].mxu0
        %4547 = vmatprep.mubr.f32.mxu0 0.0
        %4548 = vmatmul.mubr.f32.gmra.mrb[0].mxu0 %v4328
        %v4549 = vpop.f32.mrb[0].mxu0
        %v4550 = vadd.f32 %v4234, %v4549
        %v4551 = vpop.f32.mrb[0].mxu0
        %4552 = vmatprep.mubr.f32.mxu0 0.0
        %4553 = vmatmul.mubr.f32.gmra.mrb[0].mxu0 %v4331
        %v4554 = vpop.f32.mrb[0].mxu0
        %v4555 = vadd.f32 %v4234, %v4554
        %v4556 = vpop.f32.mrb[0].mxu0
        %4557 = vdwg.mxu0
        %v4558 = vmax.f32 %v4400, 0.0
        %v4559 = vmax.f32 %v4405, 0.0
        %v4560 = vmax.f32 %v4410, 0.0
        %v4561 = vmax.f32 %v4415, 0.0
        %v4562 = vmax.f32 %v4420, 0.0
        %v4563 = vmax.f32 %v4425, 0.0
        %v4564 = vmax.f32 %v4430, 0.0
        %v4565 = vmax.f32 %v4435, 0.0
        %v4566 = vmax.f32 %v4440, 0.0
        %v4567 = vmax.f32 %v4445, 0.0
        %v4568 = vmax.f32 %v4450, 0.0
        %v4569 = vmax.f32 %v4455, 0.0
        %v4570 = vmax.f32 %v4460, 0.0
        %v4571 = vmax.f32 %v4465, 0.0
        %v4572 = vmax.f32 %v4470, 0.0
        %v4573 = vmax.f32 %v4475, 0.0
        %v4574 = vmax.f32 %v4480, 0.0
        %v4575 = vmax.f32 %v4485, 0.0
        %v4576 = vmax.f32 %v4490, 0.0
        %v4577 = vmax.f32 %v4495, 0.0
        %v4578 = vmax.f32 %v4500, 0.0
        %v4579 = vmax.f32 %v4505, 0.0
        %v4580 = vmax.f32 %v4510, 0.0
        %v4581 = vmax.f32 %v4515, 0.0
        %v4582 = vmax.f32 %v4520, 0.0
        %v4583 = vmax.f32 %v4525, 0.0
        %v4584 = vmax.f32 %v4530, 0.0
        %v4585 = vmax.f32 %v4535, 0.0
        %v4586 = vmax.f32 %v4540, 0.0
        %v4587 = vmax.f32 %v4545, 0.0
        %v4588 = vmax.f32 %v4550, 0.0
        %v4589 = vmax.f32 %v4555, 0.0
        %vm4590 = vcmask 130048
        %4591 = vst.msk [vmem:[%s502 + $0x1] sm:$0xff] %vm4590, %v4558
        %4592 = vst.msk [vmem:[%s502 + $0x9] sm:$0xff] %vm4590, %v4559
        %4593 = vst.msk [vmem:[%s502 + $0x19] sm:$0xff] %vm4590, %v4560
        %4594 = vst.msk [vmem:[%s502 + $0x21] sm:$0xff] %vm4590, %v4561
        %4595 = vst.msk [vmem:[%s502 + $0x31] sm:$0xff] %vm4590, %v4562
        %4596 = vst.msk [vmem:[%s502 + $0x39] sm:$0xff] %vm4590, %v4563
        %4597 = vst.msk [vmem:[%s502 + $0x49] sm:$0xff] %vm4590, %v4564
        %4598 = vst.msk [vmem:[%s502 + $0x51] sm:$0xff] %vm4590, %v4565
        %4599 = vst.msk [vmem:[%s502 + $0x61] sm:$0xff] %vm4590, %v4566
        %4600 = vst.msk [vmem:[%s502 + $0x69] sm:$0xff] %vm4590, %v4567
        %4601 = vst.msk [vmem:[%s502 + $0x79] sm:$0xff] %vm4590, %v4568
        %4602 = vst.msk [vmem:[%s502 + $0x81] sm:$0xff] %vm4590, %v4569
        %4603 = vst.msk [vmem:[%s502 + $0x91] sm:$0xff] %vm4590, %v4570
        %4604 = vst.msk [vmem:[%s502 + $0x99] sm:$0xff] %vm4590, %v4571
        %4605 = vst.msk [vmem:[%s502 + $0xa9] sm:$0xff] %vm4590, %v4572
        %4606 = vst.msk [vmem:[%s502 + $0xb1] sm:$0xff] %vm4590, %v4573
        %4607 = vst.msk [vmem:[%s502 + $0xc1] sm:$0xff] %vm4590, %v4574
        %4608 = vst.msk [vmem:[%s502 + $0xc9] sm:$0xff] %vm4590, %v4575
        %4609 = vst.msk [vmem:[%s502 + $0xd9] sm:$0xff] %vm4590, %v4576
        %4610 = vst.msk [vmem:[%s502 + $0xe1] sm:$0xff] %vm4590, %v4577
        %4611 = vst.msk [vmem:[%s502 + $0xf1] sm:$0xff] %vm4590, %v4578
        %4612 = vst.msk [vmem:[%s502 + $0xf9] sm:$0xff] %vm4590, %v4579
        %4613 = vst.msk [vmem:[%s502 + $0x109] sm:$0xff] %vm4590, %v4580
        %4614 = vst.msk [vmem:[%s502 + $0x111] sm:$0xff] %vm4590, %v4581
        %4615 = vst.msk [vmem:[%s502 + $0x121] sm:$0xff] %vm4590, %v4582
        %4616 = vst.msk [vmem:[%s502 + $0x129] sm:$0xff] %vm4590, %v4583
        %4617 = vst.msk [vmem:[%s502 + $0x139] sm:$0xff] %vm4590, %v4584
        %4618 = vst.msk [vmem:[%s502 + $0x141] sm:$0xff] %vm4590, %v4585
        %4619 = vst.msk [vmem:[%s502 + $0x151] sm:$0xff] %vm4590, %v4586
        %4620 = vst.msk [vmem:[%s502 + $0x159] sm:$0xff] %vm4590, %v4587
        %4621 = vst.msk [vmem:[%s502 + $0x169] sm:$0xff] %vm4590, %v4588
        %4622 = vst.msk [vmem:[%s502 + $0x171] sm:$0xff] %vm4590, %v4589
        %v4623 = vld [vmem:[#allocation2] sm:$0xff]
        %v4624 = vld [vmem:[#allocation2 + $0x8] sm:$0xff]
        %v4625 = vld [vmem:[#allocation2 + $0x18] sm:$0xff]
        %v4626 = vld [vmem:[#allocation2 + $0x20] sm:$0xff]
        %v4627 = vld [vmem:[#allocation2 + $0x30] sm:$0xff]
        %v4628 = vld [vmem:[#allocation2 + $0x38] sm:$0xff]
        %v4629 = vld [vmem:[#allocation2 + $0x48] sm:$0xff]
        %v4630 = vld [vmem:[#allocation2 + $0x50] sm:$0xff]
        %v4631 = vld [vmem:[#allocation2 + $0x60] sm:$0xff]
        %v4632 = vld [vmem:[#allocation2 + $0x68] sm:$0xff]
        %v4633 = vld [vmem:[#allocation2 + $0x78] sm:$0xff]
        %v4634 = vld [vmem:[#allocation2 + $0x80] sm:$0xff]
        %v4635 = vld [vmem:[#allocation2 + $0x90] sm:$0xff]
        %v4636 = vld [vmem:[#allocation2 + $0x98] sm:$0xff]
        %v4637 = vld [vmem:[#allocation2 + $0xa8] sm:$0xff]
        %v4638 = vld [vmem:[#allocation2 + $0xb0] sm:$0xff]
        %v4639 = vld [vmem:[#allocation2 + $0xc0] sm:$0xff]
        %v4640 = vld [vmem:[#allocation2 + $0xc8] sm:$0xff]
        %v4641 = vld [vmem:[#allocation2 + $0xd8] sm:$0xff]
        %v4642 = vld [vmem:[#allocation2 + $0xe0] sm:$0xff]
        %v4643 = vld [vmem:[#allocation2 + $0xf0] sm:$0xff]
        %v4644 = vld [vmem:[#allocation2 + $0xf8] sm:$0xff]
        %v4645 = vld [vmem:[#allocation2 + $0x108] sm:$0xff]
        %v4646 = vld [vmem:[#allocation2 + $0x110] sm:$0xff]
        %v4647 = vld [vmem:[#allocation2 + $0x120] sm:$0xff]
        %v4648 = vld [vmem:[#allocation2 + $0x128] sm:$0xff]
        %v4649 = vld [vmem:[#allocation2 + $0x138] sm:$0xff]
        %v4650 = vld [vmem:[#allocation2 + $0x140] sm:$0xff]
        %v4651 = vld [vmem:[#allocation2 + $0x150] sm:$0xff]
        %v4652 = vld [vmem:[#allocation2 + $0x158] sm:$0xff]
        %v4653 = vld [vmem:[#allocation2 + $0x168] sm:$0xff]
        %v4654 = vld [vmem:[#allocation2 + $0x170] sm:$0xff]
        %4655 = vst.msk [vmem:[#allocation3] sm:$0xff] %vm4590, %v4623
        %4656 = vst.msk [vmem:[#allocation3 + $0x18] sm:$0xff] %vm4590, %v4624
        %4657 = vst.msk [vmem:[#allocation3 + $0x30] sm:$0xff] %vm4590, %v4625
        %4658 = vst.msk [vmem:[#allocation3 + $0x48] sm:$0xff] %vm4590, %v4626
        %4659 = vst.msk [vmem:[#allocation3 + $0x60] sm:$0xff] %vm4590, %v4627
        %4660 = vst.msk [vmem:[#allocation3 + $0x78] sm:$0xff] %vm4590, %v4628
        %4661 = vst.msk [vmem:[#allocation3 + $0x90] sm:$0xff] %vm4590, %v4629
        %4662 = vst.msk [vmem:[#allocation3 + $0xa8] sm:$0xff] %vm4590, %v4630
        %4663 = vst.msk [vmem:[#allocation3 + $0xc0] sm:$0xff] %vm4590, %v4631
        %4664 = vst.msk [vmem:[#allocation3 + $0xd8] sm:$0xff] %vm4590, %v4632
        %4665 = vst.msk [vmem:[#allocation3 + $0xf0] sm:$0xff] %vm4590, %v4633
        %4666 = vst.msk [vmem:[#allocation3 + $0x108] sm:$0xff] %vm4590, %v4634
        %4667 = vst.msk [vmem:[#allocation3 + $0x120] sm:$0xff] %vm4590, %v4635
        %4668 = vst.msk [vmem:[#allocation3 + $0x138] sm:$0xff] %vm4590, %v4636
        %4669 = vst.msk [vmem:[#allocation3 + $0x150] sm:$0xff] %vm4590, %v4637
        %4670 = vst.msk [vmem:[#allocation3 + $0x168] sm:$0xff] %vm4590, %v4638
        %4671 = vst.msk [vmem:[#allocation3 + $0x180] sm:$0xff] %vm4590, %v4639
        %4672 = vst.msk [vmem:[#allocation3 + $0x198] sm:$0xff] %vm4590, %v4640
        %4673 = vst.msk [vmem:[#allocation3 + $0x1b0] sm:$0xff] %vm4590, %v4641
        %4674 = vst.msk [vmem:[#allocation3 + $0x1c8] sm:$0xff] %vm4590, %v4642
        %4675 = vst.msk [vmem:[#allocation3 + $0x1e0] sm:$0xff] %vm4590, %v4643
        %4676 = vst.msk [vmem:[#allocation3 + $0x1f8] sm:$0xff] %vm4590, %v4644
        %4677 = vst.msk [vmem:[#allocation3 + $0x210] sm:$0xff] %vm4590, %v4645
        %4678 = vst.msk [vmem:[#allocation3 + $0x228] sm:$0xff] %vm4590, %v4646
        %4679 = vst.msk [vmem:[#allocation3 + $0x240] sm:$0xff] %vm4590, %v4647
        %4680 = vst.msk [vmem:[#allocation3 + $0x258] sm:$0xff] %vm4590, %v4648
        %4681 = vst.msk [vmem:[#allocation3 + $0x270] sm:$0xff] %vm4590, %v4649
        %4682 = vst.msk [vmem:[#allocation3 + $0x288] sm:$0xff] %vm4590, %v4650
        %4683 = vst.msk [vmem:[#allocation3 + $0x2a0] sm:$0xff] %vm4590, %v4651
        %4684 = vst.msk [vmem:[#allocation3 + $0x2b8] sm:$0xff] %vm4590, %v4652
        %4685 = vst.msk [vmem:[#allocation3 + $0x2d0] sm:$0xff] %vm4590, %v4653
        %4686 = vst.msk [vmem:[#allocation3 + $0x2e8] sm:$0xff] %vm4590, %v4654
        %v4687 = vld [vmem:[#allocation2 + $0x1] sm:$0xff]
        %v4688 = vld [vmem:[#allocation2 + $0x9] sm:$0xff]
        %v4689 = vld [vmem:[#allocation2 + $0x19] sm:$0xff]
        %v4690 = vld [vmem:[#allocation2 + $0x21] sm:$0xff]
        %v4691 = vld [vmem:[#allocation2 + $0x31] sm:$0xff]
        %v4692 = vld [vmem:[#allocation2 + $0x39] sm:$0xff]
        %v4693 = vld [vmem:[#allocation2 + $0x49] sm:$0xff]
        %v4694 = vld [vmem:[#allocation2 + $0x51] sm:$0xff]
        %v4695 = vld [vmem:[#allocation2 + $0x61] sm:$0xff]
        %v4696 = vld [vmem:[#allocation2 + $0x69] sm:$0xff]
        %v4697 = vld [vmem:[#allocation2 + $0x79] sm:$0xff]
        %v4698 = vld [vmem:[#allocation2 + $0x81] sm:$0xff]
        %v4699 = vld [vmem:[#allocation2 + $0x91] sm:$0xff]
        %v4700 = vld [vmem:[#allocation2 + $0x99] sm:$0xff]
        %v4701 = vld [vmem:[#allocation2 + $0xa9] sm:$0xff]
        %v4702 = vld [vmem:[#allocation2 + $0xb1] sm:$0xff]
        %v4703 = vld [vmem:[#allocation2 + $0xc1] sm:$0xff]
        %v4704 = vld [vmem:[#allocation2 + $0xc9] sm:$0xff]
        %v4705 = vld [vmem:[#allocation2 + $0xd9] sm:$0xff]
        %v4706 = vld [vmem:[#allocation2 + $0xe1] sm:$0xff]
        %v4707 = vld [vmem:[#allocation2 + $0xf1] sm:$0xff]
        %v4708 = vld [vmem:[#allocation2 + $0xf9] sm:$0xff]
        %v4709 = vld [vmem:[#allocation2 + $0x109] sm:$0xff]
        %v4710 = vld [vmem:[#allocation2 + $0x111] sm:$0xff]
        %v4711 = vld [vmem:[#allocation2 + $0x121] sm:$0xff]
        %v4712 = vld [vmem:[#allocation2 + $0x129] sm:$0xff]
        %v4713 = vld [vmem:[#allocation2 + $0x139] sm:$0xff]
        %v4714 = vld [vmem:[#allocation2 + $0x141] sm:$0xff]
        %v4715 = vld [vmem:[#allocation2 + $0x151] sm:$0xff]
        %v4716 = vld [vmem:[#allocation2 + $0x159] sm:$0xff]
        %v4717 = vld [vmem:[#allocation2 + $0x169] sm:$0xff]
        %v4718 = vld [vmem:[#allocation2 + $0x171] sm:$0xff]
        %4751 = vrot.lane.b32.xlu0 %v4687, 16
        %v4752 = vpop.permute.xlu0 %4751
        %4753 = vrot.lane.b32.xlu0 %v4688, 16
        %v4754 = vpop.permute.xlu0 %4753
        %4755 = vrot.lane.b32.xlu0 %v4689, 16
        %v4756 = vpop.permute.xlu0 %4755
        %4757 = vrot.lane.b32.xlu0 %v4690, 16
        %v4758 = vpop.permute.xlu0 %4757
        %4759 = vrot.lane.b32.xlu0 %v4691, 16
        %v4760 = vpop.permute.xlu0 %4759
        %4761 = vrot.lane.b32.xlu0 %v4692, 16
        %v4762 = vpop.permute.xlu0 %4761
        %4763 = vrot.lane.b32.xlu0 %v4693, 16
        %v4764 = vpop.permute.xlu0 %4763
        %4765 = vrot.lane.b32.xlu0 %v4694, 16
        %v4766 = vpop.permute.xlu0 %4765
        %4767 = vrot.lane.b32.xlu0 %v4695, 16
        %v4768 = vpop.permute.xlu0 %4767
        %4769 = vrot.lane.b32.xlu0 %v4696, 16
        %v4770 = vpop.permute.xlu0 %4769
        %4771 = vrot.lane.b32.xlu0 %v4697, 16
        %v4772 = vpop.permute.xlu0 %4771
        %4773 = vrot.lane.b32.xlu0 %v4698, 16
        %v4774 = vpop.permute.xlu0 %4773
        %4775 = vrot.lane.b32.xlu0 %v4699, 16
        %v4776 = vpop.permute.xlu0 %4775
        %4777 = vrot.lane.b32.xlu0 %v4700, 16
        %v4778 = vpop.permute.xlu0 %4777
        %4779 = vrot.lane.b32.xlu0 %v4701, 16
        %v4780 = vpop.permute.xlu0 %4779
        %4781 = vrot.lane.b32.xlu0 %v4702, 16
        %v4782 = vpop.permute.xlu0 %4781
        %4783 = vrot.lane.b32.xlu0 %v4703, 16
        %v4784 = vpop.permute.xlu0 %4783
        %4785 = vrot.lane.b32.xlu0 %v4704, 16
        %v4786 = vpop.permute.xlu0 %4785
        %4787 = vrot.lane.b32.xlu0 %v4705, 16
        %v4788 = vpop.permute.xlu0 %4787
        %4789 = vrot.lane.b32.xlu0 %v4706, 16
        %v4790 = vpop.permute.xlu0 %4789
        %4791 = vrot.lane.b32.xlu0 %v4707, 16
        %v4792 = vpop.permute.xlu0 %4791
        %4793 = vrot.lane.b32.xlu0 %v4708, 16
        %v4794 = vpop.permute.xlu0 %4793
        %4795 = vrot.lane.b32.xlu0 %v4709, 16
        %v4796 = vpop.permute.xlu0 %4795
        %4797 = vrot.lane.b32.xlu0 %v4710, 16
        %v4798 = vpop.permute.xlu0 %4797
        %4799 = vrot.lane.b32.xlu0 %v4711, 16
        %v4800 = vpop.permute.xlu0 %4799
        %4801 = vrot.lane.b32.xlu0 %v4712, 16
        %v4802 = vpop.permute.xlu0 %4801
        %4803 = vrot.lane.b32.xlu0 %v4713, 16
        %v4804 = vpop.permute.xlu0 %4803
        %4805 = vrot.lane.b32.xlu0 %v4714, 16
        %v4806 = vpop.permute.xlu0 %4805
        %4807 = vrot.lane.b32.xlu0 %v4715, 16
        %v4808 = vpop.permute.xlu0 %4807
        %4809 = vrot.lane.b32.xlu0 %v4716, 16
        %v4810 = vpop.permute.xlu0 %4809
        %4811 = vrot.lane.b32.xlu0 %v4717, 16
        %v4812 = vpop.permute.xlu0 %4811
        %4813 = vrot.lane.b32.xlu0 %v4718, 16
        %v4814 = vpop.permute.xlu0 %4813
        %vm4847 = vcmask 261248
        %4848 = vst.msk [vmem:[#allocation3] sm:$0xff] %vm4847, %v4752
        %4849 = vst.msk [vmem:[#allocation3 + $0x18] sm:$0xff] %vm4847, %v4754
        %4850 = vst.msk [vmem:[#allocation3 + $0x30] sm:$0xff] %vm4847, %v4756
        %4851 = vst.msk [vmem:[#allocation3 + $0x48] sm:$0xff] %vm4847, %v4758
        %4852 = vst.msk [vmem:[#allocation3 + $0x60] sm:$0xff] %vm4847, %v4760
        %4853 = vst.msk [vmem:[#allocation3 + $0x78] sm:$0xff] %vm4847, %v4762
        %4854 = vst.msk [vmem:[#allocation3 + $0x90] sm:$0xff] %vm4847, %v4764
        %4855 = vst.msk [vmem:[#allocation3 + $0xa8] sm:$0xff] %vm4847, %v4766
        %4856 = vst.msk [vmem:[#allocation3 + $0xc0] sm:$0xff] %vm4847, %v4768
        %4857 = vst.msk [vmem:[#allocation3 + $0xd8] sm:$0xff] %vm4847, %v4770
        %4858 = vst.msk [vmem:[#allocation3 + $0xf0] sm:$0xff] %vm4847, %v4772
        %4859 = vst.msk [vmem:[#allocation3 + $0x108] sm:$0xff] %vm4847, %v4774
        %4860 = vst.msk [vmem:[#allocation3 + $0x120] sm:$0xff] %vm4847, %v4776
        %4861 = vst.msk [vmem:[#allocation3 + $0x138] sm:$0xff] %vm4847, %v4778
        %4862 = vst.msk [vmem:[#allocation3 + $0x150] sm:$0xff] %vm4847, %v4780
        %4863 = vst.msk [vmem:[#allocation3 + $0x168] sm:$0xff] %vm4847, %v4782
        %4864 = vst.msk [vmem:[#allocation3 + $0x180] sm:$0xff] %vm4847, %v4784
        %4865 = vst.msk [vmem:[#allocation3 + $0x198] sm:$0xff] %vm4847, %v4786
        %4866 = vst.msk [vmem:[#allocation3 + $0x1b0] sm:$0xff] %vm4847, %v4788
        %4867 = vst.msk [vmem:[#allocation3 + $0x1c8] sm:$0xff] %vm4847, %v4790
        %4868 = vst.msk [vmem:[#allocation3 + $0x1e0] sm:$0xff] %vm4847, %v4792
        %4869 = vst.msk [vmem:[#allocation3 + $0x1f8] sm:$0xff] %vm4847, %v4794
        %4870 = vst.msk [vmem:[#allocation3 + $0x210] sm:$0xff] %vm4847, %v4796
        %4871 = vst.msk [vmem:[#allocation3 + $0x228] sm:$0xff] %vm4847, %v4798
        %4872 = vst.msk [vmem:[#allocation3 + $0x240] sm:$0xff] %vm4847, %v4800
        %4873 = vst.msk [vmem:[#allocation3 + $0x258] sm:$0xff] %vm4847, %v4802
        %4874 = vst.msk [vmem:[#allocation3 + $0x270] sm:$0xff] %vm4847, %v4804
        %4875 = vst.msk [vmem:[#allocation3 + $0x288] sm:$0xff] %vm4847, %v4806
        %4876 = vst.msk [vmem:[#allocation3 + $0x2a0] sm:$0xff] %vm4847, %v4808
        %4877 = vst.msk [vmem:[#allocation3 + $0x2b8] sm:$0xff] %vm4847, %v4810
        %4878 = vst.msk [vmem:[#allocation3 + $0x2d0] sm:$0xff] %vm4847, %v4812
        %4879 = vst.msk [vmem:[#allocation3 + $0x2e8] sm:$0xff] %vm4847, %v4814
        %v4880 = vld [vmem:[#allocation2 + $0x2] sm:$0xff]
        %v4881 = vld [vmem:[#allocation2 + $0xa] sm:$0xff]
        %v4882 = vld [vmem:[#allocation2 + $0x1a] sm:$0xff]
        %v4883 = vld [vmem:[#allocation2 + $0x22] sm:$0xff]
        %v4884 = vld [vmem:[#allocation2 + $0x32] sm:$0xff]
        %v4885 = vld [vmem:[#allocation2 + $0x3a] sm:$0xff]
        %v4886 = vld [vmem:[#allocation2 + $0x4a] sm:$0xff]
        %v4887 = vld [vmem:[#allocation2 + $0x52] sm:$0xff]
        %v4888 = vld [vmem:[#allocation2 + $0x62] sm:$0xff]
        %v4889 = vld [vmem:[#allocation2 + $0x6a] sm:$0xff]
        %v4890 = vld [vmem:[#allocation2 + $0x7a] sm:$0xff]
        %v4891 = vld [vmem:[#allocation2 + $0x82] sm:$0xff]
        %v4892 = vld [vmem:[#allocation2 + $0x92] sm:$0xff]
        %v4893 = vld [vmem:[#allocation2 + $0x9a] sm:$0xff]
        %v4894 = vld [vmem:[#allocation2 + $0xaa] sm:$0xff]
        %v4895 = vld [vmem:[#allocation2 + $0xb2] sm:$0xff]
        %v4896 = vld [vmem:[#allocation2 + $0xc2] sm:$0xff]
        %v4897 = vld [vmem:[#allocation2 + $0xca] sm:$0xff]
        %v4898 = vld [vmem:[#allocation2 + $0xda] sm:$0xff]
        %v4899 = vld [vmem:[#allocation2 + $0xe2] sm:$0xff]
        %v4900 = vld [vmem:[#allocation2 + $0xf2] sm:$0xff]
        %v4901 = vld [vmem:[#allocation2 + $0xfa] sm:$0xff]
        %v4902 = vld [vmem:[#allocation2 + $0x10a] sm:$0xff]
        %v4903 = vld [vmem:[#allocation2 + $0x112] sm:$0xff]
        %v4904 = vld [vmem:[#allocation2 + $0x122] sm:$0xff]
        %v4905 = vld [vmem:[#allocation2 + $0x12a] sm:$0xff]
        %v4906 = vld [vmem:[#allocation2 + $0x13a] sm:$0xff]
        %v4907 = vld [vmem:[#allocation2 + $0x142] sm:$0xff]
        %v4908 = vld [vmem:[#allocation2 + $0x152] sm:$0xff]
        %v4909 = vld [vmem:[#allocation2 + $0x15a] sm:$0xff]
        %v4910 = vld [vmem:[#allocation2 + $0x16a] sm:$0xff]
        %v4911 = vld [vmem:[#allocation2 + $0x172] sm:$0xff]
        %4944 = vrot.lane.b32.xlu0 %v4880, 32
        %v4945 = vpop.permute.xlu0 %4944
        %4946 = vrot.lane.b32.xlu0 %v4881, 32
        %v4947 = vpop.permute.xlu0 %4946
        %4948 = vrot.lane.b32.xlu0 %v4882, 32
        %v4949 = vpop.permute.xlu0 %4948
        %4950 = vrot.lane.b32.xlu0 %v4883, 32
        %v4951 = vpop.permute.xlu0 %4950
        %4952 = vrot.lane.b32.xlu0 %v4884, 32
        %v4953 = vpop.permute.xlu0 %4952
        %4954 = vrot.lane.b32.xlu0 %v4885, 32
        %v4955 = vpop.permute.xlu0 %4954
        %4956 = vrot.lane.b32.xlu0 %v4886, 32
        %v4957 = vpop.permute.xlu0 %4956
        %4958 = vrot.lane.b32.xlu0 %v4887, 32
        %v4959 = vpop.permute.xlu0 %4958
        %4960 = vrot.lane.b32.xlu0 %v4888, 32
        %v4961 = vpop.permute.xlu0 %4960
        %4962 = vrot.lane.b32.xlu0 %v4889, 32
        %v4963 = vpop.permute.xlu0 %4962
        %4964 = vrot.lane.b32.xlu0 %v4890, 32
        %v4965 = vpop.permute.xlu0 %4964
        %4966 = vrot.lane.b32.xlu0 %v4891, 32
        %v4967 = vpop.permute.xlu0 %4966
        %4968 = vrot.lane.b32.xlu0 %v4892, 32
        %v4969 = vpop.permute.xlu0 %4968
        %4970 = vrot.lane.b32.xlu0 %v4893, 32
        %v4971 = vpop.permute.xlu0 %4970
        %4972 = vrot.lane.b32.xlu0 %v4894, 32
        %v4973 = vpop.permute.xlu0 %4972
        %4974 = vrot.lane.b32.xlu0 %v4895, 32
        %v4975 = vpop.permute.xlu0 %4974
        %4976 = vrot.lane.b32.xlu0 %v4896, 32
        %v4977 = vpop.permute.xlu0 %4976
        %4978 = vrot.lane.b32.xlu0 %v4897, 32
        %v4979 = vpop.permute.xlu0 %4978
        %4980 = vrot.lane.b32.xlu0 %v4898, 32
        %v4981 = vpop.permute.xlu0 %4980
        %4982 = vrot.lane.b32.xlu0 %v4899, 32
        %v4983 = vpop.permute.xlu0 %4982
        %4984 = vrot.lane.b32.xlu0 %v4900, 32
        %v4985 = vpop.permute.xlu0 %4984
        %4986 = vrot.lane.b32.xlu0 %v4901, 32
        %v4987 = vpop.permute.xlu0 %4986
        %4988 = vrot.lane.b32.xlu0 %v4902, 32
        %v4989 = vpop.permute.xlu0 %4988
        %4990 = vrot.lane.b32.xlu0 %v4903, 32
        %v4991 = vpop.permute.xlu0 %4990
        %4992 = vrot.lane.b32.xlu0 %v4904, 32
        %v4993 = vpop.permute.xlu0 %4992
        %4994 = vrot.lane.b32.xlu0 %v4905, 32
        %v4995 = vpop.permute.xlu0 %4994
        %4996 = vrot.lane.b32.xlu0 %v4906, 32
        %v4997 = vpop.permute.xlu0 %4996
        %4998 = vrot.lane.b32.xlu0 %v4907, 32
        %v4999 = vpop.permute.xlu0 %4998
        %5000 = vrot.lane.b32.xlu0 %v4908, 32
        %v5001 = vpop.permute.xlu0 %5000
        %5002 = vrot.lane.b32.xlu0 %v4909, 32
        %v5003 = vpop.permute.xlu0 %5002
        %5004 = vrot.lane.b32.xlu0 %v4910, 32
        %v5005 = vpop.permute.xlu0 %5004
        %5006 = vrot.lane.b32.xlu0 %v4911, 32
        %v5007 = vpop.permute.xlu0 %5006
        %vm5040 = vcmask 392448
        %5041 = vst.msk [vmem:[#allocation3] sm:$0xff] %vm5040, %v4945
        %5042 = vst.msk [vmem:[#allocation3 + $0x18] sm:$0xff] %vm5040, %v4947
        %5043 = vst.msk [vmem:[#allocation3 + $0x30] sm:$0xff] %vm5040, %v4949
        %5044 = vst.msk [vmem:[#allocation3 + $0x48] sm:$0xff] %vm5040, %v4951
        %5045 = vst.msk [vmem:[#allocation3 + $0x60] sm:$0xff] %vm5040, %v4953
        %5046 = vst.msk [vmem:[#allocation3 + $0x78] sm:$0xff] %vm5040, %v4955
        %5047 = vst.msk [vmem:[#allocation3 + $0x90] sm:$0xff] %vm5040, %v4957
        %5048 = vst.msk [vmem:[#allocation3 + $0xa8] sm:$0xff] %vm5040, %v4959
        %5049 = vst.msk [vmem:[#allocation3 + $0xc0] sm:$0xff] %vm5040, %v4961
        %5050 = vst.msk [vmem:[#allocation3 + $0xd8] sm:$0xff] %vm5040, %v4963
        %5051 = vst.msk [vmem:[#allocation3 + $0xf0] sm:$0xff] %vm5040, %v4965
        %5052 = vst.msk [vmem:[#allocation3 + $0x108] sm:$0xff] %vm5040, %v4967
        %5053 = vst.msk [vmem:[#allocation3 + $0x120] sm:$0xff] %vm5040, %v4969
        %5054 = vst.msk [vmem:[#allocation3 + $0x138] sm:$0xff] %vm5040, %v4971
        %5055 = vst.msk [vmem:[#allocation3 + $0x150] sm:$0xff] %vm5040, %v4973
        %5056 = vst.msk [vmem:[#allocation3 + $0x168] sm:$0xff] %vm5040, %v4975
        %5057 = vst.msk [vmem:[#allocation3 + $0x180] sm:$0xff] %vm5040, %v4977
        %5058 = vst.msk [vmem:[#allocation3 + $0x198] sm:$0xff] %vm5040, %v4979
        %5059 = vst.msk [vmem:[#allocation3 + $0x1b0] sm:$0xff] %vm5040, %v4981
        %5060 = vst.msk [vmem:[#allocation3 + $0x1c8] sm:$0xff] %vm5040, %v4983
        %5061 = vst.msk [vmem:[#allocation3 + $0x1e0] sm:$0xff] %vm5040, %v4985
        %5062 = vst.msk [vmem:[#allocation3 + $0x1f8] sm:$0xff] %vm5040, %v4987
        %5063 = vst.msk [vmem:[#allocation3 + $0x210] sm:$0xff] %vm5040, %v4989
        %5064 = vst.msk [vmem:[#allocation3 + $0x228] sm:$0xff] %vm5040, %v4991
        %5065 = vst.msk [vmem:[#allocation3 + $0x240] sm:$0xff] %vm5040, %v4993
        %5066 = vst.msk [vmem:[#allocation3 + $0x258] sm:$0xff] %vm5040, %v4995
        %5067 = vst.msk [vmem:[#allocation3 + $0x270] sm:$0xff] %vm5040, %v4997
        %5068 = vst.msk [vmem:[#allocation3 + $0x288] sm:$0xff] %vm5040, %v4999
        %5069 = vst.msk [vmem:[#allocation3 + $0x2a0] sm:$0xff] %vm5040, %v5001
        %5070 = vst.msk [vmem:[#allocation3 + $0x2b8] sm:$0xff] %vm5040, %v5003
        %5071 = vst.msk [vmem:[#allocation3 + $0x2d0] sm:$0xff] %vm5040, %v5005
        %5072 = vst.msk [vmem:[#allocation3 + $0x2e8] sm:$0xff] %vm5040, %v5007
        %v5073 = vld [vmem:[%s502] sm:$0xff]
        %v5074 = vld [vmem:[%s502 + $0x8] sm:$0xff]
        %v5075 = vld [vmem:[%s502 + $0x18] sm:$0xff]
        %v5076 = vld [vmem:[%s502 + $0x20] sm:$0xff]
        %v5077 = vld [vmem:[%s502 + $0x30] sm:$0xff]
        %v5078 = vld [vmem:[%s502 + $0x38] sm:$0xff]
        %v5079 = vld [vmem:[%s502 + $0x48] sm:$0xff]
        %v5080 = vld [vmem:[%s502 + $0x50] sm:$0xff]
        %v5081 = vld [vmem:[%s502 + $0x60] sm:$0xff]
        %v5082 = vld [vmem:[%s502 + $0x68] sm:$0xff]
        %v5083 = vld [vmem:[%s502 + $0x78] sm:$0xff]
        %v5084 = vld [vmem:[%s502 + $0x80] sm:$0xff]
        %v5085 = vld [vmem:[%s502 + $0x90] sm:$0xff]
        %v5086 = vld [vmem:[%s502 + $0x98] sm:$0xff]
        %v5087 = vld [vmem:[%s502 + $0xa8] sm:$0xff]
        %v5088 = vld [vmem:[%s502 + $0xb0] sm:$0xff]
        %v5089 = vld [vmem:[%s502 + $0xc0] sm:$0xff]
        %v5090 = vld [vmem:[%s502 + $0xc8] sm:$0xff]
        %v5091 = vld [vmem:[%s502 + $0xd8] sm:$0xff]
        %v5092 = vld [vmem:[%s502 + $0xe0] sm:$0xff]
        %v5093 = vld [vmem:[%s502 + $0xf0] sm:$0xff]
        %v5094 = vld [vmem:[%s502 + $0xf8] sm:$0xff]
        %v5095 = vld [vmem:[%s502 + $0x108] sm:$0xff]
        %v5096 = vld [vmem:[%s502 + $0x110] sm:$0xff]
        %v5097 = vld [vmem:[%s502 + $0x120] sm:$0xff]
        %v5098 = vld [vmem:[%s502 + $0x128] sm:$0xff]
        %v5099 = vld [vmem:[%s502 + $0x138] sm:$0xff]
        %v5100 = vld [vmem:[%s502 + $0x140] sm:$0xff]
        %v5101 = vld [vmem:[%s502 + $0x150] sm:$0xff]
        %v5102 = vld [vmem:[%s502 + $0x158] sm:$0xff]
        %v5103 = vld [vmem:[%s502 + $0x168] sm:$0xff]
        %v5104 = vld [vmem:[%s502 + $0x170] sm:$0xff]
        %5137 = vrot.lane.b32.xlu0 %v5073, 48
        %v5138 = vpop.permute.xlu0 %5137
        %5139 = vrot.lane.b32.xlu0 %v5074, 48
        %v5140 = vpop.permute.xlu0 %5139
        %5141 = vrot.lane.b32.xlu0 %v5075, 48
        %v5142 = vpop.permute.xlu0 %5141
        %5143 = vrot.lane.b32.xlu0 %v5076, 48
        %v5144 = vpop.permute.xlu0 %5143
        %5145 = vrot.lane.b32.xlu0 %v5077, 48
        %v5146 = vpop.permute.xlu0 %5145
        %5147 = vrot.lane.b32.xlu0 %v5078, 48
        %v5148 = vpop.permute.xlu0 %5147
        %5149 = vrot.lane.b32.xlu0 %v5079, 48
        %v5150 = vpop.permute.xlu0 %5149
        %5151 = vrot.lane.b32.xlu0 %v5080, 48
        %v5152 = vpop.permute.xlu0 %5151
        %5153 = vrot.lane.b32.xlu0 %v5081, 48
        %v5154 = vpop.permute.xlu0 %5153
        %5155 = vrot.lane.b32.xlu0 %v5082, 48
        %v5156 = vpop.permute.xlu0 %5155
        %5157 = vrot.lane.b32.xlu0 %v5083, 48
        %v5158 = vpop.permute.xlu0 %5157
        %5159 = vrot.lane.b32.xlu0 %v5084, 48
        %v5160 = vpop.permute.xlu0 %5159
        %5161 = vrot.lane.b32.xlu0 %v5085, 48
        %v5162 = vpop.permute.xlu0 %5161
        %5163 = vrot.lane.b32.xlu0 %v5086, 48
        %v5164 = vpop.permute.xlu0 %5163
        %5165 = vrot.lane.b32.xlu0 %v5087, 48
        %v5166 = vpop.permute.xlu0 %5165
        %5167 = vrot.lane.b32.xlu0 %v5088, 48
        %v5168 = vpop.permute.xlu0 %5167
        %5169 = vrot.lane.b32.xlu0 %v5089, 48
        %v5170 = vpop.permute.xlu0 %5169
        %5171 = vrot.lane.b32.xlu0 %v5090, 48
        %v5172 = vpop.permute.xlu0 %5171
        %5173 = vrot.lane.b32.xlu0 %v5091, 48
        %v5174 = vpop.permute.xlu0 %5173
        %5175 = vrot.lane.b32.xlu0 %v5092, 48
        %v5176 = vpop.permute.xlu0 %5175
        %5177 = vrot.lane.b32.xlu0 %v5093, 48
        %v5178 = vpop.permute.xlu0 %5177
        %5179 = vrot.lane.b32.xlu0 %v5094, 48
        %v5180 = vpop.permute.xlu0 %5179
        %5181 = vrot.lane.b32.xlu0 %v5095, 48
        %v5182 = vpop.permute.xlu0 %5181
        %5183 = vrot.lane.b32.xlu0 %v5096, 48
        %v5184 = vpop.permute.xlu0 %5183
        %5185 = vrot.lane.b32.xlu0 %v5097, 48
        %v5186 = vpop.permute.xlu0 %5185
        %5187 = vrot.lane.b32.xlu0 %v5098, 48
        %v5188 = vpop.permute.xlu0 %5187
        %5189 = vrot.lane.b32.xlu0 %v5099, 48
        %v5190 = vpop.permute.xlu0 %5189
        %5191 = vrot.lane.b32.xlu0 %v5100, 48
        %v5192 = vpop.permute.xlu0 %5191
        %5193 = vrot.lane.b32.xlu0 %v5101, 48
        %v5194 = vpop.permute.xlu0 %5193
        %5195 = vrot.lane.b32.xlu0 %v5102, 48
        %v5196 = vpop.permute.xlu0 %5195
        %5197 = vrot.lane.b32.xlu0 %v5103, 48
        %v5198 = vpop.permute.xlu0 %5197
        %5199 = vrot.lane.b32.xlu0 %v5104, 48
        %v5200 = vpop.permute.xlu0 %5199
        %vm5233 = vcmask 523648
        %5234 = vst.msk [vmem:[#allocation3] sm:$0xff] %vm5233, %v5138
        %5235 = vst.msk [vmem:[#allocation3 + $0x18] sm:$0xff] %vm5233, %v5140
        %5236 = vst.msk [vmem:[#allocation3 + $0x30] sm:$0xff] %vm5233, %v5142
        %5237 = vst.msk [vmem:[#allocation3 + $0x48] sm:$0xff] %vm5233, %v5144
        %5238 = vst.msk [vmem:[#allocation3 + $0x60] sm:$0xff] %vm5233, %v5146
        %5239 = vst.msk [vmem:[#allocation3 + $0x78] sm:$0xff] %vm5233, %v5148
        %5240 = vst.msk [vmem:[#allocation3 + $0x90] sm:$0xff] %vm5233, %v5150
        %5241 = vst.msk [vmem:[#allocation3 + $0xa8] sm:$0xff] %vm5233, %v5152
        %5242 = vst.msk [vmem:[#allocation3 + $0xc0] sm:$0xff] %vm5233, %v5154
        %5243 = vst.msk [vmem:[#allocation3 + $0xd8] sm:$0xff] %vm5233, %v5156
        %5244 = vst.msk [vmem:[#allocation3 + $0xf0] sm:$0xff] %vm5233, %v5158
        %5245 = vst.msk [vmem:[#allocation3 + $0x108] sm:$0xff] %vm5233, %v5160
        %5246 = vst.msk [vmem:[#allocation3 + $0x120] sm:$0xff] %vm5233, %v5162
        %5247 = vst.msk [vmem:[#allocation3 + $0x138] sm:$0xff] %vm5233, %v5164
        %5248 = vst.msk [vmem:[#allocation3 + $0x150] sm:$0xff] %vm5233, %v5166
        %5249 = vst.msk [vmem:[#allocation3 + $0x168] sm:$0xff] %vm5233, %v5168
        %5250 = vst.msk [vmem:[#allocation3 + $0x180] sm:$0xff] %vm5233, %v5170
        %5251 = vst.msk [vmem:[#allocation3 + $0x198] sm:$0xff] %vm5233, %v5172
        %5252 = vst.msk [vmem:[#allocation3 + $0x1b0] sm:$0xff] %vm5233, %v5174
        %5253 = vst.msk [vmem:[#allocation3 + $0x1c8] sm:$0xff] %vm5233, %v5176
        %5254 = vst.msk [vmem:[#allocation3 + $0x1e0] sm:$0xff] %vm5233, %v5178
        %5255 = vst.msk [vmem:[#allocation3 + $0x1f8] sm:$0xff] %vm5233, %v5180
        %5256 = vst.msk [vmem:[#allocation3 + $0x210] sm:$0xff] %vm5233, %v5182
        %5257 = vst.msk [vmem:[#allocation3 + $0x228] sm:$0xff] %vm5233, %v5184
        %5258 = vst.msk [vmem:[#allocation3 + $0x240] sm:$0xff] %vm5233, %v5186
        %5259 = vst.msk [vmem:[#allocation3 + $0x258] sm:$0xff] %vm5233, %v5188
        %5260 = vst.msk [vmem:[#allocation3 + $0x270] sm:$0xff] %vm5233, %v5190
        %5261 = vst.msk [vmem:[#allocation3 + $0x288] sm:$0xff] %vm5233, %v5192
        %5262 = vst.msk [vmem:[#allocation3 + $0x2a0] sm:$0xff] %vm5233, %v5194
        %5263 = vst.msk [vmem:[#allocation3 + $0x2b8] sm:$0xff] %vm5233, %v5196
        %5264 = vst.msk [vmem:[#allocation3 + $0x2d0] sm:$0xff] %vm5233, %v5198
        %5265 = vst.msk [vmem:[#allocation3 + $0x2e8] sm:$0xff] %vm5233, %v5200
        %v5266 = vld [vmem:[%s502 + $0x1] sm:$0xff]
        %v5267 = vld [vmem:[%s502 + $0x9] sm:$0xff]
        %v5268 = vld [vmem:[%s502 + $0x19] sm:$0xff]
        %v5269 = vld [vmem:[%s502 + $0x21] sm:$0xff]
        %v5270 = vld [vmem:[%s502 + $0x31] sm:$0xff]
        %v5271 = vld [vmem:[%s502 + $0x39] sm:$0xff]
        %v5272 = vld [vmem:[%s502 + $0x49] sm:$0xff]
        %v5273 = vld [vmem:[%s502 + $0x51] sm:$0xff]
        %v5274 = vld [vmem:[%s502 + $0x61] sm:$0xff]
        %v5275 = vld [vmem:[%s502 + $0x69] sm:$0xff]
        %v5276 = vld [vmem:[%s502 + $0x79] sm:$0xff]
        %v5277 = vld [vmem:[%s502 + $0x81] sm:$0xff]
        %v5278 = vld [vmem:[%s502 + $0x91] sm:$0xff]
        %v5279 = vld [vmem:[%s502 + $0x99] sm:$0xff]
        %v5280 = vld [vmem:[%s502 + $0xa9] sm:$0xff]
        %v5281 = vld [vmem:[%s502 + $0xb1] sm:$0xff]
        %v5282 = vld [vmem:[%s502 + $0xc1] sm:$0xff]
        %v5283 = vld [vmem:[%s502 + $0xc9] sm:$0xff]
        %v5284 = vld [vmem:[%s502 + $0xd9] sm:$0xff]
        %v5285 = vld [vmem:[%s502 + $0xe1] sm:$0xff]
        %v5286 = vld [vmem:[%s502 + $0xf1] sm:$0xff]
        %v5287 = vld [vmem:[%s502 + $0xf9] sm:$0xff]
        %v5288 = vld [vmem:[%s502 + $0x109] sm:$0xff]
        %v5289 = vld [vmem:[%s502 + $0x111] sm:$0xff]
        %v5290 = vld [vmem:[%s502 + $0x121] sm:$0xff]
        %v5291 = vld [vmem:[%s502 + $0x129] sm:$0xff]
        %v5292 = vld [vmem:[%s502 + $0x139] sm:$0xff]
        %v5293 = vld [vmem:[%s502 + $0x141] sm:$0xff]
        %v5294 = vld [vmem:[%s502 + $0x151] sm:$0xff]
        %v5295 = vld [vmem:[%s502 + $0x159] sm:$0xff]
        %v5296 = vld [vmem:[%s502 + $0x169] sm:$0xff]
        %v5297 = vld [vmem:[%s502 + $0x171] sm:$0xff]
        %5330 = vrot.lane.b32.xlu0 %v5266, 64
        %v5331 = vpop.permute.xlu0 %5330
        %5332 = vrot.lane.b32.xlu0 %v5267, 64
        %v5333 = vpop.permute.xlu0 %5332
        %5334 = vrot.lane.b32.xlu0 %v5268, 64
        %v5335 = vpop.permute.xlu0 %5334
        %5336 = vrot.lane.b32.xlu0 %v5269, 64
        %v5337 = vpop.permute.xlu0 %5336
        %5338 = vrot.lane.b32.xlu0 %v5270, 64
        %v5339 = vpop.permute.xlu0 %5338
        %5340 = vrot.lane.b32.xlu0 %v5271, 64
        %v5341 = vpop.permute.xlu0 %5340
        %5342 = vrot.lane.b32.xlu0 %v5272, 64
        %v5343 = vpop.permute.xlu0 %5342
        %5344 = vrot.lane.b32.xlu0 %v5273, 64
        %v5345 = vpop.permute.xlu0 %5344
        %5346 = vrot.lane.b32.xlu0 %v5274, 64
        %v5347 = vpop.permute.xlu0 %5346
        %5348 = vrot.lane.b32.xlu0 %v5275, 64
        %v5349 = vpop.permute.xlu0 %5348
        %5350 = vrot.lane.b32.xlu0 %v5276, 64
        %v5351 = vpop.permute.xlu0 %5350
        %5352 = vrot.lane.b32.xlu0 %v5277, 64
        %v5353 = vpop.permute.xlu0 %5352
        %5354 = vrot.lane.b32.xlu0 %v5278, 64
        %v5355 = vpop.permute.xlu0 %5354
        %5356 = vrot.lane.b32.xlu0 %v5279, 64
        %v5357 = vpop.permute.xlu0 %5356
        %5358 = vrot.lane.b32.xlu0 %v5280, 64
        %v5359 = vpop.permute.xlu0 %5358
        %5360 = vrot.lane.b32.xlu0 %v5281, 64
        %v5361 = vpop.permute.xlu0 %5360
        %5362 = vrot.lane.b32.xlu0 %v5282, 64
        %v5363 = vpop.permute.xlu0 %5362
        %5364 = vrot.lane.b32.xlu0 %v5283, 64
        %v5365 = vpop.permute.xlu0 %5364
        %5366 = vrot.lane.b32.xlu0 %v5284, 64
        %v5367 = vpop.permute.xlu0 %5366
        %5368 = vrot.lane.b32.xlu0 %v5285, 64
        %v5369 = vpop.permute.xlu0 %5368
        %5370 = vrot.lane.b32.xlu0 %v5286, 64
        %v5371 = vpop.permute.xlu0 %5370
        %5372 = vrot.lane.b32.xlu0 %v5287, 64
        %v5373 = vpop.permute.xlu0 %5372
        %5374 = vrot.lane.b32.xlu0 %v5288, 64
        %v5375 = vpop.permute.xlu0 %5374
        %5376 = vrot.lane.b32.xlu0 %v5289, 64
        %v5377 = vpop.permute.xlu0 %5376
        %5378 = vrot.lane.b32.xlu0 %v5290, 64
        %v5379 = vpop.permute.xlu0 %5378
        %5380 = vrot.lane.b32.xlu0 %v5291, 64
        %v5381 = vpop.permute.xlu0 %5380
        %5382 = vrot.lane.b32.xlu0 %v5292, 64
        %v5383 = vpop.permute.xlu0 %5382
        %5384 = vrot.lane.b32.xlu0 %v5293, 64
        %v5385 = vpop.permute.xlu0 %5384
        %5386 = vrot.lane.b32.xlu0 %v5294, 64
        %v5387 = vpop.permute.xlu0 %5386
        %5388 = vrot.lane.b32.xlu0 %v5295, 64
        %v5389 = vpop.permute.xlu0 %5388
        %5390 = vrot.lane.b32.xlu0 %v5296, 64
        %v5391 = vpop.permute.xlu0 %5390
        %5392 = vrot.lane.b32.xlu0 %v5297, 64
        %v5393 = vpop.permute.xlu0 %5392
        %vm5426 = vcmask 654848
        %5427 = vst.msk [vmem:[#allocation3] sm:$0xff] %vm5426, %v5331
        %5428 = vst.msk [vmem:[#allocation3 + $0x18] sm:$0xff] %vm5426, %v5333
        %5429 = vst.msk [vmem:[#allocation3 + $0x30] sm:$0xff] %vm5426, %v5335
        %5430 = vst.msk [vmem:[#allocation3 + $0x48] sm:$0xff] %vm5426, %v5337
        %5431 = vst.msk [vmem:[#allocation3 + $0x60] sm:$0xff] %vm5426, %v5339
        %5432 = vst.msk [vmem:[#allocation3 + $0x78] sm:$0xff] %vm5426, %v5341
        %5433 = vst.msk [vmem:[#allocation3 + $0x90] sm:$0xff] %vm5426, %v5343
        %5434 = vst.msk [vmem:[#allocation3 + $0xa8] sm:$0xff] %vm5426, %v5345
        %5435 = vst.msk [vmem:[#allocation3 + $0xc0] sm:$0xff] %vm5426, %v5347
        %5436 = vst.msk [vmem:[#allocation3 + $0xd8] sm:$0xff] %vm5426, %v5349
        %5437 = vst.msk [vmem:[#allocation3 + $0xf0] sm:$0xff] %vm5426, %v5351
        %5438 = vst.msk [vmem:[#allocation3 + $0x108] sm:$0xff] %vm5426, %v5353
        %5439 = vst.msk [vmem:[#allocation3 + $0x120] sm:$0xff] %vm5426, %v5355
        %5440 = vst.msk [vmem:[#allocation3 + $0x138] sm:$0xff] %vm5426, %v5357
        %5441 = vst.msk [vmem:[#allocation3 + $0x150] sm:$0xff] %vm5426, %v5359
        %5442 = vst.msk [vmem:[#allocation3 + $0x168] sm:$0xff] %vm5426, %v5361
        %5443 = vst.msk [vmem:[#allocation3 + $0x180] sm:$0xff] %vm5426, %v5363
        %5444 = vst.msk [vmem:[#allocation3 + $0x198] sm:$0xff] %vm5426, %v5365
        %5445 = vst.msk [vmem:[#allocation3 + $0x1b0] sm:$0xff] %vm5426, %v5367
        %5446 = vst.msk [vmem:[#allocation3 + $0x1c8] sm:$0xff] %vm5426, %v5369
        %5447 = vst.msk [vmem:[#allocation3 + $0x1e0] sm:$0xff] %vm5426, %v5371
        %5448 = vst.msk [vmem:[#allocation3 + $0x1f8] sm:$0xff] %vm5426, %v5373
        %5449 = vst.msk [vmem:[#allocation3 + $0x210] sm:$0xff] %vm5426, %v5375
        %5450 = vst.msk [vmem:[#allocation3 + $0x228] sm:$0xff] %vm5426, %v5377
        %5451 = vst.msk [vmem:[#allocation3 + $0x240] sm:$0xff] %vm5426, %v5379
        %5452 = vst.msk [vmem:[#allocation3 + $0x258] sm:$0xff] %vm5426, %v5381
        %5453 = vst.msk [vmem:[#allocation3 + $0x270] sm:$0xff] %vm5426, %v5383
        %5454 = vst.msk [vmem:[#allocation3 + $0x288] sm:$0xff] %vm5426, %v5385
        %5455 = vst.msk [vmem:[#allocation3 + $0x2a0] sm:$0xff] %vm5426, %v5387
        %5456 = vst.msk [vmem:[#allocation3 + $0x2b8] sm:$0xff] %vm5426, %v5389
        %5457 = vst.msk [vmem:[#allocation3 + $0x2d0] sm:$0xff] %vm5426, %v5391
        %5458 = vst.msk [vmem:[#allocation3 + $0x2e8] sm:$0xff] %vm5426, %v5393
        %v5459 = vld [vmem:[%s502 + $0x2] sm:$0xff]
        %v5460 = vld [vmem:[%s502 + $0xa] sm:$0xff]
        %v5461 = vld [vmem:[%s502 + $0x1a] sm:$0xff]
        %v5462 = vld [vmem:[%s502 + $0x22] sm:$0xff]
        %v5463 = vld [vmem:[%s502 + $0x32] sm:$0xff]
        %v5464 = vld [vmem:[%s502 + $0x3a] sm:$0xff]
        %v5465 = vld [vmem:[%s502 + $0x4a] sm:$0xff]
        %v5466 = vld [vmem:[%s502 + $0x52] sm:$0xff]
        %v5467 = vld [vmem:[%s502 + $0x62] sm:$0xff]
        %v5468 = vld [vmem:[%s502 + $0x6a] sm:$0xff]
        %v5469 = vld [vmem:[%s502 + $0x7a] sm:$0xff]
        %v5470 = vld [vmem:[%s502 + $0x82] sm:$0xff]
        %v5471 = vld [vmem:[%s502 + $0x92] sm:$0xff]
        %v5472 = vld [vmem:[%s502 + $0x9a] sm:$0xff]
        %v5473 = vld [vmem:[%s502 + $0xaa] sm:$0xff]
        %v5474 = vld [vmem:[%s502 + $0xb2] sm:$0xff]
        %v5475 = vld [vmem:[%s502 + $0xc2] sm:$0xff]
        %v5476 = vld [vmem:[%s502 + $0xca] sm:$0xff]
        %v5477 = vld [vmem:[%s502 + $0xda] sm:$0xff]
        %v5478 = vld [vmem:[%s502 + $0xe2] sm:$0xff]
        %v5479 = vld [vmem:[%s502 + $0xf2] sm:$0xff]
        %v5480 = vld [vmem:[%s502 + $0xfa] sm:$0xff]
        %v5481 = vld [vmem:[%s502 + $0x10a] sm:$0xff]
        %v5482 = vld [vmem:[%s502 + $0x112] sm:$0xff]
        %v5483 = vld [vmem:[%s502 + $0x122] sm:$0xff]
        %v5484 = vld [vmem:[%s502 + $0x12a] sm:$0xff]
        %v5485 = vld [vmem:[%s502 + $0x13a] sm:$0xff]
        %v5486 = vld [vmem:[%s502 + $0x142] sm:$0xff]
        %v5487 = vld [vmem:[%s502 + $0x152] sm:$0xff]
        %v5488 = vld [vmem:[%s502 + $0x15a] sm:$0xff]
        %v5489 = vld [vmem:[%s502 + $0x16a] sm:$0xff]
        %v5490 = vld [vmem:[%s502 + $0x172] sm:$0xff]
        %5523 = vrot.lane.b32.xlu0 %v5459, 80
        %v5524 = vpop.permute.xlu0 %5523
        %5525 = vrot.lane.b32.xlu0 %v5460, 80
        %v5526 = vpop.permute.xlu0 %5525
        %5527 = vrot.lane.b32.xlu0 %v5461, 80
        %v5528 = vpop.permute.xlu0 %5527
        %5529 = vrot.lane.b32.xlu0 %v5462, 80
        %v5530 = vpop.permute.xlu0 %5529
        %5531 = vrot.lane.b32.xlu0 %v5463, 80
        %v5532 = vpop.permute.xlu0 %5531
        %5533 = vrot.lane.b32.xlu0 %v5464, 80
        %v5534 = vpop.permute.xlu0 %5533
        %5535 = vrot.lane.b32.xlu0 %v5465, 80
        %v5536 = vpop.permute.xlu0 %5535
        %5537 = vrot.lane.b32.xlu0 %v5466, 80
        %v5538 = vpop.permute.xlu0 %5537
        %5539 = vrot.lane.b32.xlu0 %v5467, 80
        %v5540 = vpop.permute.xlu0 %5539
        %5541 = vrot.lane.b32.xlu0 %v5468, 80
        %v5542 = vpop.permute.xlu0 %5541
        %5543 = vrot.lane.b32.xlu0 %v5469, 80
        %v5544 = vpop.permute.xlu0 %5543
        %5545 = vrot.lane.b32.xlu0 %v5470, 80
        %v5546 = vpop.permute.xlu0 %5545
        %5547 = vrot.lane.b32.xlu0 %v5471, 80
        %v5548 = vpop.permute.xlu0 %5547
        %5549 = vrot.lane.b32.xlu0 %v5472, 80
        %v5550 = vpop.permute.xlu0 %5549
        %5551 = vrot.lane.b32.xlu0 %v5473, 80
        %v5552 = vpop.permute.xlu0 %5551
        %5553 = vrot.lane.b32.xlu0 %v5474, 80
        %v5554 = vpop.permute.xlu0 %5553
        %5555 = vrot.lane.b32.xlu0 %v5475, 80
        %v5556 = vpop.permute.xlu0 %5555
        %5557 = vrot.lane.b32.xlu0 %v5476, 80
        %v5558 = vpop.permute.xlu0 %5557
        %5559 = vrot.lane.b32.xlu0 %v5477, 80
        %v5560 = vpop.permute.xlu0 %5559
        %5561 = vrot.lane.b32.xlu0 %v5478, 80
        %v5562 = vpop.permute.xlu0 %5561
        %5563 = vrot.lane.b32.xlu0 %v5479, 80
        %v5564 = vpop.permute.xlu0 %5563
        %5565 = vrot.lane.b32.xlu0 %v5480, 80
        %v5566 = vpop.permute.xlu0 %5565
        %5567 = vrot.lane.b32.xlu0 %v5481, 80
        %v5568 = vpop.permute.xlu0 %5567
        %5569 = vrot.lane.b32.xlu0 %v5482, 80
        %v5570 = vpop.permute.xlu0 %5569
        %5571 = vrot.lane.b32.xlu0 %v5483, 80
        %v5572 = vpop.permute.xlu0 %5571
        %5573 = vrot.lane.b32.xlu0 %v5484, 80
        %v5574 = vpop.permute.xlu0 %5573
        %5575 = vrot.lane.b32.xlu0 %v5485, 80
        %v5576 = vpop.permute.xlu0 %5575
        %5577 = vrot.lane.b32.xlu0 %v5486, 80
        %v5578 = vpop.permute.xlu0 %5577
        %5579 = vrot.lane.b32.xlu0 %v5487, 80
        %v5580 = vpop.permute.xlu0 %5579
        %5581 = vrot.lane.b32.xlu0 %v5488, 80
        %v5582 = vpop.permute.xlu0 %5581
        %5583 = vrot.lane.b32.xlu0 %v5489, 80
        %v5584 = vpop.permute.xlu0 %5583
        %5585 = vrot.lane.b32.xlu0 %v5490, 80
        %v5586 = vpop.permute.xlu0 %5585
        %vm5619 = vcmask 786048
        %5620 = vst.msk [vmem:[#allocation3] sm:$0xff] %vm5619, %v5524
        %5621 = vst.msk [vmem:[#allocation3 + $0x18] sm:$0xff] %vm5619, %v5526
        %5622 = vst.msk [vmem:[#allocation3 + $0x30] sm:$0xff] %vm5619, %v5528
        %5623 = vst.msk [vmem:[#allocation3 + $0x48] sm:$0xff] %vm5619, %v5530
        %5624 = vst.msk [vmem:[#allocation3 + $0x60] sm:$0xff] %vm5619, %v5532
        %5625 = vst.msk [vmem:[#allocation3 + $0x78] sm:$0xff] %vm5619, %v5534
        %5626 = vst.msk [vmem:[#allocation3 + $0x90] sm:$0xff] %vm5619, %v5536
        %5627 = vst.msk [vmem:[#allocation3 + $0xa8] sm:$0xff] %vm5619, %v5538
        %5628 = vst.msk [vmem:[#allocation3 + $0xc0] sm:$0xff] %vm5619, %v5540
        %5629 = vst.msk [vmem:[#allocation3 + $0xd8] sm:$0xff] %vm5619, %v5542
        %5630 = vst.msk [vmem:[#allocation3 + $0xf0] sm:$0xff] %vm5619, %v5544
        %5631 = vst.msk [vmem:[#allocation3 + $0x108] sm:$0xff] %vm5619, %v5546
        %5632 = vst.msk [vmem:[#allocation3 + $0x120] sm:$0xff] %vm5619, %v5548
        %5633 = vst.msk [vmem:[#allocation3 + $0x138] sm:$0xff] %vm5619, %v5550
        %5634 = vst.msk [vmem:[#allocation3 + $0x150] sm:$0xff] %vm5619, %v5552
        %5635 = vst.msk [vmem:[#allocation3 + $0x168] sm:$0xff] %vm5619, %v5554
        %5636 = vst.msk [vmem:[#allocation3 + $0x180] sm:$0xff] %vm5619, %v5556
        %5637 = vst.msk [vmem:[#allocation3 + $0x198] sm:$0xff] %vm5619, %v5558
        %5638 = vst.msk [vmem:[#allocation3 + $0x1b0] sm:$0xff] %vm5619, %v5560
        %5639 = vst.msk [vmem:[#allocation3 + $0x1c8] sm:$0xff] %vm5619, %v5562
        %5640 = vst.msk [vmem:[#allocation3 + $0x1e0] sm:$0xff] %vm5619, %v5564
        %5641 = vst.msk [vmem:[#allocation3 + $0x1f8] sm:$0xff] %vm5619, %v5566
        %5642 = vst.msk [vmem:[#allocation3 + $0x210] sm:$0xff] %vm5619, %v5568
        %5643 = vst.msk [vmem:[#allocation3 + $0x228] sm:$0xff] %vm5619, %v5570
        %5644 = vst.msk [vmem:[#allocation3 + $0x240] sm:$0xff] %vm5619, %v5572
        %5645 = vst.msk [vmem:[#allocation3 + $0x258] sm:$0xff] %vm5619, %v5574
        %5646 = vst.msk [vmem:[#allocation3 + $0x270] sm:$0xff] %vm5619, %v5576
        %5647 = vst.msk [vmem:[#allocation3 + $0x288] sm:$0xff] %vm5619, %v5578
        %5648 = vst.msk [vmem:[#allocation3 + $0x2a0] sm:$0xff] %vm5619, %v5580
        %5649 = vst.msk [vmem:[#allocation3 + $0x2b8] sm:$0xff] %vm5619, %v5582
        %5650 = vst.msk [vmem:[#allocation3 + $0x2d0] sm:$0xff] %vm5619, %v5584
        %5651 = vst.msk [vmem:[#allocation3 + $0x2e8] sm:$0xff] %vm5619, %v5586
        %v5652 = vld [vmem:[%s1565] sm:$0xff]
        %v5653 = vld [vmem:[%s1565 + $0x8] sm:$0xff]
        %v5654 = vld [vmem:[%s1565 + $0x18] sm:$0xff]
        %v5655 = vld [vmem:[%s1565 + $0x20] sm:$0xff]
        %v5656 = vld [vmem:[%s1565 + $0x30] sm:$0xff]
        %v5657 = vld [vmem:[%s1565 + $0x38] sm:$0xff]
        %v5658 = vld [vmem:[%s1565 + $0x48] sm:$0xff]
        %v5659 = vld [vmem:[%s1565 + $0x50] sm:$0xff]
        %v5660 = vld [vmem:[%s1565 + $0x60] sm:$0xff]
        %v5661 = vld [vmem:[%s1565 + $0x68] sm:$0xff]
        %v5662 = vld [vmem:[%s1565 + $0x78] sm:$0xff]
        %v5663 = vld [vmem:[%s1565 + $0x80] sm:$0xff]
        %v5664 = vld [vmem:[%s1565 + $0x90] sm:$0xff]
        %v5665 = vld [vmem:[%s1565 + $0x98] sm:$0xff]
        %v5666 = vld [vmem:[%s1565 + $0xa8] sm:$0xff]
        %v5667 = vld [vmem:[%s1565 + $0xb0] sm:$0xff]
        %v5668 = vld [vmem:[%s1565 + $0xc0] sm:$0xff]
        %v5669 = vld [vmem:[%s1565 + $0xc8] sm:$0xff]
        %v5670 = vld [vmem:[%s1565 + $0xd8] sm:$0xff]
        %v5671 = vld [vmem:[%s1565 + $0xe0] sm:$0xff]
        %v5672 = vld [vmem:[%s1565 + $0xf0] sm:$0xff]
        %v5673 = vld [vmem:[%s1565 + $0xf8] sm:$0xff]
        %v5674 = vld [vmem:[%s1565 + $0x108] sm:$0xff]
        %v5675 = vld [vmem:[%s1565 + $0x110] sm:$0xff]
        %v5676 = vld [vmem:[%s1565 + $0x120] sm:$0xff]
        %v5677 = vld [vmem:[%s1565 + $0x128] sm:$0xff]
        %v5678 = vld [vmem:[%s1565 + $0x138] sm:$0xff]
        %v5679 = vld [vmem:[%s1565 + $0x140] sm:$0xff]
        %v5680 = vld [vmem:[%s1565 + $0x150] sm:$0xff]
        %v5681 = vld [vmem:[%s1565 + $0x158] sm:$0xff]
        %v5682 = vld [vmem:[%s1565 + $0x168] sm:$0xff]
        %v5683 = vld [vmem:[%s1565 + $0x170] sm:$0xff]
        %5716 = vrot.lane.b32.xlu0 %v5652, 96
        %v5717 = vpop.permute.xlu0 %5716
        %5718 = vrot.lane.b32.xlu0 %v5653, 96
        %v5719 = vpop.permute.xlu0 %5718
        %5720 = vrot.lane.b32.xlu0 %v5654, 96
        %v5721 = vpop.permute.xlu0 %5720
        %5722 = vrot.lane.b32.xlu0 %v5655, 96
        %v5723 = vpop.permute.xlu0 %5722
        %5724 = vrot.lane.b32.xlu0 %v5656, 96
        %v5725 = vpop.permute.xlu0 %5724
        %5726 = vrot.lane.b32.xlu0 %v5657, 96
        %v5727 = vpop.permute.xlu0 %5726
        %5728 = vrot.lane.b32.xlu0 %v5658, 96
        %v5729 = vpop.permute.xlu0 %5728
        %5730 = vrot.lane.b32.xlu0 %v5659, 96
        %v5731 = vpop.permute.xlu0 %5730
        %5732 = vrot.lane.b32.xlu0 %v5660, 96
        %v5733 = vpop.permute.xlu0 %5732
        %5734 = vrot.lane.b32.xlu0 %v5661, 96
        %v5735 = vpop.permute.xlu0 %5734
        %5736 = vrot.lane.b32.xlu0 %v5662, 96
        %v5737 = vpop.permute.xlu0 %5736
        %5738 = vrot.lane.b32.xlu0 %v5663, 96
        %v5739 = vpop.permute.xlu0 %5738
        %5740 = vrot.lane.b32.xlu0 %v5664, 96
        %v5741 = vpop.permute.xlu0 %5740
        %5742 = vrot.lane.b32.xlu0 %v5665, 96
        %v5743 = vpop.permute.xlu0 %5742
        %5744 = vrot.lane.b32.xlu0 %v5666, 96
        %v5745 = vpop.permute.xlu0 %5744
        %5746 = vrot.lane.b32.xlu0 %v5667, 96
        %v5747 = vpop.permute.xlu0 %5746
        %5748 = vrot.lane.b32.xlu0 %v5668, 96
        %v5749 = vpop.permute.xlu0 %5748
        %5750 = vrot.lane.b32.xlu0 %v5669, 96
        %v5751 = vpop.permute.xlu0 %5750
        %5752 = vrot.lane.b32.xlu0 %v5670, 96
        %v5753 = vpop.permute.xlu0 %5752
        %5754 = vrot.lane.b32.xlu0 %v5671, 96
        %v5755 = vpop.permute.xlu0 %5754
        %5756 = vrot.lane.b32.xlu0 %v5672, 96
        %v5757 = vpop.permute.xlu0 %5756
        %5758 = vrot.lane.b32.xlu0 %v5673, 96
        %v5759 = vpop.permute.xlu0 %5758
        %5760 = vrot.lane.b32.xlu0 %v5674, 96
        %v5761 = vpop.permute.xlu0 %5760
        %5762 = vrot.lane.b32.xlu0 %v5675, 96
        %v5763 = vpop.permute.xlu0 %5762
        %5764 = vrot.lane.b32.xlu0 %v5676, 96
        %v5765 = vpop.permute.xlu0 %5764
        %5766 = vrot.lane.b32.xlu0 %v5677, 96
        %v5767 = vpop.permute.xlu0 %5766
        %5768 = vrot.lane.b32.xlu0 %v5678, 96
        %v5769 = vpop.permute.xlu0 %5768
        %5770 = vrot.lane.b32.xlu0 %v5679, 96
        %v5771 = vpop.permute.xlu0 %5770
        %5772 = vrot.lane.b32.xlu0 %v5680, 96
        %v5773 = vpop.permute.xlu0 %5772
        %5774 = vrot.lane.b32.xlu0 %v5681, 96
        %v5775 = vpop.permute.xlu0 %5774
        %5776 = vrot.lane.b32.xlu0 %v5682, 96
        %v5777 = vpop.permute.xlu0 %5776
        %5778 = vrot.lane.b32.xlu0 %v5683, 96
        %v5779 = vpop.permute.xlu0 %5778
        %vm5812 = vcmask 917248
        %5813 = vst.msk [vmem:[#allocation3] sm:$0xff] %vm5812, %v5717
        %5814 = vst.msk [vmem:[#allocation3 + $0x18] sm:$0xff] %vm5812, %v5719
        %5815 = vst.msk [vmem:[#allocation3 + $0x30] sm:$0xff] %vm5812, %v5721
        %5816 = vst.msk [vmem:[#allocation3 + $0x48] sm:$0xff] %vm5812, %v5723
        %5817 = vst.msk [vmem:[#allocation3 + $0x60] sm:$0xff] %vm5812, %v5725
        %5818 = vst.msk [vmem:[#allocation3 + $0x78] sm:$0xff] %vm5812, %v5727
        %5819 = vst.msk [vmem:[#allocation3 + $0x90] sm:$0xff] %vm5812, %v5729
        %5820 = vst.msk [vmem:[#allocation3 + $0xa8] sm:$0xff] %vm5812, %v5731
        %5821 = vst.msk [vmem:[#allocation3 + $0xc0] sm:$0xff] %vm5812, %v5733
        %5822 = vst.msk [vmem:[#allocation3 + $0xd8] sm:$0xff] %vm5812, %v5735
        %5823 = vst.msk [vmem:[#allocation3 + $0xf0] sm:$0xff] %vm5812, %v5737
        %5824 = vst.msk [vmem:[#allocation3 + $0x108] sm:$0xff] %vm5812, %v5739
        %5825 = vst.msk [vmem:[#allocation3 + $0x120] sm:$0xff] %vm5812, %v5741
        %5826 = vst.msk [vmem:[#allocation3 + $0x138] sm:$0xff] %vm5812, %v5743
        %5827 = vst.msk [vmem:[#allocation3 + $0x150] sm:$0xff] %vm5812, %v5745
        %5828 = vst.msk [vmem:[#allocation3 + $0x168] sm:$0xff] %vm5812, %v5747
        %5829 = vst.msk [vmem:[#allocation3 + $0x180] sm:$0xff] %vm5812, %v5749
        %5830 = vst.msk [vmem:[#allocation3 + $0x198] sm:$0xff] %vm5812, %v5751
        %5831 = vst.msk [vmem:[#allocation3 + $0x1b0] sm:$0xff] %vm5812, %v5753
        %5832 = vst.msk [vmem:[#allocation3 + $0x1c8] sm:$0xff] %vm5812, %v5755
        %5833 = vst.msk [vmem:[#allocation3 + $0x1e0] sm:$0xff] %vm5812, %v5757
        %5834 = vst.msk [vmem:[#allocation3 + $0x1f8] sm:$0xff] %vm5812, %v5759
        %5835 = vst.msk [vmem:[#allocation3 + $0x210] sm:$0xff] %vm5812, %v5761
        %5836 = vst.msk [vmem:[#allocation3 + $0x228] sm:$0xff] %vm5812, %v5763
        %5837 = vst.msk [vmem:[#allocation3 + $0x240] sm:$0xff] %vm5812, %v5765
        %5838 = vst.msk [vmem:[#allocation3 + $0x258] sm:$0xff] %vm5812, %v5767
        %5839 = vst.msk [vmem:[#allocation3 + $0x270] sm:$0xff] %vm5812, %v5769
        %5840 = vst.msk [vmem:[#allocation3 + $0x288] sm:$0xff] %vm5812, %v5771
        %5841 = vst.msk [vmem:[#allocation3 + $0x2a0] sm:$0xff] %vm5812, %v5773
        %5842 = vst.msk [vmem:[#allocation3 + $0x2b8] sm:$0xff] %vm5812, %v5775
        %5843 = vst.msk [vmem:[#allocation3 + $0x2d0] sm:$0xff] %vm5812, %v5777
        %5844 = vst.msk [vmem:[#allocation3 + $0x2e8] sm:$0xff] %vm5812, %v5779
        %v5845 = vld [vmem:[%s1565 + $0x1] sm:$0xff]
        %v5846 = vld [vmem:[%s1565 + $0x9] sm:$0xff]
        %v5847 = vld [vmem:[%s1565 + $0x19] sm:$0xff]
        %v5848 = vld [vmem:[%s1565 + $0x21] sm:$0xff]
        %v5849 = vld [vmem:[%s1565 + $0x31] sm:$0xff]
        %v5850 = vld [vmem:[%s1565 + $0x39] sm:$0xff]
        %v5851 = vld [vmem:[%s1565 + $0x49] sm:$0xff]
        %v5852 = vld [vmem:[%s1565 + $0x51] sm:$0xff]
        %v5853 = vld [vmem:[%s1565 + $0x61] sm:$0xff]
        %v5854 = vld [vmem:[%s1565 + $0x69] sm:$0xff]
        %v5855 = vld [vmem:[%s1565 + $0x79] sm:$0xff]
        %v5856 = vld [vmem:[%s1565 + $0x81] sm:$0xff]
        %v5857 = vld [vmem:[%s1565 + $0x91] sm:$0xff]
        %v5858 = vld [vmem:[%s1565 + $0x99] sm:$0xff]
        %v5859 = vld [vmem:[%s1565 + $0xa9] sm:$0xff]
        %v5860 = vld [vmem:[%s1565 + $0xb1] sm:$0xff]
        %v5861 = vld [vmem:[%s1565 + $0xc1] sm:$0xff]
        %v5862 = vld [vmem:[%s1565 + $0xc9] sm:$0xff]
        %v5863 = vld [vmem:[%s1565 + $0xd9] sm:$0xff]
        %v5864 = vld [vmem:[%s1565 + $0xe1] sm:$0xff]
        %v5865 = vld [vmem:[%s1565 + $0xf1] sm:$0xff]
        %v5866 = vld [vmem:[%s1565 + $0xf9] sm:$0xff]
        %v5867 = vld [vmem:[%s1565 + $0x109] sm:$0xff]
        %v5868 = vld [vmem:[%s1565 + $0x111] sm:$0xff]
        %v5869 = vld [vmem:[%s1565 + $0x121] sm:$0xff]
        %v5870 = vld [vmem:[%s1565 + $0x129] sm:$0xff]
        %v5871 = vld [vmem:[%s1565 + $0x139] sm:$0xff]
        %v5872 = vld [vmem:[%s1565 + $0x141] sm:$0xff]
        %v5873 = vld [vmem:[%s1565 + $0x151] sm:$0xff]
        %v5874 = vld [vmem:[%s1565 + $0x159] sm:$0xff]
        %v5875 = vld [vmem:[%s1565 + $0x169] sm:$0xff]
        %v5876 = vld [vmem:[%s1565 + $0x171] sm:$0xff]
        %5909 = vrot.lane.b32.xlu0 %v5845, 112
        %v5910 = vpop.permute.xlu0 %5909
        %5911 = vrot.lane.b32.xlu0 %v5846, 112
        %v5912 = vpop.permute.xlu0 %5911
        %5913 = vrot.lane.b32.xlu0 %v5847, 112
        %v5914 = vpop.permute.xlu0 %5913
        %5915 = vrot.lane.b32.xlu0 %v5848, 112
        %v5916 = vpop.permute.xlu0 %5915
        %5917 = vrot.lane.b32.xlu0 %v5849, 112
        %v5918 = vpop.permute.xlu0 %5917
        %5919 = vrot.lane.b32.xlu0 %v5850, 112
        %v5920 = vpop.permute.xlu0 %5919
        %5921 = vrot.lane.b32.xlu0 %v5851, 112
        %v5922 = vpop.permute.xlu0 %5921
        %5923 = vrot.lane.b32.xlu0 %v5852, 112
        %v5924 = vpop.permute.xlu0 %5923
        %5925 = vrot.lane.b32.xlu0 %v5853, 112
        %v5926 = vpop.permute.xlu0 %5925
        %5927 = vrot.lane.b32.xlu0 %v5854, 112
        %v5928 = vpop.permute.xlu0 %5927
        %5929 = vrot.lane.b32.xlu0 %v5855, 112
        %v5930 = vpop.permute.xlu0 %5929
        %5931 = vrot.lane.b32.xlu0 %v5856, 112
        %v5932 = vpop.permute.xlu0 %5931
        %5933 = vrot.lane.b32.xlu0 %v5857, 112
        %v5934 = vpop.permute.xlu0 %5933
        %5935 = vrot.lane.b32.xlu0 %v5858, 112
        %v5936 = vpop.permute.xlu0 %5935
        %5937 = vrot.lane.b32.xlu0 %v5859, 112
        %v5938 = vpop.permute.xlu0 %5937
        %5939 = vrot.lane.b32.xlu0 %v5860, 112
        %v5940 = vpop.permute.xlu0 %5939
        %5941 = vrot.lane.b32.xlu0 %v5861, 112
        %v5942 = vpop.permute.xlu0 %5941
        %5943 = vrot.lane.b32.xlu0 %v5862, 112
        %v5944 = vpop.permute.xlu0 %5943
        %5945 = vrot.lane.b32.xlu0 %v5863, 112
        %v5946 = vpop.permute.xlu0 %5945
        %5947 = vrot.lane.b32.xlu0 %v5864, 112
        %v5948 = vpop.permute.xlu0 %5947
        %5949 = vrot.lane.b32.xlu0 %v5865, 112
        %v5950 = vpop.permute.xlu0 %5949
        %5951 = vrot.lane.b32.xlu0 %v5866, 112
        %v5952 = vpop.permute.xlu0 %5951
        %5953 = vrot.lane.b32.xlu0 %v5867, 112
        %v5954 = vpop.permute.xlu0 %5953
        %5955 = vrot.lane.b32.xlu0 %v5868, 112
        %v5956 = vpop.permute.xlu0 %5955
        %5957 = vrot.lane.b32.xlu0 %v5869, 112
        %v5958 = vpop.permute.xlu0 %5957
        %5959 = vrot.lane.b32.xlu0 %v5870, 112
        %v5960 = vpop.permute.xlu0 %5959
        %5961 = vrot.lane.b32.xlu0 %v5871, 112
        %v5962 = vpop.permute.xlu0 %5961
        %5963 = vrot.lane.b32.xlu0 %v5872, 112
        %v5964 = vpop.permute.xlu0 %5963
        %5965 = vrot.lane.b32.xlu0 %v5873, 112
        %v5966 = vpop.permute.xlu0 %5965
        %5967 = vrot.lane.b32.xlu0 %v5874, 112
        %v5968 = vpop.permute.xlu0 %5967
        %5969 = vrot.lane.b32.xlu0 %v5875, 112
        %v5970 = vpop.permute.xlu0 %5969
        %5971 = vrot.lane.b32.xlu0 %v5876, 112
        %v5972 = vpop.permute.xlu0 %5971
        %vm6005 = vcmask 1048448
        %6006 = vst.msk [vmem:[#allocation3] sm:$0xff] %vm6005, %v5910
        %6007 = vst.msk [vmem:[#allocation3 + $0x18] sm:$0xff] %vm6005, %v5912
        %6008 = vst.msk [vmem:[#allocation3 + $0x30] sm:$0xff] %vm6005, %v5914
        %6009 = vst.msk [vmem:[#allocation3 + $0x48] sm:$0xff] %vm6005, %v5916
        %6010 = vst.msk [vmem:[#allocation3 + $0x60] sm:$0xff] %vm6005, %v5918
        %6011 = vst.msk [vmem:[#allocation3 + $0x78] sm:$0xff] %vm6005, %v5920
        %6012 = vst.msk [vmem:[#allocation3 + $0x90] sm:$0xff] %vm6005, %v5922
        %6013 = vst.msk [vmem:[#allocation3 + $0xa8] sm:$0xff] %vm6005, %v5924
        %6014 = vst.msk [vmem:[#allocation3 + $0xc0] sm:$0xff] %vm6005, %v5926
        %6015 = vst.msk [vmem:[#allocation3 + $0xd8] sm:$0xff] %vm6005, %v5928
        %6016 = vst.msk [vmem:[#allocation3 + $0xf0] sm:$0xff] %vm6005, %v5930
        %6017 = vst.msk [vmem:[#allocation3 + $0x108] sm:$0xff] %vm6005, %v5932
        %6018 = vst.msk [vmem:[#allocation3 + $0x120] sm:$0xff] %vm6005, %v5934
        %6019 = vst.msk [vmem:[#allocation3 + $0x138] sm:$0xff] %vm6005, %v5936
        %6020 = vst.msk [vmem:[#allocation3 + $0x150] sm:$0xff] %vm6005, %v5938
        %6021 = vst.msk [vmem:[#allocation3 + $0x168] sm:$0xff] %vm6005, %v5940
        %6022 = vst.msk [vmem:[#allocation3 + $0x180] sm:$0xff] %vm6005, %v5942
        %6023 = vst.msk [vmem:[#allocation3 + $0x198] sm:$0xff] %vm6005, %v5944
        %6024 = vst.msk [vmem:[#allocation3 + $0x1b0] sm:$0xff] %vm6005, %v5946
        %6025 = vst.msk [vmem:[#allocation3 + $0x1c8] sm:$0xff] %vm6005, %v5948
        %6026 = vst.msk [vmem:[#allocation3 + $0x1e0] sm:$0xff] %vm6005, %v5950
        %6027 = vst.msk [vmem:[#allocation3 + $0x1f8] sm:$0xff] %vm6005, %v5952
        %6028 = vst.msk [vmem:[#allocation3 + $0x210] sm:$0xff] %vm6005, %v5954
        %6029 = vst.msk [vmem:[#allocation3 + $0x228] sm:$0xff] %vm6005, %v5956
        %6030 = vst.msk [vmem:[#allocation3 + $0x240] sm:$0xff] %vm6005, %v5958
        %6031 = vst.msk [vmem:[#allocation3 + $0x258] sm:$0xff] %vm6005, %v5960
        %6032 = vst.msk [vmem:[#allocation3 + $0x270] sm:$0xff] %vm6005, %v5962
        %6033 = vst.msk [vmem:[#allocation3 + $0x288] sm:$0xff] %vm6005, %v5964
        %6034 = vst.msk [vmem:[#allocation3 + $0x2a0] sm:$0xff] %vm6005, %v5966
        %6035 = vst.msk [vmem:[#allocation3 + $0x2b8] sm:$0xff] %vm6005, %v5968
        %6036 = vst.msk [vmem:[#allocation3 + $0x2d0] sm:$0xff] %vm6005, %v5970
        %6037 = vst.msk [vmem:[#allocation3 + $0x2e8] sm:$0xff] %vm6005, %v5972
        %v6038 = vld [vmem:[%s1565 + $0x2] sm:$0xff]
        %v6039 = vld [vmem:[%s1565 + $0xa] sm:$0xff]
        %v6040 = vld [vmem:[%s1565 + $0x1a] sm:$0xff]
        %v6041 = vld [vmem:[%s1565 + $0x22] sm:$0xff]
        %v6042 = vld [vmem:[%s1565 + $0x32] sm:$0xff]
        %v6043 = vld [vmem:[%s1565 + $0x3a] sm:$0xff]
        %v6044 = vld [vmem:[%s1565 + $0x4a] sm:$0xff]
        %v6045 = vld [vmem:[%s1565 + $0x52] sm:$0xff]
        %v6046 = vld [vmem:[%s1565 + $0x62] sm:$0xff]
        %v6047 = vld [vmem:[%s1565 + $0x6a] sm:$0xff]
        %v6048 = vld [vmem:[%s1565 + $0x7a] sm:$0xff]
        %v6049 = vld [vmem:[%s1565 + $0x82] sm:$0xff]
        %v6050 = vld [vmem:[%s1565 + $0x92] sm:$0xff]
        %v6051 = vld [vmem:[%s1565 + $0x9a] sm:$0xff]
        %v6052 = vld [vmem:[%s1565 + $0xaa] sm:$0xff]
        %v6053 = vld [vmem:[%s1565 + $0xb2] sm:$0xff]
        %v6054 = vld [vmem:[%s1565 + $0xc2] sm:$0xff]
        %v6055 = vld [vmem:[%s1565 + $0xca] sm:$0xff]
        %v6056 = vld [vmem:[%s1565 + $0xda] sm:$0xff]
        %v6057 = vld [vmem:[%s1565 + $0xe2] sm:$0xff]
        %v6058 = vld [vmem:[%s1565 + $0xf2] sm:$0xff]
        %v6059 = vld [vmem:[%s1565 + $0xfa] sm:$0xff]
        %v6060 = vld [vmem:[%s1565 + $0x10a] sm:$0xff]
        %v6061 = vld [vmem:[%s1565 + $0x112] sm:$0xff]
        %v6062 = vld [vmem:[%s1565 + $0x122] sm:$0xff]
        %v6063 = vld [vmem:[%s1565 + $0x12a] sm:$0xff]
        %v6064 = vld [vmem:[%s1565 + $0x13a] sm:$0xff]
        %v6065 = vld [vmem:[%s1565 + $0x142] sm:$0xff]
        %v6066 = vld [vmem:[%s1565 + $0x152] sm:$0xff]
        %v6067 = vld [vmem:[%s1565 + $0x15a] sm:$0xff]
        %v6068 = vld [vmem:[%s1565 + $0x16a] sm:$0xff]
        %v6069 = vld [vmem:[%s1565 + $0x172] sm:$0xff]
        %6070 = vst.msk [vmem:[#allocation3 + $0x8] sm:$0xff] %vm4590, %v6038
        %6071 = vst.msk [vmem:[#allocation3 + $0x20] sm:$0xff] %vm4590, %v6039
        %6072 = vst.msk [vmem:[#allocation3 + $0x38] sm:$0xff] %vm4590, %v6040
        %6073 = vst.msk [vmem:[#allocation3 + $0x50] sm:$0xff] %vm4590, %v6041
        %6074 = vst.msk [vmem:[#allocation3 + $0x68] sm:$0xff] %vm4590, %v6042
        %6075 = vst.msk [vmem:[#allocation3 + $0x80] sm:$0xff] %vm4590, %v6043
        %6076 = vst.msk [vmem:[#allocation3 + $0x98] sm:$0xff] %vm4590, %v6044
        %6077 = vst.msk [vmem:[#allocation3 + $0xb0] sm:$0xff] %vm4590, %v6045
        %6078 = vst.msk [vmem:[#allocation3 + $0xc8] sm:$0xff] %vm4590, %v6046
        %6079 = vst.msk [vmem:[#allocation3 + $0xe0] sm:$0xff] %vm4590, %v6047
        %6080 = vst.msk [vmem:[#allocation3 + $0xf8] sm:$0xff] %vm4590, %v6048
        %6081 = vst.msk [vmem:[#allocation3 + $0x110] sm:$0xff] %vm4590, %v6049
        %6082 = vst.msk [vmem:[#allocation3 + $0x128] sm:$0xff] %vm4590, %v6050
        %6083 = vst.msk [vmem:[#allocation3 + $0x140] sm:$0xff] %vm4590, %v6051
        %6084 = vst.msk [vmem:[#allocation3 + $0x158] sm:$0xff] %vm4590, %v6052
        %6085 = vst.msk [vmem:[#allocation3 + $0x170] sm:$0xff] %vm4590, %v6053
        %6086 = vst.msk [vmem:[#allocation3 + $0x188] sm:$0xff] %vm4590, %v6054
        %6087 = vst.msk [vmem:[#allocation3 + $0x1a0] sm:$0xff] %vm4590, %v6055
        %6088 = vst.msk [vmem:[#allocation3 + $0x1b8] sm:$0xff] %vm4590, %v6056
        %6089 = vst.msk [vmem:[#allocation3 + $0x1d0] sm:$0xff] %vm4590, %v6057
        %6090 = vst.msk [vmem:[#allocation3 + $0x1e8] sm:$0xff] %vm4590, %v6058
        %6091 = vst.msk [vmem:[#allocation3 + $0x200] sm:$0xff] %vm4590, %v6059
        %6092 = vst.msk [vmem:[#allocation3 + $0x218] sm:$0xff] %vm4590, %v6060
        %6093 = vst.msk [vmem:[#allocation3 + $0x230] sm:$0xff] %vm4590, %v6061
        %6094 = vst.msk [vmem:[#allocation3 + $0x248] sm:$0xff] %vm4590, %v6062
        %6095 = vst.msk [vmem:[#allocation3 + $0x260] sm:$0xff] %vm4590, %v6063
        %6096 = vst.msk [vmem:[#allocation3 + $0x278] sm:$0xff] %vm4590, %v6064
        %6097 = vst.msk [vmem:[#allocation3 + $0x290] sm:$0xff] %vm4590, %v6065
        %6098 = vst.msk [vmem:[#allocation3 + $0x2a8] sm:$0xff] %vm4590, %v6066
        %6099 = vst.msk [vmem:[#allocation3 + $0x2c0] sm:$0xff] %vm4590, %v6067
        %6100 = vst.msk [vmem:[#allocation3 + $0x2d8] sm:$0xff] %vm4590, %v6068
        %6101 = vst.msk [vmem:[#allocation3 + $0x2f0] sm:$0xff] %vm4590, %v6069
        %v6102 = vld [vmem:[#allocation3] sm:$0xff]
        %v6103 = vld [vmem:[#allocation3 + $0x8] sm:$0xff]
        %v6104 = vld [vmem:[#allocation3 + $0x18] sm:$0xff]
        %v6105 = vld [vmem:[#allocation3 + $0x20] sm:$0xff]
        %v6106 = vld [vmem:[#allocation3 + $0x30] sm:$0xff]
        %v6107 = vld [vmem:[#allocation3 + $0x38] sm:$0xff]
        %v6108 = vld [vmem:[#allocation3 + $0x48] sm:$0xff]
        %v6109 = vld [vmem:[#allocation3 + $0x50] sm:$0xff]
        %v6110 = vld [vmem:[#allocation3 + $0x60] sm:$0xff]
        %v6111 = vld [vmem:[#allocation3 + $0x68] sm:$0xff]
        %v6112 = vld [vmem:[#allocation3 + $0x78] sm:$0xff]
        %v6113 = vld [vmem:[#allocation3 + $0x80] sm:$0xff]
        %v6114 = vld [vmem:[#allocation3 + $0x90] sm:$0xff]
        %v6115 = vld [vmem:[#allocation3 + $0x98] sm:$0xff]
        %v6116 = vld [vmem:[#allocation3 + $0xa8] sm:$0xff]
        %v6117 = vld [vmem:[#allocation3 + $0xb0] sm:$0xff]
        %v6118 = vld [vmem:[#allocation3 + $0xc0] sm:$0xff]
        %v6119 = vld [vmem:[#allocation3 + $0xc8] sm:$0xff]
        %v6120 = vld [vmem:[#allocation3 + $0xd8] sm:$0xff]
        %v6121 = vld [vmem:[#allocation3 + $0xe0] sm:$0xff]
        %v6122 = vld [vmem:[#allocation3 + $0xf0] sm:$0xff]
        %v6123 = vld [vmem:[#allocation3 + $0xf8] sm:$0xff]
        %v6124 = vld [vmem:[#allocation3 + $0x108] sm:$0xff]
        %v6125 = vld [vmem:[#allocation3 + $0x110] sm:$0xff]
        %v6126 = vld [vmem:[#allocation3 + $0x120] sm:$0xff]
        %v6127 = vld [vmem:[#allocation3 + $0x128] sm:$0xff]
        %v6128 = vld [vmem:[#allocation3 + $0x138] sm:$0xff]
        %v6129 = vld [vmem:[#allocation3 + $0x140] sm:$0xff]
        %v6130 = vld [vmem:[#allocation3 + $0x150] sm:$0xff]
        %v6131 = vld [vmem:[#allocation3 + $0x158] sm:$0xff]
        %v6132 = vld [vmem:[#allocation3 + $0x168] sm:$0xff]
        %v6133 = vld [vmem:[#allocation3 + $0x170] sm:$0xff]
        %v6134 = vld [vmem:[#allocation3 + $0x180] sm:$0xff]
        %v6135 = vld [vmem:[#allocation3 + $0x188] sm:$0xff]
        %v6136 = vld [vmem:[#allocation3 + $0x198] sm:$0xff]
        %v6137 = vld [vmem:[#allocation3 + $0x1a0] sm:$0xff]
        %v6138 = vld [vmem:[#allocation3 + $0x1b0] sm:$0xff]
        %v6139 = vld [vmem:[#allocation3 + $0x1b8] sm:$0xff]
        %v6140 = vld [vmem:[#allocation3 + $0x1c8] sm:$0xff]
        %v6141 = vld [vmem:[#allocation3 + $0x1d0] sm:$0xff]
        %v6142 = vld [vmem:[#allocation3 + $0x1e0] sm:$0xff]
        %v6143 = vld [vmem:[#allocation3 + $0x1e8] sm:$0xff]
        %v6144 = vld [vmem:[#allocation3 + $0x1f8] sm:$0xff]
        %v6145 = vld [vmem:[#allocation3 + $0x200] sm:$0xff]
        %v6146 = vld [vmem:[#allocation3 + $0x210] sm:$0xff]
        %v6147 = vld [vmem:[#allocation3 + $0x218] sm:$0xff]
        %v6148 = vld [vmem:[#allocation3 + $0x228] sm:$0xff]
        %v6149 = vld [vmem:[#allocation3 + $0x230] sm:$0xff]
        %v6150 = vld [vmem:[#allocation3 + $0x240] sm:$0xff]
        %v6151 = vld [vmem:[#allocation3 + $0x248] sm:$0xff]
        %v6152 = vld [vmem:[#allocation3 + $0x258] sm:$0xff]
        %v6153 = vld [vmem:[#allocation3 + $0x260] sm:$0xff]
        %v6154 = vld [vmem:[#allocation3 + $0x270] sm:$0xff]
        %v6155 = vld [vmem:[#allocation3 + $0x278] sm:$0xff]
        %v6156 = vld [vmem:[#allocation3 + $0x288] sm:$0xff]
        %v6157 = vld [vmem:[#allocation3 + $0x290] sm:$0xff]
        %v6158 = vld [vmem:[#allocation3 + $0x2a0] sm:$0xff]
        %v6159 = vld [vmem:[#allocation3 + $0x2a8] sm:$0xff]
        %v6160 = vld [vmem:[#allocation3 + $0x2b8] sm:$0xff]
        %v6161 = vld [vmem:[#allocation3 + $0x2c0] sm:$0xff]
        %v6162 = vld [vmem:[#allocation3 + $0x2d0] sm:$0xff]
        %v6163 = vld [vmem:[#allocation3 + $0x2d8] sm:$0xff]
        %v6164 = vld [vmem:[#allocation3 + $0x2e8] sm:$0xff]
        %v6165 = vld [vmem:[#allocation3 + $0x2f0] sm:$0xff]
        %v6166 = vld [vmem:[%s5] sm:$0xff]
        %v6167 = vld [vmem:[%s5 + $0x8] sm:$0xff]
        %v6168 = vld [vmem:[%s5 + $0x10] sm:$0xff]
        %v6169 = vld [vmem:[%s5 + $0x18] sm:$0xff]
        %v6170 = vld [vmem:[%s5 + $0x20] sm:$0xff]
        %v6171 = vld [vmem:[%s5 + $0x28] sm:$0xff]
        %v6172 = vld [vmem:[%s5 + $0x30] sm:$0xff]
        %v6173 = vld [vmem:[%s5 + $0x38] sm:$0xff]
        %v6174 = vld [vmem:[%s5 + $0x40] sm:$0xff]
        %v6175 = vld [vmem:[%s5 + $0x48] sm:$0xff]
        %v6176 = vld [vmem:[%s5 + $0x50] sm:$0xff]
        %v6177 = vld [vmem:[%s5 + $0x58] sm:$0xff]
        %v6178 = vld [vmem:[%s5 + $0x60] sm:$0xff]
        %v6179 = vld [vmem:[%s5 + $0x68] sm:$0xff]
        %v6180 = vld [vmem:[%s5 + $0x70] sm:$0xff]
        %v6181 = vld [vmem:[%s5 + $0x78] sm:$0xff]
        %v6182 = vld [vmem:[%s5 + $0x80] sm:$0xff]
        %v6183 = vld [vmem:[%s5 + $0x88] sm:$0xff]
        %v6184 = vld [vmem:[%s6] sm:$0x1]
        %v6186 = vlaneseq
        %v6187 = vshrl.u32 %v6186, 7
        %v6188 = vsub.s32 0, %v6187
        %v6189 = vrot.slane %v6184, %v6188
        %v6192 = vsel %vm4590, %v6103, 0
        %v6195 = vsel %vm4590, %v6105, 0
        %v6198 = vsel %vm4590, %v6107, 0
        %v6201 = vsel %vm4590, %v6109, 0
        %v6204 = vsel %vm4590, %v6111, 0
        %v6207 = vsel %vm4590, %v6113, 0
        %v6210 = vsel %vm4590, %v6115, 0
        %v6213 = vsel %vm4590, %v6117, 0
        %v6216 = vsel %vm4590, %v6119, 0
        %v6219 = vsel %vm4590, %v6121, 0
        %v6222 = vsel %vm4590, %v6123, 0
        %v6225 = vsel %vm4590, %v6125, 0
        %v6228 = vsel %vm4590, %v6127, 0
        %v6231 = vsel %vm4590, %v6129, 0
        %v6234 = vsel %vm4590, %v6131, 0
        %v6237 = vsel %vm4590, %v6133, 0
        %v6240 = vsel %vm4590, %v6135, 0
        %v6243 = vsel %vm4590, %v6137, 0
        %v6246 = vsel %vm4590, %v6139, 0
        %v6249 = vsel %vm4590, %v6141, 0
        %v6252 = vsel %vm4590, %v6143, 0
        %v6255 = vsel %vm4590, %v6145, 0
        %v6258 = vsel %vm4590, %v6147, 0
        %v6261 = vsel %vm4590, %v6149, 0
        %v6264 = vsel %vm4590, %v6151, 0
        %v6267 = vsel %vm4590, %v6153, 0
        %v6270 = vsel %vm4590, %v6155, 0
        %v6273 = vsel %vm4590, %v6157, 0
        %v6276 = vsel %vm4590, %v6159, 0
        %v6279 = vsel %vm4590, %v6161, 0
        %v6282 = vsel %vm4590, %v6163, 0
        %v6285 = vsel %vm4590, %v6165, 0
        %6287 = vmatprep.subr.mxu0 0.0
        %6288 = vmatpush1.msra.mxu0 %v6166
        %6289 = vmatprep.subr.mxu0 0.0
        %6290 = vmatpush1.msra.mxu0 %v6167
        %6291 = vmatprep.subr.mxu0 0.0
        %6292 = vmatpush1.msra.mxu0 %v6168
        %6293 = vmatprep.subr.mxu0 0.0
        %6294 = vmatpush1.msra.mxu0 %v6169
        %6295 = vmatprep.subr.mxu0 0.0
        %6296 = vmatpush1.msra.mxu0 %v6170
        %6297 = vmatprep.subr.mxu0 0.0
        %6298 = vmatpush1.msra.mxu0 %v6171
        %6299 = vmatprep.subr.mxu0 0.0
        %6300 = vmatpush1.msra.mxu0 %v6172
        %6301 = vmatprep.subr.mxu0 0.0
        %6302 = vmatpush1.msra.mxu0 %v6173
        %6303 = vmatprep.subr.mxu0 0.0
        %6304 = vmatpush1.msra.mxu0 %v6174
        %6305 = vmatprep.subr.mxu0 0.0
        %6306 = vmatpush1.msra.mxu0 %v6175
        %6307 = vmatprep.subr.mxu0 0.0
        %6308 = vmatpush1.msra.mxu0 %v6176
        %6309 = vmatprep.subr.mxu0 0.0
        %6310 = vmatpush1.msra.mxu0 %v6177
        %6311 = vmatprep.subr.mxu0 0.0
        %6312 = vmatpush1.msra.mxu0 %v6178
        %6313 = vmatprep.subr.mxu0 0.0
        %6314 = vmatpush1.msra.mxu0 %v6179
        %6315 = vmatprep.subr.mxu0 0.0
        %6316 = vmatpush1.msra.mxu0 %v6180
        %6317 = vmatprep.subr.mxu0 0.0
        %6318 = vmatpush1.msra.mxu0 %v6181
        %6319 = vmatprep.subr.mxu0 0.0
        %6320 = vmatpush1.msra.mxu0 %v6182
        %6321 = vmatprep.subr.mxu0 0.0
        %6322 = vmatpush1.msra.mxu0 %v6183
        %6323 = vmatprep.subr.mxu0 0.0
        %6324 = vmatpush1.msra.mxu0 0.0
        %6325 = vmatprep.subr.mxu0 0.0
        %6326 = vmatpush1.msra.mxu0 0.0
        %6327 = vmatprep.subr.mxu0 0.0
        %6328 = vmatpush1.msra.mxu0 0.0
        %6329 = vmatprep.subr.mxu0 0.0
        %6330 = vmatpush1.msra.mxu0 0.0
        %6331 = vmatprep.subr.mxu0 0.0
        %6332 = vmatpush1.msra.mxu0 0.0
        %6333 = vmatprep.subr.mxu0 0.0
        %6334 = vmatpush1.msra.mxu0 0.0
        %6335 = vmatprep.subr.mxu0 0.0
        %6336 = vmatpush1.msra.mxu0 0.0
        %6337 = vmatprep.subr.mxu0 0.0
        %6338 = vmatpush1.msra.mxu0 0.0
        %6339 = vmatprep.subr.mxu0 0.0
        %6340 = vmatpush1.msra.mxu0 0.0
        %6341 = vmatprep.subr.mxu0 0.0
        %6342 = vmatpush1.msra.mxu0 0.0
        %6343 = vmatprep.subr.mxu0 0.0
        %6344 = vmatpush1.msra.mxu0 0.0
        %6345 = vmatprep.subr.mxu0 0.0
        %6346 = vmatpush1.msra.mxu0 0.0
        %6347 = vmatprep.subr.mxu0 0.0
        %6348 = vmatpush1.msra.mxu0 0.0
        %6349 = vmatprep.subr.mxu0 0.0
        %6350 = vmatpush1.msra.mxu0 0.0
        %6351 = vmatprep.mubr.f32.mxu0 %v6192
        %6352 = vmatmul.mubr.f32.gmra.mrb[0].mxu0 %v6102
        %v6353 = vpop.f32.mrb[0].mxu0
        %v6354 = vadd.f32 %v6189, %v6353
        %v6355 = vpop.f32.mrb[0].mxu0
        %6356 = vmatprep.mubr.f32.mxu0 %v6195
        %6357 = vmatmul.mubr.f32.gmra.mrb[0].mxu0 %v6104
        %v6358 = vpop.f32.mrb[0].mxu0
        %v6359 = vadd.f32 %v6189, %v6358
        %v6360 = vpop.f32.mrb[0].mxu0
        %6361 = vmatprep.mubr.f32.mxu0 %v6198
        %6362 = vmatmul.mubr.f32.gmra.mrb[0].mxu0 %v6106
        %v6363 = vpop.f32.mrb[0].mxu0
        %v6364 = vadd.f32 %v6189, %v6363
        %v6365 = vpop.f32.mrb[0].mxu0
        %6366 = vmatprep.mubr.f32.mxu0 %v6201
        %6367 = vmatmul.mubr.f32.gmra.mrb[0].mxu0 %v6108
        %v6368 = vpop.f32.mrb[0].mxu0
        %v6369 = vadd.f32 %v6189, %v6368
        %v6370 = vpop.f32.mrb[0].mxu0
        %6371 = vmatprep.mubr.f32.mxu0 %v6204
        %6372 = vmatmul.mubr.f32.gmra.mrb[0].mxu0 %v6110
        %v6373 = vpop.f32.mrb[0].mxu0
        %v6374 = vadd.f32 %v6189, %v6373
        %v6375 = vpop.f32.mrb[0].mxu0
        %6376 = vmatprep.mubr.f32.mxu0 %v6207
        %6377 = vmatmul.mubr.f32.gmra.mrb[0].mxu0 %v6112
        %v6378 = vpop.f32.mrb[0].mxu0
        %v6379 = vadd.f32 %v6189, %v6378
        %v6380 = vpop.f32.mrb[0].mxu0
        %6381 = vmatprep.mubr.f32.mxu0 %v6210
        %6382 = vmatmul.mubr.f32.gmra.mrb[0].mxu0 %v6114
        %v6383 = vpop.f32.mrb[0].mxu0
        %v6384 = vadd.f32 %v6189, %v6383
        %v6385 = vpop.f32.mrb[0].mxu0
        %6386 = vmatprep.mubr.f32.mxu0 %v6213
        %6387 = vmatmul.mubr.f32.gmra.mrb[0].mxu0 %v6116
        %v6388 = vpop.f32.mrb[0].mxu0
        %v6389 = vadd.f32 %v6189, %v6388
        %v6390 = vpop.f32.mrb[0].mxu0
        %6391 = vmatprep.mubr.f32.mxu0 %v6216
        %6392 = vmatmul.mubr.f32.gmra.mrb[0].mxu0 %v6118
        %v6393 = vpop.f32.mrb[0].mxu0
        %v6394 = vadd.f32 %v6189, %v6393
        %v6395 = vpop.f32.mrb[0].mxu0
        %6396 = vmatprep.mubr.f32.mxu0 %v6219
        %6397 = vmatmul.mubr.f32.gmra.mrb[0].mxu0 %v6120
        %v6398 = vpop.f32.mrb[0].mxu0
        %v6399 = vadd.f32 %v6189, %v6398
        %v6400 = vpop.f32.mrb[0].mxu0
        %6401 = vmatprep.mubr.f32.mxu0 %v6222
        %6402 = vmatmul.mubr.f32.gmra.mrb[0].mxu0 %v6122
        %v6403 = vpop.f32.mrb[0].mxu0
        %v6404 = vadd.f32 %v6189, %v6403
        %v6405 = vpop.f32.mrb[0].mxu0
        %6406 = vmatprep.mubr.f32.mxu0 %v6225
        %6407 = vmatmul.mubr.f32.gmra.mrb[0].mxu0 %v6124
        %v6408 = vpop.f32.mrb[0].mxu0
        %v6409 = vadd.f32 %v6189, %v6408
        %v6410 = vpop.f32.mrb[0].mxu0
        %6411 = vmatprep.mubr.f32.mxu0 %v6228
        %6412 = vmatmul.mubr.f32.gmra.mrb[0].mxu0 %v6126
        %v6413 = vpop.f32.mrb[0].mxu0
        %v6414 = vadd.f32 %v6189, %v6413
        %v6415 = vpop.f32.mrb[0].mxu0
        %6416 = vmatprep.mubr.f32.mxu0 %v6231
        %6417 = vmatmul.mubr.f32.gmra.mrb[0].mxu0 %v6128
        %v6418 = vpop.f32.mrb[0].mxu0
        %v6419 = vadd.f32 %v6189, %v6418
        %v6420 = vpop.f32.mrb[0].mxu0
        %6421 = vmatprep.mubr.f32.mxu0 %v6234
        %6422 = vmatmul.mubr.f32.gmra.mrb[0].mxu0 %v6130
        %v6423 = vpop.f32.mrb[0].mxu0
        %v6424 = vadd.f32 %v6189, %v6423
        %v6425 = vpop.f32.mrb[0].mxu0
        %6426 = vmatprep.mubr.f32.mxu0 %v6237
        %6427 = vmatmul.mubr.f32.gmra.mrb[0].mxu0 %v6132
        %v6428 = vpop.f32.mrb[0].mxu0
        %v6429 = vadd.f32 %v6189, %v6428
        %v6430 = vpop.f32.mrb[0].mxu0
        %6431 = vmatprep.mubr.f32.mxu0 %v6240
        %6432 = vmatmul.mubr.f32.gmra.mrb[0].mxu0 %v6134
        %v6433 = vpop.f32.mrb[0].mxu0
        %v6434 = vadd.f32 %v6189, %v6433
        %v6435 = vpop.f32.mrb[0].mxu0
        %6436 = vmatprep.mubr.f32.mxu0 %v6243
        %6437 = vmatmul.mubr.f32.gmra.mrb[0].mxu0 %v6136
        %v6438 = vpop.f32.mrb[0].mxu0
        %v6439 = vadd.f32 %v6189, %v6438
        %v6440 = vpop.f32.mrb[0].mxu0
        %6441 = vmatprep.mubr.f32.mxu0 %v6246
        %6442 = vmatmul.mubr.f32.gmra.mrb[0].mxu0 %v6138
        %v6443 = vpop.f32.mrb[0].mxu0
        %v6444 = vadd.f32 %v6189, %v6443
        %v6445 = vpop.f32.mrb[0].mxu0
        %6446 = vmatprep.mubr.f32.mxu0 %v6249
        %6447 = vmatmul.mubr.f32.gmra.mrb[0].mxu0 %v6140
        %v6448 = vpop.f32.mrb[0].mxu0
        %v6449 = vadd.f32 %v6189, %v6448
        %v6450 = vpop.f32.mrb[0].mxu0
        %6451 = vmatprep.mubr.f32.mxu0 %v6252
        %6452 = vmatmul.mubr.f32.gmra.mrb[0].mxu0 %v6142
        %v6453 = vpop.f32.mrb[0].mxu0
        %v6454 = vadd.f32 %v6189, %v6453
        %v6455 = vpop.f32.mrb[0].mxu0
        %6456 = vmatprep.mubr.f32.mxu0 %v6255
        %6457 = vmatmul.mubr.f32.gmra.mrb[0].mxu0 %v6144
        %v6458 = vpop.f32.mrb[0].mxu0
        %v6459 = vadd.f32 %v6189, %v6458
        %v6460 = vpop.f32.mrb[0].mxu0
        %6461 = vmatprep.mubr.f32.mxu0 %v6258
        %6462 = vmatmul.mubr.f32.gmra.mrb[0].mxu0 %v6146
        %v6463 = vpop.f32.mrb[0].mxu0
        %v6464 = vadd.f32 %v6189, %v6463
        %v6465 = vpop.f32.mrb[0].mxu0
        %6466 = vmatprep.mubr.f32.mxu0 %v6261
        %6467 = vmatmul.mubr.f32.gmra.mrb[0].mxu0 %v6148
        %v6468 = vpop.f32.mrb[0].mxu0
        %v6469 = vadd.f32 %v6189, %v6468
        %v6470 = vpop.f32.mrb[0].mxu0
        %6471 = vmatprep.mubr.f32.mxu0 %v6264
        %6472 = vmatmul.mubr.f32.gmra.mrb[0].mxu0 %v6150
        %v6473 = vpop.f32.mrb[0].mxu0
        %v6474 = vadd.f32 %v6189, %v6473
        %v6475 = vpop.f32.mrb[0].mxu0
        %6476 = vmatprep.mubr.f32.mxu0 %v6267
        %6477 = vmatmul.mubr.f32.gmra.mrb[0].mxu0 %v6152
        %v6478 = vpop.f32.mrb[0].mxu0
        %v6479 = vadd.f32 %v6189, %v6478
        %v6480 = vpop.f32.mrb[0].mxu0
        %6481 = vmatprep.mubr.f32.mxu0 %v6270
        %6482 = vmatmul.mubr.f32.gmra.mrb[0].mxu0 %v6154
        %v6483 = vpop.f32.mrb[0].mxu0
        %v6484 = vadd.f32 %v6189, %v6483
        %v6485 = vpop.f32.mrb[0].mxu0
        %6486 = vmatprep.mubr.f32.mxu0 %v6273
        %6487 = vmatmul.mubr.f32.gmra.mrb[0].mxu0 %v6156
        %v6488 = vpop.f32.mrb[0].mxu0
        %v6489 = vadd.f32 %v6189, %v6488
        %v6490 = vpop.f32.mrb[0].mxu0
        %6491 = vmatprep.mubr.f32.mxu0 %v6276
        %6492 = vmatmul.mubr.f32.gmra.mrb[0].mxu0 %v6158
        %v6493 = vpop.f32.mrb[0].mxu0
        %v6494 = vadd.f32 %v6189, %v6493
        %v6495 = vpop.f32.mrb[0].mxu0
        %6496 = vmatprep.mubr.f32.mxu0 %v6279
        %6497 = vmatmul.mubr.f32.gmra.mrb[0].mxu0 %v6160
        %v6498 = vpop.f32.mrb[0].mxu0
        %v6499 = vadd.f32 %v6189, %v6498
        %v6500 = vpop.f32.mrb[0].mxu0
        %6501 = vmatprep.mubr.f32.mxu0 %v6282
        %6502 = vmatmul.mubr.f32.gmra.mrb[0].mxu0 %v6162
        %v6503 = vpop.f32.mrb[0].mxu0
        %v6504 = vadd.f32 %v6189, %v6503
        %v6505 = vpop.f32.mrb[0].mxu0
        %6506 = vmatprep.mubr.f32.mxu0 %v6285
        %6507 = vmatmul.mubr.f32.gmra.mrb[0].mxu0 %v6164
        %v6508 = vpop.f32.mrb[0].mxu0
        %v6509 = vadd.f32 %v6189, %v6508
        %v6510 = vpop.f32.mrb[0].mxu0
        %6511 = vdwg.mxu0
        %v6512 = vmax.f32 %v6354, 0.0
        %v6513 = vmax.f32 %v6359, 0.0
        %v6514 = vmax.f32 %v6364, 0.0
        %v6515 = vmax.f32 %v6369, 0.0
        %v6516 = vmax.f32 %v6374, 0.0
        %v6517 = vmax.f32 %v6379, 0.0
        %v6518 = vmax.f32 %v6384, 0.0
        %v6519 = vmax.f32 %v6389, 0.0
        %v6520 = vmax.f32 %v6394, 0.0
        %v6521 = vmax.f32 %v6399, 0.0
        %v6522 = vmax.f32 %v6404, 0.0
        %v6523 = vmax.f32 %v6409, 0.0
        %v6524 = vmax.f32 %v6414, 0.0
        %v6525 = vmax.f32 %v6419, 0.0
        %v6526 = vmax.f32 %v6424, 0.0
        %v6527 = vmax.f32 %v6429, 0.0
        %v6528 = vmax.f32 %v6434, 0.0
        %v6529 = vmax.f32 %v6439, 0.0
        %v6530 = vmax.f32 %v6444, 0.0
        %v6531 = vmax.f32 %v6449, 0.0
        %v6532 = vmax.f32 %v6454, 0.0
        %v6533 = vmax.f32 %v6459, 0.0
        %v6534 = vmax.f32 %v6464, 0.0
        %v6535 = vmax.f32 %v6469, 0.0
        %v6536 = vmax.f32 %v6474, 0.0
        %v6537 = vmax.f32 %v6479, 0.0
        %v6538 = vmax.f32 %v6484, 0.0
        %v6539 = vmax.f32 %v6489, 0.0
        %v6540 = vmax.f32 %v6494, 0.0
        %v6541 = vmax.f32 %v6499, 0.0
        %v6542 = vmax.f32 %v6504, 0.0
        %v6543 = vmax.f32 %v6509, 0.0
        %6544 = vst.msk [vmem:[%s502 + $0x1] sm:$0xff] %vm424, %v6512
        %6545 = vst.msk [vmem:[%s502 + $0x9] sm:$0xff] %vm424, %v6513
        %6546 = vst.msk [vmem:[%s502 + $0x19] sm:$0xff] %vm424, %v6514
        %6547 = vst.msk [vmem:[%s502 + $0x21] sm:$0xff] %vm424, %v6515
        %6548 = vst.msk [vmem:[%s502 + $0x31] sm:$0xff] %vm424, %v6516
        %6549 = vst.msk [vmem:[%s502 + $0x39] sm:$0xff] %vm424, %v6517
        %6550 = vst.msk [vmem:[%s502 + $0x49] sm:$0xff] %vm424, %v6518
        %6551 = vst.msk [vmem:[%s502 + $0x51] sm:$0xff] %vm424, %v6519
        %6552 = vst.msk [vmem:[%s502 + $0x61] sm:$0xff] %vm424, %v6520
        %6553 = vst.msk [vmem:[%s502 + $0x69] sm:$0xff] %vm424, %v6521
        %6554 = vst.msk [vmem:[%s502 + $0x79] sm:$0xff] %vm424, %v6522
        %6555 = vst.msk [vmem:[%s502 + $0x81] sm:$0xff] %vm424, %v6523
        %6556 = vst.msk [vmem:[%s502 + $0x91] sm:$0xff] %vm424, %v6524
        %6557 = vst.msk [vmem:[%s502 + $0x99] sm:$0xff] %vm424, %v6525
        %6558 = vst.msk [vmem:[%s502 + $0xa9] sm:$0xff] %vm424, %v6526
        %6559 = vst.msk [vmem:[%s502 + $0xb1] sm:$0xff] %vm424, %v6527
        %6560 = vst.msk [vmem:[%s502 + $0xc1] sm:$0xff] %vm424, %v6528
        %6561 = vst.msk [vmem:[%s502 + $0xc9] sm:$0xff] %vm424, %v6529
        %6562 = vst.msk [vmem:[%s502 + $0xd9] sm:$0xff] %vm424, %v6530
        %6563 = vst.msk [vmem:[%s502 + $0xe1] sm:$0xff] %vm424, %v6531
        %6564 = vst.msk [vmem:[%s502 + $0xf1] sm:$0xff] %vm424, %v6532
        %6565 = vst.msk [vmem:[%s502 + $0xf9] sm:$0xff] %vm424, %v6533
        %6566 = vst.msk [vmem:[%s502 + $0x109] sm:$0xff] %vm424, %v6534
        %6567 = vst.msk [vmem:[%s502 + $0x111] sm:$0xff] %vm424, %v6535
        %6568 = vst.msk [vmem:[%s502 + $0x121] sm:$0xff] %vm424, %v6536
        %6569 = vst.msk [vmem:[%s502 + $0x129] sm:$0xff] %vm424, %v6537
        %6570 = vst.msk [vmem:[%s502 + $0x139] sm:$0xff] %vm424, %v6538
        %6571 = vst.msk [vmem:[%s502 + $0x141] sm:$0xff] %vm424, %v6539
        %6572 = vst.msk [vmem:[%s502 + $0x151] sm:$0xff] %vm424, %v6540
        %6573 = vst.msk [vmem:[%s502 + $0x159] sm:$0xff] %vm424, %v6541
        %6574 = vst.msk [vmem:[%s502 + $0x169] sm:$0xff] %vm424, %v6542
        %6575 = vst.msk [vmem:[%s502 + $0x171] sm:$0xff] %vm424, %v6543
        %v6576 = vld [vmem:[#allocation2] sm:$0xff]
        %v6577 = vld [vmem:[#allocation2 + $0x8] sm:$0xff]
        %v6578 = vld [vmem:[#allocation2 + $0x18] sm:$0xff]
        %v6579 = vld [vmem:[#allocation2 + $0x20] sm:$0xff]
        %v6580 = vld [vmem:[#allocation2 + $0x30] sm:$0xff]
        %v6581 = vld [vmem:[#allocation2 + $0x38] sm:$0xff]
        %v6582 = vld [vmem:[#allocation2 + $0x48] sm:$0xff]
        %v6583 = vld [vmem:[#allocation2 + $0x50] sm:$0xff]
        %v6584 = vld [vmem:[#allocation2 + $0x60] sm:$0xff]
        %v6585 = vld [vmem:[#allocation2 + $0x68] sm:$0xff]
        %v6586 = vld [vmem:[#allocation2 + $0x78] sm:$0xff]
        %v6587 = vld [vmem:[#allocation2 + $0x80] sm:$0xff]
        %v6588 = vld [vmem:[#allocation2 + $0x90] sm:$0xff]
        %v6589 = vld [vmem:[#allocation2 + $0x98] sm:$0xff]
        %v6590 = vld [vmem:[#allocation2 + $0xa8] sm:$0xff]
        %v6591 = vld [vmem:[#allocation2 + $0xb0] sm:$0xff]
        %v6592 = vld [vmem:[#allocation2 + $0xc0] sm:$0xff]
        %v6593 = vld [vmem:[#allocation2 + $0xc8] sm:$0xff]
        %v6594 = vld [vmem:[#allocation2 + $0xd8] sm:$0xff]
        %v6595 = vld [vmem:[#allocation2 + $0xe0] sm:$0xff]
        %v6596 = vld [vmem:[#allocation2 + $0xf0] sm:$0xff]
        %v6597 = vld [vmem:[#allocation2 + $0xf8] sm:$0xff]
        %v6598 = vld [vmem:[#allocation2 + $0x108] sm:$0xff]
        %v6599 = vld [vmem:[#allocation2 + $0x110] sm:$0xff]
        %v6600 = vld [vmem:[#allocation2 + $0x120] sm:$0xff]
        %v6601 = vld [vmem:[#allocation2 + $0x128] sm:$0xff]
        %v6602 = vld [vmem:[#allocation2 + $0x138] sm:$0xff]
        %v6603 = vld [vmem:[#allocation2 + $0x140] sm:$0xff]
        %v6604 = vld [vmem:[#allocation2 + $0x150] sm:$0xff]
        %v6605 = vld [vmem:[#allocation2 + $0x158] sm:$0xff]
        %v6606 = vld [vmem:[#allocation2 + $0x168] sm:$0xff]
        %v6607 = vld [vmem:[#allocation2 + $0x170] sm:$0xff]
        %6608 = vst.msk [vmem:[#allocation3] sm:$0xff] %vm424, %v6576
        %6609 = vst.msk [vmem:[#allocation3 + $0x18] sm:$0xff] %vm424, %v6577
        %6610 = vst.msk [vmem:[#allocation3 + $0x30] sm:$0xff] %vm424, %v6578
        %6611 = vst.msk [vmem:[#allocation3 + $0x48] sm:$0xff] %vm424, %v6579
        %6612 = vst.msk [vmem:[#allocation3 + $0x60] sm:$0xff] %vm424, %v6580
        %6613 = vst.msk [vmem:[#allocation3 + $0x78] sm:$0xff] %vm424, %v6581
        %6614 = vst.msk [vmem:[#allocation3 + $0x90] sm:$0xff] %vm424, %v6582
        %6615 = vst.msk [vmem:[#allocation3 + $0xa8] sm:$0xff] %vm424, %v6583
        %6616 = vst.msk [vmem:[#allocation3 + $0xc0] sm:$0xff] %vm424, %v6584
        %6617 = vst.msk [vmem:[#allocation3 + $0xd8] sm:$0xff] %vm424, %v6585
        %6618 = vst.msk [vmem:[#allocation3 + $0xf0] sm:$0xff] %vm424, %v6586
        %6619 = vst.msk [vmem:[#allocation3 + $0x108] sm:$0xff] %vm424, %v6587
        %6620 = vst.msk [vmem:[#allocation3 + $0x120] sm:$0xff] %vm424, %v6588
        %6621 = vst.msk [vmem:[#allocation3 + $0x138] sm:$0xff] %vm424, %v6589
        %6622 = vst.msk [vmem:[#allocation3 + $0x150] sm:$0xff] %vm424, %v6590
        %6623 = vst.msk [vmem:[#allocation3 + $0x168] sm:$0xff] %vm424, %v6591
        %6624 = vst.msk [vmem:[#allocation3 + $0x180] sm:$0xff] %vm424, %v6592
        %6625 = vst.msk [vmem:[#allocation3 + $0x198] sm:$0xff] %vm424, %v6593
        %6626 = vst.msk [vmem:[#allocation3 + $0x1b0] sm:$0xff] %vm424, %v6594
        %6627 = vst.msk [vmem:[#allocation3 + $0x1c8] sm:$0xff] %vm424, %v6595
        %6628 = vst.msk [vmem:[#allocation3 + $0x1e0] sm:$0xff] %vm424, %v6596
        %6629 = vst.msk [vmem:[#allocation3 + $0x1f8] sm:$0xff] %vm424, %v6597
        %6630 = vst.msk [vmem:[#allocation3 + $0x210] sm:$0xff] %vm424, %v6598
        %6631 = vst.msk [vmem:[#allocation3 + $0x228] sm:$0xff] %vm424, %v6599
        %6632 = vst.msk [vmem:[#allocation3 + $0x240] sm:$0xff] %vm424, %v6600
        %6633 = vst.msk [vmem:[#allocation3 + $0x258] sm:$0xff] %vm424, %v6601
        %6634 = vst.msk [vmem:[#allocation3 + $0x270] sm:$0xff] %vm424, %v6602
        %6635 = vst.msk [vmem:[#allocation3 + $0x288] sm:$0xff] %vm424, %v6603
        %6636 = vst.msk [vmem:[#allocation3 + $0x2a0] sm:$0xff] %vm424, %v6604
        %6637 = vst.msk [vmem:[#allocation3 + $0x2b8] sm:$0xff] %vm424, %v6605
        %6638 = vst.msk [vmem:[#allocation3 + $0x2d0] sm:$0xff] %vm424, %v6606
        %6639 = vst.msk [vmem:[#allocation3 + $0x2e8] sm:$0xff] %vm424, %v6607
        %v6640 = vld [vmem:[#allocation2 + $0x1] sm:$0xff]
        %v6641 = vld [vmem:[#allocation2 + $0x9] sm:$0xff]
        %v6642 = vld [vmem:[#allocation2 + $0x19] sm:$0xff]
        %v6643 = vld [vmem:[#allocation2 + $0x21] sm:$0xff]
        %v6644 = vld [vmem:[#allocation2 + $0x31] sm:$0xff]
        %v6645 = vld [vmem:[#allocation2 + $0x39] sm:$0xff]
        %v6646 = vld [vmem:[#allocation2 + $0x49] sm:$0xff]
        %v6647 = vld [vmem:[#allocation2 + $0x51] sm:$0xff]
        %v6648 = vld [vmem:[#allocation2 + $0x61] sm:$0xff]
        %v6649 = vld [vmem:[#allocation2 + $0x69] sm:$0xff]
        %v6650 = vld [vmem:[#allocation2 + $0x79] sm:$0xff]
        %v6651 = vld [vmem:[#allocation2 + $0x81] sm:$0xff]
        %v6652 = vld [vmem:[#allocation2 + $0x91] sm:$0xff]
        %v6653 = vld [vmem:[#allocation2 + $0x99] sm:$0xff]
        %v6654 = vld [vmem:[#allocation2 + $0xa9] sm:$0xff]
        %v6655 = vld [vmem:[#allocation2 + $0xb1] sm:$0xff]
        %v6656 = vld [vmem:[#allocation2 + $0xc1] sm:$0xff]
        %v6657 = vld [vmem:[#allocation2 + $0xc9] sm:$0xff]
        %v6658 = vld [vmem:[#allocation2 + $0xd9] sm:$0xff]
        %v6659 = vld [vmem:[#allocation2 + $0xe1] sm:$0xff]
        %v6660 = vld [vmem:[#allocation2 + $0xf1] sm:$0xff]
        %v6661 = vld [vmem:[#allocation2 + $0xf9] sm:$0xff]
        %v6662 = vld [vmem:[#allocation2 + $0x109] sm:$0xff]
        %v6663 = vld [vmem:[#allocation2 + $0x111] sm:$0xff]
        %v6664 = vld [vmem:[#allocation2 + $0x121] sm:$0xff]
        %v6665 = vld [vmem:[#allocation2 + $0x129] sm:$0xff]
        %v6666 = vld [vmem:[#allocation2 + $0x139] sm:$0xff]
        %v6667 = vld [vmem:[#allocation2 + $0x141] sm:$0xff]
        %v6668 = vld [vmem:[#allocation2 + $0x151] sm:$0xff]
        %v6669 = vld [vmem:[#allocation2 + $0x159] sm:$0xff]
        %v6670 = vld [vmem:[#allocation2 + $0x169] sm:$0xff]
        %v6671 = vld [vmem:[#allocation2 + $0x171] sm:$0xff]
        %6704 = vrot.lane.b32.xlu0 %v6640, 32
        %v6705 = vpop.permute.xlu0 %6704
        %6706 = vrot.lane.b32.xlu0 %v6641, 32
        %v6707 = vpop.permute.xlu0 %6706
        %6708 = vrot.lane.b32.xlu0 %v6642, 32
        %v6709 = vpop.permute.xlu0 %6708
        %6710 = vrot.lane.b32.xlu0 %v6643, 32
        %v6711 = vpop.permute.xlu0 %6710
        %6712 = vrot.lane.b32.xlu0 %v6644, 32
        %v6713 = vpop.permute.xlu0 %6712
        %6714 = vrot.lane.b32.xlu0 %v6645, 32
        %v6715 = vpop.permute.xlu0 %6714
        %6716 = vrot.lane.b32.xlu0 %v6646, 32
        %v6717 = vpop.permute.xlu0 %6716
        %6718 = vrot.lane.b32.xlu0 %v6647, 32
        %v6719 = vpop.permute.xlu0 %6718
        %6720 = vrot.lane.b32.xlu0 %v6648, 32
        %v6721 = vpop.permute.xlu0 %6720
        %6722 = vrot.lane.b32.xlu0 %v6649, 32
        %v6723 = vpop.permute.xlu0 %6722
        %6724 = vrot.lane.b32.xlu0 %v6650, 32
        %v6725 = vpop.permute.xlu0 %6724
        %6726 = vrot.lane.b32.xlu0 %v6651, 32
        %v6727 = vpop.permute.xlu0 %6726
        %6728 = vrot.lane.b32.xlu0 %v6652, 32
        %v6729 = vpop.permute.xlu0 %6728
        %6730 = vrot.lane.b32.xlu0 %v6653, 32
        %v6731 = vpop.permute.xlu0 %6730
        %6732 = vrot.lane.b32.xlu0 %v6654, 32
        %v6733 = vpop.permute.xlu0 %6732
        %6734 = vrot.lane.b32.xlu0 %v6655, 32
        %v6735 = vpop.permute.xlu0 %6734
        %6736 = vrot.lane.b32.xlu0 %v6656, 32
        %v6737 = vpop.permute.xlu0 %6736
        %6738 = vrot.lane.b32.xlu0 %v6657, 32
        %v6739 = vpop.permute.xlu0 %6738
        %6740 = vrot.lane.b32.xlu0 %v6658, 32
        %v6741 = vpop.permute.xlu0 %6740
        %6742 = vrot.lane.b32.xlu0 %v6659, 32
        %v6743 = vpop.permute.xlu0 %6742
        %6744 = vrot.lane.b32.xlu0 %v6660, 32
        %v6745 = vpop.permute.xlu0 %6744
        %6746 = vrot.lane.b32.xlu0 %v6661, 32
        %v6747 = vpop.permute.xlu0 %6746
        %6748 = vrot.lane.b32.xlu0 %v6662, 32
        %v6749 = vpop.permute.xlu0 %6748
        %6750 = vrot.lane.b32.xlu0 %v6663, 32
        %v6751 = vpop.permute.xlu0 %6750
        %6752 = vrot.lane.b32.xlu0 %v6664, 32
        %v6753 = vpop.permute.xlu0 %6752
        %6754 = vrot.lane.b32.xlu0 %v6665, 32
        %v6755 = vpop.permute.xlu0 %6754
        %6756 = vrot.lane.b32.xlu0 %v6666, 32
        %v6757 = vpop.permute.xlu0 %6756
        %6758 = vrot.lane.b32.xlu0 %v6667, 32
        %v6759 = vpop.permute.xlu0 %6758
        %6760 = vrot.lane.b32.xlu0 %v6668, 32
        %v6761 = vpop.permute.xlu0 %6760
        %6762 = vrot.lane.b32.xlu0 %v6669, 32
        %v6763 = vpop.permute.xlu0 %6762
        %6764 = vrot.lane.b32.xlu0 %v6670, 32
        %v6765 = vpop.permute.xlu0 %6764
        %6766 = vrot.lane.b32.xlu0 %v6671, 32
        %v6767 = vpop.permute.xlu0 %6766
        %vm6800 = vcmask 523520
        %6801 = vst.msk [vmem:[#allocation3] sm:$0xff] %vm6800, %v6705
        %6802 = vst.msk [vmem:[#allocation3 + $0x18] sm:$0xff] %vm6800, %v6707
        %6803 = vst.msk [vmem:[#allocation3 + $0x30] sm:$0xff] %vm6800, %v6709
        %6804 = vst.msk [vmem:[#allocation3 + $0x48] sm:$0xff] %vm6800, %v6711
        %6805 = vst.msk [vmem:[#allocation3 + $0x60] sm:$0xff] %vm6800, %v6713
        %6806 = vst.msk [vmem:[#allocation3 + $0x78] sm:$0xff] %vm6800, %v6715
        %6807 = vst.msk [vmem:[#allocation3 + $0x90] sm:$0xff] %vm6800, %v6717
        %6808 = vst.msk [vmem:[#allocation3 + $0xa8] sm:$0xff] %vm6800, %v6719
        %6809 = vst.msk [vmem:[#allocation3 + $0xc0] sm:$0xff] %vm6800, %v6721
        %6810 = vst.msk [vmem:[#allocation3 + $0xd8] sm:$0xff] %vm6800, %v6723
        %6811 = vst.msk [vmem:[#allocation3 + $0xf0] sm:$0xff] %vm6800, %v6725
        %6812 = vst.msk [vmem:[#allocation3 + $0x108] sm:$0xff] %vm6800, %v6727
        %6813 = vst.msk [vmem:[#allocation3 + $0x120] sm:$0xff] %vm6800, %v6729
        %6814 = vst.msk [vmem:[#allocation3 + $0x138] sm:$0xff] %vm6800, %v6731
        %6815 = vst.msk [vmem:[#allocation3 + $0x150] sm:$0xff] %vm6800, %v6733
        %6816 = vst.msk [vmem:[#allocation3 + $0x168] sm:$0xff] %vm6800, %v6735
        %6817 = vst.msk [vmem:[#allocation3 + $0x180] sm:$0xff] %vm6800, %v6737
        %6818 = vst.msk [vmem:[#allocation3 + $0x198] sm:$0xff] %vm6800, %v6739
        %6819 = vst.msk [vmem:[#allocation3 + $0x1b0] sm:$0xff] %vm6800, %v6741
        %6820 = vst.msk [vmem:[#allocation3 + $0x1c8] sm:$0xff] %vm6800, %v6743
        %6821 = vst.msk [vmem:[#allocation3 + $0x1e0] sm:$0xff] %vm6800, %v6745
        %6822 = vst.msk [vmem:[#allocation3 + $0x1f8] sm:$0xff] %vm6800, %v6747
        %6823 = vst.msk [vmem:[#allocation3 + $0x210] sm:$0xff] %vm6800, %v6749
        %6824 = vst.msk [vmem:[#allocation3 + $0x228] sm:$0xff] %vm6800, %v6751
        %6825 = vst.msk [vmem:[#allocation3 + $0x240] sm:$0xff] %vm6800, %v6753
        %6826 = vst.msk [vmem:[#allocation3 + $0x258] sm:$0xff] %vm6800, %v6755
        %6827 = vst.msk [vmem:[#allocation3 + $0x270] sm:$0xff] %vm6800, %v6757
        %6828 = vst.msk [vmem:[#allocation3 + $0x288] sm:$0xff] %vm6800, %v6759
        %6829 = vst.msk [vmem:[#allocation3 + $0x2a0] sm:$0xff] %vm6800, %v6761
        %6830 = vst.msk [vmem:[#allocation3 + $0x2b8] sm:$0xff] %vm6800, %v6763
        %6831 = vst.msk [vmem:[#allocation3 + $0x2d0] sm:$0xff] %vm6800, %v6765
        %6832 = vst.msk [vmem:[#allocation3 + $0x2e8] sm:$0xff] %vm6800, %v6767
        %v6833 = vld [vmem:[#allocation2 + $0x2] sm:$0xff]
        %v6834 = vld [vmem:[#allocation2 + $0xa] sm:$0xff]
        %v6835 = vld [vmem:[#allocation2 + $0x1a] sm:$0xff]
        %v6836 = vld [vmem:[#allocation2 + $0x22] sm:$0xff]
        %v6837 = vld [vmem:[#allocation2 + $0x32] sm:$0xff]
        %v6838 = vld [vmem:[#allocation2 + $0x3a] sm:$0xff]
        %v6839 = vld [vmem:[#allocation2 + $0x4a] sm:$0xff]
        %v6840 = vld [vmem:[#allocation2 + $0x52] sm:$0xff]
        %v6841 = vld [vmem:[#allocation2 + $0x62] sm:$0xff]
        %v6842 = vld [vmem:[#allocation2 + $0x6a] sm:$0xff]
        %v6843 = vld [vmem:[#allocation2 + $0x7a] sm:$0xff]
        %v6844 = vld [vmem:[#allocation2 + $0x82] sm:$0xff]
        %v6845 = vld [vmem:[#allocation2 + $0x92] sm:$0xff]
        %v6846 = vld [vmem:[#allocation2 + $0x9a] sm:$0xff]
        %v6847 = vld [vmem:[#allocation2 + $0xaa] sm:$0xff]
        %v6848 = vld [vmem:[#allocation2 + $0xb2] sm:$0xff]
        %v6849 = vld [vmem:[#allocation2 + $0xc2] sm:$0xff]
        %v6850 = vld [vmem:[#allocation2 + $0xca] sm:$0xff]
        %v6851 = vld [vmem:[#allocation2 + $0xda] sm:$0xff]
        %v6852 = vld [vmem:[#allocation2 + $0xe2] sm:$0xff]
        %v6853 = vld [vmem:[#allocation2 + $0xf2] sm:$0xff]
        %v6854 = vld [vmem:[#allocation2 + $0xfa] sm:$0xff]
        %v6855 = vld [vmem:[#allocation2 + $0x10a] sm:$0xff]
        %v6856 = vld [vmem:[#allocation2 + $0x112] sm:$0xff]
        %v6857 = vld [vmem:[#allocation2 + $0x122] sm:$0xff]
        %v6858 = vld [vmem:[#allocation2 + $0x12a] sm:$0xff]
        %v6859 = vld [vmem:[#allocation2 + $0x13a] sm:$0xff]
        %v6860 = vld [vmem:[#allocation2 + $0x142] sm:$0xff]
        %v6861 = vld [vmem:[#allocation2 + $0x152] sm:$0xff]
        %v6862 = vld [vmem:[#allocation2 + $0x15a] sm:$0xff]
        %v6863 = vld [vmem:[#allocation2 + $0x16a] sm:$0xff]
        %v6864 = vld [vmem:[#allocation2 + $0x172] sm:$0xff]
        %6897 = vrot.lane.b32.xlu0 %v6833, 64
        %v6898 = vpop.permute.xlu0 %6897
        %6899 = vrot.lane.b32.xlu0 %v6834, 64
        %v6900 = vpop.permute.xlu0 %6899
        %6901 = vrot.lane.b32.xlu0 %v6835, 64
        %v6902 = vpop.permute.xlu0 %6901
        %6903 = vrot.lane.b32.xlu0 %v6836, 64
        %v6904 = vpop.permute.xlu0 %6903
        %6905 = vrot.lane.b32.xlu0 %v6837, 64
        %v6906 = vpop.permute.xlu0 %6905
        %6907 = vrot.lane.b32.xlu0 %v6838, 64
        %v6908 = vpop.permute.xlu0 %6907
        %6909 = vrot.lane.b32.xlu0 %v6839, 64
        %v6910 = vpop.permute.xlu0 %6909
        %6911 = vrot.lane.b32.xlu0 %v6840, 64
        %v6912 = vpop.permute.xlu0 %6911
        %6913 = vrot.lane.b32.xlu0 %v6841, 64
        %v6914 = vpop.permute.xlu0 %6913
        %6915 = vrot.lane.b32.xlu0 %v6842, 64
        %v6916 = vpop.permute.xlu0 %6915
        %6917 = vrot.lane.b32.xlu0 %v6843, 64
        %v6918 = vpop.permute.xlu0 %6917
        %6919 = vrot.lane.b32.xlu0 %v6844, 64
        %v6920 = vpop.permute.xlu0 %6919
        %6921 = vrot.lane.b32.xlu0 %v6845, 64
        %v6922 = vpop.permute.xlu0 %6921
        %6923 = vrot.lane.b32.xlu0 %v6846, 64
        %v6924 = vpop.permute.xlu0 %6923
        %6925 = vrot.lane.b32.xlu0 %v6847, 64
        %v6926 = vpop.permute.xlu0 %6925
        %6927 = vrot.lane.b32.xlu0 %v6848, 64
        %v6928 = vpop.permute.xlu0 %6927
        %6929 = vrot.lane.b32.xlu0 %v6849, 64
        %v6930 = vpop.permute.xlu0 %6929
        %6931 = vrot.lane.b32.xlu0 %v6850, 64
        %v6932 = vpop.permute.xlu0 %6931
        %6933 = vrot.lane.b32.xlu0 %v6851, 64
        %v6934 = vpop.permute.xlu0 %6933
        %6935 = vrot.lane.b32.xlu0 %v6852, 64
        %v6936 = vpop.permute.xlu0 %6935
        %6937 = vrot.lane.b32.xlu0 %v6853, 64
        %v6938 = vpop.permute.xlu0 %6937
        %6939 = vrot.lane.b32.xlu0 %v6854, 64
        %v6940 = vpop.permute.xlu0 %6939
        %6941 = vrot.lane.b32.xlu0 %v6855, 64
        %v6942 = vpop.permute.xlu0 %6941
        %6943 = vrot.lane.b32.xlu0 %v6856, 64
        %v6944 = vpop.permute.xlu0 %6943
        %6945 = vrot.lane.b32.xlu0 %v6857, 64
        %v6946 = vpop.permute.xlu0 %6945
        %6947 = vrot.lane.b32.xlu0 %v6858, 64
        %v6948 = vpop.permute.xlu0 %6947
        %6949 = vrot.lane.b32.xlu0 %v6859, 64
        %v6950 = vpop.permute.xlu0 %6949
        %6951 = vrot.lane.b32.xlu0 %v6860, 64
        %v6952 = vpop.permute.xlu0 %6951
        %6953 = vrot.lane.b32.xlu0 %v6861, 64
        %v6954 = vpop.permute.xlu0 %6953
        %6955 = vrot.lane.b32.xlu0 %v6862, 64
        %v6956 = vpop.permute.xlu0 %6955
        %6957 = vrot.lane.b32.xlu0 %v6863, 64
        %v6958 = vpop.permute.xlu0 %6957
        %6959 = vrot.lane.b32.xlu0 %v6864, 64
        %v6960 = vpop.permute.xlu0 %6959
        %vm6993 = vcmask 785920
        %6994 = vst.msk [vmem:[#allocation3] sm:$0xff] %vm6993, %v6898
        %6995 = vst.msk [vmem:[#allocation3 + $0x18] sm:$0xff] %vm6993, %v6900
        %6996 = vst.msk [vmem:[#allocation3 + $0x30] sm:$0xff] %vm6993, %v6902
        %6997 = vst.msk [vmem:[#allocation3 + $0x48] sm:$0xff] %vm6993, %v6904
        %6998 = vst.msk [vmem:[#allocation3 + $0x60] sm:$0xff] %vm6993, %v6906
        %6999 = vst.msk [vmem:[#allocation3 + $0x78] sm:$0xff] %vm6993, %v6908
        %7000 = vst.msk [vmem:[#allocation3 + $0x90] sm:$0xff] %vm6993, %v6910
        %7001 = vst.msk [vmem:[#allocation3 + $0xa8] sm:$0xff] %vm6993, %v6912
        %7002 = vst.msk [vmem:[#allocation3 + $0xc0] sm:$0xff] %vm6993, %v6914
        %7003 = vst.msk [vmem:[#allocation3 + $0xd8] sm:$0xff] %vm6993, %v6916
        %7004 = vst.msk [vmem:[#allocation3 + $0xf0] sm:$0xff] %vm6993, %v6918
        %7005 = vst.msk [vmem:[#allocation3 + $0x108] sm:$0xff] %vm6993, %v6920
        %7006 = vst.msk [vmem:[#allocation3 + $0x120] sm:$0xff] %vm6993, %v6922
        %7007 = vst.msk [vmem:[#allocation3 + $0x138] sm:$0xff] %vm6993, %v6924
        %7008 = vst.msk [vmem:[#allocation3 + $0x150] sm:$0xff] %vm6993, %v6926
        %7009 = vst.msk [vmem:[#allocation3 + $0x168] sm:$0xff] %vm6993, %v6928
        %7010 = vst.msk [vmem:[#allocation3 + $0x180] sm:$0xff] %vm6993, %v6930
        %7011 = vst.msk [vmem:[#allocation3 + $0x198] sm:$0xff] %vm6993, %v6932
        %7012 = vst.msk [vmem:[#allocation3 + $0x1b0] sm:$0xff] %vm6993, %v6934
        %7013 = vst.msk [vmem:[#allocation3 + $0x1c8] sm:$0xff] %vm6993, %v6936
        %7014 = vst.msk [vmem:[#allocation3 + $0x1e0] sm:$0xff] %vm6993, %v6938
        %7015 = vst.msk [vmem:[#allocation3 + $0x1f8] sm:$0xff] %vm6993, %v6940
        %7016 = vst.msk [vmem:[#allocation3 + $0x210] sm:$0xff] %vm6993, %v6942
        %7017 = vst.msk [vmem:[#allocation3 + $0x228] sm:$0xff] %vm6993, %v6944
        %7018 = vst.msk [vmem:[#allocation3 + $0x240] sm:$0xff] %vm6993, %v6946
        %7019 = vst.msk [vmem:[#allocation3 + $0x258] sm:$0xff] %vm6993, %v6948
        %7020 = vst.msk [vmem:[#allocation3 + $0x270] sm:$0xff] %vm6993, %v6950
        %7021 = vst.msk [vmem:[#allocation3 + $0x288] sm:$0xff] %vm6993, %v6952
        %7022 = vst.msk [vmem:[#allocation3 + $0x2a0] sm:$0xff] %vm6993, %v6954
        %7023 = vst.msk [vmem:[#allocation3 + $0x2b8] sm:$0xff] %vm6993, %v6956
        %7024 = vst.msk [vmem:[#allocation3 + $0x2d0] sm:$0xff] %vm6993, %v6958
        %7025 = vst.msk [vmem:[#allocation3 + $0x2e8] sm:$0xff] %vm6993, %v6960
        %v7026 = vld [vmem:[%s502] sm:$0xff]
        %v7027 = vld [vmem:[%s502 + $0x8] sm:$0xff]
        %v7028 = vld [vmem:[%s502 + $0x18] sm:$0xff]
        %v7029 = vld [vmem:[%s502 + $0x20] sm:$0xff]
        %v7030 = vld [vmem:[%s502 + $0x30] sm:$0xff]
        %v7031 = vld [vmem:[%s502 + $0x38] sm:$0xff]
        %v7032 = vld [vmem:[%s502 + $0x48] sm:$0xff]
        %v7033 = vld [vmem:[%s502 + $0x50] sm:$0xff]
        %v7034 = vld [vmem:[%s502 + $0x60] sm:$0xff]
        %v7035 = vld [vmem:[%s502 + $0x68] sm:$0xff]
        %v7036 = vld [vmem:[%s502 + $0x78] sm:$0xff]
        %v7037 = vld [vmem:[%s502 + $0x80] sm:$0xff]
        %v7038 = vld [vmem:[%s502 + $0x90] sm:$0xff]
        %v7039 = vld [vmem:[%s502 + $0x98] sm:$0xff]
        %v7040 = vld [vmem:[%s502 + $0xa8] sm:$0xff]
        %v7041 = vld [vmem:[%s502 + $0xb0] sm:$0xff]
        %v7042 = vld [vmem:[%s502 + $0xc0] sm:$0xff]
        %v7043 = vld [vmem:[%s502 + $0xc8] sm:$0xff]
        %v7044 = vld [vmem:[%s502 + $0xd8] sm:$0xff]
        %v7045 = vld [vmem:[%s502 + $0xe0] sm:$0xff]
        %v7046 = vld [vmem:[%s502 + $0xf0] sm:$0xff]
        %v7047 = vld [vmem:[%s502 + $0xf8] sm:$0xff]
        %v7048 = vld [vmem:[%s502 + $0x108] sm:$0xff]
        %v7049 = vld [vmem:[%s502 + $0x110] sm:$0xff]
        %v7050 = vld [vmem:[%s502 + $0x120] sm:$0xff]
        %v7051 = vld [vmem:[%s502 + $0x128] sm:$0xff]
        %v7052 = vld [vmem:[%s502 + $0x138] sm:$0xff]
        %v7053 = vld [vmem:[%s502 + $0x140] sm:$0xff]
        %v7054 = vld [vmem:[%s502 + $0x150] sm:$0xff]
        %v7055 = vld [vmem:[%s502 + $0x158] sm:$0xff]
        %v7056 = vld [vmem:[%s502 + $0x168] sm:$0xff]
        %v7057 = vld [vmem:[%s502 + $0x170] sm:$0xff]
        %7090 = vrot.lane.b32.xlu0 %v7026, 96
        %v7091 = vpop.permute.xlu0 %7090
        %7092 = vrot.lane.b32.xlu0 %v7027, 96
        %v7093 = vpop.permute.xlu0 %7092
        %7094 = vrot.lane.b32.xlu0 %v7028, 96
        %v7095 = vpop.permute.xlu0 %7094
        %7096 = vrot.lane.b32.xlu0 %v7029, 96
        %v7097 = vpop.permute.xlu0 %7096
        %7098 = vrot.lane.b32.xlu0 %v7030, 96
        %v7099 = vpop.permute.xlu0 %7098
        %7100 = vrot.lane.b32.xlu0 %v7031, 96
        %v7101 = vpop.permute.xlu0 %7100
        %7102 = vrot.lane.b32.xlu0 %v7032, 96
        %v7103 = vpop.permute.xlu0 %7102
        %7104 = vrot.lane.b32.xlu0 %v7033, 96
        %v7105 = vpop.permute.xlu0 %7104
        %7106 = vrot.lane.b32.xlu0 %v7034, 96
        %v7107 = vpop.permute.xlu0 %7106
        %7108 = vrot.lane.b32.xlu0 %v7035, 96
        %v7109 = vpop.permute.xlu0 %7108
        %7110 = vrot.lane.b32.xlu0 %v7036, 96
        %v7111 = vpop.permute.xlu0 %7110
        %7112 = vrot.lane.b32.xlu0 %v7037, 96
        %v7113 = vpop.permute.xlu0 %7112
        %7114 = vrot.lane.b32.xlu0 %v7038, 96
        %v7115 = vpop.permute.xlu0 %7114
        %7116 = vrot.lane.b32.xlu0 %v7039, 96
        %v7117 = vpop.permute.xlu0 %7116
        %7118 = vrot.lane.b32.xlu0 %v7040, 96
        %v7119 = vpop.permute.xlu0 %7118
        %7120 = vrot.lane.b32.xlu0 %v7041, 96
        %v7121 = vpop.permute.xlu0 %7120
        %7122 = vrot.lane.b32.xlu0 %v7042, 96
        %v7123 = vpop.permute.xlu0 %7122
        %7124 = vrot.lane.b32.xlu0 %v7043, 96
        %v7125 = vpop.permute.xlu0 %7124
        %7126 = vrot.lane.b32.xlu0 %v7044, 96
        %v7127 = vpop.permute.xlu0 %7126
        %7128 = vrot.lane.b32.xlu0 %v7045, 96
        %v7129 = vpop.permute.xlu0 %7128
        %7130 = vrot.lane.b32.xlu0 %v7046, 96
        %v7131 = vpop.permute.xlu0 %7130
        %7132 = vrot.lane.b32.xlu0 %v7047, 96
        %v7133 = vpop.permute.xlu0 %7132
        %7134 = vrot.lane.b32.xlu0 %v7048, 96
        %v7135 = vpop.permute.xlu0 %7134
        %7136 = vrot.lane.b32.xlu0 %v7049, 96
        %v7137 = vpop.permute.xlu0 %7136
        %7138 = vrot.lane.b32.xlu0 %v7050, 96
        %v7139 = vpop.permute.xlu0 %7138
        %7140 = vrot.lane.b32.xlu0 %v7051, 96
        %v7141 = vpop.permute.xlu0 %7140
        %7142 = vrot.lane.b32.xlu0 %v7052, 96
        %v7143 = vpop.permute.xlu0 %7142
        %7144 = vrot.lane.b32.xlu0 %v7053, 96
        %v7145 = vpop.permute.xlu0 %7144
        %7146 = vrot.lane.b32.xlu0 %v7054, 96
        %v7147 = vpop.permute.xlu0 %7146
        %7148 = vrot.lane.b32.xlu0 %v7055, 96
        %v7149 = vpop.permute.xlu0 %7148
        %7150 = vrot.lane.b32.xlu0 %v7056, 96
        %v7151 = vpop.permute.xlu0 %7150
        %7152 = vrot.lane.b32.xlu0 %v7057, 96
        %v7153 = vpop.permute.xlu0 %7152
        %vm7186 = vcmask 1048320
        %7187 = vst.msk [vmem:[#allocation3] sm:$0xff] %vm7186, %v7091
        %7188 = vst.msk [vmem:[#allocation3 + $0x18] sm:$0xff] %vm7186, %v7093
        %7189 = vst.msk [vmem:[#allocation3 + $0x30] sm:$0xff] %vm7186, %v7095
        %7190 = vst.msk [vmem:[#allocation3 + $0x48] sm:$0xff] %vm7186, %v7097
        %7191 = vst.msk [vmem:[#allocation3 + $0x60] sm:$0xff] %vm7186, %v7099
        %7192 = vst.msk [vmem:[#allocation3 + $0x78] sm:$0xff] %vm7186, %v7101
        %7193 = vst.msk [vmem:[#allocation3 + $0x90] sm:$0xff] %vm7186, %v7103
        %7194 = vst.msk [vmem:[#allocation3 + $0xa8] sm:$0xff] %vm7186, %v7105
        %7195 = vst.msk [vmem:[#allocation3 + $0xc0] sm:$0xff] %vm7186, %v7107
        %7196 = vst.msk [vmem:[#allocation3 + $0xd8] sm:$0xff] %vm7186, %v7109
        %7197 = vst.msk [vmem:[#allocation3 + $0xf0] sm:$0xff] %vm7186, %v7111
        %7198 = vst.msk [vmem:[#allocation3 + $0x108] sm:$0xff] %vm7186, %v7113
        %7199 = vst.msk [vmem:[#allocation3 + $0x120] sm:$0xff] %vm7186, %v7115
        %7200 = vst.msk [vmem:[#allocation3 + $0x138] sm:$0xff] %vm7186, %v7117
        %7201 = vst.msk [vmem:[#allocation3 + $0x150] sm:$0xff] %vm7186, %v7119
        %7202 = vst.msk [vmem:[#allocation3 + $0x168] sm:$0xff] %vm7186, %v7121
        %7203 = vst.msk [vmem:[#allocation3 + $0x180] sm:$0xff] %vm7186, %v7123
        %7204 = vst.msk [vmem:[#allocation3 + $0x198] sm:$0xff] %vm7186, %v7125
        %7205 = vst.msk [vmem:[#allocation3 + $0x1b0] sm:$0xff] %vm7186, %v7127
        %7206 = vst.msk [vmem:[#allocation3 + $0x1c8] sm:$0xff] %vm7186, %v7129
        %7207 = vst.msk [vmem:[#allocation3 + $0x1e0] sm:$0xff] %vm7186, %v7131
        %7208 = vst.msk [vmem:[#allocation3 + $0x1f8] sm:$0xff] %vm7186, %v7133
        %7209 = vst.msk [vmem:[#allocation3 + $0x210] sm:$0xff] %vm7186, %v7135
        %7210 = vst.msk [vmem:[#allocation3 + $0x228] sm:$0xff] %vm7186, %v7137
        %7211 = vst.msk [vmem:[#allocation3 + $0x240] sm:$0xff] %vm7186, %v7139
        %7212 = vst.msk [vmem:[#allocation3 + $0x258] sm:$0xff] %vm7186, %v7141
        %7213 = vst.msk [vmem:[#allocation3 + $0x270] sm:$0xff] %vm7186, %v7143
        %7214 = vst.msk [vmem:[#allocation3 + $0x288] sm:$0xff] %vm7186, %v7145
        %7215 = vst.msk [vmem:[#allocation3 + $0x2a0] sm:$0xff] %vm7186, %v7147
        %7216 = vst.msk [vmem:[#allocation3 + $0x2b8] sm:$0xff] %vm7186, %v7149
        %7217 = vst.msk [vmem:[#allocation3 + $0x2d0] sm:$0xff] %vm7186, %v7151
        %7218 = vst.msk [vmem:[#allocation3 + $0x2e8] sm:$0xff] %vm7186, %v7153
        %v7219 = vld [vmem:[%s502 + $0x1] sm:$0xff]
        %v7220 = vld [vmem:[%s502 + $0x9] sm:$0xff]
        %v7221 = vld [vmem:[%s502 + $0x19] sm:$0xff]
        %v7222 = vld [vmem:[%s502 + $0x21] sm:$0xff]
        %v7223 = vld [vmem:[%s502 + $0x31] sm:$0xff]
        %v7224 = vld [vmem:[%s502 + $0x39] sm:$0xff]
        %v7225 = vld [vmem:[%s502 + $0x49] sm:$0xff]
        %v7226 = vld [vmem:[%s502 + $0x51] sm:$0xff]
        %v7227 = vld [vmem:[%s502 + $0x61] sm:$0xff]
        %v7228 = vld [vmem:[%s502 + $0x69] sm:$0xff]
        %v7229 = vld [vmem:[%s502 + $0x79] sm:$0xff]
        %v7230 = vld [vmem:[%s502 + $0x81] sm:$0xff]
        %v7231 = vld [vmem:[%s502 + $0x91] sm:$0xff]
        %v7232 = vld [vmem:[%s502 + $0x99] sm:$0xff]
        %v7233 = vld [vmem:[%s502 + $0xa9] sm:$0xff]
        %v7234 = vld [vmem:[%s502 + $0xb1] sm:$0xff]
        %v7235 = vld [vmem:[%s502 + $0xc1] sm:$0xff]
        %v7236 = vld [vmem:[%s502 + $0xc9] sm:$0xff]
        %v7237 = vld [vmem:[%s502 + $0xd9] sm:$0xff]
        %v7238 = vld [vmem:[%s502 + $0xe1] sm:$0xff]
        %v7239 = vld [vmem:[%s502 + $0xf1] sm:$0xff]
        %v7240 = vld [vmem:[%s502 + $0xf9] sm:$0xff]
        %v7241 = vld [vmem:[%s502 + $0x109] sm:$0xff]
        %v7242 = vld [vmem:[%s502 + $0x111] sm:$0xff]
        %v7243 = vld [vmem:[%s502 + $0x121] sm:$0xff]
        %v7244 = vld [vmem:[%s502 + $0x129] sm:$0xff]
        %v7245 = vld [vmem:[%s502 + $0x139] sm:$0xff]
        %v7246 = vld [vmem:[%s502 + $0x141] sm:$0xff]
        %v7247 = vld [vmem:[%s502 + $0x151] sm:$0xff]
        %v7248 = vld [vmem:[%s502 + $0x159] sm:$0xff]
        %v7249 = vld [vmem:[%s502 + $0x169] sm:$0xff]
        %v7250 = vld [vmem:[%s502 + $0x171] sm:$0xff]
        %7251 = vst.msk [vmem:[#allocation3 + $0x8] sm:$0xff] %vm424, %v7219
        %7252 = vst.msk [vmem:[#allocation3 + $0x20] sm:$0xff] %vm424, %v7220
        %7253 = vst.msk [vmem:[#allocation3 + $0x38] sm:$0xff] %vm424, %v7221
        %7254 = vst.msk [vmem:[#allocation3 + $0x50] sm:$0xff] %vm424, %v7222
        %7255 = vst.msk [vmem:[#allocation3 + $0x68] sm:$0xff] %vm424, %v7223
        %7256 = vst.msk [vmem:[#allocation3 + $0x80] sm:$0xff] %vm424, %v7224
        %7257 = vst.msk [vmem:[#allocation3 + $0x98] sm:$0xff] %vm424, %v7225
        %7258 = vst.msk [vmem:[#allocation3 + $0xb0] sm:$0xff] %vm424, %v7226
        %7259 = vst.msk [vmem:[#allocation3 + $0xc8] sm:$0xff] %vm424, %v7227
        %7260 = vst.msk [vmem:[#allocation3 + $0xe0] sm:$0xff] %vm424, %v7228
        %7261 = vst.msk [vmem:[#allocation3 + $0xf8] sm:$0xff] %vm424, %v7229
        %7262 = vst.msk [vmem:[#allocation3 + $0x110] sm:$0xff] %vm424, %v7230
        %7263 = vst.msk [vmem:[#allocation3 + $0x128] sm:$0xff] %vm424, %v7231
        %7264 = vst.msk [vmem:[#allocation3 + $0x140] sm:$0xff] %vm424, %v7232
        %7265 = vst.msk [vmem:[#allocation3 + $0x158] sm:$0xff] %vm424, %v7233
        %7266 = vst.msk [vmem:[#allocation3 + $0x170] sm:$0xff] %vm424, %v7234
        %7267 = vst.msk [vmem:[#allocation3 + $0x188] sm:$0xff] %vm424, %v7235
        %7268 = vst.msk [vmem:[#allocation3 + $0x1a0] sm:$0xff] %vm424, %v7236
        %7269 = vst.msk [vmem:[#allocation3 + $0x1b8] sm:$0xff] %vm424, %v7237
        %7270 = vst.msk [vmem:[#allocation3 + $0x1d0] sm:$0xff] %vm424, %v7238
        %7271 = vst.msk [vmem:[#allocation3 + $0x1e8] sm:$0xff] %vm424, %v7239
        %7272 = vst.msk [vmem:[#allocation3 + $0x200] sm:$0xff] %vm424, %v7240
        %7273 = vst.msk [vmem:[#allocation3 + $0x218] sm:$0xff] %vm424, %v7241
        %7274 = vst.msk [vmem:[#allocation3 + $0x230] sm:$0xff] %vm424, %v7242
        %7275 = vst.msk [vmem:[#allocation3 + $0x248] sm:$0xff] %vm424, %v7243
        %7276 = vst.msk [vmem:[#allocation3 + $0x260] sm:$0xff] %vm424, %v7244
        %7277 = vst.msk [vmem:[#allocation3 + $0x278] sm:$0xff] %vm424, %v7245
        %7278 = vst.msk [vmem:[#allocation3 + $0x290] sm:$0xff] %vm424, %v7246
        %7279 = vst.msk [vmem:[#allocation3 + $0x2a8] sm:$0xff] %vm424, %v7247
        %7280 = vst.msk [vmem:[#allocation3 + $0x2c0] sm:$0xff] %vm424, %v7248
        %7281 = vst.msk [vmem:[#allocation3 + $0x2d8] sm:$0xff] %vm424, %v7249
        %7282 = vst.msk [vmem:[#allocation3 + $0x2f0] sm:$0xff] %vm424, %v7250
        %v7283 = vld [vmem:[%s502 + $0x2] sm:$0xff]
        %v7284 = vld [vmem:[%s502 + $0xa] sm:$0xff]
        %v7285 = vld [vmem:[%s502 + $0x1a] sm:$0xff]
        %v7286 = vld [vmem:[%s502 + $0x22] sm:$0xff]
        %v7287 = vld [vmem:[%s502 + $0x32] sm:$0xff]
        %v7288 = vld [vmem:[%s502 + $0x3a] sm:$0xff]
        %v7289 = vld [vmem:[%s502 + $0x4a] sm:$0xff]
        %v7290 = vld [vmem:[%s502 + $0x52] sm:$0xff]
        %v7291 = vld [vmem:[%s502 + $0x62] sm:$0xff]
        %v7292 = vld [vmem:[%s502 + $0x6a] sm:$0xff]
        %v7293 = vld [vmem:[%s502 + $0x7a] sm:$0xff]
        %v7294 = vld [vmem:[%s502 + $0x82] sm:$0xff]
        %v7295 = vld [vmem:[%s502 + $0x92] sm:$0xff]
        %v7296 = vld [vmem:[%s502 + $0x9a] sm:$0xff]
        %v7297 = vld [vmem:[%s502 + $0xaa] sm:$0xff]
        %v7298 = vld [vmem:[%s502 + $0xb2] sm:$0xff]
        %v7299 = vld [vmem:[%s502 + $0xc2] sm:$0xff]
        %v7300 = vld [vmem:[%s502 + $0xca] sm:$0xff]
        %v7301 = vld [vmem:[%s502 + $0xda] sm:$0xff]
        %v7302 = vld [vmem:[%s502 + $0xe2] sm:$0xff]
        %v7303 = vld [vmem:[%s502 + $0xf2] sm:$0xff]
        %v7304 = vld [vmem:[%s502 + $0xfa] sm:$0xff]
        %v7305 = vld [vmem:[%s502 + $0x10a] sm:$0xff]
        %v7306 = vld [vmem:[%s502 + $0x112] sm:$0xff]
        %v7307 = vld [vmem:[%s502 + $0x122] sm:$0xff]
        %v7308 = vld [vmem:[%s502 + $0x12a] sm:$0xff]
        %v7309 = vld [vmem:[%s502 + $0x13a] sm:$0xff]
        %v7310 = vld [vmem:[%s502 + $0x142] sm:$0xff]
        %v7311 = vld [vmem:[%s502 + $0x152] sm:$0xff]
        %v7312 = vld [vmem:[%s502 + $0x15a] sm:$0xff]
        %v7313 = vld [vmem:[%s502 + $0x16a] sm:$0xff]
        %v7314 = vld [vmem:[%s502 + $0x172] sm:$0xff]
        %7347 = vrot.lane.b32.xlu0 %v7283, 32
        %v7348 = vpop.permute.xlu0 %7347
        %7349 = vrot.lane.b32.xlu0 %v7284, 32
        %v7350 = vpop.permute.xlu0 %7349
        %7351 = vrot.lane.b32.xlu0 %v7285, 32
        %v7352 = vpop.permute.xlu0 %7351
        %7353 = vrot.lane.b32.xlu0 %v7286, 32
        %v7354 = vpop.permute.xlu0 %7353
        %7355 = vrot.lane.b32.xlu0 %v7287, 32
        %v7356 = vpop.permute.xlu0 %7355
        %7357 = vrot.lane.b32.xlu0 %v7288, 32
        %v7358 = vpop.permute.xlu0 %7357
        %7359 = vrot.lane.b32.xlu0 %v7289, 32
        %v7360 = vpop.permute.xlu0 %7359
        %7361 = vrot.lane.b32.xlu0 %v7290, 32
        %v7362 = vpop.permute.xlu0 %7361
        %7363 = vrot.lane.b32.xlu0 %v7291, 32
        %v7364 = vpop.permute.xlu0 %7363
        %7365 = vrot.lane.b32.xlu0 %v7292, 32
        %v7366 = vpop.permute.xlu0 %7365
        %7367 = vrot.lane.b32.xlu0 %v7293, 32
        %v7368 = vpop.permute.xlu0 %7367
        %7369 = vrot.lane.b32.xlu0 %v7294, 32
        %v7370 = vpop.permute.xlu0 %7369
        %7371 = vrot.lane.b32.xlu0 %v7295, 32
        %v7372 = vpop.permute.xlu0 %7371
        %7373 = vrot.lane.b32.xlu0 %v7296, 32
        %v7374 = vpop.permute.xlu0 %7373
        %7375 = vrot.lane.b32.xlu0 %v7297, 32
        %v7376 = vpop.permute.xlu0 %7375
        %7377 = vrot.lane.b32.xlu0 %v7298, 32
        %v7378 = vpop.permute.xlu0 %7377
        %7379 = vrot.lane.b32.xlu0 %v7299, 32
        %v7380 = vpop.permute.xlu0 %7379
        %7381 = vrot.lane.b32.xlu0 %v7300, 32
        %v7382 = vpop.permute.xlu0 %7381
        %7383 = vrot.lane.b32.xlu0 %v7301, 32
        %v7384 = vpop.permute.xlu0 %7383
        %7385 = vrot.lane.b32.xlu0 %v7302, 32
        %v7386 = vpop.permute.xlu0 %7385
        %7387 = vrot.lane.b32.xlu0 %v7303, 32
        %v7388 = vpop.permute.xlu0 %7387
        %7389 = vrot.lane.b32.xlu0 %v7304, 32
        %v7390 = vpop.permute.xlu0 %7389
        %7391 = vrot.lane.b32.xlu0 %v7305, 32
        %v7392 = vpop.permute.xlu0 %7391
        %7393 = vrot.lane.b32.xlu0 %v7306, 32
        %v7394 = vpop.permute.xlu0 %7393
        %7395 = vrot.lane.b32.xlu0 %v7307, 32
        %v7396 = vpop.permute.xlu0 %7395
        %7397 = vrot.lane.b32.xlu0 %v7308, 32
        %v7398 = vpop.permute.xlu0 %7397
        %7399 = vrot.lane.b32.xlu0 %v7309, 32
        %v7400 = vpop.permute.xlu0 %7399
        %7401 = vrot.lane.b32.xlu0 %v7310, 32
        %v7402 = vpop.permute.xlu0 %7401
        %7403 = vrot.lane.b32.xlu0 %v7311, 32
        %v7404 = vpop.permute.xlu0 %7403
        %7405 = vrot.lane.b32.xlu0 %v7312, 32
        %v7406 = vpop.permute.xlu0 %7405
        %7407 = vrot.lane.b32.xlu0 %v7313, 32
        %v7408 = vpop.permute.xlu0 %7407
        %7409 = vrot.lane.b32.xlu0 %v7314, 32
        %v7410 = vpop.permute.xlu0 %7409
        %7443 = vst.msk [vmem:[#allocation3 + $0x8] sm:$0xff] %vm6800, %v7348
        %7444 = vst.msk [vmem:[#allocation3 + $0x20] sm:$0xff] %vm6800, %v7350
        %7445 = vst.msk [vmem:[#allocation3 + $0x38] sm:$0xff] %vm6800, %v7352
        %7446 = vst.msk [vmem:[#allocation3 + $0x50] sm:$0xff] %vm6800, %v7354
        %7447 = vst.msk [vmem:[#allocation3 + $0x68] sm:$0xff] %vm6800, %v7356
        %7448 = vst.msk [vmem:[#allocation3 + $0x80] sm:$0xff] %vm6800, %v7358
        %7449 = vst.msk [vmem:[#allocation3 + $0x98] sm:$0xff] %vm6800, %v7360
        %7450 = vst.msk [vmem:[#allocation3 + $0xb0] sm:$0xff] %vm6800, %v7362
        %7451 = vst.msk [vmem:[#allocation3 + $0xc8] sm:$0xff] %vm6800, %v7364
        %7452 = vst.msk [vmem:[#allocation3 + $0xe0] sm:$0xff] %vm6800, %v7366
        %7453 = vst.msk [vmem:[#allocation3 + $0xf8] sm:$0xff] %vm6800, %v7368
        %7454 = vst.msk [vmem:[#allocation3 + $0x110] sm:$0xff] %vm6800, %v7370
        %7455 = vst.msk [vmem:[#allocation3 + $0x128] sm:$0xff] %vm6800, %v7372
        %7456 = vst.msk [vmem:[#allocation3 + $0x140] sm:$0xff] %vm6800, %v7374
        %7457 = vst.msk [vmem:[#allocation3 + $0x158] sm:$0xff] %vm6800, %v7376
        %7458 = vst.msk [vmem:[#allocation3 + $0x170] sm:$0xff] %vm6800, %v7378
        %7459 = vst.msk [vmem:[#allocation3 + $0x188] sm:$0xff] %vm6800, %v7380
        %7460 = vst.msk [vmem:[#allocation3 + $0x1a0] sm:$0xff] %vm6800, %v7382
        %7461 = vst.msk [vmem:[#allocation3 + $0x1b8] sm:$0xff] %vm6800, %v7384
        %7462 = vst.msk [vmem:[#allocation3 + $0x1d0] sm:$0xff] %vm6800, %v7386
        %7463 = vst.msk [vmem:[#allocation3 + $0x1e8] sm:$0xff] %vm6800, %v7388
        %7464 = vst.msk [vmem:[#allocation3 + $0x200] sm:$0xff] %vm6800, %v7390
        %7465 = vst.msk [vmem:[#allocation3 + $0x218] sm:$0xff] %vm6800, %v7392
        %7466 = vst.msk [vmem:[#allocation3 + $0x230] sm:$0xff] %vm6800, %v7394
        %7467 = vst.msk [vmem:[#allocation3 + $0x248] sm:$0xff] %vm6800, %v7396
        %7468 = vst.msk [vmem:[#allocation3 + $0x260] sm:$0xff] %vm6800, %v7398
        %7469 = vst.msk [vmem:[#allocation3 + $0x278] sm:$0xff] %vm6800, %v7400
        %7470 = vst.msk [vmem:[#allocation3 + $0x290] sm:$0xff] %vm6800, %v7402
        %7471 = vst.msk [vmem:[#allocation3 + $0x2a8] sm:$0xff] %vm6800, %v7404
        %7472 = vst.msk [vmem:[#allocation3 + $0x2c0] sm:$0xff] %vm6800, %v7406
        %7473 = vst.msk [vmem:[#allocation3 + $0x2d8] sm:$0xff] %vm6800, %v7408
        %7474 = vst.msk [vmem:[#allocation3 + $0x2f0] sm:$0xff] %vm6800, %v7410
        %v7475 = vld [vmem:[%s1565] sm:$0xff]
        %v7476 = vld [vmem:[%s1565 + $0x8] sm:$0xff]
        %v7477 = vld [vmem:[%s1565 + $0x18] sm:$0xff]
        %v7478 = vld [vmem:[%s1565 + $0x20] sm:$0xff]
        %v7479 = vld [vmem:[%s1565 + $0x30] sm:$0xff]
        %v7480 = vld [vmem:[%s1565 + $0x38] sm:$0xff]
        %v7481 = vld [vmem:[%s1565 + $0x48] sm:$0xff]
        %v7482 = vld [vmem:[%s1565 + $0x50] sm:$0xff]
        %v7483 = vld [vmem:[%s1565 + $0x60] sm:$0xff]
        %v7484 = vld [vmem:[%s1565 + $0x68] sm:$0xff]
        %v7485 = vld [vmem:[%s1565 + $0x78] sm:$0xff]
        %v7486 = vld [vmem:[%s1565 + $0x80] sm:$0xff]
        %v7487 = vld [vmem:[%s1565 + $0x90] sm:$0xff]
        %v7488 = vld [vmem:[%s1565 + $0x98] sm:$0xff]
        %v7489 = vld [vmem:[%s1565 + $0xa8] sm:$0xff]
        %v7490 = vld [vmem:[%s1565 + $0xb0] sm:$0xff]
        %v7491 = vld [vmem:[%s1565 + $0xc0] sm:$0xff]
        %v7492 = vld [vmem:[%s1565 + $0xc8] sm:$0xff]
        %v7493 = vld [vmem:[%s1565 + $0xd8] sm:$0xff]
        %v7494 = vld [vmem:[%s1565 + $0xe0] sm:$0xff]
        %v7495 = vld [vmem:[%s1565 + $0xf0] sm:$0xff]
        %v7496 = vld [vmem:[%s1565 + $0xf8] sm:$0xff]
        %v7497 = vld [vmem:[%s1565 + $0x108] sm:$0xff]
        %v7498 = vld [vmem:[%s1565 + $0x110] sm:$0xff]
        %v7499 = vld [vmem:[%s1565 + $0x120] sm:$0xff]
        %v7500 = vld [vmem:[%s1565 + $0x128] sm:$0xff]
        %v7501 = vld [vmem:[%s1565 + $0x138] sm:$0xff]
        %v7502 = vld [vmem:[%s1565 + $0x140] sm:$0xff]
        %v7503 = vld [vmem:[%s1565 + $0x150] sm:$0xff]
        %v7504 = vld [vmem:[%s1565 + $0x158] sm:$0xff]
        %v7505 = vld [vmem:[%s1565 + $0x168] sm:$0xff]
        %v7506 = vld [vmem:[%s1565 + $0x170] sm:$0xff]
        %7539 = vrot.lane.b32.xlu0 %v7475, 64
        %v7540 = vpop.permute.xlu0 %7539
        %7541 = vrot.lane.b32.xlu0 %v7476, 64
        %v7542 = vpop.permute.xlu0 %7541
        %7543 = vrot.lane.b32.xlu0 %v7477, 64
        %v7544 = vpop.permute.xlu0 %7543
        %7545 = vrot.lane.b32.xlu0 %v7478, 64
        %v7546 = vpop.permute.xlu0 %7545
        %7547 = vrot.lane.b32.xlu0 %v7479, 64
        %v7548 = vpop.permute.xlu0 %7547
        %7549 = vrot.lane.b32.xlu0 %v7480, 64
        %v7550 = vpop.permute.xlu0 %7549
        %7551 = vrot.lane.b32.xlu0 %v7481, 64
        %v7552 = vpop.permute.xlu0 %7551
        %7553 = vrot.lane.b32.xlu0 %v7482, 64
        %v7554 = vpop.permute.xlu0 %7553
        %7555 = vrot.lane.b32.xlu0 %v7483, 64
        %v7556 = vpop.permute.xlu0 %7555
        %7557 = vrot.lane.b32.xlu0 %v7484, 64
        %v7558 = vpop.permute.xlu0 %7557
        %7559 = vrot.lane.b32.xlu0 %v7485, 64
        %v7560 = vpop.permute.xlu0 %7559
        %7561 = vrot.lane.b32.xlu0 %v7486, 64
        %v7562 = vpop.permute.xlu0 %7561
        %7563 = vrot.lane.b32.xlu0 %v7487, 64
        %v7564 = vpop.permute.xlu0 %7563
        %7565 = vrot.lane.b32.xlu0 %v7488, 64
        %v7566 = vpop.permute.xlu0 %7565
        %7567 = vrot.lane.b32.xlu0 %v7489, 64
        %v7568 = vpop.permute.xlu0 %7567
        %7569 = vrot.lane.b32.xlu0 %v7490, 64
        %v7570 = vpop.permute.xlu0 %7569
        %7571 = vrot.lane.b32.xlu0 %v7491, 64
        %v7572 = vpop.permute.xlu0 %7571
        %7573 = vrot.lane.b32.xlu0 %v7492, 64
        %v7574 = vpop.permute.xlu0 %7573
        %7575 = vrot.lane.b32.xlu0 %v7493, 64
        %v7576 = vpop.permute.xlu0 %7575
        %7577 = vrot.lane.b32.xlu0 %v7494, 64
        %v7578 = vpop.permute.xlu0 %7577
        %7579 = vrot.lane.b32.xlu0 %v7495, 64
        %v7580 = vpop.permute.xlu0 %7579
        %7581 = vrot.lane.b32.xlu0 %v7496, 64
        %v7582 = vpop.permute.xlu0 %7581
        %7583 = vrot.lane.b32.xlu0 %v7497, 64
        %v7584 = vpop.permute.xlu0 %7583
        %7585 = vrot.lane.b32.xlu0 %v7498, 64
        %v7586 = vpop.permute.xlu0 %7585
        %7587 = vrot.lane.b32.xlu0 %v7499, 64
        %v7588 = vpop.permute.xlu0 %7587
        %7589 = vrot.lane.b32.xlu0 %v7500, 64
        %v7590 = vpop.permute.xlu0 %7589
        %7591 = vrot.lane.b32.xlu0 %v7501, 64
        %v7592 = vpop.permute.xlu0 %7591
        %7593 = vrot.lane.b32.xlu0 %v7502, 64
        %v7594 = vpop.permute.xlu0 %7593
        %7595 = vrot.lane.b32.xlu0 %v7503, 64
        %v7596 = vpop.permute.xlu0 %7595
        %7597 = vrot.lane.b32.xlu0 %v7504, 64
        %v7598 = vpop.permute.xlu0 %7597
        %7599 = vrot.lane.b32.xlu0 %v7505, 64
        %v7600 = vpop.permute.xlu0 %7599
        %7601 = vrot.lane.b32.xlu0 %v7506, 64
        %v7602 = vpop.permute.xlu0 %7601
        %7635 = vst.msk [vmem:[#allocation3 + $0x8] sm:$0xff] %vm6993, %v7540
        %7636 = vst.msk [vmem:[#allocation3 + $0x20] sm:$0xff] %vm6993, %v7542
        %7637 = vst.msk [vmem:[#allocation3 + $0x38] sm:$0xff] %vm6993, %v7544
        %7638 = vst.msk [vmem:[#allocation3 + $0x50] sm:$0xff] %vm6993, %v7546
        %7639 = vst.msk [vmem:[#allocation3 + $0x68] sm:$0xff] %vm6993, %v7548
        %7640 = vst.msk [vmem:[#allocation3 + $0x80] sm:$0xff] %vm6993, %v7550
        %7641 = vst.msk [vmem:[#allocation3 + $0x98] sm:$0xff] %vm6993, %v7552
        %7642 = vst.msk [vmem:[#allocation3 + $0xb0] sm:$0xff] %vm6993, %v7554
        %7643 = vst.msk [vmem:[#allocation3 + $0xc8] sm:$0xff] %vm6993, %v7556
        %7644 = vst.msk [vmem:[#allocation3 + $0xe0] sm:$0xff] %vm6993, %v7558
        %7645 = vst.msk [vmem:[#allocation3 + $0xf8] sm:$0xff] %vm6993, %v7560
        %7646 = vst.msk [vmem:[#allocation3 + $0x110] sm:$0xff] %vm6993, %v7562
        %7647 = vst.msk [vmem:[#allocation3 + $0x128] sm:$0xff] %vm6993, %v7564
        %7648 = vst.msk [vmem:[#allocation3 + $0x140] sm:$0xff] %vm6993, %v7566
        %7649 = vst.msk [vmem:[#allocation3 + $0x158] sm:$0xff] %vm6993, %v7568
        %7650 = vst.msk [vmem:[#allocation3 + $0x170] sm:$0xff] %vm6993, %v7570
        %7651 = vst.msk [vmem:[#allocation3 + $0x188] sm:$0xff] %vm6993, %v7572
        %7652 = vst.msk [vmem:[#allocation3 + $0x1a0] sm:$0xff] %vm6993, %v7574
        %7653 = vst.msk [vmem:[#allocation3 + $0x1b8] sm:$0xff] %vm6993, %v7576
        %7654 = vst.msk [vmem:[#allocation3 + $0x1d0] sm:$0xff] %vm6993, %v7578
        %7655 = vst.msk [vmem:[#allocation3 + $0x1e8] sm:$0xff] %vm6993, %v7580
        %7656 = vst.msk [vmem:[#allocation3 + $0x200] sm:$0xff] %vm6993, %v7582
        %7657 = vst.msk [vmem:[#allocation3 + $0x218] sm:$0xff] %vm6993, %v7584
        %7658 = vst.msk [vmem:[#allocation3 + $0x230] sm:$0xff] %vm6993, %v7586
        %7659 = vst.msk [vmem:[#allocation3 + $0x248] sm:$0xff] %vm6993, %v7588
        %7660 = vst.msk [vmem:[#allocation3 + $0x260] sm:$0xff] %vm6993, %v7590
        %7661 = vst.msk [vmem:[#allocation3 + $0x278] sm:$0xff] %vm6993, %v7592
        %7662 = vst.msk [vmem:[#allocation3 + $0x290] sm:$0xff] %vm6993, %v7594
        %7663 = vst.msk [vmem:[#allocation3 + $0x2a8] sm:$0xff] %vm6993, %v7596
        %7664 = vst.msk [vmem:[#allocation3 + $0x2c0] sm:$0xff] %vm6993, %v7598
        %7665 = vst.msk [vmem:[#allocation3 + $0x2d8] sm:$0xff] %vm6993, %v7600
        %7666 = vst.msk [vmem:[#allocation3 + $0x2f0] sm:$0xff] %vm6993, %v7602
        %v7667 = vld [vmem:[%s1565 + $0x1] sm:$0xff]
        %v7668 = vld [vmem:[%s1565 + $0x9] sm:$0xff]
        %v7669 = vld [vmem:[%s1565 + $0x19] sm:$0xff]
        %v7670 = vld [vmem:[%s1565 + $0x21] sm:$0xff]
        %v7671 = vld [vmem:[%s1565 + $0x31] sm:$0xff]
        %v7672 = vld [vmem:[%s1565 + $0x39] sm:$0xff]
        %v7673 = vld [vmem:[%s1565 + $0x49] sm:$0xff]
        %v7674 = vld [vmem:[%s1565 + $0x51] sm:$0xff]
        %v7675 = vld [vmem:[%s1565 + $0x61] sm:$0xff]
        %v7676 = vld [vmem:[%s1565 + $0x69] sm:$0xff]
        %v7677 = vld [vmem:[%s1565 + $0x79] sm:$0xff]
        %v7678 = vld [vmem:[%s1565 + $0x81] sm:$0xff]
        %v7679 = vld [vmem:[%s1565 + $0x91] sm:$0xff]
        %v7680 = vld [vmem:[%s1565 + $0x99] sm:$0xff]
        %v7681 = vld [vmem:[%s1565 + $0xa9] sm:$0xff]
        %v7682 = vld [vmem:[%s1565 + $0xb1] sm:$0xff]
        %v7683 = vld [vmem:[%s1565 + $0xc1] sm:$0xff]
        %v7684 = vld [vmem:[%s1565 + $0xc9] sm:$0xff]
        %v7685 = vld [vmem:[%s1565 + $0xd9] sm:$0xff]
        %v7686 = vld [vmem:[%s1565 + $0xe1] sm:$0xff]
        %v7687 = vld [vmem:[%s1565 + $0xf1] sm:$0xff]
        %v7688 = vld [vmem:[%s1565 + $0xf9] sm:$0xff]
        %v7689 = vld [vmem:[%s1565 + $0x109] sm:$0xff]
        %v7690 = vld [vmem:[%s1565 + $0x111] sm:$0xff]
        %v7691 = vld [vmem:[%s1565 + $0x121] sm:$0xff]
        %v7692 = vld [vmem:[%s1565 + $0x129] sm:$0xff]
        %v7693 = vld [vmem:[%s1565 + $0x139] sm:$0xff]
        %v7694 = vld [vmem:[%s1565 + $0x141] sm:$0xff]
        %v7695 = vld [vmem:[%s1565 + $0x151] sm:$0xff]
        %v7696 = vld [vmem:[%s1565 + $0x159] sm:$0xff]
        %v7697 = vld [vmem:[%s1565 + $0x169] sm:$0xff]
        %v7698 = vld [vmem:[%s1565 + $0x171] sm:$0xff]
        %7731 = vrot.lane.b32.xlu0 %v7667, 96
        %v7732 = vpop.permute.xlu0 %7731
        %7733 = vrot.lane.b32.xlu0 %v7668, 96
        %v7734 = vpop.permute.xlu0 %7733
        %7735 = vrot.lane.b32.xlu0 %v7669, 96
        %v7736 = vpop.permute.xlu0 %7735
        %7737 = vrot.lane.b32.xlu0 %v7670, 96
        %v7738 = vpop.permute.xlu0 %7737
        %7739 = vrot.lane.b32.xlu0 %v7671, 96
        %v7740 = vpop.permute.xlu0 %7739
        %7741 = vrot.lane.b32.xlu0 %v7672, 96
        %v7742 = vpop.permute.xlu0 %7741
        %7743 = vrot.lane.b32.xlu0 %v7673, 96
        %v7744 = vpop.permute.xlu0 %7743
        %7745 = vrot.lane.b32.xlu0 %v7674, 96
        %v7746 = vpop.permute.xlu0 %7745
        %7747 = vrot.lane.b32.xlu0 %v7675, 96
        %v7748 = vpop.permute.xlu0 %7747
        %7749 = vrot.lane.b32.xlu0 %v7676, 96
        %v7750 = vpop.permute.xlu0 %7749
        %7751 = vrot.lane.b32.xlu0 %v7677, 96
        %v7752 = vpop.permute.xlu0 %7751
        %7753 = vrot.lane.b32.xlu0 %v7678, 96
        %v7754 = vpop.permute.xlu0 %7753
        %7755 = vrot.lane.b32.xlu0 %v7679, 96
        %v7756 = vpop.permute.xlu0 %7755
        %7757 = vrot.lane.b32.xlu0 %v7680, 96
        %v7758 = vpop.permute.xlu0 %7757
        %7759 = vrot.lane.b32.xlu0 %v7681, 96
        %v7760 = vpop.permute.xlu0 %7759
        %7761 = vrot.lane.b32.xlu0 %v7682, 96
        %v7762 = vpop.permute.xlu0 %7761
        %7763 = vrot.lane.b32.xlu0 %v7683, 96
        %v7764 = vpop.permute.xlu0 %7763
        %7765 = vrot.lane.b32.xlu0 %v7684, 96
        %v7766 = vpop.permute.xlu0 %7765
        %7767 = vrot.lane.b32.xlu0 %v7685, 96
        %v7768 = vpop.permute.xlu0 %7767
        %7769 = vrot.lane.b32.xlu0 %v7686, 96
        %v7770 = vpop.permute.xlu0 %7769
        %7771 = vrot.lane.b32.xlu0 %v7687, 96
        %v7772 = vpop.permute.xlu0 %7771
        %7773 = vrot.lane.b32.xlu0 %v7688, 96
        %v7774 = vpop.permute.xlu0 %7773
        %7775 = vrot.lane.b32.xlu0 %v7689, 96
        %v7776 = vpop.permute.xlu0 %7775
        %7777 = vrot.lane.b32.xlu0 %v7690, 96
        %v7778 = vpop.permute.xlu0 %7777
        %7779 = vrot.lane.b32.xlu0 %v7691, 96
        %v7780 = vpop.permute.xlu0 %7779
        %7781 = vrot.lane.b32.xlu0 %v7692, 96
        %v7782 = vpop.permute.xlu0 %7781
        %7783 = vrot.lane.b32.xlu0 %v7693, 96
        %v7784 = vpop.permute.xlu0 %7783
        %7785 = vrot.lane.b32.xlu0 %v7694, 96
        %v7786 = vpop.permute.xlu0 %7785
        %7787 = vrot.lane.b32.xlu0 %v7695, 96
        %v7788 = vpop.permute.xlu0 %7787
        %7789 = vrot.lane.b32.xlu0 %v7696, 96
        %v7790 = vpop.permute.xlu0 %7789
        %7791 = vrot.lane.b32.xlu0 %v7697, 96
        %v7792 = vpop.permute.xlu0 %7791
        %7793 = vrot.lane.b32.xlu0 %v7698, 96
        %v7794 = vpop.permute.xlu0 %7793
        %7827 = vst.msk [vmem:[#allocation3 + $0x8] sm:$0xff] %vm7186, %v7732
        %7828 = vst.msk [vmem:[#allocation3 + $0x20] sm:$0xff] %vm7186, %v7734
        %7829 = vst.msk [vmem:[#allocation3 + $0x38] sm:$0xff] %vm7186, %v7736
        %7830 = vst.msk [vmem:[#allocation3 + $0x50] sm:$0xff] %vm7186, %v7738
        %7831 = vst.msk [vmem:[#allocation3 + $0x68] sm:$0xff] %vm7186, %v7740
        %7832 = vst.msk [vmem:[#allocation3 + $0x80] sm:$0xff] %vm7186, %v7742
        %7833 = vst.msk [vmem:[#allocation3 + $0x98] sm:$0xff] %vm7186, %v7744
        %7834 = vst.msk [vmem:[#allocation3 + $0xb0] sm:$0xff] %vm7186, %v7746
        %7835 = vst.msk [vmem:[#allocation3 + $0xc8] sm:$0xff] %vm7186, %v7748
        %7836 = vst.msk [vmem:[#allocation3 + $0xe0] sm:$0xff] %vm7186, %v7750
        %7837 = vst.msk [vmem:[#allocation3 + $0xf8] sm:$0xff] %vm7186, %v7752
        %7838 = vst.msk [vmem:[#allocation3 + $0x110] sm:$0xff] %vm7186, %v7754
        %7839 = vst.msk [vmem:[#allocation3 + $0x128] sm:$0xff] %vm7186, %v7756
        %7840 = vst.msk [vmem:[#allocation3 + $0x140] sm:$0xff] %vm7186, %v7758
        %7841 = vst.msk [vmem:[#allocation3 + $0x158] sm:$0xff] %vm7186, %v7760
        %7842 = vst.msk [vmem:[#allocation3 + $0x170] sm:$0xff] %vm7186, %v7762
        %7843 = vst.msk [vmem:[#allocation3 + $0x188] sm:$0xff] %vm7186, %v7764
        %7844 = vst.msk [vmem:[#allocation3 + $0x1a0] sm:$0xff] %vm7186, %v7766
        %7845 = vst.msk [vmem:[#allocation3 + $0x1b8] sm:$0xff] %vm7186, %v7768
        %7846 = vst.msk [vmem:[#allocation3 + $0x1d0] sm:$0xff] %vm7186, %v7770
        %7847 = vst.msk [vmem:[#allocation3 + $0x1e8] sm:$0xff] %vm7186, %v7772
        %7848 = vst.msk [vmem:[#allocation3 + $0x200] sm:$0xff] %vm7186, %v7774
        %7849 = vst.msk [vmem:[#allocation3 + $0x218] sm:$0xff] %vm7186, %v7776
        %7850 = vst.msk [vmem:[#allocation3 + $0x230] sm:$0xff] %vm7186, %v7778
        %7851 = vst.msk [vmem:[#allocation3 + $0x248] sm:$0xff] %vm7186, %v7780
        %7852 = vst.msk [vmem:[#allocation3 + $0x260] sm:$0xff] %vm7186, %v7782
        %7853 = vst.msk [vmem:[#allocation3 + $0x278] sm:$0xff] %vm7186, %v7784
        %7854 = vst.msk [vmem:[#allocation3 + $0x290] sm:$0xff] %vm7186, %v7786
        %7855 = vst.msk [vmem:[#allocation3 + $0x2a8] sm:$0xff] %vm7186, %v7788
        %7856 = vst.msk [vmem:[#allocation3 + $0x2c0] sm:$0xff] %vm7186, %v7790
        %7857 = vst.msk [vmem:[#allocation3 + $0x2d8] sm:$0xff] %vm7186, %v7792
        %7858 = vst.msk [vmem:[#allocation3 + $0x2f0] sm:$0xff] %vm7186, %v7794
        %v7859 = vld [vmem:[%s1565 + $0x2] sm:$0xff]
        %v7860 = vld [vmem:[%s1565 + $0xa] sm:$0xff]
        %v7861 = vld [vmem:[%s1565 + $0x1a] sm:$0xff]
        %v7862 = vld [vmem:[%s1565 + $0x22] sm:$0xff]
        %v7863 = vld [vmem:[%s1565 + $0x32] sm:$0xff]
        %v7864 = vld [vmem:[%s1565 + $0x3a] sm:$0xff]
        %v7865 = vld [vmem:[%s1565 + $0x4a] sm:$0xff]
        %v7866 = vld [vmem:[%s1565 + $0x52] sm:$0xff]
        %v7867 = vld [vmem:[%s1565 + $0x62] sm:$0xff]
        %v7868 = vld [vmem:[%s1565 + $0x6a] sm:$0xff]
        %v7869 = vld [vmem:[%s1565 + $0x7a] sm:$0xff]
        %v7870 = vld [vmem:[%s1565 + $0x82] sm:$0xff]
        %v7871 = vld [vmem:[%s1565 + $0x92] sm:$0xff]
        %v7872 = vld [vmem:[%s1565 + $0x9a] sm:$0xff]
        %v7873 = vld [vmem:[%s1565 + $0xaa] sm:$0xff]
        %v7874 = vld [vmem:[%s1565 + $0xb2] sm:$0xff]
        %v7875 = vld [vmem:[%s1565 + $0xc2] sm:$0xff]
        %v7876 = vld [vmem:[%s1565 + $0xca] sm:$0xff]
        %v7877 = vld [vmem:[%s1565 + $0xda] sm:$0xff]
        %v7878 = vld [vmem:[%s1565 + $0xe2] sm:$0xff]
        %v7879 = vld [vmem:[%s1565 + $0xf2] sm:$0xff]
        %v7880 = vld [vmem:[%s1565 + $0xfa] sm:$0xff]
        %v7881 = vld [vmem:[%s1565 + $0x10a] sm:$0xff]
        %v7882 = vld [vmem:[%s1565 + $0x112] sm:$0xff]
        %v7883 = vld [vmem:[%s1565 + $0x122] sm:$0xff]
        %v7884 = vld [vmem:[%s1565 + $0x12a] sm:$0xff]
        %v7885 = vld [vmem:[%s1565 + $0x13a] sm:$0xff]
        %v7886 = vld [vmem:[%s1565 + $0x142] sm:$0xff]
        %v7887 = vld [vmem:[%s1565 + $0x152] sm:$0xff]
        %v7888 = vld [vmem:[%s1565 + $0x15a] sm:$0xff]
        %v7889 = vld [vmem:[%s1565 + $0x16a] sm:$0xff]
        %v7890 = vld [vmem:[%s1565 + $0x172] sm:$0xff]
        %7891 = vst.msk [vmem:[#allocation3 + $0x10] sm:$0xff] %vm424, %v7859
        %7892 = vst.msk [vmem:[#allocation3 + $0x28] sm:$0xff] %vm424, %v7860
        %7893 = vst.msk [vmem:[#allocation3 + $0x40] sm:$0xff] %vm424, %v7861
        %7894 = vst.msk [vmem:[#allocation3 + $0x58] sm:$0xff] %vm424, %v7862
        %7895 = vst.msk [vmem:[#allocation3 + $0x70] sm:$0xff] %vm424, %v7863
        %7896 = vst.msk [vmem:[#allocation3 + $0x88] sm:$0xff] %vm424, %v7864
        %7897 = vst.msk [vmem:[#allocation3 + $0xa0] sm:$0xff] %vm424, %v7865
        %7898 = vst.msk [vmem:[#allocation3 + $0xb8] sm:$0xff] %vm424, %v7866
        %7899 = vst.msk [vmem:[#allocation3 + $0xd0] sm:$0xff] %vm424, %v7867
        %7900 = vst.msk [vmem:[#allocation3 + $0xe8] sm:$0xff] %vm424, %v7868
        %7901 = vst.msk [vmem:[#allocation3 + $0x100] sm:$0xff] %vm424, %v7869
        %7902 = vst.msk [vmem:[#allocation3 + $0x118] sm:$0xff] %vm424, %v7870
        %7903 = vst.msk [vmem:[#allocation3 + $0x130] sm:$0xff] %vm424, %v7871
        %7904 = vst.msk [vmem:[#allocation3 + $0x148] sm:$0xff] %vm424, %v7872
        %7905 = vst.msk [vmem:[#allocation3 + $0x160] sm:$0xff] %vm424, %v7873
        %7906 = vst.msk [vmem:[#allocation3 + $0x178] sm:$0xff] %vm424, %v7874
        %7907 = vst.msk [vmem:[#allocation3 + $0x190] sm:$0xff] %vm424, %v7875
        %7908 = vst.msk [vmem:[#allocation3 + $0x1a8] sm:$0xff] %vm424, %v7876
        %7909 = vst.msk [vmem:[#allocation3 + $0x1c0] sm:$0xff] %vm424, %v7877
        %7910 = vst.msk [vmem:[#allocation3 + $0x1d8] sm:$0xff] %vm424, %v7878
        %7911 = vst.msk [vmem:[#allocation3 + $0x1f0] sm:$0xff] %vm424, %v7879
        %7912 = vst.msk [vmem:[#allocation3 + $0x208] sm:$0xff] %vm424, %v7880
        %7913 = vst.msk [vmem:[#allocation3 + $0x220] sm:$0xff] %vm424, %v7881
        %7914 = vst.msk [vmem:[#allocation3 + $0x238] sm:$0xff] %vm424, %v7882
        %7915 = vst.msk [vmem:[#allocation3 + $0x250] sm:$0xff] %vm424, %v7883
        %7916 = vst.msk [vmem:[#allocation3 + $0x268] sm:$0xff] %vm424, %v7884
        %7917 = vst.msk [vmem:[#allocation3 + $0x280] sm:$0xff] %vm424, %v7885
        %7918 = vst.msk [vmem:[#allocation3 + $0x298] sm:$0xff] %vm424, %v7886
        %7919 = vst.msk [vmem:[#allocation3 + $0x2b0] sm:$0xff] %vm424, %v7887
        %7920 = vst.msk [vmem:[#allocation3 + $0x2c8] sm:$0xff] %vm424, %v7888
        %7921 = vst.msk [vmem:[#allocation3 + $0x2e0] sm:$0xff] %vm424, %v7889
        %7922 = vst.msk [vmem:[#allocation3 + $0x2f8] sm:$0xff] %vm424, %v7890
        %v7923 = vld [vmem:[#allocation3] sm:$0xff]
        %v7924 = vld [vmem:[#allocation3 + $0x8] sm:$0xff]
        %v7925 = vld [vmem:[#allocation3 + $0x10] sm:$0xff]
        %v7926 = vld [vmem:[#allocation3 + $0x18] sm:$0xff]
        %v7927 = vld [vmem:[#allocation3 + $0x20] sm:$0xff]
        %v7928 = vld [vmem:[#allocation3 + $0x28] sm:$0xff]
        %v7929 = vld [vmem:[#allocation3 + $0x30] sm:$0xff]
        %v7930 = vld [vmem:[#allocation3 + $0x38] sm:$0xff]
        %v7931 = vld [vmem:[#allocation3 + $0x40] sm:$0xff]
        %v7932 = vld [vmem:[#allocation3 + $0x48] sm:$0xff]
        %v7933 = vld [vmem:[#allocation3 + $0x50] sm:$0xff]
        %v7934 = vld [vmem:[#allocation3 + $0x58] sm:$0xff]
        %v7935 = vld [vmem:[#allocation3 + $0x60] sm:$0xff]
        %v7936 = vld [vmem:[#allocation3 + $0x68] sm:$0xff]
        %v7937 = vld [vmem:[#allocation3 + $0x70] sm:$0xff]
        %v7938 = vld [vmem:[#allocation3 + $0x78] sm:$0xff]
        %v7939 = vld [vmem:[#allocation3 + $0x80] sm:$0xff]
        %v7940 = vld [vmem:[#allocation3 + $0x88] sm:$0xff]
        %v7941 = vld [vmem:[#allocation3 + $0x90] sm:$0xff]
        %v7942 = vld [vmem:[#allocation3 + $0x98] sm:$0xff]
        %v7943 = vld [vmem:[#allocation3 + $0xa0] sm:$0xff]
        %v7944 = vld [vmem:[#allocation3 + $0xa8] sm:$0xff]
        %v7945 = vld [vmem:[#allocation3 + $0xb0] sm:$0xff]
        %v7946 = vld [vmem:[#allocation3 + $0xb8] sm:$0xff]
        %v7947 = vld [vmem:[#allocation3 + $0xc0] sm:$0xff]
        %v7948 = vld [vmem:[#allocation3 + $0xc8] sm:$0xff]
        %v7949 = vld [vmem:[#allocation3 + $0xd0] sm:$0xff]
        %v7950 = vld [vmem:[#allocation3 + $0xd8] sm:$0xff]
        %v7951 = vld [vmem:[#allocation3 + $0xe0] sm:$0xff]
        %v7952 = vld [vmem:[#allocation3 + $0xe8] sm:$0xff]
        %v7953 = vld [vmem:[#allocation3 + $0xf0] sm:$0xff]
        %v7954 = vld [vmem:[#allocation3 + $0xf8] sm:$0xff]
        %v7955 = vld [vmem:[#allocation3 + $0x100] sm:$0xff]
        %v7956 = vld [vmem:[#allocation3 + $0x108] sm:$0xff]
        %v7957 = vld [vmem:[#allocation3 + $0x110] sm:$0xff]
        %v7958 = vld [vmem:[#allocation3 + $0x118] sm:$0xff]
        %v7959 = vld [vmem:[#allocation3 + $0x120] sm:$0xff]
        %v7960 = vld [vmem:[#allocation3 + $0x128] sm:$0xff]
        %v7961 = vld [vmem:[#allocation3 + $0x130] sm:$0xff]
        %v7962 = vld [vmem:[#allocation3 + $0x138] sm:$0xff]
        %v7963 = vld [vmem:[#allocation3 + $0x140] sm:$0xff]
        %v7964 = vld [vmem:[#allocation3 + $0x148] sm:$0xff]
        %v7965 = vld [vmem:[#allocation3 + $0x150] sm:$0xff]
        %v7966 = vld [vmem:[#allocation3 + $0x158] sm:$0xff]
        %v7967 = vld [vmem:[#allocation3 + $0x160] sm:$0xff]
        %v7968 = vld [vmem:[#allocation3 + $0x168] sm:$0xff]
        %v7969 = vld [vmem:[#allocation3 + $0x170] sm:$0xff]
        %v7970 = vld [vmem:[#allocation3 + $0x178] sm:$0xff]
        %v7971 = vld [vmem:[#allocation3 + $0x180] sm:$0xff]
        %v7972 = vld [vmem:[#allocation3 + $0x188] sm:$0xff]
        %v7973 = vld [vmem:[#allocation3 + $0x190] sm:$0xff]
        %v7974 = vld [vmem:[#allocation3 + $0x198] sm:$0xff]
        %v7975 = vld [vmem:[#allocation3 + $0x1a0] sm:$0xff]
        %v7976 = vld [vmem:[#allocation3 + $0x1a8] sm:$0xff]
        %v7977 = vld [vmem:[#allocation3 + $0x1b0] sm:$0xff]
        %v7978 = vld [vmem:[#allocation3 + $0x1b8] sm:$0xff]
        %v7979 = vld [vmem:[#allocation3 + $0x1c0] sm:$0xff]
        %v7980 = vld [vmem:[#allocation3 + $0x1c8] sm:$0xff]
        %v7981 = vld [vmem:[#allocation3 + $0x1d0] sm:$0xff]
        %v7982 = vld [vmem:[#allocation3 + $0x1d8] sm:$0xff]
        %v7983 = vld [vmem:[#allocation3 + $0x1e0] sm:$0xff]
        %v7984 = vld [vmem:[#allocation3 + $0x1e8] sm:$0xff]
        %v7985 = vld [vmem:[#allocation3 + $0x1f0] sm:$0xff]
        %v7986 = vld [vmem:[#allocation3 + $0x1f8] sm:$0xff]
        %v7987 = vld [vmem:[#allocation3 + $0x200] sm:$0xff]
        %v7988 = vld [vmem:[#allocation3 + $0x208] sm:$0xff]
        %v7989 = vld [vmem:[#allocation3 + $0x210] sm:$0xff]
        %v7990 = vld [vmem:[#allocation3 + $0x218] sm:$0xff]
        %v7991 = vld [vmem:[#allocation3 + $0x220] sm:$0xff]
        %v7992 = vld [vmem:[#allocation3 + $0x228] sm:$0xff]
        %v7993 = vld [vmem:[#allocation3 + $0x230] sm:$0xff]
        %v7994 = vld [vmem:[#allocation3 + $0x238] sm:$0xff]
        %v7995 = vld [vmem:[#allocation3 + $0x240] sm:$0xff]
        %v7996 = vld [vmem:[#allocation3 + $0x248] sm:$0xff]
        %v7997 = vld [vmem:[#allocation3 + $0x250] sm:$0xff]
        %v7998 = vld [vmem:[#allocation3 + $0x258] sm:$0xff]
        %v7999 = vld [vmem:[#allocation3 + $0x260] sm:$0xff]
        %v8000 = vld [vmem:[#allocation3 + $0x268] sm:$0xff]
        %v8001 = vld [vmem:[#allocation3 + $0x270] sm:$0xff]
        %v8002 = vld [vmem:[#allocation3 + $0x278] sm:$0xff]
        %v8003 = vld [vmem:[#allocation3 + $0x280] sm:$0xff]
        %v8004 = vld [vmem:[#allocation3 + $0x288] sm:$0xff]
        %v8005 = vld [vmem:[#allocation3 + $0x290] sm:$0xff]
        %v8006 = vld [vmem:[#allocation3 + $0x298] sm:$0xff]
        %v8007 = vld [vmem:[#allocation3 + $0x2a0] sm:$0xff]
        %v8008 = vld [vmem:[#allocation3 + $0x2a8] sm:$0xff]
        %v8009 = vld [vmem:[#allocation3 + $0x2b0] sm:$0xff]
        %v8010 = vld [vmem:[#allocation3 + $0x2b8] sm:$0xff]
        %v8011 = vld [vmem:[#allocation3 + $0x2c0] sm:$0xff]
        %v8012 = vld [vmem:[#allocation3 + $0x2c8] sm:$0xff]
        %v8013 = vld [vmem:[#allocation3 + $0x2d0] sm:$0xff]
        %v8014 = vld [vmem:[#allocation3 + $0x2d8] sm:$0xff]
        %v8015 = vld [vmem:[#allocation3 + $0x2e0] sm:$0xff]
        %v8016 = vld [vmem:[#allocation3 + $0x2e8] sm:$0xff]
        %v8017 = vld [vmem:[#allocation3 + $0x2f0] sm:$0xff]
        %v8018 = vld [vmem:[#allocation3 + $0x2f8] sm:$0xff]
        %v8019 = vld [vmem:[%s7] sm:$0xff]
        %v8020 = vld [vmem:[%s7 + $0x8] sm:$0xff]
        %v8021 = vld [vmem:[%s7 + $0x10] sm:$0xff]
        %v8022 = vld [vmem:[%s7 + $0x18] sm:$0xff]
        %v8023 = vld [vmem:[%s7 + $0x20] sm:$0xff]
        %v8024 = vld [vmem:[%s7 + $0x28] sm:$0xff]
        %v8025 = vld [vmem:[%s7 + $0x30] sm:$0xff]
        %v8026 = vld [vmem:[%s7 + $0x38] sm:$0xff]
        %v8027 = vld [vmem:[%s7 + $0x40] sm:$0xff]
        %v8028 = vld [vmem:[%s7 + $0x48] sm:$0xff]
        %v8029 = vld [vmem:[%s7 + $0x50] sm:$0xff]
        %v8030 = vld [vmem:[%s7 + $0x58] sm:$0xff]
        %v8031 = vld [vmem:[%s7 + $0x60] sm:$0xff]
        %v8032 = vld [vmem:[%s7 + $0x68] sm:$0xff]
        %v8033 = vld [vmem:[%s7 + $0x70] sm:$0xff]
        %v8034 = vld [vmem:[%s7 + $0x78] sm:$0xff]
        %v8035 = vld [vmem:[%s7 + $0x80] sm:$0xff]
        %v8036 = vld [vmem:[%s7 + $0x88] sm:$0xff]
        %v8037 = vld [vmem:[%s7 + $0x90] sm:$0xff]
        %v8038 = vld [vmem:[%s7 + $0x98] sm:$0xff]
        %v8039 = vld [vmem:[%s7 + $0xa0] sm:$0xff]
        %v8040 = vld [vmem:[%s7 + $0xa8] sm:$0xff]
        %v8041 = vld [vmem:[%s7 + $0xb0] sm:$0xff]
        %v8042 = vld [vmem:[%s7 + $0xb8] sm:$0xff]
        %v8043 = vld [vmem:[%s7 + $0xc0] sm:$0xff]
        %v8044 = vld [vmem:[%s7 + $0xc8] sm:$0xff]
        %v8045 = vld [vmem:[%s7 + $0xd0] sm:$0xff]
        %v8046 = vld [vmem:[%s7 + $0xd8] sm:$0xff]
        %v8047 = vld [vmem:[%s7 + $0xe0] sm:$0xff]
        %v8048 = vld [vmem:[%s7 + $0xe8] sm:$0xff]
        %v8049 = vld [vmem:[%s7 + $0xf0] sm:$0xff]
        %v8050 = vld [vmem:[%s7 + $0xf8] sm:$0xff]
        %v8051 = vld [vmem:[%s7 + $0x100] sm:$0xff]
        %v8052 = vld [vmem:[%s7 + $0x108] sm:$0xff]
        %v8053 = vld [vmem:[%s7 + $0x110] sm:$0xff]
        %v8054 = vld [vmem:[%s7 + $0x118] sm:$0xff]
        %v8055 = vld [vmem:[%s8] sm:$0x1]
        %v8057 = vlaneseq
        %v8058 = vshrl.u32 %v8057, 7
        %v8059 = vsub.s32 0, %v8058
        %v8060 = vrot.slane %v8055, %v8059
        %v8063 = vsel %vm424, %v7925, 0
        %v8066 = vsel %vm424, %v7928, 0
        %v8069 = vsel %vm424, %v7931, 0
        %v8072 = vsel %vm424, %v7934, 0
        %v8075 = vsel %vm424, %v7937, 0
        %v8078 = vsel %vm424, %v7940, 0
        %v8081 = vsel %vm424, %v7943, 0
        %v8084 = vsel %vm424, %v7946, 0
        %v8087 = vsel %vm424, %v7949, 0
        %v8090 = vsel %vm424, %v7952, 0
        %v8093 = vsel %vm424, %v7955, 0
        %v8096 = vsel %vm424, %v7958, 0
        %v8099 = vsel %vm424, %v7961, 0
        %v8102 = vsel %vm424, %v7964, 0
        %v8105 = vsel %vm424, %v7967, 0
        %v8108 = vsel %vm424, %v7970, 0
        %v8111 = vsel %vm424, %v7973, 0
        %v8114 = vsel %vm424, %v7976, 0
        %v8117 = vsel %vm424, %v7979, 0
        %v8120 = vsel %vm424, %v7982, 0
        %v8123 = vsel %vm424, %v7985, 0
        %v8126 = vsel %vm424, %v7988, 0
        %v8129 = vsel %vm424, %v7991, 0
        %v8132 = vsel %vm424, %v7994, 0
        %v8135 = vsel %vm424, %v7997, 0
        %v8138 = vsel %vm424, %v8000, 0
        %v8141 = vsel %vm424, %v8003, 0
        %v8144 = vsel %vm424, %v8006, 0
        %v8147 = vsel %vm424, %v8009, 0
        %v8150 = vsel %vm424, %v8012, 0
        %v8153 = vsel %vm424, %v8015, 0
        %v8156 = vsel %vm424, %v8018, 0
        %8158 = vmatprep.subr.mxu0 0.0
        %8159 = vmatpush1.msra.mxu0 %v8019
        %8160 = vmatprep.subr.mxu0 0.0
        %8161 = vmatpush1.msra.mxu0 %v8020
        %8162 = vmatprep.subr.mxu0 0.0
        %8163 = vmatpush1.msra.mxu0 %v8021
        %8164 = vmatprep.subr.mxu0 0.0
        %8165 = vmatpush1.msra.mxu0 %v8022
        %8166 = vmatprep.subr.mxu0 0.0
        %8167 = vmatpush1.msra.mxu0 %v8023
        %8168 = vmatprep.subr.mxu0 0.0
        %8169 = vmatpush1.msra.mxu0 %v8024
        %8170 = vmatprep.subr.mxu0 0.0
        %8171 = vmatpush1.msra.mxu0 %v8025
        %8172 = vmatprep.subr.mxu0 0.0
        %8173 = vmatpush1.msra.mxu0 %v8026
        %8174 = vmatprep.subr.mxu0 0.0
        %8175 = vmatpush1.msra.mxu0 %v8027
        %8176 = vmatprep.subr.mxu0 0.0
        %8177 = vmatpush1.msra.mxu0 %v8028
        %8178 = vmatprep.subr.mxu0 0.0
        %8179 = vmatpush1.msra.mxu0 %v8029
        %8180 = vmatprep.subr.mxu0 0.0
        %8181 = vmatpush1.msra.mxu0 %v8030
        %8182 = vmatprep.subr.mxu0 0.0
        %8183 = vmatpush1.msra.mxu0 %v8031
        %8184 = vmatprep.subr.mxu0 0.0
        %8185 = vmatpush1.msra.mxu0 %v8032
        %8186 = vmatprep.subr.mxu0 0.0
        %8187 = vmatpush1.msra.mxu0 %v8033
        %8188 = vmatprep.subr.mxu0 0.0
        %8189 = vmatpush1.msra.mxu0 %v8034
        %8190 = vmatprep.subr.mxu0 0.0
        %8191 = vmatpush1.msra.mxu0 %v8035
        %8192 = vmatprep.subr.mxu0 0.0
        %8193 = vmatpush1.msra.mxu0 %v8036
        %8194 = vmatprep.subr.mxu0 0.0
        %8195 = vmatpush1.msra.mxu0 %v8037
        %8196 = vmatprep.subr.mxu0 0.0
        %8197 = vmatpush1.msra.mxu0 %v8038
        %8198 = vmatprep.subr.mxu0 0.0
        %8199 = vmatpush1.msra.mxu0 %v8039
        %8200 = vmatprep.subr.mxu0 0.0
        %8201 = vmatpush1.msra.mxu0 %v8040
        %8202 = vmatprep.subr.mxu0 0.0
        %8203 = vmatpush1.msra.mxu0 %v8041
        %8204 = vmatprep.subr.mxu0 0.0
        %8205 = vmatpush1.msra.mxu0 %v8042
        %8206 = vmatprep.subr.mxu0 0.0
        %8207 = vmatpush1.msra.mxu0 %v8043
        %8208 = vmatprep.subr.mxu0 0.0
        %8209 = vmatpush1.msra.mxu0 %v8044
        %8210 = vmatprep.subr.mxu0 0.0
        %8211 = vmatpush1.msra.mxu0 %v8045
        %8212 = vmatprep.subr.mxu0 0.0
        %8213 = vmatpush1.msra.mxu0 %v8046
        %8214 = vmatprep.subr.mxu0 0.0
        %8215 = vmatpush1.msra.mxu0 %v8047
        %8216 = vmatprep.subr.mxu0 0.0
        %8217 = vmatpush1.msra.mxu0 %v8048
        %8218 = vmatprep.subr.mxu0 0.0
        %8219 = vmatpush1.msra.mxu0 %v8049
        %8220 = vmatprep.subr.mxu0 0.0
        %8221 = vmatpush1.msra.mxu0 %v8050
        %8222 = vmatprep.mubr.f32.mxu0 %v7924
        %8223 = vmatmul.mubr.f32.gmra.mrb[0].mxu0 %v7923
        %v8224 = vpop.f32.mrb[0].mxu0
        %v8225 = vadd.f32 %v8060, %v8224
        %v8226 = vpop.f32.mrb[0].mxu0
        %8227 = vmatprep.mubr.f32.mxu0 %v7927
        %8228 = vmatmul.mubr.f32.gmra.mrb[0].mxu0 %v7926
        %v8229 = vpop.f32.mrb[0].mxu0
        %v8230 = vadd.f32 %v8060, %v8229
        %v8231 = vpop.f32.mrb[0].mxu0
        %8232 = vmatprep.mubr.f32.mxu0 %v7930
        %8233 = vmatmul.mubr.f32.gmra.mrb[0].mxu0 %v7929
        %v8234 = vpop.f32.mrb[0].mxu0
        %v8235 = vadd.f32 %v8060, %v8234
        %v8236 = vpop.f32.mrb[0].mxu0
        %8237 = vmatprep.mubr.f32.mxu0 %v7933
        %8238 = vmatmul.mubr.f32.gmra.mrb[0].mxu0 %v7932
        %v8239 = vpop.f32.mrb[0].mxu0
        %v8240 = vadd.f32 %v8060, %v8239
        %v8241 = vpop.f32.mrb[0].mxu0
        %8242 = vmatprep.mubr.f32.mxu0 %v7936
        %8243 = vmatmul.mubr.f32.gmra.mrb[0].mxu0 %v7935
        %v8244 = vpop.f32.mrb[0].mxu0
        %v8245 = vadd.f32 %v8060, %v8244
        %v8246 = vpop.f32.mrb[0].mxu0
        %8247 = vmatprep.mubr.f32.mxu0 %v7939
        %8248 = vmatmul.mubr.f32.gmra.mrb[0].mxu0 %v7938
        %v8249 = vpop.f32.mrb[0].mxu0
        %v8250 = vadd.f32 %v8060, %v8249
        %v8251 = vpop.f32.mrb[0].mxu0
        %8252 = vmatprep.mubr.f32.mxu0 %v7942
        %8253 = vmatmul.mubr.f32.gmra.mrb[0].mxu0 %v7941
        %v8254 = vpop.f32.mrb[0].mxu0
        %v8255 = vadd.f32 %v8060, %v8254
        %v8256 = vpop.f32.mrb[0].mxu0
        %8257 = vmatprep.mubr.f32.mxu0 %v7945
        %8258 = vmatmul.mubr.f32.gmra.mrb[0].mxu0 %v7944
        %v8259 = vpop.f32.mrb[0].mxu0
        %v8260 = vadd.f32 %v8060, %v8259
        %v8261 = vpop.f32.mrb[0].mxu0
        %8262 = vmatprep.mubr.f32.mxu0 %v7948
        %8263 = vmatmul.mubr.f32.gmra.mrb[0].mxu0 %v7947
        %v8264 = vpop.f32.mrb[0].mxu0
        %v8265 = vadd.f32 %v8060, %v8264
        %v8266 = vpop.f32.mrb[0].mxu0
        %8267 = vmatprep.mubr.f32.mxu0 %v7951
        %8268 = vmatmul.mubr.f32.gmra.mrb[0].mxu0 %v7950
        %v8269 = vpop.f32.mrb[0].mxu0
        %v8270 = vadd.f32 %v8060, %v8269
        %v8271 = vpop.f32.mrb[0].mxu0
        %8272 = vmatprep.mubr.f32.mxu0 %v7954
        %8273 = vmatmul.mubr.f32.gmra.mrb[0].mxu0 %v7953
        %v8274 = vpop.f32.mrb[0].mxu0
        %v8275 = vadd.f32 %v8060, %v8274
        %v8276 = vpop.f32.mrb[0].mxu0
        %8277 = vmatprep.mubr.f32.mxu0 %v7957
        %8278 = vmatmul.mubr.f32.gmra.mrb[0].mxu0 %v7956
        %v8279 = vpop.f32.mrb[0].mxu0
        %v8280 = vadd.f32 %v8060, %v8279
        %v8281 = vpop.f32.mrb[0].mxu0
        %8282 = vmatprep.mubr.f32.mxu0 %v7960
        %8283 = vmatmul.mubr.f32.gmra.mrb[0].mxu0 %v7959
        %v8284 = vpop.f32.mrb[0].mxu0
        %v8285 = vadd.f32 %v8060, %v8284
        %v8286 = vpop.f32.mrb[0].mxu0
        %8287 = vmatprep.mubr.f32.mxu0 %v7963
        %8288 = vmatmul.mubr.f32.gmra.mrb[0].mxu0 %v7962
        %v8289 = vpop.f32.mrb[0].mxu0
        %v8290 = vadd.f32 %v8060, %v8289
        %v8291 = vpop.f32.mrb[0].mxu0
        %8292 = vmatprep.mubr.f32.mxu0 %v7966
        %8293 = vmatmul.mubr.f32.gmra.mrb[0].mxu0 %v7965
        %v8294 = vpop.f32.mrb[0].mxu0
        %v8295 = vadd.f32 %v8060, %v8294
        %v8296 = vpop.f32.mrb[0].mxu0
        %8297 = vmatprep.mubr.f32.mxu0 %v7969
        %8298 = vmatmul.mubr.f32.gmra.mrb[0].mxu0 %v7968
        %v8299 = vpop.f32.mrb[0].mxu0
        %v8300 = vadd.f32 %v8060, %v8299
        %v8301 = vpop.f32.mrb[0].mxu0
        %8302 = vmatprep.mubr.f32.mxu0 %v7972
        %8303 = vmatmul.mubr.f32.gmra.mrb[0].mxu0 %v7971
        %v8304 = vpop.f32.mrb[0].mxu0
        %v8305 = vadd.f32 %v8060, %v8304
        %v8306 = vpop.f32.mrb[0].mxu0
        %8307 = vmatprep.mubr.f32.mxu0 %v7975
        %8308 = vmatmul.mubr.f32.gmra.mrb[0].mxu0 %v7974
        %v8309 = vpop.f32.mrb[0].mxu0
        %v8310 = vadd.f32 %v8060, %v8309
        %v8311 = vpop.f32.mrb[0].mxu0
        %8312 = vmatprep.mubr.f32.mxu0 %v7978
        %8313 = vmatmul.mubr.f32.gmra.mrb[0].mxu0 %v7977
        %v8314 = vpop.f32.mrb[0].mxu0
        %v8315 = vadd.f32 %v8060, %v8314
        %v8316 = vpop.f32.mrb[0].mxu0
        %8317 = vmatprep.mubr.f32.mxu0 %v7981
        %8318 = vmatmul.mubr.f32.gmra.mrb[0].mxu0 %v7980
        %v8319 = vpop.f32.mrb[0].mxu0
        %v8320 = vadd.f32 %v8060, %v8319
        %v8321 = vpop.f32.mrb[0].mxu0
        %8322 = vmatprep.mubr.f32.mxu0 %v7984
        %8323 = vmatmul.mubr.f32.gmra.mrb[0].mxu0 %v7983
        %v8324 = vpop.f32.mrb[0].mxu0
        %v8325 = vadd.f32 %v8060, %v8324
        %v8326 = vpop.f32.mrb[0].mxu0
        %8327 = vmatprep.mubr.f32.mxu0 %v7987
        %8328 = vmatmul.mubr.f32.gmra.mrb[0].mxu0 %v7986
        %v8329 = vpop.f32.mrb[0].mxu0
        %v8330 = vadd.f32 %v8060, %v8329
        %v8331 = vpop.f32.mrb[0].mxu0
        %8332 = vmatprep.mubr.f32.mxu0 %v7990
        %8333 = vmatmul.mubr.f32.gmra.mrb[0].mxu0 %v7989
        %v8334 = vpop.f32.mrb[0].mxu0
        %v8335 = vadd.f32 %v8060, %v8334
        %v8336 = vpop.f32.mrb[0].mxu0
        %8337 = vmatprep.mubr.f32.mxu0 %v7993
        %8338 = vmatmul.mubr.f32.gmra.mrb[0].mxu0 %v7992
        %v8339 = vpop.f32.mrb[0].mxu0
        %v8340 = vadd.f32 %v8060, %v8339
        %v8341 = vpop.f32.mrb[0].mxu0
        %8342 = vmatprep.mubr.f32.mxu0 %v7996
        %8343 = vmatmul.mubr.f32.gmra.mrb[0].mxu0 %v7995
        %v8344 = vpop.f32.mrb[0].mxu0
        %v8345 = vadd.f32 %v8060, %v8344
        %v8346 = vpop.f32.mrb[0].mxu0
        %8347 = vmatprep.mubr.f32.mxu0 %v7999
        %8348 = vmatmul.mubr.f32.gmra.mrb[0].mxu0 %v7998
        %v8349 = vpop.f32.mrb[0].mxu0
        %v8350 = vadd.f32 %v8060, %v8349
        %v8351 = vpop.f32.mrb[0].mxu0
        %8352 = vmatprep.mubr.f32.mxu0 %v8002
        %8353 = vmatmul.mubr.f32.gmra.mrb[0].mxu0 %v8001
        %v8354 = vpop.f32.mrb[0].mxu0
        %v8355 = vadd.f32 %v8060, %v8354
        %v8356 = vpop.f32.mrb[0].mxu0
        %8357 = vmatprep.mubr.f32.mxu0 %v8005
        %8358 = vmatmul.mubr.f32.gmra.mrb[0].mxu0 %v8004
        %v8359 = vpop.f32.mrb[0].mxu0
        %v8360 = vadd.f32 %v8060, %v8359
        %v8361 = vpop.f32.mrb[0].mxu0
        %8362 = vmatprep.mubr.f32.mxu0 %v8008
        %8363 = vmatmul.mubr.f32.gmra.mrb[0].mxu0 %v8007
        %v8364 = vpop.f32.mrb[0].mxu0
        %v8365 = vadd.f32 %v8060, %v8364
        %v8366 = vpop.f32.mrb[0].mxu0
        %8367 = vmatprep.mubr.f32.mxu0 %v8011
        %8368 = vmatmul.mubr.f32.gmra.mrb[0].mxu0 %v8010
        %v8369 = vpop.f32.mrb[0].mxu0
        %v8370 = vadd.f32 %v8060, %v8369
        %v8371 = vpop.f32.mrb[0].mxu0
        %8372 = vmatprep.mubr.f32.mxu0 %v8014
        %8373 = vmatmul.mubr.f32.gmra.mrb[0].mxu0 %v8013
        %v8374 = vpop.f32.mrb[0].mxu0
        %v8375 = vadd.f32 %v8060, %v8374
        %v8376 = vpop.f32.mrb[0].mxu0
        %8377 = vmatprep.mubr.f32.mxu0 %v8017
        %8378 = vmatmul.mubr.f32.gmra.mrb[0].mxu0 %v8016
        %v8379 = vpop.f32.mrb[0].mxu0
        %v8380 = vadd.f32 %v8060, %v8379
        %v8381 = vpop.f32.mrb[0].mxu0
        %8382 = vdwg.mxu0
        %8383 = vmatprep.subr.mxu0 0.0
        %8384 = vmatpush1.msra.mxu0 %v8051
        %8385 = vmatprep.subr.mxu0 0.0
        %8386 = vmatpush1.msra.mxu0 %v8052
        %8387 = vmatprep.subr.mxu0 0.0
        %8388 = vmatpush1.msra.mxu0 %v8053
        %8389 = vmatprep.subr.mxu0 0.0
        %8390 = vmatpush1.msra.mxu0 %v8054
        %8391 = vmatprep.subr.mxu0 0.0
        %8392 = vmatpush1.msra.mxu0 0.0
        %8393 = vmatprep.subr.mxu0 0.0
        %8394 = vmatpush1.msra.mxu0 0.0
        %8395 = vmatprep.subr.mxu0 0.0
        %8396 = vmatpush1.msra.mxu0 0.0
        %8397 = vmatprep.subr.mxu0 0.0
        %8398 = vmatpush1.msra.mxu0 0.0
        %8399 = vmatprep.subr.mxu0 0.0
        %8400 = vmatpush1.msra.mxu0 0.0
        %8401 = vmatprep.subr.mxu0 0.0
        %8402 = vmatpush1.msra.mxu0 0.0
        %8403 = vmatprep.subr.mxu0 0.0
        %8404 = vmatpush1.msra.mxu0 0.0
        %8405 = vmatprep.subr.mxu0 0.0
        %8406 = vmatpush1.msra.mxu0 0.0
        %8407 = vmatprep.subr.mxu0 0.0
        %8408 = vmatpush1.msra.mxu0 0.0
        %8409 = vmatprep.subr.mxu0 0.0
        %8410 = vmatpush1.msra.mxu0 0.0
        %8411 = vmatprep.subr.mxu0 0.0
        %8412 = vmatpush1.msra.mxu0 0.0
        %8413 = vmatprep.subr.mxu0 0.0
        %8414 = vmatpush1.msra.mxu0 0.0
        %8415 = vmatprep.subr.mxu0 0.0
        %8416 = vmatpush1.msra.mxu0 0.0
        %8417 = vmatprep.subr.mxu0 0.0
        %8418 = vmatpush1.msra.mxu0 0.0
        %8419 = vmatprep.subr.mxu0 0.0
        %8420 = vmatpush1.msra.mxu0 0.0
        %8421 = vmatprep.subr.mxu0 0.0
        %8422 = vmatpush1.msra.mxu0 0.0
        %8423 = vmatprep.subr.mxu0 0.0
        %8424 = vmatpush1.msra.mxu0 0.0
        %8425 = vmatprep.subr.mxu0 0.0
        %8426 = vmatpush1.msra.mxu0 0.0
        %8427 = vmatprep.subr.mxu0 0.0
        %8428 = vmatpush1.msra.mxu0 0.0
        %8429 = vmatprep.subr.mxu0 0.0
        %8430 = vmatpush1.msra.mxu0 0.0
        %8431 = vmatprep.subr.mxu0 0.0
        %8432 = vmatpush1.msra.mxu0 0.0
        %8433 = vmatprep.subr.mxu0 0.0
        %8434 = vmatpush1.msra.mxu0 0.0
        %8435 = vmatprep.subr.mxu0 0.0
        %8436 = vmatpush1.msra.mxu0 0.0
        %8437 = vmatprep.subr.mxu0 0.0
        %8438 = vmatpush1.msra.mxu0 0.0
        %8439 = vmatprep.subr.mxu0 0.0
        %8440 = vmatpush1.msra.mxu0 0.0
        %8441 = vmatprep.subr.mxu0 0.0
        %8442 = vmatpush1.msra.mxu0 0.0
        %8443 = vmatprep.subr.mxu0 0.0
        %8444 = vmatpush1.msra.mxu0 0.0
        %8445 = vmatprep.subr.mxu0 0.0
        %8446 = vmatpush1.msra.mxu0 0.0
        %8447 = vmatprep.mubr.f32.mxu0 0.0
        %8448 = vmatmul.mubr.f32.gmra.mrb[0].mxu0 %v8063
        %v8449 = vpop.f32.mrb[0].mxu0
        %v8450 = vadd.f32 %v8225, %v8449
        %v8451 = vpop.f32.mrb[0].mxu0
        %8452 = vmatprep.mubr.f32.mxu0 0.0
        %8453 = vmatmul.mubr.f32.gmra.mrb[0].mxu0 %v8066
        %v8454 = vpop.f32.mrb[0].mxu0
        %v8455 = vadd.f32 %v8230, %v8454
        %v8456 = vpop.f32.mrb[0].mxu0
        %8457 = vmatprep.mubr.f32.mxu0 0.0
        %8458 = vmatmul.mubr.f32.gmra.mrb[0].mxu0 %v8069
        %v8459 = vpop.f32.mrb[0].mxu0
        %v8460 = vadd.f32 %v8235, %v8459
        %v8461 = vpop.f32.mrb[0].mxu0
        %8462 = vmatprep.mubr.f32.mxu0 0.0
        %8463 = vmatmul.mubr.f32.gmra.mrb[0].mxu0 %v8072
        %v8464 = vpop.f32.mrb[0].mxu0
        %v8465 = vadd.f32 %v8240, %v8464
        %v8466 = vpop.f32.mrb[0].mxu0
        %8467 = vmatprep.mubr.f32.mxu0 0.0
        %8468 = vmatmul.mubr.f32.gmra.mrb[0].mxu0 %v8075
        %v8469 = vpop.f32.mrb[0].mxu0
        %v8470 = vadd.f32 %v8245, %v8469
        %v8471 = vpop.f32.mrb[0].mxu0
        %8472 = vmatprep.mubr.f32.mxu0 0.0
        %8473 = vmatmul.mubr.f32.gmra.mrb[0].mxu0 %v8078
        %v8474 = vpop.f32.mrb[0].mxu0
        %v8475 = vadd.f32 %v8250, %v8474
        %v8476 = vpop.f32.mrb[0].mxu0
        %8477 = vmatprep.mubr.f32.mxu0 0.0
        %8478 = vmatmul.mubr.f32.gmra.mrb[0].mxu0 %v8081
        %v8479 = vpop.f32.mrb[0].mxu0
        %v8480 = vadd.f32 %v8255, %v8479
        %v8481 = vpop.f32.mrb[0].mxu0
        %8482 = vmatprep.mubr.f32.mxu0 0.0
        %8483 = vmatmul.mubr.f32.gmra.mrb[0].mxu0 %v8084
        %v8484 = vpop.f32.mrb[0].mxu0
        %v8485 = vadd.f32 %v8260, %v8484
        %v8486 = vpop.f32.mrb[0].mxu0
        %8487 = vmatprep.mubr.f32.mxu0 0.0
        %8488 = vmatmul.mubr.f32.gmra.mrb[0].mxu0 %v8087
        %v8489 = vpop.f32.mrb[0].mxu0
        %v8490 = vadd.f32 %v8265, %v8489
        %v8491 = vpop.f32.mrb[0].mxu0
        %8492 = vmatprep.mubr.f32.mxu0 0.0
        %8493 = vmatmul.mubr.f32.gmra.mrb[0].mxu0 %v8090
        %v8494 = vpop.f32.mrb[0].mxu0
        %v8495 = vadd.f32 %v8270, %v8494
        %v8496 = vpop.f32.mrb[0].mxu0
        %8497 = vmatprep.mubr.f32.mxu0 0.0
        %8498 = vmatmul.mubr.f32.gmra.mrb[0].mxu0 %v8093
        %v8499 = vpop.f32.mrb[0].mxu0
        %v8500 = vadd.f32 %v8275, %v8499
        %v8501 = vpop.f32.mrb[0].mxu0
        %8502 = vmatprep.mubr.f32.mxu0 0.0
        %8503 = vmatmul.mubr.f32.gmra.mrb[0].mxu0 %v8096
        %v8504 = vpop.f32.mrb[0].mxu0
        %v8505 = vadd.f32 %v8280, %v8504
        %v8506 = vpop.f32.mrb[0].mxu0
        %8507 = vmatprep.mubr.f32.mxu0 0.0
        %8508 = vmatmul.mubr.f32.gmra.mrb[0].mxu0 %v8099
        %v8509 = vpop.f32.mrb[0].mxu0
        %v8510 = vadd.f32 %v8285, %v8509
        %v8511 = vpop.f32.mrb[0].mxu0
        %8512 = vmatprep.mubr.f32.mxu0 0.0
        %8513 = vmatmul.mubr.f32.gmra.mrb[0].mxu0 %v8102
        %v8514 = vpop.f32.mrb[0].mxu0
        %v8515 = vadd.f32 %v8290, %v8514
        %v8516 = vpop.f32.mrb[0].mxu0
        %8517 = vmatprep.mubr.f32.mxu0 0.0
        %8518 = vmatmul.mubr.f32.gmra.mrb[0].mxu0 %v8105
        %v8519 = vpop.f32.mrb[0].mxu0
        %v8520 = vadd.f32 %v8295, %v8519
        %v8521 = vpop.f32.mrb[0].mxu0
        %8522 = vmatprep.mubr.f32.mxu0 0.0
        %8523 = vmatmul.mubr.f32.gmra.mrb[0].mxu0 %v8108
        %v8524 = vpop.f32.mrb[0].mxu0
        %v8525 = vadd.f32 %v8300, %v8524
        %v8526 = vpop.f32.mrb[0].mxu0
        %8527 = vmatprep.mubr.f32.mxu0 0.0
        %8528 = vmatmul.mubr.f32.gmra.mrb[0].mxu0 %v8111
        %v8529 = vpop.f32.mrb[0].mxu0
        %v8530 = vadd.f32 %v8305, %v8529
        %v8531 = vpop.f32.mrb[0].mxu0
        %8532 = vmatprep.mubr.f32.mxu0 0.0
        %8533 = vmatmul.mubr.f32.gmra.mrb[0].mxu0 %v8114
        %v8534 = vpop.f32.mrb[0].mxu0
        %v8535 = vadd.f32 %v8310, %v8534
        %v8536 = vpop.f32.mrb[0].mxu0
        %8537 = vmatprep.mubr.f32.mxu0 0.0
        %8538 = vmatmul.mubr.f32.gmra.mrb[0].mxu0 %v8117
        %v8539 = vpop.f32.mrb[0].mxu0
        %v8540 = vadd.f32 %v8315, %v8539
        %v8541 = vpop.f32.mrb[0].mxu0
        %8542 = vmatprep.mubr.f32.mxu0 0.0
        %8543 = vmatmul.mubr.f32.gmra.mrb[0].mxu0 %v8120
        %v8544 = vpop.f32.mrb[0].mxu0
        %v8545 = vadd.f32 %v8320, %v8544
        %v8546 = vpop.f32.mrb[0].mxu0
        %8547 = vmatprep.mubr.f32.mxu0 0.0
        %8548 = vmatmul.mubr.f32.gmra.mrb[0].mxu0 %v8123
        %v8549 = vpop.f32.mrb[0].mxu0
        %v8550 = vadd.f32 %v8325, %v8549
        %v8551 = vpop.f32.mrb[0].mxu0
        %8552 = vmatprep.mubr.f32.mxu0 0.0
        %8553 = vmatmul.mubr.f32.gmra.mrb[0].mxu0 %v8126
        %v8554 = vpop.f32.mrb[0].mxu0
        %v8555 = vadd.f32 %v8330, %v8554
        %v8556 = vpop.f32.mrb[0].mxu0
        %8557 = vmatprep.mubr.f32.mxu0 0.0
        %8558 = vmatmul.mubr.f32.gmra.mrb[0].mxu0 %v8129
        %v8559 = vpop.f32.mrb[0].mxu0
        %v8560 = vadd.f32 %v8335, %v8559
        %v8561 = vpop.f32.mrb[0].mxu0
        %8562 = vmatprep.mubr.f32.mxu0 0.0
        %8563 = vmatmul.mubr.f32.gmra.mrb[0].mxu0 %v8132
        %v8564 = vpop.f32.mrb[0].mxu0
        %v8565 = vadd.f32 %v8340, %v8564
        %v8566 = vpop.f32.mrb[0].mxu0
        %8567 = vmatprep.mubr.f32.mxu0 0.0
        %8568 = vmatmul.mubr.f32.gmra.mrb[0].mxu0 %v8135
        %v8569 = vpop.f32.mrb[0].mxu0
        %v8570 = vadd.f32 %v8345, %v8569
        %v8571 = vpop.f32.mrb[0].mxu0
        %8572 = vmatprep.mubr.f32.mxu0 0.0
        %8573 = vmatmul.mubr.f32.gmra.mrb[0].mxu0 %v8138
        %v8574 = vpop.f32.mrb[0].mxu0
        %v8575 = vadd.f32 %v8350, %v8574
        %v8576 = vpop.f32.mrb[0].mxu0
        %8577 = vmatprep.mubr.f32.mxu0 0.0
        %8578 = vmatmul.mubr.f32.gmra.mrb[0].mxu0 %v8141
        %v8579 = vpop.f32.mrb[0].mxu0
        %v8580 = vadd.f32 %v8355, %v8579
        %v8581 = vpop.f32.mrb[0].mxu0
        %8582 = vmatprep.mubr.f32.mxu0 0.0
        %8583 = vmatmul.mubr.f32.gmra.mrb[0].mxu0 %v8144
        %v8584 = vpop.f32.mrb[0].mxu0
        %v8585 = vadd.f32 %v8360, %v8584
        %v8586 = vpop.f32.mrb[0].mxu0
        %8587 = vmatprep.mubr.f32.mxu0 0.0
        %8588 = vmatmul.mubr.f32.gmra.mrb[0].mxu0 %v8147
        %v8589 = vpop.f32.mrb[0].mxu0
        %v8590 = vadd.f32 %v8365, %v8589
        %v8591 = vpop.f32.mrb[0].mxu0
        %8592 = vmatprep.mubr.f32.mxu0 0.0
        %8593 = vmatmul.mubr.f32.gmra.mrb[0].mxu0 %v8150
        %v8594 = vpop.f32.mrb[0].mxu0
        %v8595 = vadd.f32 %v8370, %v8594
        %v8596 = vpop.f32.mrb[0].mxu0
        %8597 = vmatprep.mubr.f32.mxu0 0.0
        %8598 = vmatmul.mubr.f32.gmra.mrb[0].mxu0 %v8153
        %v8599 = vpop.f32.mrb[0].mxu0
        %v8600 = vadd.f32 %v8375, %v8599
        %v8601 = vpop.f32.mrb[0].mxu0
        %8602 = vmatprep.mubr.f32.mxu0 0.0
        %8603 = vmatmul.mubr.f32.gmra.mrb[0].mxu0 %v8156
        %v8604 = vpop.f32.mrb[0].mxu0
        %v8605 = vadd.f32 %v8380, %v8604
        %v8606 = vpop.f32.mrb[0].mxu0
        %8607 = vdwg.mxu0
        %v8608 = vmax.f32 %v8450, 0.0
        %v8609 = vmax.f32 %v8455, 0.0
        %v8610 = vmax.f32 %v8460, 0.0
        %v8611 = vmax.f32 %v8465, 0.0
        %v8612 = vmax.f32 %v8470, 0.0
        %v8613 = vmax.f32 %v8475, 0.0
        %v8614 = vmax.f32 %v8480, 0.0
        %v8615 = vmax.f32 %v8485, 0.0
        %v8616 = vmax.f32 %v8490, 0.0
        %v8617 = vmax.f32 %v8495, 0.0
        %v8618 = vmax.f32 %v8500, 0.0
        %v8619 = vmax.f32 %v8505, 0.0
        %v8620 = vmax.f32 %v8510, 0.0
        %v8621 = vmax.f32 %v8515, 0.0
        %v8622 = vmax.f32 %v8520, 0.0
        %v8623 = vmax.f32 %v8525, 0.0
        %v8624 = vmax.f32 %v8530, 0.0
        %v8625 = vmax.f32 %v8535, 0.0
        %v8626 = vmax.f32 %v8540, 0.0
        %v8627 = vmax.f32 %v8545, 0.0
        %v8628 = vmax.f32 %v8550, 0.0
        %v8629 = vmax.f32 %v8555, 0.0
        %v8630 = vmax.f32 %v8560, 0.0
        %v8631 = vmax.f32 %v8565, 0.0
        %v8632 = vmax.f32 %v8570, 0.0
        %v8633 = vmax.f32 %v8575, 0.0
        %v8634 = vmax.f32 %v8580, 0.0
        %v8635 = vmax.f32 %v8585, 0.0
        %v8636 = vmax.f32 %v8590, 0.0
        %v8637 = vmax.f32 %v8595, 0.0
        %v8638 = vmax.f32 %v8600, 0.0
        %v8639 = vmax.f32 %v8605, 0.0
        %8640 = vxpose.xlu0.b32.start [1/16] %v8608, 128
        %8641 = vxpose.xlu0.b32.cont [2/16] %v8609, 128
        %8642 = vxpose.xlu0.b32.cont [3/16] %v8610, 128
        %8643 = vxpose.xlu0.b32.cont [4/16] %v8611, 128
        %8644 = vxpose.xlu0.b32.cont [5/16] %v8612, 128
        %8645 = vxpose.xlu0.b32.cont [6/16] %v8613, 128
        %8646 = vxpose.xlu0.b32.cont [7/16] %v8614, 128
        %8647 = vxpose.xlu0.b32.cont [8/16] %v8615, 128
        %8648 = vxpose.xlu0.b32.cont [9/16] %v8616, 128
        %8649 = vxpose.xlu0.b32.cont [10/16] %v8617, 128
        %8650 = vxpose.xlu0.b32.cont [11/16] %v8618, 128
        %8651 = vxpose.xlu0.b32.cont [12/16] %v8619, 128
        %8652 = vxpose.xlu0.b32.cont [13/16] %v8620, 128
        %8653 = vxpose.xlu0.b32.cont [14/16] %v8621, 128
        %8654 = vxpose.xlu0.b32.cont [15/16] %v8622, 128
        %8655 = vxpose.xlu0.b32.end [16/16] %v8623, 128
        %v8656 = vpop.trf.xlu0
        %v8657 = vpop.trf.xlu0
        %v8658 = vpop.trf.xlu0
        %v8659 = vpop.trf.xlu0
        %v8660 = vpop.trf.xlu0
        %v8661 = vpop.trf.xlu0
        %v8662 = vpop.trf.xlu0
        %v8663 = vpop.trf.xlu0
        %v8664 = vpop.trf.xlu0
        %v8665 = vpop.trf.xlu0
        %v8666 = vpop.trf.xlu0
        %v8667 = vpop.trf.xlu0
        %v8668 = vpop.trf.xlu0
        %v8669 = vpop.trf.xlu0
        %v8670 = vpop.trf.xlu0
        %v8671 = vpop.trf.xlu0
        %8672 = vxpose.xlu0.b32.start [1/16] %v8624, 128
        %8673 = vxpose.xlu0.b32.cont [2/16] %v8625, 128
        %8674 = vxpose.xlu0.b32.cont [3/16] %v8626, 128
        %8675 = vxpose.xlu0.b32.cont [4/16] %v8627, 128
        %8676 = vxpose.xlu0.b32.cont [5/16] %v8628, 128
        %8677 = vxpose.xlu0.b32.cont [6/16] %v8629, 128
        %8678 = vxpose.xlu0.b32.cont [7/16] %v8630, 128
        %8679 = vxpose.xlu0.b32.cont [8/16] %v8631, 128
        %8680 = vxpose.xlu0.b32.cont [9/16] %v8632, 128
        %8681 = vxpose.xlu0.b32.cont [10/16] %v8633, 128
        %8682 = vxpose.xlu0.b32.cont [11/16] %v8634, 128
        %8683 = vxpose.xlu0.b32.cont [12/16] %v8635, 128
        %8684 = vxpose.xlu0.b32.cont [13/16] %v8636, 128
        %8685 = vxpose.xlu0.b32.cont [14/16] %v8637, 128
        %8686 = vxpose.xlu0.b32.cont [15/16] %v8638, 128
        %8687 = vxpose.xlu0.b32.end [16/16] %v8639, 128
        %v8688 = vpop.trf.xlu0
        %v8689 = vpop.trf.xlu0
        %v8690 = vpop.trf.xlu0
        %v8691 = vpop.trf.xlu0
        %v8692 = vpop.trf.xlu0
        %v8693 = vpop.trf.xlu0
        %v8694 = vpop.trf.xlu0
        %v8695 = vpop.trf.xlu0
        %v8696 = vpop.trf.xlu0
        %v8697 = vpop.trf.xlu0
        %v8698 = vpop.trf.xlu0
        %v8699 = vpop.trf.xlu0
        %v8700 = vpop.trf.xlu0
        %v8701 = vpop.trf.xlu0
        %v8702 = vpop.trf.xlu0
        %v8703 = vpop.trf.xlu0
        %8704 = vst [vmem:[%s423] sm:$0xff] %v8656
        %8705 = vst [vmem:[%s423 + $0x8] sm:$0xff] %v8688
        %8706 = vst [vmem:[%s423 + $0x10] sm:$0xff] %v8657
        %8707 = vst [vmem:[%s423 + $0x18] sm:$0xff] %v8689
        %8708 = vst [vmem:[%s423 + $0x20] sm:$0xff] %v8658
        %8709 = vst [vmem:[%s423 + $0x28] sm:$0xff] %v8690
        %8710 = vst [vmem:[%s423 + $0x30] sm:$0xff] %v8659
        %8711 = vst [vmem:[%s423 + $0x38] sm:$0xff] %v8691
        %v8712 = vsel %vm424, %v8608, 0.0
        %v8713 = vsel %vm424, %v8609, 0.0
        %v8714 = vadd.f32 %v8712, %v8713
        %v8715 = vsel %vm424, %v8610, 0.0
        %v8716 = vadd.f32 %v8714, %v8715
        %v8717 = vsel %vm424, %v8611, 0.0
        %v8718 = vadd.f32 %v8716, %v8717
        %v8719 = vsel %vm424, %v8612, 0.0
        %v8720 = vadd.f32 %v8718, %v8719
        %v8721 = vsel %vm424, %v8613, 0.0
        %v8722 = vadd.f32 %v8720, %v8721
        %v8723 = vsel %vm424, %v8614, 0.0
        %v8724 = vadd.f32 %v8722, %v8723
        %v8725 = vsel %vm424, %v8615, 0.0
        %v8726 = vadd.f32 %v8724, %v8725
        %v8727 = vsel %vm424, %v8616, 0.0
        %v8728 = vadd.f32 %v8726, %v8727
        %v8729 = vsel %vm424, %v8617, 0.0
        %v8730 = vadd.f32 %v8728, %v8729
        %v8731 = vsel %vm424, %v8618, 0.0
        %v8732 = vadd.f32 %v8730, %v8731
        %v8733 = vsel %vm424, %v8619, 0.0
        %v8734 = vadd.f32 %v8732, %v8733
        %v8735 = vsel %vm424, %v8620, 0.0
        %v8736 = vadd.f32 %v8734, %v8735
        %v8737 = vsel %vm424, %v8621, 0.0
        %v8738 = vadd.f32 %v8736, %v8737
        %v8739 = vsel %vm424, %v8622, 0.0
        %v8740 = vadd.f32 %v8738, %v8739
        %v8741 = vsel %vm424, %v8623, 0.0
        %v8742 = vadd.f32 %v8740, %v8741
        %v8743 = vsel %vm424, %v8624, 0.0
        %v8744 = vadd.f32 %v8742, %v8743
        %v8745 = vsel %vm424, %v8625, 0.0
        %v8746 = vadd.f32 %v8744, %v8745
        %v8747 = vsel %vm424, %v8626, 0.0
        %v8748 = vadd.f32 %v8746, %v8747
        %v8749 = vsel %vm424, %v8627, 0.0
        %v8750 = vadd.f32 %v8748, %v8749
        %v8751 = vsel %vm424, %v8628, 0.0
        %v8752 = vadd.f32 %v8750, %v8751
        %v8753 = vsel %vm424, %v8629, 0.0
        %v8754 = vadd.f32 %v8752, %v8753
        %v8755 = vsel %vm424, %v8630, 0.0
        %v8756 = vadd.f32 %v8754, %v8755
        %v8757 = vsel %vm424, %v8631, 0.0
        %v8758 = vadd.f32 %v8756, %v8757
        %v8759 = vsel %vm424, %v8632, 0.0
        %v8760 = vadd.f32 %v8758, %v8759
        %v8761 = vsel %vm424, %v8633, 0.0
        %v8762 = vadd.f32 %v8760, %v8761
        %v8763 = vsel %vm424, %v8634, 0.0
        %v8764 = vadd.f32 %v8762, %v8763
        %v8765 = vsel %vm424, %v8635, 0.0
        %v8766 = vadd.f32 %v8764, %v8765
        %v8767 = vsel %vm424, %v8636, 0.0
        %v8768 = vadd.f32 %v8766, %v8767
        %v8769 = vsel %vm424, %v8637, 0.0
        %v8770 = vadd.f32 %v8768, %v8769
        %v8771 = vsel %vm424, %v8638, 0.0
        %v8772 = vadd.f32 %v8770, %v8771
        %v8773 = vsel %vm424, %v8639, 0.0
        %v8774 = vadd.f32 %v8772, %v8773
        %v8775 = vrot.slane %v8774, 4
        %v8776 = vadd.f32 %v8774, %v8775
        %v8777 = vrot.slane %v8776, 2
        %v8778 = vadd.f32 %v8776, %v8777
        %v8779 = vrot.slane %v8778, 1
        %v8780 = vadd.f32 %v8778, %v8779
        %v8781 = vrcp.pop 256.0
        %v8782 = vmul.f32 %v8780, %v8781
        %v8783 = vld [vmem:[%s9] sm:$0xff]
        %v8784 = vld [vmem:[%s9 + $0x8] sm:$0xff]
        %v8785 = vld [vmem:[%s9 + $0x10] sm:$0xff]
        %v8786 = vld [vmem:[%s9 + $0x18] sm:$0xff]
        %v8787 = vld [vmem:[%s10] sm:$0x1]
        %v8789 = vsel %vm424, %v8782, 0
        %8791 = vmatprep.subr.mxu0 0.0
        %8792 = vmatpush1.msra.mxu0 %v8783
        %8793 = vmatprep.subr.mxu0 0.0
        %8794 = vmatpush1.msra.mxu0 %v8784
        %8795 = vmatprep.subr.mxu0 0.0
        %8796 = vmatpush1.msra.mxu0 %v8785
        %8797 = vmatprep.subr.mxu0 0.0
        %8798 = vmatpush1.msra.mxu0 %v8786
        %8799 = vmatprep.subr.mxu0 0.0
        %8800 = vmatpush1.msra.mxu0 0.0
        %8801 = vmatprep.subr.mxu0 0.0
        %8802 = vmatpush1.msra.mxu0 0.0
        %8803 = vmatprep.subr.mxu0 0.0
        %8804 = vmatpush1.msra.mxu0 0.0
        %8805 = vmatprep.subr.mxu0 0.0
        %8806 = vmatpush1.msra.mxu0 0.0
        %8807 = vmatprep.subr.mxu0 0.0
        %8808 = vmatpush1.msra.mxu0 0.0
        %8809 = vmatprep.subr.mxu0 0.0
        %8810 = vmatpush1.msra.mxu0 0.0
        %8811 = vmatprep.subr.mxu0 0.0
        %8812 = vmatpush1.msra.mxu0 0.0
        %8813 = vmatprep.subr.mxu0 0.0
        %8814 = vmatpush1.msra.mxu0 0.0
        %8815 = vmatprep.subr.mxu0 0.0
        %8816 = vmatpush1.msra.mxu0 0.0
        %8817 = vmatprep.subr.mxu0 0.0
        %8818 = vmatpush1.msra.mxu0 0.0
        %8819 = vmatprep.subr.mxu0 0.0
        %8820 = vmatpush1.msra.mxu0 0.0
        %8821 = vmatprep.subr.mxu0 0.0
        %8822 = vmatpush1.msra.mxu0 0.0
        %8823 = vmatprep.subr.mxu0 0.0
        %8824 = vmatpush1.msra.mxu0 0.0
        %8825 = vmatprep.subr.mxu0 0.0
        %8826 = vmatpush1.msra.mxu0 0.0
        %8827 = vmatprep.subr.mxu0 0.0
        %8828 = vmatpush1.msra.mxu0 0.0
        %8829 = vmatprep.subr.mxu0 0.0
        %8830 = vmatpush1.msra.mxu0 0.0
        %8831 = vmatprep.subr.mxu0 0.0
        %8832 = vmatpush1.msra.mxu0 0.0
        %8833 = vmatprep.subr.mxu0 0.0
        %8834 = vmatpush1.msra.mxu0 0.0
        %8835 = vmatprep.subr.mxu0 0.0
        %8836 = vmatpush1.msra.mxu0 0.0
        %8837 = vmatprep.subr.mxu0 0.0
        %8838 = vmatpush1.msra.mxu0 0.0
        %8839 = vmatprep.subr.mxu0 0.0
        %8840 = vmatpush1.msra.mxu0 0.0
        %8841 = vmatprep.subr.mxu0 0.0
        %8842 = vmatpush1.msra.mxu0 0.0
        %8843 = vmatprep.subr.mxu0 0.0
        %8844 = vmatpush1.msra.mxu0 0.0
        %8845 = vmatprep.subr.mxu0 0.0
        %8846 = vmatpush1.msra.mxu0 0.0
        %8847 = vmatprep.subr.mxu0 0.0
        %8848 = vmatpush1.msra.mxu0 0.0
        %8849 = vmatprep.subr.mxu0 0.0
        %8850 = vmatpush1.msra.mxu0 0.0
        %8851 = vmatprep.subr.mxu0 0.0
        %8852 = vmatpush1.msra.mxu0 0.0
        %8853 = vmatprep.subr.mxu0 0.0
        %8854 = vmatpush1.msra.mxu0 0.0
        %8855 = vmatprep.mubr.f32.mxu0 0.0
        %8856 = vmatmul.mubr.f32.gmra.mrb[0].mxu0 %v8789
        %v8857 = vpop.f32.mrb[0].mxu0
        %v8858 = vadd.f32 %v8787, %v8857
        %v8859 = vpop.f32.mrb[0].mxu0
        %8860 = vdwg.mxu0
        %vm8861 = vcmask 73728
        %8862 = vst.msk [vmem:[%s406] sm:$0x1] %vm8861, %v8858
        %s8863 = sand.u32 %s271, 1
        %s8864 = scalar_lea.sflag [#allocation5], %s8863
        %s8865 = sand.u32 %s271, 1
        %s8866 = scalar_lea.vmem [#allocation4], %s8865
        %p8867 = scmp.lt.s32.totalorder %s27, 1
        %s8868 = scalar_select %p8867, %s27, 1
        %s8869 = smul.addr %s8868, 8
        %s8870 = smul.addr %s8869, 8
        %s8871 = scalar_lea.vmem %s12, %s8870
        // Predicated region
        $region65: #{gradcam_forward.1} parent=63 // pred_check
          %p8872 = pneg %p281
        $region66: #{gradcam_forward.1} parent=63 // pred_check_branch
          %8874 = sbr.rel (%p8872) target = $region68
        $region67: #{gradcam_forward.1} parent=63 // pred_region
          %s8876 = ssub.s32 16, 16
          %8877 = vsyncadd %s8864, %s8876
          %s8878 = smul.addr %s27, 16
          %s8879 = scalar_lea.hbm %s11, %s8878
          %s8881 = sshll.u32 %s8866, 4
          %s8882 = int_to_ptr.vmem [resolvable:$true] %s8881
          %8884 = dma.vmem_to_hbm [thread:$0]  %s8882, 16, %s8879, %s8864
        $region68: #{gradcam_forward.1} parent=63 // pred_fallthru
          _
        // Predicated region
        $region69: #{gradcam_forward.1} parent=63 // pred_check
          %p8885 = pneg %p307
        $region70: #{gradcam_forward.1} parent=63 // pred_check_branch
          %8887 = sbr.rel (%p8885) target = $region72
        $region71: #{gradcam_forward.1} parent=63 // pred_region
          _
        $region72: #{gradcam_forward.1} parent=63 // pred_fallthru
          _
      $region64: #{gradcam_forward.1} parent=5 // pred_fallthru
        _
      %p8888 = scmp.le.s32.totalorder 2, %s22
      // Predicated region
      $region73: #{gradcam_forward.1} parent=5 // pred_check
        %p8889 = pneg %p8888
      $region74: #{gradcam_forward.1} parent=5 // pred_check_branch
        %8891 = sbr.rel (%p8889) target = $region76
      $region75: #{gradcam_forward.1} parent=5 // pred_region
        %s8892 = ssub.s32 %s22, 2
        // Predicated region
        $region77: #{gradcam_forward.1} parent=75 // pred_check
          %p8893 = pneg %p287
        $region78: #{gradcam_forward.1} parent=75 // pred_check_branch
          %8895 = sbr.rel (%p8893) target = $region80
        $region79: #{gradcam_forward.1} parent=75 // pred_region
          %s8896 = sand.u32 %s272, 1
          %s8897 = scalar_lea.sflag [#allocation5], %s8896
          %s8898 = sand.u32 %s272, 1
          %s8899 = scalar_lea.vmem [#allocation4], %s8898
          %8900 = dma.done %s8897, 16
        $region80: #{gradcam_forward.1} parent=75 // pred_fallthru
          _
        // Predicated region
        $region81: #{gradcam_forward.1} parent=75 // pred_check
          %p8901 = pneg %p313
        $region82: #{gradcam_forward.1} parent=75 // pred_check_branch
          %8903 = sbr.rel (%p8901) target = $region84
        $region83: #{gradcam_forward.1} parent=75 // pred_region
          %p8904 = scmp.lt.s32.totalorder %s28, 1
          %s8905 = scalar_select %p8904, %s28, 1
          %s8906 = smul.addr %s8905, 8
          %s8907 = smul.addr %s8906, 8
          %s8908 = scalar_lea.vmem %s12, %s8907
        $region84: #{gradcam_forward.1} parent=75 // pred_fallthru
          _
      $region76: #{gradcam_forward.1} parent=5 // pred_fallthru
        _
    $region6: #{gradcam_forward.1} parent=1 // loop_footer
      %s26 = sadd.s32 1, %s22
    $region7: #{gradcam_forward.1} parent=1 // loop_footer_branch
      %21 = sbr.rel target = $region3
    $region8: #{gradcam_forward.1} parent=1 // loop_exit
      _
    %8909 = vsyncpa [#allocation5], 1
    %s8910 = scalar_lea.sflag [#allocation5], 1
    %8911 = vsyncpa %s8910, 1

</llo_original>
